<compile_context>
chip_gen: v7x
topology: tpu7x:2x2x1
jax: 0.10.0
libtpu: 0.0.40
codegen_flags: <defaults>
</compile_context>

<pallas_src>
import jax
import jax.numpy as jnp
from jax.experimental import pallas as pl
from jax.experimental.pallas import tpu as pltpu

LANE = 128


def _pick_band(hwp, hi=96):
    """Largest multiple-of-8 divisor of hwp that is <= hi (keeps acc in vregs)."""
    for b in range(min(hi, hwp), 7, -1):
        if hwp % b == 0 and b % 8 == 0:
            return b
    return hwp


def _make_kernel(H, W, Cp, BAND):
    Wp = W + 2                    # padded row width
    HWp = H * Wp                  # rows of the flat conv-output space
    MID_ROWS = (H + 2) * Wp + 2   # padded mid rows (+2 overrun rows for last tap)
    NB = HWp // BAND
    assert NB * BAND == HWp
    TAPS = [(kh, kw) for kh in range(3) for kw in range(3)]

    def kernel(x_ref, mask_ref, w1_ref, w2_ref, b1_ref, b2_ref, o_ref, mid_ref):
        # x_ref:   (1, (H+3)*Wp, Cp) bf16  spatially+channel padded, flat, pre-cast
        # mask_ref:(HWp, 1)         f32   1.0 on valid output rows (w < W), else 0.0
        # w*_ref:  (3, 3, Cp, Cp)   bf16  HWIO weights, BN scale pre-folded
        # b*_ref:  (1, Cp)          f32   folded BN bias
        # o_ref:   (1, HWp, Cp)     f32   flat output (lane-dense, Cp = 128)
        # mid_ref: (MID_ROWS, Cp)   bf16  zero-haloed intermediate activation

        # Zero only the 1-pixel halo rows of the bf16 mid buffer (tiny). Done every
        # grid step so each megacore's private scratch is always initialized.
        mid_ref[0:Wp + 1, :] = jnp.zeros((Wp + 1, Cp), jnp.bfloat16)
        mid_ref[Wp + 1 + HWp:MID_ROWS, :] = jnp.zeros(
            (MID_ROWS - (Wp + 1 + HWp), Cp), jnp.bfloat16)

        def conv_band(load_patch, w_ref, start):
            # 9 taps as a vreg-resident f32 accumulation chain (no per-tap VMEM
            # accumulator traffic); all row offsets are static constants.
            acc = None
            for kh, kw in TAPS:
                patch = load_patch(start + kh * Wp + kw)          # bf16 operand
                d = jnp.dot(patch, w_ref[kh, kw],
                            preferred_element_type=jnp.float32)
                acc = d if acc is None else acc + d
            return acc

        # ---- conv1 + bn1 (scale folded) + relu, banded; mid staged once as bf16 ----
        for b in range(NB):              # static unroll: offsets stay compile-time
            start = b * BAND
            acc = conv_band(lambda r: x_ref[0, pl.ds(r, BAND), :], w1_ref, start)
            mid = jnp.maximum(acc + b1_ref[...], 0.0)
            mid = mid * mask_ref[pl.ds(start, BAND), :]   # zero halo-garbage rows
            mid_ref[pl.ds(Wp + 1 + start, BAND), :] = mid.astype(jnp.bfloat16)

        # ---- conv2 + bn2 + residual + relu (needs full mid, hence separate loop) ----
        for b in range(NB):
            start = b * BAND
            acc = conv_band(lambda r: mid_ref[pl.ds(r, BAND), :], w2_ref, start)
            identity = x_ref[0, pl.ds(Wp + 1 + start, BAND), :].astype(jnp.float32)
            out = jnp.maximum(acc + b2_ref[...] + identity, 0.0)
            o_ref[0, pl.ds(start, BAND), :] = out.astype(o_ref.dtype)

    return kernel


def basic_block_forward(x_nchw, params):
    """x_nchw: (N, C, H, W) float32. Returns (N, C, H, W)."""
    w1, w2, s1, b1, s2, b2 = params
    N, C, H, W = x_nchw.shape
    Wp = W + 2
    HWp = H * Wp
    Cp = max(LANE, ((C + LANE - 1) // LANE) * LANE)
    XROWS = (H + 3) * Wp            # H + 2 halo rows + 1 extra zero row (tap overrun)
    MID_ROWS = (H + 2) * Wp + 2
    BAND = _pick_band(HWp)

    # Layout glue: NCHW -> NHWC, one pad for spatial halo + channel lane-padding,
    # flatten (H, W) so conv taps become contiguous row-offset loads in-kernel,
    # and a single cast to bf16 (halves the per-step activation DMA).
    # TODO(synk): when chaining blocks, keep activations in this padded flat bf16
    #             (rows, Cp) layout across blocks instead of re-doing the
    #             transpose/pad/reshape/slice per block.
    x_nhwc = jnp.transpose(x_nchw, (0, 2, 3, 1))
    xpad = jnp.pad(x_nhwc, ((0, 0), (1, 2), (1, 1), (0, Cp - C)))
    xflat = xpad.reshape(N, XROWS, Cp).astype(jnp.bfloat16)

    # Validity mask over flat output rows: row r = h*Wp + w is valid iff w < W.
    col = jnp.arange(HWp, dtype=jnp.int32) % Wp
    mask = (col < W).astype(jnp.float32).reshape(HWp, 1)

    # Fold BN (inference mode): scale into the bf16 conv weights, bias stays f32.
    wpad = ((0, 0), (0, 0), (0, Cp - C), (0, Cp - C))
    w1p = jnp.pad(w1 * s1[None, None, None, :], wpad).astype(jnp.bfloat16)
    w2p = jnp.pad(w2 * s2[None, None, None, :], wpad).astype(jnp.bfloat16)
    b1r = jnp.pad(b1, (0, Cp - C)).reshape(1, Cp)
    b2r = jnp.pad(b2, (0, Cp - C)).reshape(1, Cp)

    kernel = _make_kernel(H, W, Cp, BAND)

    flops = 2 * 2 * 9 * N * HWp * Cp * Cp                      # two convs
    bytes_accessed = (N * XROWS * Cp * 2                        # x (bf16)
                      + N * HWp * Cp * 4                        # out (f32)
                      + (w1p.size + w2p.size) * 2               # weights (bf16)
                      + 2 * Cp * 4 + HWp * 4)                   # biases + mask

    out_flat = pl.pallas_call(
        kernel,
        out_shape=jax.ShapeDtypeStruct((N, HWp, Cp), x_nchw.dtype),
        grid_spec=pltpu.PrefetchScalarGridSpec(
            num_scalar_prefetch=0,
            grid=(N,),
            in_specs=[
                pl.BlockSpec((1, XROWS, Cp), lambda n: (n, 0, 0)),     # xflat (bf16)
                pl.BlockSpec((HWp, 1), lambda n: (0, 0)),              # row mask
                pl.BlockSpec((3, 3, Cp, Cp), lambda n: (0, 0, 0, 0)),  # w1 (bf16)
                pl.BlockSpec((3, 3, Cp, Cp), lambda n: (0, 0, 0, 0)),  # w2 (bf16)
                pl.BlockSpec((1, Cp), lambda n: (0, 0)),               # bias1
                pl.BlockSpec((1, Cp), lambda n: (0, 0)),               # bias2
            ],
            out_specs=pl.BlockSpec((1, HWp, Cp), lambda n: (n, 0, 0)),
            scratch_shapes=[
                pltpu.VMEM((MID_ROWS, Cp), jnp.bfloat16),   # zero-haloed bf16 mid
            ],
        ),
        compiler_params=pltpu.CompilerParams(
            dimension_semantics=("parallel",)),
        cost_estimate=pl.CostEstimate(
            flops=flops, transcendentals=0, bytes_accessed=bytes_accessed),
    )(xflat, mask, w1p, w2p, b1r, b2r)

    out_nhwc = out_flat.reshape(N, H, Wp, Cp)[:, :, :W, :C]
    return jnp.transpose(out_nhwc, (0, 3, 1, 2))


def _reference_forward(x_nchw, params):
    """Pure-JAX f32 reference (lax.conv) for numeric validation."""
    w1, w2, s1, b1, s2, b2 = params
    dn = ("NHWC", "HWIO", "NHWC")
    x = jnp.transpose(x_nchw, (0, 2, 3, 1))
    y = jax.lax.conv_general_dilated(x, w1, (1, 1), "SAME", dimension_numbers=dn)
    y = jnp.maximum(y * s1 + b1, 0.0)
    y = jax.lax.conv_general_dilated(y, w2, (1, 1), "SAME", dimension_numbers=dn)
    y = jnp.maximum(y * s2 + b2 + x, 0.0)
    return jnp.transpose(y, (0, 3, 1, 2))


def make_params(key, c):
    """Deterministic BasicBlock params (inplanes == planes == c, stride=1)."""
    k1, k2, k3, k4, k5, k6, k7, k8 = jax.random.split(key, 8)
    eps = 1e-5
    # conv weights in HWIO layout: (kh, kw, in, out)
    w1 = jax.random.normal(k1, (3, 3, c, c), jnp.float32) * 0.1
    w2 = jax.random.normal(k2, (3, 3, c, c), jnp.float32) * 0.1
    # BatchNorm params / running stats (inference mode), folded:
    g1 = 1.0 + 0.1 * jax.random.normal(k3, (c,), jnp.float32)
    beta1 = 0.1 * jax.random.normal(k4, (c,), jnp.float32)
    m1 = 0.05 * jax.random.normal(k5, (c,), jnp.float32)
    v1 = jnp.abs(1.0 + 0.1 * jax.random.normal(k6, (c,), jnp.float32))
    g2 = 1.0 + 0.1 * jax.random.normal(k7, (c,), jnp.float32)
    beta2 = 0.1 * jax.random.normal(k8, (c,), jnp.float32)
    m2 = jnp.zeros((c,), jnp.float32)
    v2 = jnp.ones((c,), jnp.float32)

    s1 = g1 / jnp.sqrt(v1 + eps)
    b1 = beta1 - m1 * s1
    s2 = g2 / jnp.sqrt(v2 + eps)
    b2 = beta2 - m2 * s2
    return (w1, w2, s1, b1, s2, b2)


if __name__ == "__main__":
    key = jax.random.PRNGKey(0)
    kx, kp = jax.random.split(key)

    N, C, H, W = 2, 8, 16, 16  # inplanes == planes == 8, stride=1, no downsample
    x = jax.random.normal(kx, (N, C, H, W), jnp.float32)
    params = make_params(kp, C)

    fwd = jax.jit(basic_block_forward)
    out = jax.block_until_ready(fwd(x, params))
    ref = jax.block_until_ready(_reference_forward(x, params))

    assert out.shape == (N, C, H, W)
    assert bool(jnp.all(out >= 0.0))  # final ReLU
    max_err = float(jnp.max(jnp.abs(out - ref)))
    # bf16 MXU operands + bf16-staged input/mid/residual with f32 accumulation:
    # validated against the full-f32 reference with a bf16-commensurate tolerance.
    assert max_err < 6e-2, f"max abs error vs f32 reference too large: {max_err}"
    print("KERNEL_OK")
</pallas_src>

<mosaic_0001>
module attributes {stable_mosaic.version = 11 : i64} {
  func.func @kernel(%arg0: i32, %arg1: memref<1x342x128xbf16, #tpu.memory_space<vmem>>, %arg2: memref<288x1xf32, #tpu.memory_space<vmem>>, %arg3: memref<3x3x128x128xbf16, #tpu.memory_space<vmem>>, %arg4: memref<3x3x128x128xbf16, #tpu.memory_space<vmem>>, %arg5: memref<1x128xf32, #tpu.memory_space<vmem>>, %arg6: memref<1x128xf32, #tpu.memory_space<vmem>>, %arg7: memref<1x288x128xf32, #tpu.memory_space<vmem>>, %arg8: memref<326x128xbf16, #tpu.memory_space<vmem>>) attributes {dimension_semantics = [#tpu.dimension_semantics<parallel>], iteration_bounds = array<i64: 2>, scalar_prefetch = 0 : i64, scratch_operands = 1 : i64, tpu.core_type = #tpu.core_type<tc>, window_params = [{transform_indices = @transform_0, window_bounds = array<i64: 1, 342, 128>}, {pipeline_mode = #tpu.pipeline_mode<synchronous>, transform_indices = @transform_1, window_bounds = array<i64: 288, 1>}, {pipeline_mode = #tpu.pipeline_mode<synchronous>, transform_indices = @transform_2, window_bounds = array<i64: 3, 3, 128, 128>}, {pipeline_mode = #tpu.pipeline_mode<synchronous>, transform_indices = @transform_3, window_bounds = array<i64: 3, 3, 128, 128>}, {pipeline_mode = #tpu.pipeline_mode<synchronous>, transform_indices = @transform_4, window_bounds = array<i64: 1, 128>}, {pipeline_mode = #tpu.pipeline_mode<synchronous>, transform_indices = @transform_5, window_bounds = array<i64: 1, 128>}, {transform_indices = @transform_6, window_bounds = array<i64: 1, 288, 128>}]} {
    %cst = arith.constant 0.000000e+00 : bf16
    %0 = vector.broadcast %cst : bf16 to vector<19x128xbf16>
    %c0 = arith.constant 0 : index
    %c0_0 = arith.constant 0 : index
    %1 = vector.load %arg8[%c0, %c0_0] : memref<326x128xbf16, #tpu.memory_space<vmem>>, vector<19x128xbf16>
    tpu.vector_store %arg8[%c0, %c0_0], %0 {strides = array<i32>} : memref<326x128xbf16, #tpu.memory_space<vmem>>, vector<19x128xbf16>,
    %cst_1 = arith.constant 0.000000e+00 : bf16
    %2 = vector.broadcast %cst_1 : bf16 to vector<19x128xbf16>
    %c307 = arith.constant 307 : index
    %c0_2 = arith.constant 0 : index
    %3 = vector.load %arg8[%c307, %c0_2] : memref<326x128xbf16, #tpu.memory_space<vmem>>, vector<19x128xbf16>
    tpu.vector_store %arg8[%c307, %c0_2], %2 {strides = array<i32>} : memref<326x128xbf16, #tpu.memory_space<vmem>>, vector<19x128xbf16>,
    %c0_3 = arith.constant 0 : index
    %c0_4 = arith.constant 0 : index
    %c0_5 = arith.constant 0 : index
    %4 = vector.load %arg1[%c0_3, %c0_4, %c0_5] : memref<1x342x128xbf16, #tpu.memory_space<vmem>>, vector<1x96x128xbf16>
    %5 = vector.shape_cast %4 : vector<1x96x128xbf16> to vector<96x128xbf16>
    %c0_6 = arith.constant 0 : index
    %c0_7 = arith.constant 0 : index
    %c0_8 = arith.constant 0 : index
    %c0_9 = arith.constant 0 : index
    %6 = vector.load %arg3[%c0_6, %c0_7, %c0_8, %c0_9] : memref<3x3x128x128xbf16, #tpu.memory_space<vmem>>, vector<1x1x128x128xbf16>
    %7 = vector.shape_cast %6 : vector<1x1x128x128xbf16> to vector<128x128xbf16>
    %cst_10 = arith.constant dense<0.000000e+00> : vector<96x128xf32>
    %8 = tpu.matmul %5, %7, %cst_10 {dimension_numbers = #tpu.dot_dimension_numbers<[1], [0], [0], [1], [0, 0, 1, 1], [], []>} : vector<96x128xbf16>, vector<128x128xbf16>, vector<96x128xf32> -> vector<96x128xf32>
    %c0_11 = arith.constant 0 : index
    %c1 = arith.constant 1 : index
    %c0_12 = arith.constant 0 : index
    %9 = vector.load %arg1[%c0_11, %c1, %c0_12] : memref<1x342x128xbf16, #tpu.memory_space<vmem>>, vector<1x96x128xbf16>
    %10 = vector.shape_cast %9 : vector<1x96x128xbf16> to vector<96x128xbf16>
    %c0_13 = arith.constant 0 : index
    %c1_14 = arith.constant 1 : index
    %c0_15 = arith.constant 0 : index
    %c0_16 = arith.constant 0 : index
    %11 = vector.load %arg3[%c0_13, %c1_14, %c0_15, %c0_16] : memref<3x3x128x128xbf16, #tpu.memory_space<vmem>>, vector<1x1x128x128xbf16>
    %12 = vector.shape_cast %11 : vector<1x1x128x128xbf16> to vector<128x128xbf16>
    %cst_17 = arith.constant dense<0.000000e+00> : vector<96x128xf32>
    %13 = tpu.matmul %10, %12, %cst_17 {dimension_numbers = #tpu.dot_dimension_numbers<[1], [0], [0], [1], [0, 0, 1, 1], [], []>} : vector<96x128xbf16>, vector<128x128xbf16>, vector<96x128xf32> -> vector<96x128xf32>
    %14 = arith.addf %8, %13 : vector<96x128xf32>
    %c0_18 = arith.constant 0 : index
    %c2 = arith.constant 2 : index
    %c0_19 = arith.constant 0 : index
    %15 = vector.load %arg1[%c0_18, %c2, %c0_19] : memref<1x342x128xbf16, #tpu.memory_space<vmem>>, vector<1x96x128xbf16>
    %16 = vector.shape_cast %15 : vector<1x96x128xbf16> to vector<96x128xbf16>
    %c0_20 = arith.constant 0 : index
    %c2_21 = arith.constant 2 : index
    %c0_22 = arith.constant 0 : index
    %c0_23 = arith.constant 0 : index
    %17 = vector.load %arg3[%c0_20, %c2_21, %c0_22, %c0_23] : memref<3x3x128x128xbf16, #tpu.memory_space<vmem>>, vector<1x1x128x128xbf16>
    %18 = vector.shape_cast %17 : vector<1x1x128x128xbf16> to vector<128x128xbf16>
    %cst_24 = arith.constant dense<0.000000e+00> : vector<96x128xf32>
    %19 = tpu.matmul %16, %18, %cst_24 {dimension_numbers = #tpu.dot_dimension_numbers<[1], [0], [0], [1], [0, 0, 1, 1], [], []>} : vector<96x128xbf16>, vector<128x128xbf16>, vector<96x128xf32> -> vector<96x128xf32>
    %20 = arith.addf %14, %19 : vector<96x128xf32>
    %c0_25 = arith.constant 0 : index
    %c18 = arith.constant 18 : index
    %c0_26 = arith.constant 0 : index
    %21 = vector.load %arg1[%c0_25, %c18, %c0_26] : memref<1x342x128xbf16, #tpu.memory_space<vmem>>, vector<1x96x128xbf16>
    %22 = vector.shape_cast %21 : vector<1x96x128xbf16> to vector<96x128xbf16>
    %c1_27 = arith.constant 1 : index
    %c0_28 = arith.constant 0 : index
    %c0_29 = arith.constant 0 : index
    %c0_30 = arith.constant 0 : index
    %23 = vector.load %arg3[%c1_27, %c0_28, %c0_29, %c0_30] : memref<3x3x128x128xbf16, #tpu.memory_space<vmem>>, vector<1x1x128x128xbf16>
    %24 = vector.shape_cast %23 : vector<1x1x128x128xbf16> to vector<128x128xbf16>
    %cst_31 = arith.constant dense<0.000000e+00> : vector<96x128xf32>
    %25 = tpu.matmul %22, %24, %cst_31 {dimension_numbers = #tpu.dot_dimension_numbers<[1], [0], [0], [1], [0, 0, 1, 1], [], []>} : vector<96x128xbf16>, vector<128x128xbf16>, vector<96x128xf32> -> vector<96x128xf32>
    %26 = arith.addf %20, %25 : vector<96x128xf32>
    %c0_32 = arith.constant 0 : index
    %c19 = arith.constant 19 : index
    %c0_33 = arith.constant 0 : index
    %27 = vector.load %arg1[%c0_32, %c19, %c0_33] : memref<1x342x128xbf16, #tpu.memory_space<vmem>>, vector<1x96x128xbf16>
    %28 = vector.shape_cast %27 : vector<1x96x128xbf16> to vector<96x128xbf16>
    %c1_34 = arith.constant 1 : index
    %c1_35 = arith.constant 1 : index
    %c0_36 = arith.constant 0 : index
    %c0_37 = arith.constant 0 : index
    %29 = vector.load %arg3[%c1_34, %c1_35, %c0_36, %c0_37] : memref<3x3x128x128xbf16, #tpu.memory_space<vmem>>, vector<1x1x128x128xbf16>
    %30 = vector.shape_cast %29 : vector<1x1x128x128xbf16> to vector<128x128xbf16>
    %cst_38 = arith.constant dense<0.000000e+00> : vector<96x128xf32>
    %31 = tpu.matmul %28, %30, %cst_38 {dimension_numbers = #tpu.dot_dimension_numbers<[1], [0], [0], [1], [0, 0, 1, 1], [], []>} : vector<96x128xbf16>, vector<128x128xbf16>, vector<96x128xf32> -> vector<96x128xf32>
    %32 = arith.addf %26, %31 : vector<96x128xf32>
    %c0_39 = arith.constant 0 : index
    %c20 = arith.constant 20 : index
    %c0_40 = arith.constant 0 : index
    %33 = vector.load %arg1[%c0_39, %c20, %c0_40] : memref<1x342x128xbf16, #tpu.memory_space<vmem>>, vector<1x96x128xbf16>
    %34 = vector.shape_cast %33 : vector<1x96x128xbf16> to vector<96x128xbf16>
    %c1_41 = arith.constant 1 : index
    %c2_42 = arith.constant 2 : index
    %c0_43 = arith.constant 0 : index
    %c0_44 = arith.constant 0 : index
    %35 = vector.load %arg3[%c1_41, %c2_42, %c0_43, %c0_44] : memref<3x3x128x128xbf16, #tpu.memory_space<vmem>>, vector<1x1x128x128xbf16>
    %36 = vector.shape_cast %35 : vector<1x1x128x128xbf16> to vector<128x128xbf16>
    %cst_45 = arith.constant dense<0.000000e+00> : vector<96x128xf32>
    %37 = tpu.matmul %34, %36, %cst_45 {dimension_numbers = #tpu.dot_dimension_numbers<[1], [0], [0], [1], [0, 0, 1, 1], [], []>} : vector<96x128xbf16>, vector<128x128xbf16>, vector<96x128xf32> -> vector<96x128xf32>
    %38 = arith.addf %32, %37 : vector<96x128xf32>
    %c0_46 = arith.constant 0 : index
    %c36 = arith.constant 36 : index
    %c0_47 = arith.constant 0 : index
    %39 = vector.load %arg1[%c0_46, %c36, %c0_47] : memref<1x342x128xbf16, #tpu.memory_space<vmem>>, vector<1x96x128xbf16>
    %40 = vector.shape_cast %39 : vector<1x96x128xbf16> to vector<96x128xbf16>
    %c2_48 = arith.constant 2 : index
    %c0_49 = arith.constant 0 : index
    %c0_50 = arith.constant 0 : index
    %c0_51 = arith.constant 0 : index
    %41 = vector.load %arg3[%c2_48, %c0_49, %c0_50, %c0_51] : memref<3x3x128x128xbf16, #tpu.memory_space<vmem>>, vector<1x1x128x128xbf16>
    %42 = vector.shape_cast %41 : vector<1x1x128x128xbf16> to vector<128x128xbf16>
    %cst_52 = arith.constant dense<0.000000e+00> : vector<96x128xf32>
    %43 = tpu.matmul %40, %42, %cst_52 {dimension_numbers = #tpu.dot_dimension_numbers<[1], [0], [0], [1], [0, 0, 1, 1], [], []>} : vector<96x128xbf16>, vector<128x128xbf16>, vector<96x128xf32> -> vector<96x128xf32>
    %44 = arith.addf %38, %43 : vector<96x128xf32>
    %c0_53 = arith.constant 0 : index
    %c37 = arith.constant 37 : index
    %c0_54 = arith.constant 0 : index
    %45 = vector.load %arg1[%c0_53, %c37, %c0_54] : memref<1x342x128xbf16, #tpu.memory_space<vmem>>, vector<1x96x128xbf16>
    %46 = vector.shape_cast %45 : vector<1x96x128xbf16> to vector<96x128xbf16>
    %c2_55 = arith.constant 2 : index
    %c1_56 = arith.constant 1 : index
    %c0_57 = arith.constant 0 : index
    %c0_58 = arith.constant 0 : index
    %47 = vector.load %arg3[%c2_55, %c1_56, %c0_57, %c0_58] : memref<3x3x128x128xbf16, #tpu.memory_space<vmem>>, vector<1x1x128x128xbf16>
    %48 = vector.shape_cast %47 : vector<1x1x128x128xbf16> to vector<128x128xbf16>
    %cst_59 = arith.constant dense<0.000000e+00> : vector<96x128xf32>
    %49 = tpu.matmul %46, %48, %cst_59 {dimension_numbers = #tpu.dot_dimension_numbers<[1], [0], [0], [1], [0, 0, 1, 1], [], []>} : vector<96x128xbf16>, vector<128x128xbf16>, vector<96x128xf32> -> vector<96x128xf32>
    %50 = arith.addf %44, %49 : vector<96x128xf32>
    %c0_60 = arith.constant 0 : index
    %c38 = arith.constant 38 : index
    %c0_61 = arith.constant 0 : index
    %51 = vector.load %arg1[%c0_60, %c38, %c0_61] : memref<1x342x128xbf16, #tpu.memory_space<vmem>>, vector<1x96x128xbf16>
    %52 = vector.shape_cast %51 : vector<1x96x128xbf16> to vector<96x128xbf16>
    %c2_62 = arith.constant 2 : index
    %c2_63 = arith.constant 2 : index
    %c0_64 = arith.constant 0 : index
    %c0_65 = arith.constant 0 : index
    %53 = vector.load %arg3[%c2_62, %c2_63, %c0_64, %c0_65] : memref<3x3x128x128xbf16, #tpu.memory_space<vmem>>, vector<1x1x128x128xbf16>
    %54 = vector.shape_cast %53 : vector<1x1x128x128xbf16> to vector<128x128xbf16>
    %cst_66 = arith.constant dense<0.000000e+00> : vector<96x128xf32>
    %55 = tpu.matmul %52, %54, %cst_66 {dimension_numbers = #tpu.dot_dimension_numbers<[1], [0], [0], [1], [0, 0, 1, 1], [], []>} : vector<96x128xbf16>, vector<128x128xbf16>, vector<96x128xf32> -> vector<96x128xf32>
    %56 = arith.addf %50, %55 : vector<96x128xf32>
    %c0_67 = arith.constant 0 : index
    %c0_68 = arith.constant 0 : index
    %57 = vector.load %arg5[%c0_67, %c0_68] : memref<1x128xf32, #tpu.memory_space<vmem>>, vector<1x128xf32>
    %58 = vector.broadcast %57 : vector<1x128xf32> to vector<96x128xf32>
    %59 = arith.addf %56, %58 : vector<96x128xf32>
    %cst_69 = arith.constant 0.000000e+00 : f32
    %60 = vector.broadcast %cst_69 : f32 to vector<96x128xf32>
    %61 = arith.maximumf %59, %60 : vector<96x128xf32>
    %c0_70 = arith.constant 0 : index
    %c0_71 = arith.constant 0 : index
    %62 = vector.load %arg2[%c0_70, %c0_71] : memref<288x1xf32, #tpu.memory_space<vmem>>, vector<96x1xf32>
    %63 = vector.broadcast %62 : vector<96x1xf32> to vector<96x128xf32>
    %64 = arith.mulf %61, %63 : vector<96x128xf32>
    %65 = arith.truncf %64 : vector<96x128xf32> to vector<96x128xbf16>
    %c19_72 = arith.constant 19 : index
    %c0_73 = arith.constant 0 : index
    %66 = vector.load %arg8[%c19_72, %c0_73] : memref<326x128xbf16, #tpu.memory_space<vmem>>, vector<96x128xbf16>
    tpu.vector_store %arg8[%c19_72, %c0_73], %65 {strides = array<i32>} : memref<326x128xbf16, #tpu.memory_space<vmem>>, vector<96x128xbf16>,
    %c0_74 = arith.constant 0 : index
    %c96 = arith.constant 96 : index
    %c0_75 = arith.constant 0 : index
    %67 = vector.load %arg1[%c0_74, %c96, %c0_75] : memref<1x342x128xbf16, #tpu.memory_space<vmem>>, vector<1x96x128xbf16>
    %68 = vector.shape_cast %67 : vector<1x96x128xbf16> to vector<96x128xbf16>
    %c0_76 = arith.constant 0 : index
    %c0_77 = arith.constant 0 : index
    %c0_78 = arith.constant 0 : index
    %c0_79 = arith.constant 0 : index
    %69 = vector.load %arg3[%c0_76, %c0_77, %c0_78, %c0_79] : memref<3x3x128x128xbf16, #tpu.memory_space<vmem>>, vector<1x1x128x128xbf16>
    %70 = vector.shape_cast %69 : vector<1x1x128x128xbf16> to vector<128x128xbf16>
    %cst_80 = arith.constant dense<0.000000e+00> : vector<96x128xf32>
    %71 = tpu.matmul %68, %70, %cst_80 {dimension_numbers = #tpu.dot_dimension_numbers<[1], [0], [0], [1], [0, 0, 1, 1], [], []>} : vector<96x128xbf16>, vector<128x128xbf16>, vector<96x128xf32> -> vector<96x128xf32>
    %c0_81 = arith.constant 0 : index
    %c97 = arith.constant 97 : index
    %c0_82 = arith.constant 0 : index
    %72 = vector.load %arg1[%c0_81, %c97, %c0_82] : memref<1x342x128xbf16, #tpu.memory_space<vmem>>, vector<1x96x128xbf16>
    %73 = vector.shape_cast %72 : vector<1x96x128xbf16> to vector<96x128xbf16>
    %c0_83 = arith.constant 0 : index
    %c1_84 = arith.constant 1 : index
    %c0_85 = arith.constant 0 : index
    %c0_86 = arith.constant 0 : index
    %74 = vector.load %arg3[%c0_83, %c1_84, %c0_85, %c0_86] : memref<3x3x128x128xbf16, #tpu.memory_space<vmem>>, vector<1x1x128x128xbf16>
    %75 = vector.shape_cast %74 : vector<1x1x128x128xbf16> to vector<128x128xbf16>
    %cst_87 = arith.constant dense<0.000000e+00> : vector<96x128xf32>
    %76 = tpu.matmul %73, %75, %cst_87 {dimension_numbers = #tpu.dot_dimension_numbers<[1], [0], [0], [1], [0, 0, 1, 1], [], []>} : vector<96x128xbf16>, vector<128x128xbf16>, vector<96x128xf32> -> vector<96x128xf32>
    %77 = arith.addf %71, %76 : vector<96x128xf32>
    %c0_88 = arith.constant 0 : index
    %c98 = arith.constant 98 : index
    %c0_89 = arith.constant 0 : index
    %78 = vector.load %arg1[%c0_88, %c98, %c0_89] : memref<1x342x128xbf16, #tpu.memory_space<vmem>>, vector<1x96x128xbf16>
    %79 = vector.shape_cast %78 : vector<1x96x128xbf16> to vector<96x128xbf16>
    %c0_90 = arith.constant 0 : index
    %c2_91 = arith.constant 2 : index
    %c0_92 = arith.constant 0 : index
    %c0_93 = arith.constant 0 : index
    %80 = vector.load %arg3[%c0_90, %c2_91, %c0_92, %c0_93] : memref<3x3x128x128xbf16, #tpu.memory_space<vmem>>, vector<1x1x128x128xbf16>
    %81 = vector.shape_cast %80 : vector<1x1x128x128xbf16> to vector<128x128xbf16>
    %cst_94 = arith.constant dense<0.000000e+00> : vector<96x128xf32>
    %82 = tpu.matmul %79, %81, %cst_94 {dimension_numbers = #tpu.dot_dimension_numbers<[1], [0], [0], [1], [0, 0, 1, 1], [], []>} : vector<96x128xbf16>, vector<128x128xbf16>, vector<96x128xf32> -> vector<96x128xf32>
    %83 = arith.addf %77, %82 : vector<96x128xf32>
    %c0_95 = arith.constant 0 : index
    %c114 = arith.constant 114 : index
    %c0_96 = arith.constant 0 : index
    %84 = vector.load %arg1[%c0_95, %c114, %c0_96] : memref<1x342x128xbf16, #tpu.memory_space<vmem>>, vector<1x96x128xbf16>
    %85 = vector.shape_cast %84 : vector<1x96x128xbf16> to vector<96x128xbf16>
    %c1_97 = arith.constant 1 : index
    %c0_98 = arith.constant 0 : index
    %c0_99 = arith.constant 0 : index
    %c0_100 = arith.constant 0 : index
    %86 = vector.load %arg3[%c1_97, %c0_98, %c0_99, %c0_100] : memref<3x3x128x128xbf16, #tpu.memory_space<vmem>>, vector<1x1x128x128xbf16>
    %87 = vector.shape_cast %86 : vector<1x1x128x128xbf16> to vector<128x128xbf16>
    %cst_101 = arith.constant dense<0.000000e+00> : vector<96x128xf32>
    %88 = tpu.matmul %85, %87, %cst_101 {dimension_numbers = #tpu.dot_dimension_numbers<[1], [0], [0], [1], [0, 0, 1, 1], [], []>} : vector<96x128xbf16>, vector<128x128xbf16>, vector<96x128xf32> -> vector<96x128xf32>
    %89 = arith.addf %83, %88 : vector<96x128xf32>
    %c0_102 = arith.constant 0 : index
    %c115 = arith.constant 115 : index
    %c0_103 = arith.constant 0 : index
    %90 = vector.load %arg1[%c0_102, %c115, %c0_103] : memref<1x342x128xbf16, #tpu.memory_space<vmem>>, vector<1x96x128xbf16>
    %91 = vector.shape_cast %90 : vector<1x96x128xbf16> to vector<96x128xbf16>
    %c1_104 = arith.constant 1 : index
    %c1_105 = arith.constant 1 : index
    %c0_106 = arith.constant 0 : index
    %c0_107 = arith.constant 0 : index
    %92 = vector.load %arg3[%c1_104, %c1_105, %c0_106, %c0_107] : memref<3x3x128x128xbf16, #tpu.memory_space<vmem>>, vector<1x1x128x128xbf16>
    %93 = vector.shape_cast %92 : vector<1x1x128x128xbf16> to vector<128x128xbf16>
    %cst_108 = arith.constant dense<0.000000e+00> : vector<96x128xf32>
    %94 = tpu.matmul %91, %93, %cst_108 {dimension_numbers = #tpu.dot_dimension_numbers<[1], [0], [0], [1], [0, 0, 1, 1], [], []>} : vector<96x128xbf16>, vector<128x128xbf16>, vector<96x128xf32> -> vector<96x128xf32>
    %95 = arith.addf %89, %94 : vector<96x128xf32>
    %c0_109 = arith.constant 0 : index
    %c116 = arith.constant 116 : index
    %c0_110 = arith.constant 0 : index
    %96 = vector.load %arg1[%c0_109, %c116, %c0_110] : memref<1x342x128xbf16, #tpu.memory_space<vmem>>, vector<1x96x128xbf16>
    %97 = vector.shape_cast %96 : vector<1x96x128xbf16> to vector<96x128xbf16>
    %c1_111 = arith.constant 1 : index
    %c2_112 = arith.constant 2 : index
    %c0_113 = arith.constant 0 : index
    %c0_114 = arith.constant 0 : index
    %98 = vector.load %arg3[%c1_111, %c2_112, %c0_113, %c0_114] : memref<3x3x128x128xbf16, #tpu.memory_space<vmem>>, vector<1x1x128x128xbf16>
    %99 = vector.shape_cast %98 : vector<1x1x128x128xbf16> to vector<128x128xbf16>
    %cst_115 = arith.constant dense<0.000000e+00> : vector<96x128xf32>
    %100 = tpu.matmul %97, %99, %cst_115 {dimension_numbers = #tpu.dot_dimension_numbers<[1], [0], [0], [1], [0, 0, 1, 1], [], []>} : vector<96x128xbf16>, vector<128x128xbf16>, vector<96x128xf32> -> vector<96x128xf32>
    %101 = arith.addf %95, %100 : vector<96x128xf32>
    %c0_116 = arith.constant 0 : index
    %c132 = arith.constant 132 : index
    %c0_117 = arith.constant 0 : index
    %102 = vector.load %arg1[%c0_116, %c132, %c0_117] : memref<1x342x128xbf16, #tpu.memory_space<vmem>>, vector<1x96x128xbf16>
    %103 = vector.shape_cast %102 : vector<1x96x128xbf16> to vector<96x128xbf16>
    %c2_118 = arith.constant 2 : index
    %c0_119 = arith.constant 0 : index
    %c0_120 = arith.constant 0 : index
    %c0_121 = arith.constant 0 : index
    %104 = vector.load %arg3[%c2_118, %c0_119, %c0_120, %c0_121] : memref<3x3x128x128xbf16, #tpu.memory_space<vmem>>, vector<1x1x128x128xbf16>
    %105 = vector.shape_cast %104 : vector<1x1x128x128xbf16> to vector<128x128xbf16>
    %cst_122 = arith.constant dense<0.000000e+00> : vector<96x128xf32>
    %106 = tpu.matmul %103, %105, %cst_122 {dimension_numbers = #tpu.dot_dimension_numbers<[1], [0], [0], [1], [0, 0, 1, 1], [], []>} : vector<96x128xbf16>, vector<128x128xbf16>, vector<96x128xf32> -> vector<96x128xf32>
    %107 = arith.addf %101, %106 : vector<96x128xf32>
    %c0_123 = arith.constant 0 : index
    %c133 = arith.constant 133 : index
    %c0_124 = arith.constant 0 : index
    %108 = vector.load %arg1[%c0_123, %c133, %c0_124] : memref<1x342x128xbf16, #tpu.memory_space<vmem>>, vector<1x96x128xbf16>
    %109 = vector.shape_cast %108 : vector<1x96x128xbf16> to vector<96x128xbf16>
    %c2_125 = arith.constant 2 : index
    %c1_126 = arith.constant 1 : index
    %c0_127 = arith.constant 0 : index
    %c0_128 = arith.constant 0 : index
    %110 = vector.load %arg3[%c2_125, %c1_126, %c0_127, %c0_128] : memref<3x3x128x128xbf16, #tpu.memory_space<vmem>>, vector<1x1x128x128xbf16>
    %111 = vector.shape_cast %110 : vector<1x1x128x128xbf16> to vector<128x128xbf16>
    %cst_129 = arith.constant dense<0.000000e+00> : vector<96x128xf32>
    %112 = tpu.matmul %109, %111, %cst_129 {dimension_numbers = #tpu.dot_dimension_numbers<[1], [0], [0], [1], [0, 0, 1, 1], [], []>} : vector<96x128xbf16>, vector<128x128xbf16>, vector<96x128xf32> -> vector<96x128xf32>
    %113 = arith.addf %107, %112 : vector<96x128xf32>
    %c0_130 = arith.constant 0 : index
    %c134 = arith.constant 134 : index
    %c0_131 = arith.constant 0 : index
    %114 = vector.load %arg1[%c0_130, %c134, %c0_131] : memref<1x342x128xbf16, #tpu.memory_space<vmem>>, vector<1x96x128xbf16>
    %115 = vector.shape_cast %114 : vector<1x96x128xbf16> to vector<96x128xbf16>
    %c2_132 = arith.constant 2 : index
    %c2_133 = arith.constant 2 : index
    %c0_134 = arith.constant 0 : index
    %c0_135 = arith.constant 0 : index
    %116 = vector.load %arg3[%c2_132, %c2_133, %c0_134, %c0_135] : memref<3x3x128x128xbf16, #tpu.memory_space<vmem>>, vector<1x1x128x128xbf16>
    %117 = vector.shape_cast %116 : vector<1x1x128x128xbf16> to vector<128x128xbf16>
    %cst_136 = arith.constant dense<0.000000e+00> : vector<96x128xf32>
    %118 = tpu.matmul %115, %117, %cst_136 {dimension_numbers = #tpu.dot_dimension_numbers<[1], [0], [0], [1], [0, 0, 1, 1], [], []>} : vector<96x128xbf16>, vector<128x128xbf16>, vector<96x128xf32> -> vector<96x128xf32>
    %119 = arith.addf %113, %118 : vector<96x128xf32>
    %c0_137 = arith.constant 0 : index
    %c0_138 = arith.constant 0 : index
    %120 = vector.load %arg5[%c0_137, %c0_138] : memref<1x128xf32, #tpu.memory_space<vmem>>, vector<1x128xf32>
    %121 = vector.broadcast %120 : vector<1x128xf32> to vector<96x128xf32>
    %122 = arith.addf %119, %121 : vector<96x128xf32>
    %cst_139 = arith.constant 0.000000e+00 : f32
    %123 = vector.broadcast %cst_139 : f32 to vector<96x128xf32>
    %124 = arith.maximumf %122, %123 : vector<96x128xf32>
    %c96_140 = arith.constant 96 : index
    %c0_141 = arith.constant 0 : index
    %125 = vector.load %arg2[%c96_140, %c0_141] : memref<288x1xf32, #tpu.memory_space<vmem>>, vector<96x1xf32>
    %126 = vector.broadcast %125 : vector<96x1xf32> to vector<96x128xf32>
    %127 = arith.mulf %124, %126 : vector<96x128xf32>
    %128 = arith.truncf %127 : vector<96x128xf32> to vector<96x128xbf16>
    %c115_142 = arith.constant 115 : index
    %c0_143 = arith.constant 0 : index
    %129 = vector.load %arg8[%c115_142, %c0_143] : memref<326x128xbf16, #tpu.memory_space<vmem>>, vector<96x128xbf16>
    tpu.vector_store %arg8[%c115_142, %c0_143], %128 {strides = array<i32>} : memref<326x128xbf16, #tpu.memory_space<vmem>>, vector<96x128xbf16>,
    %c0_144 = arith.constant 0 : index
    %c192 = arith.constant 192 : index
    %c0_145 = arith.constant 0 : index
    %130 = vector.load %arg1[%c0_144, %c192, %c0_145] : memref<1x342x128xbf16, #tpu.memory_space<vmem>>, vector<1x96x128xbf16>
    %131 = vector.shape_cast %130 : vector<1x96x128xbf16> to vector<96x128xbf16>
    %c0_146 = arith.constant 0 : index
    %c0_147 = arith.constant 0 : index
    %c0_148 = arith.constant 0 : index
    %c0_149 = arith.constant 0 : index
    %132 = vector.load %arg3[%c0_146, %c0_147, %c0_148, %c0_149] : memref<3x3x128x128xbf16, #tpu.memory_space<vmem>>, vector<1x1x128x128xbf16>
    %133 = vector.shape_cast %132 : vector<1x1x128x128xbf16> to vector<128x128xbf16>
    %cst_150 = arith.constant dense<0.000000e+00> : vector<96x128xf32>
    %134 = tpu.matmul %131, %133, %cst_150 {dimension_numbers = #tpu.dot_dimension_numbers<[1], [0], [0], [1], [0, 0, 1, 1], [], []>} : vector<96x128xbf16>, vector<128x128xbf16>, vector<96x128xf32> -> vector<96x128xf32>
    %c0_151 = arith.constant 0 : index
    %c193 = arith.constant 193 : index
    %c0_152 = arith.constant 0 : index
    %135 = vector.load %arg1[%c0_151, %c193, %c0_152] : memref<1x342x128xbf16, #tpu.memory_space<vmem>>, vector<1x96x128xbf16>
    %136 = vector.shape_cast %135 : vector<1x96x128xbf16> to vector<96x128xbf16>
    %c0_153 = arith.constant 0 : index
    %c1_154 = arith.constant 1 : index
    %c0_155 = arith.constant 0 : index
    %c0_156 = arith.constant 0 : index
    %137 = vector.load %arg3[%c0_153, %c1_154, %c0_155, %c0_156] : memref<3x3x128x128xbf16, #tpu.memory_space<vmem>>, vector<1x1x128x128xbf16>
    %138 = vector.shape_cast %137 : vector<1x1x128x128xbf16> to vector<128x128xbf16>
    %cst_157 = arith.constant dense<0.000000e+00> : vector<96x128xf32>
    %139 = tpu.matmul %136, %138, %cst_157 {dimension_numbers = #tpu.dot_dimension_numbers<[1], [0], [0], [1], [0, 0, 1, 1], [], []>} : vector<96x128xbf16>, vector<128x128xbf16>, vector<96x128xf32> -> vector<96x128xf32>
    %140 = arith.addf %134, %139 : vector<96x128xf32>
    %c0_158 = arith.constant 0 : index
    %c194 = arith.constant 194 : index
    %c0_159 = arith.constant 0 : index
    %141 = vector.load %arg1[%c0_158, %c194, %c0_159] : memref<1x342x128xbf16, #tpu.memory_space<vmem>>, vector<1x96x128xbf16>
    %142 = vector.shape_cast %141 : vector<1x96x128xbf16> to vector<96x128xbf16>
    %c0_160 = arith.constant 0 : index
    %c2_161 = arith.constant 2 : index
    %c0_162 = arith.constant 0 : index
    %c0_163 = arith.constant 0 : index
    %143 = vector.load %arg3[%c0_160, %c2_161, %c0_162, %c0_163] : memref<3x3x128x128xbf16, #tpu.memory_space<vmem>>, vector<1x1x128x128xbf16>
    %144 = vector.shape_cast %143 : vector<1x1x128x128xbf16> to vector<128x128xbf16>
    %cst_164 = arith.constant dense<0.000000e+00> : vector<96x128xf32>
    %145 = tpu.matmul %142, %144, %cst_164 {dimension_numbers = #tpu.dot_dimension_numbers<[1], [0], [0], [1], [0, 0, 1, 1], [], []>} : vector<96x128xbf16>, vector<128x128xbf16>, vector<96x128xf32> -> vector<96x128xf32>
    %146 = arith.addf %140, %145 : vector<96x128xf32>
    %c0_165 = arith.constant 0 : index
    %c210 = arith.constant 210 : index
    %c0_166 = arith.constant 0 : index
    %147 = vector.load %arg1[%c0_165, %c210, %c0_166] : memref<1x342x128xbf16, #tpu.memory_space<vmem>>, vector<1x96x128xbf16>
    %148 = vector.shape_cast %147 : vector<1x96x128xbf16> to vector<96x128xbf16>
    %c1_167 = arith.constant 1 : index
    %c0_168 = arith.constant 0 : index
    %c0_169 = arith.constant 0 : index
    %c0_170 = arith.constant 0 : index
    %149 = vector.load %arg3[%c1_167, %c0_168, %c0_169, %c0_170] : memref<3x3x128x128xbf16, #tpu.memory_space<vmem>>, vector<1x1x128x128xbf16>
    %150 = vector.shape_cast %149 : vector<1x1x128x128xbf16> to vector<128x128xbf16>
    %cst_171 = arith.constant dense<0.000000e+00> : vector<96x128xf32>
    %151 = tpu.matmul %148, %150, %cst_171 {dimension_numbers = #tpu.dot_dimension_numbers<[1], [0], [0], [1], [0, 0, 1, 1], [], []>} : vector<96x128xbf16>, vector<128x128xbf16>, vector<96x128xf32> -> vector<96x128xf32>
    %152 = arith.addf %146, %151 : vector<96x128xf32>
    %c0_172 = arith.constant 0 : index
    %c211 = arith.constant 211 : index
    %c0_173 = arith.constant 0 : index
    %153 = vector.load %arg1[%c0_172, %c211, %c0_173] : memref<1x342x128xbf16, #tpu.memory_space<vmem>>, vector<1x96x128xbf16>
    %154 = vector.shape_cast %153 : vector<1x96x128xbf16> to vector<96x128xbf16>
    %c1_174 = arith.constant 1 : index
    %c1_175 = arith.constant 1 : index
    %c0_176 = arith.constant 0 : index
    %c0_177 = arith.constant 0 : index
    %155 = vector.load %arg3[%c1_174, %c1_175, %c0_176, %c0_177] : memref<3x3x128x128xbf16, #tpu.memory_space<vmem>>, vector<1x1x128x128xbf16>
    %156 = vector.shape_cast %155 : vector<1x1x128x128xbf16> to vector<128x128xbf16>
    %cst_178 = arith.constant dense<0.000000e+00> : vector<96x128xf32>
    %157 = tpu.matmul %154, %156, %cst_178 {dimension_numbers = #tpu.dot_dimension_numbers<[1], [0], [0], [1], [0, 0, 1, 1], [], []>} : vector<96x128xbf16>, vector<128x128xbf16>, vector<96x128xf32> -> vector<96x128xf32>
    %158 = arith.addf %152, %157 : vector<96x128xf32>
    %c0_179 = arith.constant 0 : index
    %c212 = arith.constant 212 : index
    %c0_180 = arith.constant 0 : index
    %159 = vector.load %arg1[%c0_179, %c212, %c0_180] : memref<1x342x128xbf16, #tpu.memory_space<vmem>>, vector<1x96x128xbf16>
    %160 = vector.shape_cast %159 : vector<1x96x128xbf16> to vector<96x128xbf16>
    %c1_181 = arith.constant 1 : index
    %c2_182 = arith.constant 2 : index
    %c0_183 = arith.constant 0 : index
    %c0_184 = arith.constant 0 : index
    %161 = vector.load %arg3[%c1_181, %c2_182, %c0_183, %c0_184] : memref<3x3x128x128xbf16, #tpu.memory_space<vmem>>, vector<1x1x128x128xbf16>
    %162 = vector.shape_cast %161 : vector<1x1x128x128xbf16> to vector<128x128xbf16>
    %cst_185 = arith.constant dense<0.000000e+00> : vector<96x128xf32>
    %163 = tpu.matmul %160, %162, %cst_185 {dimension_numbers = #tpu.dot_dimension_numbers<[1], [0], [0], [1], [0, 0, 1, 1], [], []>} : vector<96x128xbf16>, vector<128x128xbf16>, vector<96x128xf32> -> vector<96x128xf32>
    %164 = arith.addf %158, %163 : vector<96x128xf32>
    %c0_186 = arith.constant 0 : index
    %c228 = arith.constant 228 : index
    %c0_187 = arith.constant 0 : index
    %165 = vector.load %arg1[%c0_186, %c228, %c0_187] : memref<1x342x128xbf16, #tpu.memory_space<vmem>>, vector<1x96x128xbf16>
    %166 = vector.shape_cast %165 : vector<1x96x128xbf16> to vector<96x128xbf16>
    %c2_188 = arith.constant 2 : index
    %c0_189 = arith.constant 0 : index
    %c0_190 = arith.constant 0 : index
    %c0_191 = arith.constant 0 : index
    %167 = vector.load %arg3[%c2_188, %c0_189, %c0_190, %c0_191] : memref<3x3x128x128xbf16, #tpu.memory_space<vmem>>, vector<1x1x128x128xbf16>
    %168 = vector.shape_cast %167 : vector<1x1x128x128xbf16> to vector<128x128xbf16>
    %cst_192 = arith.constant dense<0.000000e+00> : vector<96x128xf32>
    %169 = tpu.matmul %166, %168, %cst_192 {dimension_numbers = #tpu.dot_dimension_numbers<[1], [0], [0], [1], [0, 0, 1, 1], [], []>} : vector<96x128xbf16>, vector<128x128xbf16>, vector<96x128xf32> -> vector<96x128xf32>
    %170 = arith.addf %164, %169 : vector<96x128xf32>
    %c0_193 = arith.constant 0 : index
    %c229 = arith.constant 229 : index
    %c0_194 = arith.constant 0 : index
    %171 = vector.load %arg1[%c0_193, %c229, %c0_194] : memref<1x342x128xbf16, #tpu.memory_space<vmem>>, vector<1x96x128xbf16>
    %172 = vector.shape_cast %171 : vector<1x96x128xbf16> to vector<96x128xbf16>
    %c2_195 = arith.constant 2 : index
    %c1_196 = arith.constant 1 : index
    %c0_197 = arith.constant 0 : index
    %c0_198 = arith.constant 0 : index
    %173 = vector.load %arg3[%c2_195, %c1_196, %c0_197, %c0_198] : memref<3x3x128x128xbf16, #tpu.memory_space<vmem>>, vector<1x1x128x128xbf16>
    %174 = vector.shape_cast %173 : vector<1x1x128x128xbf16> to vector<128x128xbf16>
    %cst_199 = arith.constant dense<0.000000e+00> : vector<96x128xf32>
    %175 = tpu.matmul %172, %174, %cst_199 {dimension_numbers = #tpu.dot_dimension_numbers<[1], [0], [0], [1], [0, 0, 1, 1], [], []>} : vector<96x128xbf16>, vector<128x128xbf16>, vector<96x128xf32> -> vector<96x128xf32>
    %176 = arith.addf %170, %175 : vector<96x128xf32>
    %c0_200 = arith.constant 0 : index
    %c230 = arith.constant 230 : index
    %c0_201 = arith.constant 0 : index
    %177 = vector.load %arg1[%c0_200, %c230, %c0_201] : memref<1x342x128xbf16, #tpu.memory_space<vmem>>, vector<1x96x128xbf16>
    %178 = vector.shape_cast %177 : vector<1x96x128xbf16> to vector<96x128xbf16>
    %c2_202 = arith.constant 2 : index
    %c2_203 = arith.constant 2 : index
    %c0_204 = arith.constant 0 : index
    %c0_205 = arith.constant 0 : index
    %179 = vector.load %arg3[%c2_202, %c2_203, %c0_204, %c0_205] : memref<3x3x128x128xbf16, #tpu.memory_space<vmem>>, vector<1x1x128x128xbf16>
    %180 = vector.shape_cast %179 : vector<1x1x128x128xbf16> to vector<128x128xbf16>
    %cst_206 = arith.constant dense<0.000000e+00> : vector<96x128xf32>
    %181 = tpu.matmul %178, %180, %cst_206 {dimension_numbers = #tpu.dot_dimension_numbers<[1], [0], [0], [1], [0, 0, 1, 1], [], []>} : vector<96x128xbf16>, vector<128x128xbf16>, vector<96x128xf32> -> vector<96x128xf32>
    %182 = arith.addf %176, %181 : vector<96x128xf32>
    %c0_207 = arith.constant 0 : index
    %c0_208 = arith.constant 0 : index
    %183 = vector.load %arg5[%c0_207, %c0_208] : memref<1x128xf32, #tpu.memory_space<vmem>>, vector<1x128xf32>
    %184 = vector.broadcast %183 : vector<1x128xf32> to vector<96x128xf32>
    %185 = arith.addf %182, %184 : vector<96x128xf32>
    %cst_209 = arith.constant 0.000000e+00 : f32
    %186 = vector.broadcast %cst_209 : f32 to vector<96x128xf32>
    %187 = arith.maximumf %185, %186 : vector<96x128xf32>
    %c192_210 = arith.constant 192 : index
    %c0_211 = arith.constant 0 : index
    %188 = vector.load %arg2[%c192_210, %c0_211] : memref<288x1xf32, #tpu.memory_space<vmem>>, vector<96x1xf32>
    %189 = vector.broadcast %188 : vector<96x1xf32> to vector<96x128xf32>
    %190 = arith.mulf %187, %189 : vector<96x128xf32>
    %191 = arith.truncf %190 : vector<96x128xf32> to vector<96x128xbf16>
    %c211_212 = arith.constant 211 : index
    %c0_213 = arith.constant 0 : index
    %192 = vector.load %arg8[%c211_212, %c0_213] : memref<326x128xbf16, #tpu.memory_space<vmem>>, vector<96x128xbf16>
    tpu.vector_store %arg8[%c211_212, %c0_213], %191 {strides = array<i32>} : memref<326x128xbf16, #tpu.memory_space<vmem>>, vector<96x128xbf16>,
    %c0_214 = arith.constant 0 : index
    %c0_215 = arith.constant 0 : index
    %193 = vector.load %arg8[%c0_214, %c0_215] : memref<326x128xbf16, #tpu.memory_space<vmem>>, vector<96x128xbf16>
    %c0_216 = arith.constant 0 : index
    %c0_217 = arith.constant 0 : index
    %c0_218 = arith.constant 0 : index
    %c0_219 = arith.constant 0 : index
    %194 = vector.load %arg4[%c0_216, %c0_217, %c0_218, %c0_219] : memref<3x3x128x128xbf16, #tpu.memory_space<vmem>>, vector<1x1x128x128xbf16>
    %195 = vector.shape_cast %194 : vector<1x1x128x128xbf16> to vector<128x128xbf16>
    %cst_220 = arith.constant dense<0.000000e+00> : vector<96x128xf32>
    %196 = tpu.matmul %193, %195, %cst_220 {dimension_numbers = #tpu.dot_dimension_numbers<[1], [0], [0], [1], [0, 0, 1, 1], [], []>} : vector<96x128xbf16>, vector<128x128xbf16>, vector<96x128xf32> -> vector<96x128xf32>
    %c1_221 = arith.constant 1 : index
    %c0_222 = arith.constant 0 : index
    %197 = vector.load %arg8[%c1_221, %c0_222] : memref<326x128xbf16, #tpu.memory_space<vmem>>, vector<96x128xbf16>
    %c0_223 = arith.constant 0 : index
    %c1_224 = arith.constant 1 : index
    %c0_225 = arith.constant 0 : index
    %c0_226 = arith.constant 0 : index
    %198 = vector.load %arg4[%c0_223, %c1_224, %c0_225, %c0_226] : memref<3x3x128x128xbf16, #tpu.memory_space<vmem>>, vector<1x1x128x128xbf16>
    %199 = vector.shape_cast %198 : vector<1x1x128x128xbf16> to vector<128x128xbf16>
    %cst_227 = arith.constant dense<0.000000e+00> : vector<96x128xf32>
    %200 = tpu.matmul %197, %199, %cst_227 {dimension_numbers = #tpu.dot_dimension_numbers<[1], [0], [0], [1], [0, 0, 1, 1], [], []>} : vector<96x128xbf16>, vector<128x128xbf16>, vector<96x128xf32> -> vector<96x128xf32>
    %201 = arith.addf %196, %200 : vector<96x128xf32>
    %c2_228 = arith.constant 2 : index
    %c0_229 = arith.constant 0 : index
    %202 = vector.load %arg8[%c2_228, %c0_229] : memref<326x128xbf16, #tpu.memory_space<vmem>>, vector<96x128xbf16>
    %c0_230 = arith.constant 0 : index
    %c2_231 = arith.constant 2 : index
    %c0_232 = arith.constant 0 : index
    %c0_233 = arith.constant 0 : index
    %203 = vector.load %arg4[%c0_230, %c2_231, %c0_232, %c0_233] : memref<3x3x128x128xbf16, #tpu.memory_space<vmem>>, vector<1x1x128x128xbf16>
    %204 = vector.shape_cast %203 : vector<1x1x128x128xbf16> to vector<128x128xbf16>
    %cst_234 = arith.constant dense<0.000000e+00> : vector<96x128xf32>
    %205 = tpu.matmul %202, %204, %cst_234 {dimension_numbers = #tpu.dot_dimension_numbers<[1], [0], [0], [1], [0, 0, 1, 1], [], []>} : vector<96x128xbf16>, vector<128x128xbf16>, vector<96x128xf32> -> vector<96x128xf32>
    %206 = arith.addf %201, %205 : vector<96x128xf32>
    %c18_235 = arith.constant 18 : index
    %c0_236 = arith.constant 0 : index
    %207 = vector.load %arg8[%c18_235, %c0_236] : memref<326x128xbf16, #tpu.memory_space<vmem>>, vector<96x128xbf16>
    %c1_237 = arith.constant 1 : index
    %c0_238 = arith.constant 0 : index
    %c0_239 = arith.constant 0 : index
    %c0_240 = arith.constant 0 : index
    %208 = vector.load %arg4[%c1_237, %c0_238, %c0_239, %c0_240] : memref<3x3x128x128xbf16, #tpu.memory_space<vmem>>, vector<1x1x128x128xbf16>
    %209 = vector.shape_cast %208 : vector<1x1x128x128xbf16> to vector<128x128xbf16>
    %cst_241 = arith.constant dense<0.000000e+00> : vector<96x128xf32>
    %210 = tpu.matmul %207, %209, %cst_241 {dimension_numbers = #tpu.dot_dimension_numbers<[1], [0], [0], [1], [0, 0, 1, 1], [], []>} : vector<96x128xbf16>, vector<128x128xbf16>, vector<96x128xf32> -> vector<96x128xf32>
    %211 = arith.addf %206, %210 : vector<96x128xf32>
    %c19_242 = arith.constant 19 : index
    %c0_243 = arith.constant 0 : index
    %212 = vector.load %arg8[%c19_242, %c0_243] : memref<326x128xbf16, #tpu.memory_space<vmem>>, vector<96x128xbf16>
    %c1_244 = arith.constant 1 : index
    %c1_245 = arith.constant 1 : index
    %c0_246 = arith.constant 0 : index
    %c0_247 = arith.constant 0 : index
    %213 = vector.load %arg4[%c1_244, %c1_245, %c0_246, %c0_247] : memref<3x3x128x128xbf16, #tpu.memory_space<vmem>>, vector<1x1x128x128xbf16>
    %214 = vector.shape_cast %213 : vector<1x1x128x128xbf16> to vector<128x128xbf16>
    %cst_248 = arith.constant dense<0.000000e+00> : vector<96x128xf32>
    %215 = tpu.matmul %212, %214, %cst_248 {dimension_numbers = #tpu.dot_dimension_numbers<[1], [0], [0], [1], [0, 0, 1, 1], [], []>} : vector<96x128xbf16>, vector<128x128xbf16>, vector<96x128xf32> -> vector<96x128xf32>
    %216 = arith.addf %211, %215 : vector<96x128xf32>
    %c20_249 = arith.constant 20 : index
    %c0_250 = arith.constant 0 : index
    %217 = vector.load %arg8[%c20_249, %c0_250] : memref<326x128xbf16, #tpu.memory_space<vmem>>, vector<96x128xbf16>
    %c1_251 = arith.constant 1 : index
    %c2_252 = arith.constant 2 : index
    %c0_253 = arith.constant 0 : index
    %c0_254 = arith.constant 0 : index
    %218 = vector.load %arg4[%c1_251, %c2_252, %c0_253, %c0_254] : memref<3x3x128x128xbf16, #tpu.memory_space<vmem>>, vector<1x1x128x128xbf16>
    %219 = vector.shape_cast %218 : vector<1x1x128x128xbf16> to vector<128x128xbf16>
    %cst_255 = arith.constant dense<0.000000e+00> : vector<96x128xf32>
    %220 = tpu.matmul %217, %219, %cst_255 {dimension_numbers = #tpu.dot_dimension_numbers<[1], [0], [0], [1], [0, 0, 1, 1], [], []>} : vector<96x128xbf16>, vector<128x128xbf16>, vector<96x128xf32> -> vector<96x128xf32>
    %221 = arith.addf %216, %220 : vector<96x128xf32>
    %c36_256 = arith.constant 36 : index
    %c0_257 = arith.constant 0 : index
    %222 = vector.load %arg8[%c36_256, %c0_257] : memref<326x128xbf16, #tpu.memory_space<vmem>>, vector<96x128xbf16>
    %c2_258 = arith.constant 2 : index
    %c0_259 = arith.constant 0 : index
    %c0_260 = arith.constant 0 : index
    %c0_261 = arith.constant 0 : index
    %223 = vector.load %arg4[%c2_258, %c0_259, %c0_260, %c0_261] : memref<3x3x128x128xbf16, #tpu.memory_space<vmem>>, vector<1x1x128x128xbf16>
    %224 = vector.shape_cast %223 : vector<1x1x128x128xbf16> to vector<128x128xbf16>
    %cst_262 = arith.constant dense<0.000000e+00> : vector<96x128xf32>
    %225 = tpu.matmul %222, %224, %cst_262 {dimension_numbers = #tpu.dot_dimension_numbers<[1], [0], [0], [1], [0, 0, 1, 1], [], []>} : vector<96x128xbf16>, vector<128x128xbf16>, vector<96x128xf32> -> vector<96x128xf32>
    %226 = arith.addf %221, %225 : vector<96x128xf32>
    %c37_263 = arith.constant 37 : index
    %c0_264 = arith.constant 0 : index
    %227 = vector.load %arg8[%c37_263, %c0_264] : memref<326x128xbf16, #tpu.memory_space<vmem>>, vector<96x128xbf16>
    %c2_265 = arith.constant 2 : index
    %c1_266 = arith.constant 1 : index
    %c0_267 = arith.constant 0 : index
    %c0_268 = arith.constant 0 : index
    %228 = vector.load %arg4[%c2_265, %c1_266, %c0_267, %c0_268] : memref<3x3x128x128xbf16, #tpu.memory_space<vmem>>, vector<1x1x128x128xbf16>
    %229 = vector.shape_cast %228 : vector<1x1x128x128xbf16> to vector<128x128xbf16>
    %cst_269 = arith.constant dense<0.000000e+00> : vector<96x128xf32>
    %230 = tpu.matmul %227, %229, %cst_269 {dimension_numbers = #tpu.dot_dimension_numbers<[1], [0], [0], [1], [0, 0, 1, 1], [], []>} : vector<96x128xbf16>, vector<128x128xbf16>, vector<96x128xf32> -> vector<96x128xf32>
    %231 = arith.addf %226, %230 : vector<96x128xf32>
    %c38_270 = arith.constant 38 : index
    %c0_271 = arith.constant 0 : index
    %232 = vector.load %arg8[%c38_270, %c0_271] : memref<326x128xbf16, #tpu.memory_space<vmem>>, vector<96x128xbf16>
    %c2_272 = arith.constant 2 : index
    %c2_273 = arith.constant 2 : index
    %c0_274 = arith.constant 0 : index
    %c0_275 = arith.constant 0 : index
    %233 = vector.load %arg4[%c2_272, %c2_273, %c0_274, %c0_275] : memref<3x3x128x128xbf16, #tpu.memory_space<vmem>>, vector<1x1x128x128xbf16>
    %234 = vector.shape_cast %233 : vector<1x1x128x128xbf16> to vector<128x128xbf16>
    %cst_276 = arith.constant dense<0.000000e+00> : vector<96x128xf32>
    %235 = tpu.matmul %232, %234, %cst_276 {dimension_numbers = #tpu.dot_dimension_numbers<[1], [0], [0], [1], [0, 0, 1, 1], [], []>} : vector<96x128xbf16>, vector<128x128xbf16>, vector<96x128xf32> -> vector<96x128xf32>
    %236 = arith.addf %231, %235 : vector<96x128xf32>
    %c0_277 = arith.constant 0 : index
    %c19_278 = arith.constant 19 : index
    %c0_279 = arith.constant 0 : index
    %237 = vector.load %arg1[%c0_277, %c19_278, %c0_279] : memref<1x342x128xbf16, #tpu.memory_space<vmem>>, vector<1x96x128xbf16>
    %238 = vector.shape_cast %237 : vector<1x96x128xbf16> to vector<96x128xbf16>
    %239 = arith.extf %238 : vector<96x128xbf16> to vector<96x128xf32>
    %c0_280 = arith.constant 0 : index
    %c0_281 = arith.constant 0 : index
    %240 = vector.load %arg6[%c0_280, %c0_281] : memref<1x128xf32, #tpu.memory_space<vmem>>, vector<1x128xf32>
    %241 = vector.broadcast %240 : vector<1x128xf32> to vector<96x128xf32>
    %242 = arith.addf %236, %241 : vector<96x128xf32>
    %243 = arith.addf %242, %239 : vector<96x128xf32>
    %cst_282 = arith.constant 0.000000e+00 : f32
    %244 = vector.broadcast %cst_282 : f32 to vector<96x128xf32>
    %245 = arith.maximumf %243, %244 : vector<96x128xf32>
    %c0_283 = arith.constant 0 : index
    %c0_284 = arith.constant 0 : index
    %c0_285 = arith.constant 0 : index
    %246 = vector.load %arg7[%c0_283, %c0_284, %c0_285] : memref<1x288x128xf32, #tpu.memory_space<vmem>>, vector<1x96x128xf32>
    %247 = vector.shape_cast %246 : vector<1x96x128xf32> to vector<96x128xf32>
    %248 = vector.shape_cast %245 : vector<96x128xf32> to vector<1x96x128xf32>
    tpu.vector_store %arg7[%c0_283, %c0_284, %c0_285], %248 {strides = array<i32>} : memref<1x288x128xf32, #tpu.memory_space<vmem>>, vector<1x96x128xf32>,
    %c96_286 = arith.constant 96 : index
    %c0_287 = arith.constant 0 : index
    %249 = vector.load %arg8[%c96_286, %c0_287] : memref<326x128xbf16, #tpu.memory_space<vmem>>, vector<96x128xbf16>
    %c0_288 = arith.constant 0 : index
    %c0_289 = arith.constant 0 : index
    %c0_290 = arith.constant 0 : index
    %c0_291 = arith.constant 0 : index
    %250 = vector.load %arg4[%c0_288, %c0_289, %c0_290, %c0_291] : memref<3x3x128x128xbf16, #tpu.memory_space<vmem>>, vector<1x1x128x128xbf16>
    %251 = vector.shape_cast %250 : vector<1x1x128x128xbf16> to vector<128x128xbf16>
    %cst_292 = arith.constant dense<0.000000e+00> : vector<96x128xf32>
    %252 = tpu.matmul %249, %251, %cst_292 {dimension_numbers = #tpu.dot_dimension_numbers<[1], [0], [0], [1], [0, 0, 1, 1], [], []>} : vector<96x128xbf16>, vector<128x128xbf16>, vector<96x128xf32> -> vector<96x128xf32>
    %c97_293 = arith.constant 97 : index
    %c0_294 = arith.constant 0 : index
    %253 = vector.load %arg8[%c97_293, %c0_294] : memref<326x128xbf16, #tpu.memory_space<vmem>>, vector<96x128xbf16>
    %c0_295 = arith.constant 0 : index
    %c1_296 = arith.constant 1 : index
    %c0_297 = arith.constant 0 : index
    %c0_298 = arith.constant 0 : index
    %254 = vector.load %arg4[%c0_295, %c1_296, %c0_297, %c0_298] : memref<3x3x128x128xbf16, #tpu.memory_space<vmem>>, vector<1x1x128x128xbf16>
    %255 = vector.shape_cast %254 : vector<1x1x128x128xbf16> to vector<128x128xbf16>
    %cst_299 = arith.constant dense<0.000000e+00> : vector<96x128xf32>
    %256 = tpu.matmul %253, %255, %cst_299 {dimension_numbers = #tpu.dot_dimension_numbers<[1], [0], [0], [1], [0, 0, 1, 1], [], []>} : vector<96x128xbf16>, vector<128x128xbf16>, vector<96x128xf32> -> vector<96x128xf32>
    %257 = arith.addf %252, %256 : vector<96x128xf32>
    %c98_300 = arith.constant 98 : index
    %c0_301 = arith.constant 0 : index
    %258 = vector.load %arg8[%c98_300, %c0_301] : memref<326x128xbf16, #tpu.memory_space<vmem>>, vector<96x128xbf16>
    %c0_302 = arith.constant 0 : index
    %c2_303 = arith.constant 2 : index
    %c0_304 = arith.constant 0 : index
    %c0_305 = arith.constant 0 : index
    %259 = vector.load %arg4[%c0_302, %c2_303, %c0_304, %c0_305] : memref<3x3x128x128xbf16, #tpu.memory_space<vmem>>, vector<1x1x128x128xbf16>
    %260 = vector.shape_cast %259 : vector<1x1x128x128xbf16> to vector<128x128xbf16>
    %cst_306 = arith.constant dense<0.000000e+00> : vector<96x128xf32>
    %261 = tpu.matmul %258, %260, %cst_306 {dimension_numbers = #tpu.dot_dimension_numbers<[1], [0], [0], [1], [0, 0, 1, 1], [], []>} : vector<96x128xbf16>, vector<128x128xbf16>, vector<96x128xf32> -> vector<96x128xf32>
    %262 = arith.addf %257, %261 : vector<96x128xf32>
    %c114_307 = arith.constant 114 : index
    %c0_308 = arith.constant 0 : index
    %263 = vector.load %arg8[%c114_307, %c0_308] : memref<326x128xbf16, #tpu.memory_space<vmem>>, vector<96x128xbf16>
    %c1_309 = arith.constant 1 : index
    %c0_310 = arith.constant 0 : index
    %c0_311 = arith.constant 0 : index
    %c0_312 = arith.constant 0 : index
    %264 = vector.load %arg4[%c1_309, %c0_310, %c0_311, %c0_312] : memref<3x3x128x128xbf16, #tpu.memory_space<vmem>>, vector<1x1x128x128xbf16>
    %265 = vector.shape_cast %264 : vector<1x1x128x128xbf16> to vector<128x128xbf16>
    %cst_313 = arith.constant dense<0.000000e+00> : vector<96x128xf32>
    %266 = tpu.matmul %263, %265, %cst_313 {dimension_numbers = #tpu.dot_dimension_numbers<[1], [0], [0], [1], [0, 0, 1, 1], [], []>} : vector<96x128xbf16>, vector<128x128xbf16>, vector<96x128xf32> -> vector<96x128xf32>
    %267 = arith.addf %262, %266 : vector<96x128xf32>
    %c115_314 = arith.constant 115 : index
    %c0_315 = arith.constant 0 : index
    %268 = vector.load %arg8[%c115_314, %c0_315] : memref<326x128xbf16, #tpu.memory_space<vmem>>, vector<96x128xbf16>
    %c1_316 = arith.constant 1 : index
    %c1_317 = arith.constant 1 : index
    %c0_318 = arith.constant 0 : index
    %c0_319 = arith.constant 0 : index
    %269 = vector.load %arg4[%c1_316, %c1_317, %c0_318, %c0_319] : memref<3x3x128x128xbf16, #tpu.memory_space<vmem>>, vector<1x1x128x128xbf16>
    %270 = vector.shape_cast %269 : vector<1x1x128x128xbf16> to vector<128x128xbf16>
    %cst_320 = arith.constant dense<0.000000e+00> : vector<96x128xf32>
    %271 = tpu.matmul %268, %270, %cst_320 {dimension_numbers = #tpu.dot_dimension_numbers<[1], [0], [0], [1], [0, 0, 1, 1], [], []>} : vector<96x128xbf16>, vector<128x128xbf16>, vector<96x128xf32> -> vector<96x128xf32>
    %272 = arith.addf %267, %271 : vector<96x128xf32>
    %c116_321 = arith.constant 116 : index
    %c0_322 = arith.constant 0 : index
    %273 = vector.load %arg8[%c116_321, %c0_322] : memref<326x128xbf16, #tpu.memory_space<vmem>>, vector<96x128xbf16>
    %c1_323 = arith.constant 1 : index
    %c2_324 = arith.constant 2 : index
    %c0_325 = arith.constant 0 : index
    %c0_326 = arith.constant 0 : index
    %274 = vector.load %arg4[%c1_323, %c2_324, %c0_325, %c0_326] : memref<3x3x128x128xbf16, #tpu.memory_space<vmem>>, vector<1x1x128x128xbf16>
    %275 = vector.shape_cast %274 : vector<1x1x128x128xbf16> to vector<128x128xbf16>
    %cst_327 = arith.constant dense<0.000000e+00> : vector<96x128xf32>
    %276 = tpu.matmul %273, %275, %cst_327 {dimension_numbers = #tpu.dot_dimension_numbers<[1], [0], [0], [1], [0, 0, 1, 1], [], []>} : vector<96x128xbf16>, vector<128x128xbf16>, vector<96x128xf32> -> vector<96x128xf32>
    %277 = arith.addf %272, %276 : vector<96x128xf32>
    %c132_328 = arith.constant 132 : index
    %c0_329 = arith.constant 0 : index
    %278 = vector.load %arg8[%c132_328, %c0_329] : memref<326x128xbf16, #tpu.memory_space<vmem>>, vector<96x128xbf16>
    %c2_330 = arith.constant 2 : index
    %c0_331 = arith.constant 0 : index
    %c0_332 = arith.constant 0 : index
    %c0_333 = arith.constant 0 : index
    %279 = vector.load %arg4[%c2_330, %c0_331, %c0_332, %c0_333] : memref<3x3x128x128xbf16, #tpu.memory_space<vmem>>, vector<1x1x128x128xbf16>
    %280 = vector.shape_cast %279 : vector<1x1x128x128xbf16> to vector<128x128xbf16>
    %cst_334 = arith.constant dense<0.000000e+00> : vector<96x128xf32>
    %281 = tpu.matmul %278, %280, %cst_334 {dimension_numbers = #tpu.dot_dimension_numbers<[1], [0], [0], [1], [0, 0, 1, 1], [], []>} : vector<96x128xbf16>, vector<128x128xbf16>, vector<96x128xf32> -> vector<96x128xf32>
    %282 = arith.addf %277, %281 : vector<96x128xf32>
    %c133_335 = arith.constant 133 : index
    %c0_336 = arith.constant 0 : index
    %283 = vector.load %arg8[%c133_335, %c0_336] : memref<326x128xbf16, #tpu.memory_space<vmem>>, vector<96x128xbf16>
    %c2_337 = arith.constant 2 : index
    %c1_338 = arith.constant 1 : index
    %c0_339 = arith.constant 0 : index
    %c0_340 = arith.constant 0 : index
    %284 = vector.load %arg4[%c2_337, %c1_338, %c0_339, %c0_340] : memref<3x3x128x128xbf16, #tpu.memory_space<vmem>>, vector<1x1x128x128xbf16>
    %285 = vector.shape_cast %284 : vector<1x1x128x128xbf16> to vector<128x128xbf16>
    %cst_341 = arith.constant dense<0.000000e+00> : vector<96x128xf32>
    %286 = tpu.matmul %283, %285, %cst_341 {dimension_numbers = #tpu.dot_dimension_numbers<[1], [0], [0], [1], [0, 0, 1, 1], [], []>} : vector<96x128xbf16>, vector<128x128xbf16>, vector<96x128xf32> -> vector<96x128xf32>
    %287 = arith.addf %282, %286 : vector<96x128xf32>
    %c134_342 = arith.constant 134 : index
    %c0_343 = arith.constant 0 : index
    %288 = vector.load %arg8[%c134_342, %c0_343] : memref<326x128xbf16, #tpu.memory_space<vmem>>, vector<96x128xbf16>
    %c2_344 = arith.constant 2 : index
    %c2_345 = arith.constant 2 : index
    %c0_346 = arith.constant 0 : index
    %c0_347 = arith.constant 0 : index
    %289 = vector.load %arg4[%c2_344, %c2_345, %c0_346, %c0_347] : memref<3x3x128x128xbf16, #tpu.memory_space<vmem>>, vector<1x1x128x128xbf16>
    %290 = vector.shape_cast %289 : vector<1x1x128x128xbf16> to vector<128x128xbf16>
    %cst_348 = arith.constant dense<0.000000e+00> : vector<96x128xf32>
    %291 = tpu.matmul %288, %290, %cst_348 {dimension_numbers = #tpu.dot_dimension_numbers<[1], [0], [0], [1], [0, 0, 1, 1], [], []>} : vector<96x128xbf16>, vector<128x128xbf16>, vector<96x128xf32> -> vector<96x128xf32>
    %292 = arith.addf %287, %291 : vector<96x128xf32>
    %c0_349 = arith.constant 0 : index
    %c115_350 = arith.constant 115 : index
    %c0_351 = arith.constant 0 : index
    %293 = vector.load %arg1[%c0_349, %c115_350, %c0_351] : memref<1x342x128xbf16, #tpu.memory_space<vmem>>, vector<1x96x128xbf16>
    %294 = vector.shape_cast %293 : vector<1x96x128xbf16> to vector<96x128xbf16>
    %295 = arith.extf %294 : vector<96x128xbf16> to vector<96x128xf32>
    %c0_352 = arith.constant 0 : index
    %c0_353 = arith.constant 0 : index
    %296 = vector.load %arg6[%c0_352, %c0_353] : memref<1x128xf32, #tpu.memory_space<vmem>>, vector<1x128xf32>
    %297 = vector.broadcast %296 : vector<1x128xf32> to vector<96x128xf32>
    %298 = arith.addf %292, %297 : vector<96x128xf32>
    %299 = arith.addf %298, %295 : vector<96x128xf32>
    %cst_354 = arith.constant 0.000000e+00 : f32
    %300 = vector.broadcast %cst_354 : f32 to vector<96x128xf32>
    %301 = arith.maximumf %299, %300 : vector<96x128xf32>
    %c0_355 = arith.constant 0 : index
    %c96_356 = arith.constant 96 : index
    %c0_357 = arith.constant 0 : index
    %302 = vector.load %arg7[%c0_355, %c96_356, %c0_357] : memref<1x288x128xf32, #tpu.memory_space<vmem>>, vector<1x96x128xf32>
    %303 = vector.shape_cast %302 : vector<1x96x128xf32> to vector<96x128xf32>
    %304 = vector.shape_cast %301 : vector<96x128xf32> to vector<1x96x128xf32>
    tpu.vector_store %arg7[%c0_355, %c96_356, %c0_357], %304 {strides = array<i32>} : memref<1x288x128xf32, #tpu.memory_space<vmem>>, vector<1x96x128xf32>,
    %c192_358 = arith.constant 192 : index
    %c0_359 = arith.constant 0 : index
    %305 = vector.load %arg8[%c192_358, %c0_359] : memref<326x128xbf16, #tpu.memory_space<vmem>>, vector<96x128xbf16>
    %c0_360 = arith.constant 0 : index
    %c0_361 = arith.constant 0 : index
    %c0_362 = arith.constant 0 : index
    %c0_363 = arith.constant 0 : index
    %306 = vector.load %arg4[%c0_360, %c0_361, %c0_362, %c0_363] : memref<3x3x128x128xbf16, #tpu.memory_space<vmem>>, vector<1x1x128x128xbf16>
    %307 = vector.shape_cast %306 : vector<1x1x128x128xbf16> to vector<128x128xbf16>
    %cst_364 = arith.constant dense<0.000000e+00> : vector<96x128xf32>
    %308 = tpu.matmul %305, %307, %cst_364 {dimension_numbers = #tpu.dot_dimension_numbers<[1], [0], [0], [1], [0, 0, 1, 1], [], []>} : vector<96x128xbf16>, vector<128x128xbf16>, vector<96x128xf32> -> vector<96x128xf32>
    %c193_365 = arith.constant 193 : index
    %c0_366 = arith.constant 0 : index
    %309 = vector.load %arg8[%c193_365, %c0_366] : memref<326x128xbf16, #tpu.memory_space<vmem>>, vector<96x128xbf16>
    %c0_367 = arith.constant 0 : index
    %c1_368 = arith.constant 1 : index
    %c0_369 = arith.constant 0 : index
    %c0_370 = arith.constant 0 : index
    %310 = vector.load %arg4[%c0_367, %c1_368, %c0_369, %c0_370] : memref<3x3x128x128xbf16, #tpu.memory_space<vmem>>, vector<1x1x128x128xbf16>
    %311 = vector.shape_cast %310 : vector<1x1x128x128xbf16> to vector<128x128xbf16>
    %cst_371 = arith.constant dense<0.000000e+00> : vector<96x128xf32>
    %312 = tpu.matmul %309, %311, %cst_371 {dimension_numbers = #tpu.dot_dimension_numbers<[1], [0], [0], [1], [0, 0, 1, 1], [], []>} : vector<96x128xbf16>, vector<128x128xbf16>, vector<96x128xf32> -> vector<96x128xf32>
    %313 = arith.addf %308, %312 : vector<96x128xf32>
    %c194_372 = arith.constant 194 : index
    %c0_373 = arith.constant 0 : index
    %314 = vector.load %arg8[%c194_372, %c0_373] : memref<326x128xbf16, #tpu.memory_space<vmem>>, vector<96x128xbf16>
    %c0_374 = arith.constant 0 : index
    %c2_375 = arith.constant 2 : index
    %c0_376 = arith.constant 0 : index
    %c0_377 = arith.constant 0 : index
    %315 = vector.load %arg4[%c0_374, %c2_375, %c0_376, %c0_377] : memref<3x3x128x128xbf16, #tpu.memory_space<vmem>>, vector<1x1x128x128xbf16>
    %316 = vector.shape_cast %315 : vector<1x1x128x128xbf16> to vector<128x128xbf16>
    %cst_378 = arith.constant dense<0.000000e+00> : vector<96x128xf32>
    %317 = tpu.matmul %314, %316, %cst_378 {dimension_numbers = #tpu.dot_dimension_numbers<[1], [0], [0], [1], [0, 0, 1, 1], [], []>} : vector<96x128xbf16>, vector<128x128xbf16>, vector<96x128xf32> -> vector<96x128xf32>
    %318 = arith.addf %313, %317 : vector<96x128xf32>
    %c210_379 = arith.constant 210 : index
    %c0_380 = arith.constant 0 : index
    %319 = vector.load %arg8[%c210_379, %c0_380] : memref<326x128xbf16, #tpu.memory_space<vmem>>, vector<96x128xbf16>
    %c1_381 = arith.constant 1 : index
    %c0_382 = arith.constant 0 : index
    %c0_383 = arith.constant 0 : index
    %c0_384 = arith.constant 0 : index
    %320 = vector.load %arg4[%c1_381, %c0_382, %c0_383, %c0_384] : memref<3x3x128x128xbf16, #tpu.memory_space<vmem>>, vector<1x1x128x128xbf16>
    %321 = vector.shape_cast %320 : vector<1x1x128x128xbf16> to vector<128x128xbf16>
    %cst_385 = arith.constant dense<0.000000e+00> : vector<96x128xf32>
    %322 = tpu.matmul %319, %321, %cst_385 {dimension_numbers = #tpu.dot_dimension_numbers<[1], [0], [0], [1], [0, 0, 1, 1], [], []>} : vector<96x128xbf16>, vector<128x128xbf16>, vector<96x128xf32> -> vector<96x128xf32>
    %323 = arith.addf %318, %322 : vector<96x128xf32>
    %c211_386 = arith.constant 211 : index
    %c0_387 = arith.constant 0 : index
    %324 = vector.load %arg8[%c211_386, %c0_387] : memref<326x128xbf16, #tpu.memory_space<vmem>>, vector<96x128xbf16>
    %c1_388 = arith.constant 1 : index
    %c1_389 = arith.constant 1 : index
    %c0_390 = arith.constant 0 : index
    %c0_391 = arith.constant 0 : index
    %325 = vector.load %arg4[%c1_388, %c1_389, %c0_390, %c0_391] : memref<3x3x128x128xbf16, #tpu.memory_space<vmem>>, vector<1x1x128x128xbf16>
    %326 = vector.shape_cast %325 : vector<1x1x128x128xbf16> to vector<128x128xbf16>
    %cst_392 = arith.constant dense<0.000000e+00> : vector<96x128xf32>
    %327 = tpu.matmul %324, %326, %cst_392 {dimension_numbers = #tpu.dot_dimension_numbers<[1], [0], [0], [1], [0, 0, 1, 1], [], []>} : vector<96x128xbf16>, vector<128x128xbf16>, vector<96x128xf32> -> vector<96x128xf32>
    %328 = arith.addf %323, %327 : vector<96x128xf32>
    %c212_393 = arith.constant 212 : index
    %c0_394 = arith.constant 0 : index
    %329 = vector.load %arg8[%c212_393, %c0_394] : memref<326x128xbf16, #tpu.memory_space<vmem>>, vector<96x128xbf16>
    %c1_395 = arith.constant 1 : index
    %c2_396 = arith.constant 2 : index
    %c0_397 = arith.constant 0 : index
    %c0_398 = arith.constant 0 : index
    %330 = vector.load %arg4[%c1_395, %c2_396, %c0_397, %c0_398] : memref<3x3x128x128xbf16, #tpu.memory_space<vmem>>, vector<1x1x128x128xbf16>
    %331 = vector.shape_cast %330 : vector<1x1x128x128xbf16> to vector<128x128xbf16>
    %cst_399 = arith.constant dense<0.000000e+00> : vector<96x128xf32>
    %332 = tpu.matmul %329, %331, %cst_399 {dimension_numbers = #tpu.dot_dimension_numbers<[1], [0], [0], [1], [0, 0, 1, 1], [], []>} : vector<96x128xbf16>, vector<128x128xbf16>, vector<96x128xf32> -> vector<96x128xf32>
    %333 = arith.addf %328, %332 : vector<96x128xf32>
    %c228_400 = arith.constant 228 : index
    %c0_401 = arith.constant 0 : index
    %334 = vector.load %arg8[%c228_400, %c0_401] : memref<326x128xbf16, #tpu.memory_space<vmem>>, vector<96x128xbf16>
    %c2_402 = arith.constant 2 : index
    %c0_403 = arith.constant 0 : index
    %c0_404 = arith.constant 0 : index
    %c0_405 = arith.constant 0 : index
    %335 = vector.load %arg4[%c2_402, %c0_403, %c0_404, %c0_405] : memref<3x3x128x128xbf16, #tpu.memory_space<vmem>>, vector<1x1x128x128xbf16>
    %336 = vector.shape_cast %335 : vector<1x1x128x128xbf16> to vector<128x128xbf16>
    %cst_406 = arith.constant dense<0.000000e+00> : vector<96x128xf32>
    %337 = tpu.matmul %334, %336, %cst_406 {dimension_numbers = #tpu.dot_dimension_numbers<[1], [0], [0], [1], [0, 0, 1, 1], [], []>} : vector<96x128xbf16>, vector<128x128xbf16>, vector<96x128xf32> -> vector<96x128xf32>
    %338 = arith.addf %333, %337 : vector<96x128xf32>
    %c229_407 = arith.constant 229 : index
    %c0_408 = arith.constant 0 : index
    %339 = vector.load %arg8[%c229_407, %c0_408] : memref<326x128xbf16, #tpu.memory_space<vmem>>, vector<96x128xbf16>
    %c2_409 = arith.constant 2 : index
    %c1_410 = arith.constant 1 : index
    %c0_411 = arith.constant 0 : index
    %c0_412 = arith.constant 0 : index
    %340 = vector.load %arg4[%c2_409, %c1_410, %c0_411, %c0_412] : memref<3x3x128x128xbf16, #tpu.memory_space<vmem>>, vector<1x1x128x128xbf16>
    %341 = vector.shape_cast %340 : vector<1x1x128x128xbf16> to vector<128x128xbf16>
    %cst_413 = arith.constant dense<0.000000e+00> : vector<96x128xf32>
    %342 = tpu.matmul %339, %341, %cst_413 {dimension_numbers = #tpu.dot_dimension_numbers<[1], [0], [0], [1], [0, 0, 1, 1], [], []>} : vector<96x128xbf16>, vector<128x128xbf16>, vector<96x128xf32> -> vector<96x128xf32>
    %343 = arith.addf %338, %342 : vector<96x128xf32>
    %c230_414 = arith.constant 230 : index
    %c0_415 = arith.constant 0 : index
    %344 = vector.load %arg8[%c230_414, %c0_415] : memref<326x128xbf16, #tpu.memory_space<vmem>>, vector<96x128xbf16>
    %c2_416 = arith.constant 2 : index
    %c2_417 = arith.constant 2 : index
    %c0_418 = arith.constant 0 : index
    %c0_419 = arith.constant 0 : index
    %345 = vector.load %arg4[%c2_416, %c2_417, %c0_418, %c0_419] : memref<3x3x128x128xbf16, #tpu.memory_space<vmem>>, vector<1x1x128x128xbf16>
    %346 = vector.shape_cast %345 : vector<1x1x128x128xbf16> to vector<128x128xbf16>
    %cst_420 = arith.constant dense<0.000000e+00> : vector<96x128xf32>
    %347 = tpu.matmul %344, %346, %cst_420 {dimension_numbers = #tpu.dot_dimension_numbers<[1], [0], [0], [1], [0, 0, 1, 1], [], []>} : vector<96x128xbf16>, vector<128x128xbf16>, vector<96x128xf32> -> vector<96x128xf32>
    %348 = arith.addf %343, %347 : vector<96x128xf32>
    %c0_421 = arith.constant 0 : index
    %c211_422 = arith.constant 211 : index
    %c0_423 = arith.constant 0 : index
    %349 = vector.load %arg1[%c0_421, %c211_422, %c0_423] : memref<1x342x128xbf16, #tpu.memory_space<vmem>>, vector<1x96x128xbf16>
    %350 = vector.shape_cast %349 : vector<1x96x128xbf16> to vector<96x128xbf16>
    %351 = arith.extf %350 : vector<96x128xbf16> to vector<96x128xf32>
    %c0_424 = arith.constant 0 : index
    %c0_425 = arith.constant 0 : index
    %352 = vector.load %arg6[%c0_424, %c0_425] : memref<1x128xf32, #tpu.memory_space<vmem>>, vector<1x128xf32>
    %353 = vector.broadcast %352 : vector<1x128xf32> to vector<96x128xf32>
    %354 = arith.addf %348, %353 : vector<96x128xf32>
    %355 = arith.addf %354, %351 : vector<96x128xf32>
    %cst_426 = arith.constant 0.000000e+00 : f32
    %356 = vector.broadcast %cst_426 : f32 to vector<96x128xf32>
    %357 = arith.maximumf %355, %356 : vector<96x128xf32>
    %c0_427 = arith.constant 0 : index
    %c192_428 = arith.constant 192 : index
    %c0_429 = arith.constant 0 : index
    %358 = vector.load %arg7[%c0_427, %c192_428, %c0_429] : memref<1x288x128xf32, #tpu.memory_space<vmem>>, vector<1x96x128xf32>
    %359 = vector.shape_cast %358 : vector<1x96x128xf32> to vector<96x128xf32>
    %360 = vector.shape_cast %357 : vector<96x128xf32> to vector<1x96x128xf32>
    tpu.vector_store %arg7[%c0_427, %c192_428, %c0_429], %360 {strides = array<i32>} : memref<1x288x128xf32, #tpu.memory_space<vmem>>, vector<1x96x128xf32>,
    return
  }
  func.func @transform_0(%arg0: i32) -> (i32, i32, i32) {
    %c0_i32 = arith.constant 0 : i32
    %c0_i32_0 = arith.constant 0 : i32
    %c0_i32_1 = arith.constant 0 : i32
    return %arg0, %c0_i32, %c0_i32_0 : i32, i32, i32
  }
  func.func @transform_1(%arg0: i32) -> (i32, i32) {
    %c0_i32 = arith.constant 0 : i32
    %c0_i32_0 = arith.constant 0 : i32
    %c0_i32_1 = arith.constant 0 : i32
    return %c0_i32, %c0_i32_0 : i32, i32
  }
  func.func @transform_2(%arg0: i32) -> (i32, i32, i32, i32) {
    %c0_i32 = arith.constant 0 : i32
    %c0_i32_0 = arith.constant 0 : i32
    %c0_i32_1 = arith.constant 0 : i32
    %c0_i32_2 = arith.constant 0 : i32
    %c0_i32_3 = arith.constant 0 : i32
    return %c0_i32, %c0_i32_0, %c0_i32_1, %c0_i32_2 : i32, i32, i32, i32
  }
  func.func @transform_3(%arg0: i32) -> (i32, i32, i32, i32) {
    %c0_i32 = arith.constant 0 : i32
    %c0_i32_0 = arith.constant 0 : i32
    %c0_i32_1 = arith.constant 0 : i32
    %c0_i32_2 = arith.constant 0 : i32
    %c0_i32_3 = arith.constant 0 : i32
    return %c0_i32, %c0_i32_0, %c0_i32_1, %c0_i32_2 : i32, i32, i32, i32
  }
  func.func @transform_4(%arg0: i32) -> (i32, i32) {
    %c0_i32 = arith.constant 0 : i32
    %c0_i32_0 = arith.constant 0 : i32
    %c0_i32_1 = arith.constant 0 : i32
    return %c0_i32, %c0_i32_0 : i32, i32
  }
  func.func @transform_5(%arg0: i32) -> (i32, i32) {
    %c0_i32 = arith.constant 0 : i32
    %c0_i32_0 = arith.constant 0 : i32
    %c0_i32_1 = arith.constant 0 : i32
    return %c0_i32, %c0_i32_0 : i32, i32
  }
  func.func @transform_6(%arg0: i32) -> (i32, i32, i32) {
    %c0_i32 = arith.constant 0 : i32
    %c0_i32_0 = arith.constant 0 : i32
    %c0_i32_1 = arith.constant 0 : i32
    return %arg0, %c0_i32, %c0_i32_0 : i32, i32, i32
  }
}

</mosaic_0001>

<llo_original>
// kernel: basic_block_forward.1
$region0: #{basic_block_forward.1}
  #allocation0 [shape = 'u32[]', space=smem, size = 0x4, offset = 0x4, fixed_abs, tag = 'smem constant byte address 0x4 - core index']
  #allocation1 [shape = 'u32[144,128]{1,0:T(1,128)}', space=vmem, size = 0x12000, scoped, tag = 'internal scratch']
  #allocation2 [shape = 'bf16[326,128]{1,0:T(8,128)(2,1)}', space=vmem, size = 0x14800, scoped, tag = 'scratch operand']
  %s0 = inlined_call_operand.vmem [shape: bf16[2,342,128], index: 0, kind: input, shape index: {}]
  %s1 = inlined_call_operand.vmem [shape: f32[288,1], index: 1, kind: input, shape index: {}]
  %s2 = inlined_call_operand.vmem [shape: bf16[3,3,128,128], index: 2, kind: input, shape index: {}]
  %s3 = inlined_call_operand.vmem [shape: bf16[3,3,128,128], index: 3, kind: input, shape index: {}]
  %s4 = inlined_call_operand.vmem [shape: f32[1,128], index: 4, kind: input, shape index: {}]
  %s5 = inlined_call_operand.vmem [shape: f32[1,128], index: 5, kind: input, shape index: {}]
  %s6 = inlined_call_operand.vmem [shape: f32[2,288,128], index: 6, kind: output, shape index: {}]
  %s7 = sld [smem:[#allocation0]]
  $region57: #{basic_block_forward.1} parent=0
    _
  %s9 = ssub.s32 1, %s7
  %s10 = scalar_select 0, %s9, %s7
  loop: start=0, step=1, limit=4
  $region2: #{basic_block_forward.1} parent=0 // loop_pre_header
    _
  $region3: #{basic_block_forward.1} parent=0 // loop_header
    %s12 = sphi 0, %s16
    %p13 = scmp.ge.s32.totalorder %s12, 4
    %s22 = sphi 0, %s24
    %s25 = sphi 0, %s22
    %s26 = sphi 0, %s25
    %s42 = sphi 0, %s26
    %s46 = sphi 0, %s46
    %s48 = sphi 0, %s46
    %s49 = sphi 0, %s48
    %s63 = sphi 0, %s49
    %s67 = sphi 0, %s67
    %s69 = sphi 0, %s67
    %s70 = sphi 0, %s69
    %s84 = sphi 0, %s70
    %s88 = sphi 0, %s88
    %s90 = sphi 0, %s88
    %s91 = sphi 0, %s90
    %s105 = sphi 0, %s91
    %s109 = sphi 0, %s109
    %s111 = sphi 0, %s109
    %s112 = sphi 0, %s111
    %s126 = sphi 0, %s112
    %s130 = sphi 0, %s130
    %s132 = sphi 0, %s130
    %s133 = sphi 0, %s132
    %s147 = sphi 0, %s133
    %s153 = sphi 0, %s155
    %s156 = sphi 0, %s153
    %s157 = sphi 0, %s156
    %s173 = sphi 0, %s157
  $region4: #{basic_block_forward.1} parent=0 // loop_header_branch
    %15 = sbr.rel (%p13) target = $region8
  $region5: #{basic_block_forward.1} parent=0 // loop_body
    %s17 = ssub.s32 %s12, 1
    %s18 = ssub.s32 %s12, 2
    %s19 = sadd.s32 %s12, 1
    %s20 = ssub.s32 %s12, %s19
    %p21 = scmp.eq.s32.totalorder %s20, 0
    %s23 = sadd.s32 %s22, 1
    %s24 = scalar_select %p21, %s22, %s23
    %p27 = pneg %p21
    %p28 = scmp.eq.s32.totalorder %s12, 1
    %p29 = por %p27, %p28
    %p30 = scmp.ne.s32.totalorder %s22, %s25
    %p31 = scmp.eq.s32.totalorder %s12, 0
    %p32 = por %p30, %p31
    %p33 = scmp.ne.s32.totalorder %s22, %s25
    %p34 = scmp.eq.s32.totalorder %s17, 1
    %p35 = por %p33, %p34
    %p36 = scmp.ne.s32.totalorder %s25, %s26
    %p37 = scmp.eq.s32.totalorder %s17, 0
    %p38 = por %p36, %p37
    %p39 = scmp.ne.s32.totalorder %s25, %s26
    %p40 = scmp.eq.s32.totalorder %s18, 1
    %p41 = por %p39, %p40
    %p43 = scmp.ne.s32.totalorder %s26, %s42
    %p44 = scmp.eq.s32.totalorder %s18, 0
    %p45 = por %p43, %p44
    %s47 = sadd.s32 %s46, 1
    %p50 = scmp.eq.s32.totalorder %s12, 1
    %p51 = scmp.ne.s32.totalorder %s46, %s48
    %p52 = scmp.eq.s32.totalorder %s12, 0
    %p53 = por %p51, %p52
    %p54 = scmp.ne.s32.totalorder %s46, %s48
    %p55 = scmp.eq.s32.totalorder %s17, 1
    %p56 = por %p54, %p55
    %p57 = scmp.ne.s32.totalorder %s48, %s49
    %p58 = scmp.eq.s32.totalorder %s17, 0
    %p59 = por %p57, %p58
    %p60 = scmp.ne.s32.totalorder %s48, %s49
    %p61 = scmp.eq.s32.totalorder %s18, 1
    %p62 = por %p60, %p61
    %p64 = scmp.ne.s32.totalorder %s49, %s63
    %p65 = scmp.eq.s32.totalorder %s18, 0
    %p66 = por %p64, %p65
    %s68 = sadd.s32 %s67, 1
    %p71 = scmp.eq.s32.totalorder %s12, 1
    %p72 = scmp.ne.s32.totalorder %s67, %s69
    %p73 = scmp.eq.s32.totalorder %s12, 0
    %p74 = por %p72, %p73
    %p75 = scmp.ne.s32.totalorder %s67, %s69
    %p76 = scmp.eq.s32.totalorder %s17, 1
    %p77 = por %p75, %p76
    %p78 = scmp.ne.s32.totalorder %s69, %s70
    %p79 = scmp.eq.s32.totalorder %s17, 0
    %p80 = por %p78, %p79
    %p81 = scmp.ne.s32.totalorder %s69, %s70
    %p82 = scmp.eq.s32.totalorder %s18, 1
    %p83 = por %p81, %p82
    %p85 = scmp.ne.s32.totalorder %s70, %s84
    %p86 = scmp.eq.s32.totalorder %s18, 0
    %p87 = por %p85, %p86
    %s89 = sadd.s32 %s88, 1
    %p92 = scmp.eq.s32.totalorder %s12, 1
    %p93 = scmp.ne.s32.totalorder %s88, %s90
    %p94 = scmp.eq.s32.totalorder %s12, 0
    %p95 = por %p93, %p94
    %p96 = scmp.ne.s32.totalorder %s88, %s90
    %p97 = scmp.eq.s32.totalorder %s17, 1
    %p98 = por %p96, %p97
    %p99 = scmp.ne.s32.totalorder %s90, %s91
    %p100 = scmp.eq.s32.totalorder %s17, 0
    %p101 = por %p99, %p100
    %p102 = scmp.ne.s32.totalorder %s90, %s91
    %p103 = scmp.eq.s32.totalorder %s18, 1
    %p104 = por %p102, %p103
    %p106 = scmp.ne.s32.totalorder %s91, %s105
    %p107 = scmp.eq.s32.totalorder %s18, 0
    %p108 = por %p106, %p107
    %s110 = sadd.s32 %s109, 1
    %p113 = scmp.eq.s32.totalorder %s12, 1
    %p114 = scmp.ne.s32.totalorder %s109, %s111
    %p115 = scmp.eq.s32.totalorder %s12, 0
    %p116 = por %p114, %p115
    %p117 = scmp.ne.s32.totalorder %s109, %s111
    %p118 = scmp.eq.s32.totalorder %s17, 1
    %p119 = por %p117, %p118
    %p120 = scmp.ne.s32.totalorder %s111, %s112
    %p121 = scmp.eq.s32.totalorder %s17, 0
    %p122 = por %p120, %p121
    %p123 = scmp.ne.s32.totalorder %s111, %s112
    %p124 = scmp.eq.s32.totalorder %s18, 1
    %p125 = por %p123, %p124
    %p127 = scmp.ne.s32.totalorder %s112, %s126
    %p128 = scmp.eq.s32.totalorder %s18, 0
    %p129 = por %p127, %p128
    %s131 = sadd.s32 %s130, 1
    %p134 = scmp.eq.s32.totalorder %s12, 1
    %p135 = scmp.ne.s32.totalorder %s130, %s132
    %p136 = scmp.eq.s32.totalorder %s12, 0
    %p137 = por %p135, %p136
    %p138 = scmp.ne.s32.totalorder %s130, %s132
    %p139 = scmp.eq.s32.totalorder %s17, 1
    %p140 = por %p138, %p139
    %p141 = scmp.ne.s32.totalorder %s132, %s133
    %p142 = scmp.eq.s32.totalorder %s17, 0
    %p143 = por %p141, %p142
    %p144 = scmp.ne.s32.totalorder %s132, %s133
    %p145 = scmp.eq.s32.totalorder %s18, 1
    %p146 = por %p144, %p145
    %p148 = scmp.ne.s32.totalorder %s133, %s147
    %p149 = scmp.eq.s32.totalorder %s18, 0
    %p150 = por %p148, %p149
    %s151 = ssub.s32 %s12, %s19
    %p152 = scmp.eq.s32.totalorder %s151, 0
    %s154 = sadd.s32 %s153, 1
    %s155 = scalar_select %p152, %s153, %s154
    %p158 = pneg %p152
    %p159 = scmp.eq.s32.totalorder %s12, 1
    %p160 = por %p158, %p159
    %p161 = scmp.ne.s32.totalorder %s153, %s156
    %p162 = scmp.eq.s32.totalorder %s12, 0
    %p163 = por %p161, %p162
    %p164 = scmp.ne.s32.totalorder %s153, %s156
    %p165 = scmp.eq.s32.totalorder %s17, 1
    %p166 = por %p164, %p165
    %p167 = scmp.ne.s32.totalorder %s156, %s157
    %p168 = scmp.eq.s32.totalorder %s17, 0
    %p169 = por %p167, %p168
    %p170 = scmp.ne.s32.totalorder %s156, %s157
    %p171 = scmp.eq.s32.totalorder %s18, 1
    %p172 = por %p170, %p171
    %p174 = scmp.ne.s32.totalorder %s157, %s173
    %p175 = scmp.eq.s32.totalorder %s18, 0
    %p176 = por %p174, %p175
    %p177 = scmp.le.s32.totalorder 1, %s12
    %p178 = scmp.lt.s32.totalorder %s12, 3
    %p179 = pnand %p177, %p178
    %p180 = pneg %p179
    // Predicated region
    $region9: #{basic_block_forward.1} parent=5 // pred_check
      _
    $region10: #{basic_block_forward.1} parent=5 // pred_check_branch
      %182 = sbr.rel (%p179) target = $region12
    $region11: #{basic_block_forward.1} parent=5 // pred_region
      %s183 = ssub.s32 %s12, 1
      // Predicated region
      $region13: #{basic_block_forward.1} parent=11 // pred_check
        %p184 = pneg %p59
      $region14: #{basic_block_forward.1} parent=11 // pred_check_branch
        %186 = sbr.rel (%p184) target = $region16
      $region15: #{basic_block_forward.1} parent=11 // pred_region
        _
      $region16: #{basic_block_forward.1} parent=11 // pred_fallthru
        _
      // Predicated region
      $region17: #{basic_block_forward.1} parent=11 // pred_check
        %p187 = pneg %p80
      $region18: #{basic_block_forward.1} parent=11 // pred_check_branch
        %189 = sbr.rel (%p187) target = $region20
      $region19: #{basic_block_forward.1} parent=11 // pred_region
        _
      $region20: #{basic_block_forward.1} parent=11 // pred_fallthru
        _
      // Predicated region
      $region21: #{basic_block_forward.1} parent=11 // pred_check
        %p190 = pneg %p101
      $region22: #{basic_block_forward.1} parent=11 // pred_check_branch
        %192 = sbr.rel (%p190) target = $region24
      $region23: #{basic_block_forward.1} parent=11 // pred_region
        _
      $region24: #{basic_block_forward.1} parent=11 // pred_fallthru
        _
      // Predicated region
      $region25: #{basic_block_forward.1} parent=11 // pred_check
        %p193 = pneg %p122
      $region26: #{basic_block_forward.1} parent=11 // pred_check_branch
        %195 = sbr.rel (%p193) target = $region28
      $region27: #{basic_block_forward.1} parent=11 // pred_region
        _
      $region28: #{basic_block_forward.1} parent=11 // pred_fallthru
        _
      // Predicated region
      $region29: #{basic_block_forward.1} parent=11 // pred_check
        %p196 = pneg %p143
      $region30: #{basic_block_forward.1} parent=11 // pred_check_branch
        %198 = sbr.rel (%p196) target = $region32
      $region31: #{basic_block_forward.1} parent=11 // pred_region
        _
      $region32: #{basic_block_forward.1} parent=11 // pred_fallthru
        _
    $region12: #{basic_block_forward.1} parent=5 // pred_fallthru
      _
    %p199 = scmp.lt.s32.totalorder %s12, 2
    // Predicated region
    $region33: #{basic_block_forward.1} parent=5 // pred_check
      %p200 = pneg %p199
    $region34: #{basic_block_forward.1} parent=5 // pred_check_branch
      %202 = sbr.rel (%p200) target = $region36
    $region35: #{basic_block_forward.1} parent=5 // pred_region
      // Predicated region
      $region37: #{basic_block_forward.1} parent=35 // pred_check
        %p203 = pneg %p32
      $region38: #{basic_block_forward.1} parent=35 // pred_check_branch
        %205 = sbr.rel (%p203) target = $region40
      $region39: #{basic_block_forward.1} parent=35 // pred_region
        %p206 = scmp.lt.s32.totalorder %s12, 1
        %s207 = scalar_select %p206, %s12, 1
        %s208 = smul.addr %s207, 43
        %s209 = smul.addr %s208, 4
        %s210 = scalar_lea.vmem %s0, %s209
      $region40: #{basic_block_forward.1} parent=35 // pred_fallthru
        _
    $region36: #{basic_block_forward.1} parent=5 // pred_fallthru
      _
    %p211 = scmp.le.s32.totalorder 1, %s12
    %p212 = scmp.lt.s32.totalorder %s12, 3
    %p213 = pnand %p211, %p212
    %p214 = pneg %p213
    // Predicated region
    $region41: #{basic_block_forward.1} parent=5 // pred_check
      _
    $region42: #{basic_block_forward.1} parent=5 // pred_check_branch
      %216 = sbr.rel (%p213) target = $region44
    $region43: #{basic_block_forward.1} parent=5 // pred_region
      %s217 = ssub.s32 %s12, 1
      %p218 = scmp.lt.s32.totalorder %s17, 1
      %s219 = scalar_select %p218, %s17, 1
      %s220 = smul.addr %s219, 43
      %s221 = smul.addr %s220, 4
      %s222 = scalar_lea.vmem %s0, %s221
      %p223 = pneg %p38
      %p224 = pneg %p35
      %p225 = pneg %p59
      %p226 = pneg %p56
      %p227 = pneg %p80
      %p228 = pneg %p77
      %p229 = pneg %p101
      %p230 = pneg %p98
      %p231 = pneg %p122
      %p232 = pneg %p119
      %p233 = pneg %p143
      %p234 = pneg %p140
      %p235 = pneg %p169
      %p236 = pneg %p166
      %p237 = scmp.lt.s32.totalorder %s17, 1
      %s238 = scalar_select %p237, %s17, 1
      %s239 = smul.addr %s238, 36
      %s240 = smul.addr %s239, 8
      %s241 = scalar_lea.vmem %s6, %s240
      %p242 = scmp.lt.s32.totalorder %s17, 1
      %s243 = scalar_select %p242, %s17, 1
      %s244 = smul.addr %s243, 43
      %s245 = smul.addr %s244, 4
      %s246 = scalar_lea.vmem %s0, %s245
      %p247 = scmp.lt.s32.totalorder %s17, 1
      %s248 = scalar_select %p247, %s17, 1
      %s249 = smul.addr %s248, 36
      %s250 = smul.addr %s249, 8
      %s251 = scalar_lea.vmem %s6, %s250
      %253 = vst [vmem:[#allocation2] sm:$0xf] 0
      %254 = vst [vmem:[#allocation2 + $0x4] sm:$0xf] 0
      %vm255 = vcmask 1041408
      %vm256 = vsmask.f32 1280
      %vm257 = vmand %vm255, %vm256
      %v258 = vld [vmem:[#allocation2 + $0x8] sm:$0x3]
      %v259 = vsel %vm257, 0, %v258
      %260 = vst [vmem:[#allocation2 + $0x8] sm:$0x3] %v259
      %vm261 = vcmask 1043457
      %vm262 = vsmask.f32 7942
      %vm263 = vmand %vm261, %vm262
      %v264 = vld [vmem:[#allocation2 + $0x98] sm:$0xe]
      %v265 = vsel %vm263, 0, %v264
      %266 = vst [vmem:[#allocation2 + $0x98] sm:$0xe] %v265
      %267 = vst [vmem:[#allocation2 + $0x9c] sm:$0xf] 0
      %268 = vst [vmem:[#allocation2 + $0xa0] sm:$0x7] 0
      %v269 = vld [vmem:[%s246] sm:$0xf]
      %v270 = vld [vmem:[%s246 + $0x4] sm:$0xf]
      %v271 = vld [vmem:[%s246 + $0x8] sm:$0xf]
      %v272 = vld [vmem:[%s246 + $0xc] sm:$0xf]
      %v273 = vld [vmem:[%s246 + $0x10] sm:$0xf]
      %v274 = vld [vmem:[%s246 + $0x14] sm:$0xf]
      %v275 = vld [vmem:[%s246 + $0x18] sm:$0xf]
      %v276 = vld [vmem:[%s246 + $0x1c] sm:$0xf]
      %v277 = vld [vmem:[%s246 + $0x20] sm:$0xf]
      %v278 = vld [vmem:[%s246 + $0x24] sm:$0xf]
      %v279 = vld [vmem:[%s246 + $0x28] sm:$0xf]
      %v280 = vld [vmem:[%s246 + $0x2c] sm:$0xf]
      %v281 = vld [vmem:[%s2] sm:$0xf]
      %v282 = vld [vmem:[%s2 + $0x4] sm:$0xf]
      %v283 = vld [vmem:[%s2 + $0x8] sm:$0xf]
      %v284 = vld [vmem:[%s2 + $0xc] sm:$0xf]
      %v285 = vld [vmem:[%s2 + $0x10] sm:$0xf]
      %v286 = vld [vmem:[%s2 + $0x14] sm:$0xf]
      %v287 = vld [vmem:[%s2 + $0x18] sm:$0xf]
      %v288 = vld [vmem:[%s2 + $0x1c] sm:$0xf]
      %v289 = vld [vmem:[%s2 + $0x20] sm:$0xf]
      %v290 = vld [vmem:[%s2 + $0x24] sm:$0xf]
      %v291 = vld [vmem:[%s2 + $0x28] sm:$0xf]
      %v292 = vld [vmem:[%s2 + $0x2c] sm:$0xf]
      %v293 = vld [vmem:[%s2 + $0x30] sm:$0xf]
      %v294 = vld [vmem:[%s2 + $0x34] sm:$0xf]
      %v295 = vld [vmem:[%s2 + $0x38] sm:$0xf]
      %v296 = vld [vmem:[%s2 + $0x3c] sm:$0xf]
      %v297 = vld [vmem:[%s246 + $0x30] sm:$0x1]
      %s298 = scalar_lea.vmem %s2, 64
      %v299 = vld [vmem:[%s298] sm:$0xf]
      %v300 = vld [vmem:[%s298 + $0x4] sm:$0xf]
      %v301 = vld [vmem:[%s298 + $0x8] sm:$0xf]
      %v302 = vld [vmem:[%s298 + $0xc] sm:$0xf]
      %v303 = vld [vmem:[%s298 + $0x10] sm:$0xf]
      %v304 = vld [vmem:[%s298 + $0x14] sm:$0xf]
      %v305 = vld [vmem:[%s298 + $0x18] sm:$0xf]
      %v306 = vld [vmem:[%s298 + $0x1c] sm:$0xf]
      %v307 = vld [vmem:[%s298 + $0x20] sm:$0xf]
      %v308 = vld [vmem:[%s298 + $0x24] sm:$0xf]
      %v309 = vld [vmem:[%s298 + $0x28] sm:$0xf]
      %v310 = vld [vmem:[%s298 + $0x2c] sm:$0xf]
      %v311 = vld [vmem:[%s298 + $0x30] sm:$0xf]
      %v312 = vld [vmem:[%s298 + $0x34] sm:$0xf]
      %v313 = vld [vmem:[%s298 + $0x38] sm:$0xf]
      %v314 = vld [vmem:[%s298 + $0x3c] sm:$0xf]
      %v328 = vunpack.c.l.b16 %v269
      %v329 = vunpack.c.l.b16 %v270
      %v330 = vunpack.c.l.b16 %v271
      %v331 = vunpack.c.l.b16 %v272
      %v332 = vunpack.c.l.b16 %v273
      %v333 = vunpack.c.l.b16 %v274
      %v334 = vunpack.c.l.b16 %v275
      %v335 = vunpack.c.l.b16 %v276
      %v336 = vunpack.c.l.b16 %v277
      %v337 = vunpack.c.l.b16 %v278
      %v338 = vunpack.c.l.b16 %v279
      %v339 = vunpack.c.l.b16 %v280
      %v340 = vunpack.c.l.b16 %v297
      %v341 = vpack.c.b16 %v329, %v328
      %v342 = vpack.c.b16 %v331, %v330
      %v343 = vpack.c.b16 %v333, %v332
      %v344 = vpack.c.b16 %v335, %v334
      %v345 = vpack.c.b16 %v337, %v336
      %v346 = vpack.c.b16 %v339, %v338
      %v347 = vpack.c.b16 %v340, %v340
      %vm348 = vsmask.f32 7424
      %v350 = vshrl.u32 %v341, 16
      %v352 = vshll.u32 %v341, 16
      %v354 = vrot.slane %v352, 1
      %v355 = vor.u32 %v350, %v354
      %v357 = vshll.u32 %v342, 16
      %v359 = vrot.slane %v357, 1
      %v360 = vsel %vm348, %v355, %v359
      %v361 = vshrl.u32 %v342, 16
      %v363 = vor.u32 %v361, %v359
      %v365 = vshll.u32 %v343, 16
      %v367 = vrot.slane %v365, 1
      %v368 = vsel %vm348, %v363, %v367
      %v369 = vshrl.u32 %v343, 16
      %v371 = vor.u32 %v369, %v367
      %v373 = vshll.u32 %v344, 16
      %v375 = vrot.slane %v373, 1
      %v376 = vsel %vm348, %v371, %v375
      %v377 = vshrl.u32 %v344, 16
      %v379 = vor.u32 %v377, %v375
      %v381 = vshll.u32 %v345, 16
      %v383 = vrot.slane %v381, 1
      %v384 = vsel %vm348, %v379, %v383
      %v385 = vshrl.u32 %v345, 16
      %v387 = vor.u32 %v385, %v383
      %v389 = vshll.u32 %v346, 16
      %v391 = vrot.slane %v389, 1
      %v392 = vsel %vm348, %v387, %v391
      %v393 = vshrl.u32 %v346, 16
      %v395 = vor.u32 %v393, %v391
      %v397 = vshll.u32 %v347, 16
      %v399 = vrot.slane %v397, 1
      %v400 = vsel %vm348, %v395, %v399
      %v423 = vunpack.c.l.b16 %v299
      %v424 = vunpack.c.l.b16 %v300
      %v425 = vunpack.c.l.b16 %v301
      %v426 = vunpack.c.l.b16 %v302
      %v427 = vunpack.c.l.b16 %v303
      %v428 = vunpack.c.l.b16 %v304
      %v429 = vunpack.c.l.b16 %v305
      %v430 = vunpack.c.l.b16 %v306
      %v431 = vunpack.c.l.b16 %v307
      %v432 = vunpack.c.l.b16 %v308
      %v433 = vunpack.c.l.b16 %v309
      %v434 = vunpack.c.l.b16 %v310
      %v435 = vunpack.c.l.b16 %v311
      %v436 = vunpack.c.l.b16 %v312
      %v437 = vunpack.c.l.b16 %v313
      %v438 = vunpack.c.l.b16 %v314
      %v439 = vpack.c.b16 %v424, %v423
      %v440 = vpack.c.b16 %v426, %v425
      %v441 = vpack.c.b16 %v428, %v427
      %v442 = vpack.c.b16 %v430, %v429
      %v443 = vpack.c.b16 %v432, %v431
      %v444 = vpack.c.b16 %v434, %v433
      %v445 = vpack.c.b16 %v436, %v435
      %v446 = vpack.c.b16 %v438, %v437
      %455 = vmatprep.subr.bf16.mxu0 0
      %456 = vmatpush1.bf16.msra.mxu0 %v439
      %457 = vmatprep.subr.bf16.mxu0 0
      %458 = vmatpush1.bf16.msra.mxu0 %v440
      %459 = vmatprep.subr.bf16.mxu0 0
      %460 = vmatpush1.bf16.msra.mxu0 %v441
      %461 = vmatprep.subr.bf16.mxu0 0
      %462 = vmatpush1.bf16.msra.mxu0 %v442
      %463 = vmatprep.subr.bf16.mxu0 0
      %464 = vmatpush1.bf16.msra.mxu0 %v443
      %465 = vmatprep.subr.bf16.mxu0 0
      %466 = vmatpush1.bf16.msra.mxu0 %v444
      %467 = vmatprep.subr.bf16.mxu0 0
      %468 = vmatpush1.bf16.msra.mxu0 %v445
      %469 = vmatprep.subr.bf16.mxu0 0
      %470 = vmatpush1.bf16.msra.mxu0 %v446
      %471 = vmatprep.subr.bf16.mxu0 0
      %472 = vmatpush1.bf16.msra.mxu0 0
      %473 = vmatprep.subr.bf16.mxu0 0
      %474 = vmatpush1.bf16.msra.mxu0 0
      %475 = vmatprep.subr.bf16.mxu0 0
      %476 = vmatpush1.bf16.msra.mxu0 0
      %477 = vmatprep.subr.bf16.mxu0 0
      %478 = vmatpush1.bf16.msra.mxu0 0
      %479 = vmatprep.subr.bf16.mxu0 0
      %480 = vmatpush1.bf16.msra.mxu0 0
      %481 = vmatprep.subr.bf16.mxu0 0
      %482 = vmatpush1.bf16.msra.mxu0 0
      %483 = vmatprep.subr.bf16.mxu0 0
      %484 = vmatpush1.bf16.msra.mxu0 0
      %485 = vmatprep.subr.bf16.mxu0 0
      %486 = vmatpush1.bf16.msra.mxu0 0
      %487 = vmatprep.mubr.bf16.mxu0 0
      %488 = vmatmul.mubr.bf16.gmra.mrb[0].mxu0 %v360
      %v489 = vpop.f32.mrb[0].mxu0
      %v490 = vadd.f32 0.0, %v489
      %v491 = vpop.f32.mrb[0].mxu0
      %v492 = vpop.f32.mrb[0].mxu0
      %v493 = vadd.f32 0.0, %v492
      %v494 = vpop.f32.mrb[0].mxu0
      %495 = vmatprep.mubr.bf16.mxu0 0
      %496 = vmatmul.mubr.bf16.gmra.mrb[0].mxu0 %v368
      %v497 = vpop.f32.mrb[0].mxu0
      %v498 = vadd.f32 0.0, %v497
      %v499 = vpop.f32.mrb[0].mxu0
      %v500 = vpop.f32.mrb[0].mxu0
      %v501 = vadd.f32 0.0, %v500
      %v502 = vpop.f32.mrb[0].mxu0
      %503 = vmatprep.mubr.bf16.mxu0 0
      %504 = vmatmul.mubr.bf16.gmra.mrb[0].mxu0 %v376
      %v505 = vpop.f32.mrb[0].mxu0
      %v506 = vadd.f32 0.0, %v505
      %v507 = vpop.f32.mrb[0].mxu0
      %v508 = vpop.f32.mrb[0].mxu0
      %v509 = vadd.f32 0.0, %v508
      %v510 = vpop.f32.mrb[0].mxu0
      %511 = vmatprep.mubr.bf16.mxu0 0
      %512 = vmatmul.mubr.bf16.gmra.mrb[0].mxu0 %v384
      %v513 = vpop.f32.mrb[0].mxu0
      %v514 = vadd.f32 0.0, %v513
      %v515 = vpop.f32.mrb[0].mxu0
      %v516 = vpop.f32.mrb[0].mxu0
      %v517 = vadd.f32 0.0, %v516
      %v518 = vpop.f32.mrb[0].mxu0
      %519 = vmatprep.mubr.bf16.mxu0 0
      %520 = vmatmul.mubr.bf16.gmra.mrb[0].mxu0 %v392
      %v521 = vpop.f32.mrb[0].mxu0
      %v522 = vadd.f32 0.0, %v521
      %v523 = vpop.f32.mrb[0].mxu0
      %v524 = vpop.f32.mrb[0].mxu0
      %v525 = vadd.f32 0.0, %v524
      %v526 = vpop.f32.mrb[0].mxu0
      %527 = vmatprep.mubr.bf16.mxu0 0
      %528 = vmatmul.mubr.bf16.gmra.mrb[0].mxu0 %v400
      %v529 = vpop.f32.mrb[0].mxu0
      %v530 = vadd.f32 0.0, %v529
      %v531 = vpop.f32.mrb[0].mxu0
      %v532 = vpop.f32.mrb[0].mxu0
      %v533 = vadd.f32 0.0, %v532
      %v534 = vpop.f32.mrb[0].mxu0
      %535 = vdwg.mxu0
      %v558 = vunpack.c.l.b16 %v281
      %v559 = vunpack.c.l.b16 %v282
      %v560 = vunpack.c.l.b16 %v283
      %v561 = vunpack.c.l.b16 %v284
      %v562 = vunpack.c.l.b16 %v285
      %v563 = vunpack.c.l.b16 %v286
      %v564 = vunpack.c.l.b16 %v287
      %v565 = vunpack.c.l.b16 %v288
      %v566 = vunpack.c.l.b16 %v289
      %v567 = vunpack.c.l.b16 %v290
      %v568 = vunpack.c.l.b16 %v291
      %v569 = vunpack.c.l.b16 %v292
      %v570 = vunpack.c.l.b16 %v293
      %v571 = vunpack.c.l.b16 %v294
      %v572 = vunpack.c.l.b16 %v295
      %v573 = vunpack.c.l.b16 %v296
      %v574 = vpack.c.b16 %v559, %v558
      %v575 = vpack.c.b16 %v561, %v560
      %v576 = vpack.c.b16 %v563, %v562
      %v577 = vpack.c.b16 %v565, %v564
      %v578 = vpack.c.b16 %v567, %v566
      %v579 = vpack.c.b16 %v569, %v568
      %v580 = vpack.c.b16 %v571, %v570
      %v581 = vpack.c.b16 %v573, %v572
      %590 = vmatprep.subr.bf16.mxu0 0
      %591 = vmatpush1.bf16.msra.mxu0 %v574
      %592 = vmatprep.subr.bf16.mxu0 0
      %593 = vmatpush1.bf16.msra.mxu0 %v575
      %594 = vmatprep.subr.bf16.mxu0 0
      %595 = vmatpush1.bf16.msra.mxu0 %v576
      %596 = vmatprep.subr.bf16.mxu0 0
      %597 = vmatpush1.bf16.msra.mxu0 %v577
      %598 = vmatprep.subr.bf16.mxu0 0
      %599 = vmatpush1.bf16.msra.mxu0 %v578
      %600 = vmatprep.subr.bf16.mxu0 0
      %601 = vmatpush1.bf16.msra.mxu0 %v579
      %602 = vmatprep.subr.bf16.mxu0 0
      %603 = vmatpush1.bf16.msra.mxu0 %v580
      %604 = vmatprep.subr.bf16.mxu0 0
      %605 = vmatpush1.bf16.msra.mxu0 %v581
      %606 = vmatprep.subr.bf16.mxu0 0
      %607 = vmatpush1.bf16.msra.mxu0 0
      %608 = vmatprep.subr.bf16.mxu0 0
      %609 = vmatpush1.bf16.msra.mxu0 0
      %610 = vmatprep.subr.bf16.mxu0 0
      %611 = vmatpush1.bf16.msra.mxu0 0
      %612 = vmatprep.subr.bf16.mxu0 0
      %613 = vmatpush1.bf16.msra.mxu0 0
      %614 = vmatprep.subr.bf16.mxu0 0
      %615 = vmatpush1.bf16.msra.mxu0 0
      %616 = vmatprep.subr.bf16.mxu0 0
      %617 = vmatpush1.bf16.msra.mxu0 0
      %618 = vmatprep.subr.bf16.mxu0 0
      %619 = vmatpush1.bf16.msra.mxu0 0
      %620 = vmatprep.subr.bf16.mxu0 0
      %621 = vmatpush1.bf16.msra.mxu0 0
      %622 = vmatprep.mubr.bf16.mxu0 0
      %623 = vmatmul.mubr.bf16.gmra.mrb[0].mxu0 %v341
      %v624 = vpop.f32.mrb[0].mxu0
      %v625 = vadd.f32 %v490, %v624
      %v626 = vpop.f32.mrb[0].mxu0
      %v627 = vpop.f32.mrb[0].mxu0
      %v628 = vadd.f32 %v493, %v627
      %v629 = vpop.f32.mrb[0].mxu0
      %630 = vmatprep.mubr.bf16.mxu0 0
      %631 = vmatmul.mubr.bf16.gmra.mrb[0].mxu0 %v342
      %v632 = vpop.f32.mrb[0].mxu0
      %v633 = vadd.f32 %v498, %v632
      %v634 = vpop.f32.mrb[0].mxu0
      %v635 = vpop.f32.mrb[0].mxu0
      %v636 = vadd.f32 %v501, %v635
      %v637 = vpop.f32.mrb[0].mxu0
      %638 = vmatprep.mubr.bf16.mxu0 0
      %639 = vmatmul.mubr.bf16.gmra.mrb[0].mxu0 %v343
      %v640 = vpop.f32.mrb[0].mxu0
      %v641 = vadd.f32 %v506, %v640
      %v642 = vpop.f32.mrb[0].mxu0
      %v643 = vpop.f32.mrb[0].mxu0
      %v644 = vadd.f32 %v509, %v643
      %v645 = vpop.f32.mrb[0].mxu0
      %646 = vmatprep.mubr.bf16.mxu0 0
      %647 = vmatmul.mubr.bf16.gmra.mrb[0].mxu0 %v344
      %v648 = vpop.f32.mrb[0].mxu0
      %v649 = vadd.f32 %v514, %v648
      %v650 = vpop.f32.mrb[0].mxu0
      %v651 = vpop.f32.mrb[0].mxu0
      %v652 = vadd.f32 %v517, %v651
      %v653 = vpop.f32.mrb[0].mxu0
      %654 = vmatprep.mubr.bf16.mxu0 0
      %655 = vmatmul.mubr.bf16.gmra.mrb[0].mxu0 %v345
      %v656 = vpop.f32.mrb[0].mxu0
      %v657 = vadd.f32 %v522, %v656
      %v658 = vpop.f32.mrb[0].mxu0
      %v659 = vpop.f32.mrb[0].mxu0
      %v660 = vadd.f32 %v525, %v659
      %v661 = vpop.f32.mrb[0].mxu0
      %662 = vmatprep.mubr.bf16.mxu0 0
      %663 = vmatmul.mubr.bf16.gmra.mrb[0].mxu0 %v346
      %v664 = vpop.f32.mrb[0].mxu0
      %v665 = vadd.f32 %v530, %v664
      %v666 = vpop.f32.mrb[0].mxu0
      %v667 = vpop.f32.mrb[0].mxu0
      %v668 = vadd.f32 %v533, %v667
      %v669 = vpop.f32.mrb[0].mxu0
      %670 = vdwg.mxu0
      %v671 = vld [vmem:[%s246] sm:$0xe]
      %s672 = scalar_lea.vmem %s2, 128
      %v673 = vld [vmem:[%s672] sm:$0xf]
      %v674 = vld [vmem:[%s672 + $0x4] sm:$0xf]
      %v675 = vld [vmem:[%s672 + $0x8] sm:$0xf]
      %v676 = vld [vmem:[%s672 + $0xc] sm:$0xf]
      %v677 = vld [vmem:[%s672 + $0x10] sm:$0xf]
      %v678 = vld [vmem:[%s672 + $0x14] sm:$0xf]
      %v679 = vld [vmem:[%s672 + $0x18] sm:$0xf]
      %v680 = vld [vmem:[%s672 + $0x1c] sm:$0xf]
      %v681 = vld [vmem:[%s672 + $0x20] sm:$0xf]
      %v682 = vld [vmem:[%s672 + $0x24] sm:$0xf]
      %v683 = vld [vmem:[%s672 + $0x28] sm:$0xf]
      %v684 = vld [vmem:[%s672 + $0x2c] sm:$0xf]
      %v685 = vld [vmem:[%s672 + $0x30] sm:$0xf]
      %v686 = vld [vmem:[%s672 + $0x34] sm:$0xf]
      %v687 = vld [vmem:[%s672 + $0x38] sm:$0xf]
      %v688 = vld [vmem:[%s672 + $0x3c] sm:$0xf]
      %v690 = vunpack.c.l.b16 %v671
      %v691 = vpack.c.b16 %v329, %v690
      %vm692 = vcmask 1046528
      %v693 = vrot.slane %v691, 1
      %v694 = vrot.slane %v342, 1
      %v695 = vsel %vm692, %v693, %v694
      %v696 = vrot.slane %v343, 1
      %v697 = vsel %vm692, %v694, %v696
      %v698 = vrot.slane %v344, 1
      %v699 = vsel %vm692, %v696, %v698
      %v700 = vrot.slane %v345, 1
      %v701 = vsel %vm692, %v698, %v700
      %v702 = vrot.slane %v346, 1
      %v703 = vsel %vm692, %v700, %v702
      %v704 = vrot.slane %v347, 1
      %v705 = vsel %vm692, %v702, %v704
      %v728 = vunpack.c.l.b16 %v673
      %v729 = vunpack.c.l.b16 %v674
      %v730 = vunpack.c.l.b16 %v675
      %v731 = vunpack.c.l.b16 %v676
      %v732 = vunpack.c.l.b16 %v677
      %v733 = vunpack.c.l.b16 %v678
      %v734 = vunpack.c.l.b16 %v679
      %v735 = vunpack.c.l.b16 %v680
      %v736 = vunpack.c.l.b16 %v681
      %v737 = vunpack.c.l.b16 %v682
      %v738 = vunpack.c.l.b16 %v683
      %v739 = vunpack.c.l.b16 %v684
      %v740 = vunpack.c.l.b16 %v685
      %v741 = vunpack.c.l.b16 %v686
      %v742 = vunpack.c.l.b16 %v687
      %v743 = vunpack.c.l.b16 %v688
      %v744 = vpack.c.b16 %v729, %v728
      %v745 = vpack.c.b16 %v731, %v730
      %v746 = vpack.c.b16 %v733, %v732
      %v747 = vpack.c.b16 %v735, %v734
      %v748 = vpack.c.b16 %v737, %v736
      %v749 = vpack.c.b16 %v739, %v738
      %v750 = vpack.c.b16 %v741, %v740
      %v751 = vpack.c.b16 %v743, %v742
      %760 = vmatprep.subr.bf16.mxu0 0
      %761 = vmatpush1.bf16.msra.mxu0 %v744
      %762 = vmatprep.subr.bf16.mxu0 0
      %763 = vmatpush1.bf16.msra.mxu0 %v745
      %764 = vmatprep.subr.bf16.mxu0 0
      %765 = vmatpush1.bf16.msra.mxu0 %v746
      %766 = vmatprep.subr.bf16.mxu0 0
      %767 = vmatpush1.bf16.msra.mxu0 %v747
      %768 = vmatprep.subr.bf16.mxu0 0
      %769 = vmatpush1.bf16.msra.mxu0 %v748
      %770 = vmatprep.subr.bf16.mxu0 0
      %771 = vmatpush1.bf16.msra.mxu0 %v749
      %772 = vmatprep.subr.bf16.mxu0 0
      %773 = vmatpush1.bf16.msra.mxu0 %v750
      %774 = vmatprep.subr.bf16.mxu0 0
      %775 = vmatpush1.bf16.msra.mxu0 %v751
      %776 = vmatprep.subr.bf16.mxu0 0
      %777 = vmatpush1.bf16.msra.mxu0 0
      %778 = vmatprep.subr.bf16.mxu0 0
      %779 = vmatpush1.bf16.msra.mxu0 0
      %780 = vmatprep.subr.bf16.mxu0 0
      %781 = vmatpush1.bf16.msra.mxu0 0
      %782 = vmatprep.subr.bf16.mxu0 0
      %783 = vmatpush1.bf16.msra.mxu0 0
      %784 = vmatprep.subr.bf16.mxu0 0
      %785 = vmatpush1.bf16.msra.mxu0 0
      %786 = vmatprep.subr.bf16.mxu0 0
      %787 = vmatpush1.bf16.msra.mxu0 0
      %788 = vmatprep.subr.bf16.mxu0 0
      %789 = vmatpush1.bf16.msra.mxu0 0
      %790 = vmatprep.subr.bf16.mxu0 0
      %791 = vmatpush1.bf16.msra.mxu0 0
      %792 = vmatprep.mubr.bf16.mxu0 0
      %793 = vmatmul.mubr.bf16.gmra.mrb[0].mxu0 %v695
      %v794 = vpop.f32.mrb[0].mxu0
      %v795 = vadd.f32 0.0, %v794
      %v796 = vpop.f32.mrb[0].mxu0
      %v797 = vpop.f32.mrb[0].mxu0
      %v798 = vadd.f32 0.0, %v797
      %v799 = vpop.f32.mrb[0].mxu0
      %800 = vmatprep.mubr.bf16.mxu0 0
      %801 = vmatmul.mubr.bf16.gmra.mrb[0].mxu0 %v697
      %v802 = vpop.f32.mrb[0].mxu0
      %v803 = vadd.f32 0.0, %v802
      %v804 = vpop.f32.mrb[0].mxu0
      %v805 = vpop.f32.mrb[0].mxu0
      %v806 = vadd.f32 0.0, %v805
      %v807 = vpop.f32.mrb[0].mxu0
      %808 = vmatprep.mubr.bf16.mxu0 0
      %809 = vmatmul.mubr.bf16.gmra.mrb[0].mxu0 %v699
      %v810 = vpop.f32.mrb[0].mxu0
      %v811 = vadd.f32 0.0, %v810
      %v812 = vpop.f32.mrb[0].mxu0
      %v813 = vpop.f32.mrb[0].mxu0
      %v814 = vadd.f32 0.0, %v813
      %v815 = vpop.f32.mrb[0].mxu0
      %816 = vmatprep.mubr.bf16.mxu0 0
      %817 = vmatmul.mubr.bf16.gmra.mrb[0].mxu0 %v701
      %v818 = vpop.f32.mrb[0].mxu0
      %v819 = vadd.f32 0.0, %v818
      %v820 = vpop.f32.mrb[0].mxu0
      %v821 = vpop.f32.mrb[0].mxu0
      %v822 = vadd.f32 0.0, %v821
      %v823 = vpop.f32.mrb[0].mxu0
      %824 = vmatprep.mubr.bf16.mxu0 0
      %825 = vmatmul.mubr.bf16.gmra.mrb[0].mxu0 %v703
      %v826 = vpop.f32.mrb[0].mxu0
      %v827 = vadd.f32 0.0, %v826
      %v828 = vpop.f32.mrb[0].mxu0
      %v829 = vpop.f32.mrb[0].mxu0
      %v830 = vadd.f32 0.0, %v829
      %v831 = vpop.f32.mrb[0].mxu0
      %832 = vmatprep.mubr.bf16.mxu0 0
      %833 = vmatmul.mubr.bf16.gmra.mrb[0].mxu0 %v705
      %v834 = vpop.f32.mrb[0].mxu0
      %v835 = vadd.f32 0.0, %v834
      %v836 = vpop.f32.mrb[0].mxu0
      %v837 = vpop.f32.mrb[0].mxu0
      %v838 = vadd.f32 0.0, %v837
      %v839 = vpop.f32.mrb[0].mxu0
      %840 = vdwg.mxu0
      %v841 = vadd.f32 %v625, %v795
      %v842 = vadd.f32 %v628, %v798
      %v843 = vadd.f32 %v633, %v803
      %v844 = vadd.f32 %v636, %v806
      %v845 = vadd.f32 %v641, %v811
      %v846 = vadd.f32 %v644, %v814
      %v847 = vadd.f32 %v649, %v819
      %v848 = vadd.f32 %v652, %v822
      %v849 = vadd.f32 %v657, %v827
      %v850 = vadd.f32 %v660, %v830
      %v851 = vadd.f32 %v665, %v835
      %v852 = vadd.f32 %v668, %v838
      %v853 = vld [vmem:[%s246 + $0x8] sm:$0xe]
      %v854 = vld [vmem:[%s246 + $0xc] sm:$0xf]
      %v855 = vld [vmem:[%s246 + $0x10] sm:$0xf]
      %v856 = vld [vmem:[%s246 + $0x14] sm:$0xf]
      %v857 = vld [vmem:[%s246 + $0x18] sm:$0xf]
      %v858 = vld [vmem:[%s246 + $0x1c] sm:$0xf]
      %v859 = vld [vmem:[%s246 + $0x20] sm:$0xf]
      %v860 = vld [vmem:[%s246 + $0x24] sm:$0xf]
      %v861 = vld [vmem:[%s246 + $0x28] sm:$0xf]
      %v862 = vld [vmem:[%s246 + $0x2c] sm:$0xf]
      %v863 = vld [vmem:[%s246 + $0x30] sm:$0xf]
      %v864 = vld [vmem:[%s246 + $0x34] sm:$0xf]
      %v865 = vld [vmem:[%s246 + $0x38] sm:$0x1]
      %s866 = scalar_lea.vmem %s2, 192
      %v867 = vld [vmem:[%s866] sm:$0xf]
      %v868 = vld [vmem:[%s866 + $0x4] sm:$0xf]
      %v869 = vld [vmem:[%s866 + $0x8] sm:$0xf]
      %v870 = vld [vmem:[%s866 + $0xc] sm:$0xf]
      %v871 = vld [vmem:[%s866 + $0x10] sm:$0xf]
      %v872 = vld [vmem:[%s866 + $0x14] sm:$0xf]
      %v873 = vld [vmem:[%s866 + $0x18] sm:$0xf]
      %v874 = vld [vmem:[%s866 + $0x1c] sm:$0xf]
      %v875 = vld [vmem:[%s866 + $0x20] sm:$0xf]
      %v876 = vld [vmem:[%s866 + $0x24] sm:$0xf]
      %v877 = vld [vmem:[%s866 + $0x28] sm:$0xf]
      %v878 = vld [vmem:[%s866 + $0x2c] sm:$0xf]
      %v879 = vld [vmem:[%s866 + $0x30] sm:$0xf]
      %v880 = vld [vmem:[%s866 + $0x34] sm:$0xf]
      %v881 = vld [vmem:[%s866 + $0x38] sm:$0xf]
      %v882 = vld [vmem:[%s866 + $0x3c] sm:$0xf]
      %v896 = vunpack.c.l.b16 %v853
      %v897 = vunpack.c.l.b16 %v854
      %v898 = vunpack.c.l.b16 %v855
      %v899 = vunpack.c.l.b16 %v856
      %v900 = vunpack.c.l.b16 %v857
      %v901 = vunpack.c.l.b16 %v858
      %v902 = vunpack.c.l.b16 %v859
      %v903 = vunpack.c.l.b16 %v860
      %v904 = vunpack.c.l.b16 %v861
      %v905 = vunpack.c.l.b16 %v862
      %v906 = vunpack.c.l.b16 %v863
      %v907 = vunpack.c.l.b16 %v864
      %v908 = vunpack.c.l.b16 %v865
      %v909 = vpack.c.b16 %v897, %v896
      %v910 = vpack.c.b16 %v899, %v898
      %v911 = vpack.c.b16 %v901, %v900
      %v912 = vpack.c.b16 %v903, %v902
      %v913 = vpack.c.b16 %v905, %v904
      %v914 = vpack.c.b16 %v907, %v906
      %v915 = vpack.c.b16 %v908, %v908
      %v916 = vrot.slane %v909, 1
      %v917 = vrot.slane %v910, 1
      %v918 = vsel %vm692, %v916, %v917
      %v919 = vrot.slane %v911, 1
      %v920 = vsel %vm692, %v917, %v919
      %v921 = vrot.slane %v912, 1
      %v922 = vsel %vm692, %v919, %v921
      %v923 = vrot.slane %v913, 1
      %v924 = vsel %vm692, %v921, %v923
      %v925 = vrot.slane %v914, 1
      %v926 = vsel %vm692, %v923, %v925
      %v927 = vrot.slane %v915, 1
      %v928 = vsel %vm692, %v925, %v927
      %v951 = vunpack.c.l.b16 %v867
      %v952 = vunpack.c.l.b16 %v868
      %v953 = vunpack.c.l.b16 %v869
      %v954 = vunpack.c.l.b16 %v870
      %v955 = vunpack.c.l.b16 %v871
      %v956 = vunpack.c.l.b16 %v872
      %v957 = vunpack.c.l.b16 %v873
      %v958 = vunpack.c.l.b16 %v874
      %v959 = vunpack.c.l.b16 %v875
      %v960 = vunpack.c.l.b16 %v876
      %v961 = vunpack.c.l.b16 %v877
      %v962 = vunpack.c.l.b16 %v878
      %v963 = vunpack.c.l.b16 %v879
      %v964 = vunpack.c.l.b16 %v880
      %v965 = vunpack.c.l.b16 %v881
      %v966 = vunpack.c.l.b16 %v882
      %v967 = vpack.c.b16 %v952, %v951
      %v968 = vpack.c.b16 %v954, %v953
      %v969 = vpack.c.b16 %v956, %v955
      %v970 = vpack.c.b16 %v958, %v957
      %v971 = vpack.c.b16 %v960, %v959
      %v972 = vpack.c.b16 %v962, %v961
      %v973 = vpack.c.b16 %v964, %v963
      %v974 = vpack.c.b16 %v966, %v965
      %983 = vmatprep.subr.bf16.mxu0 0
      %984 = vmatpush1.bf16.msra.mxu0 %v967
      %985 = vmatprep.subr.bf16.mxu0 0
      %986 = vmatpush1.bf16.msra.mxu0 %v968
      %987 = vmatprep.subr.bf16.mxu0 0
      %988 = vmatpush1.bf16.msra.mxu0 %v969
      %989 = vmatprep.subr.bf16.mxu0 0
      %990 = vmatpush1.bf16.msra.mxu0 %v970
      %991 = vmatprep.subr.bf16.mxu0 0
      %992 = vmatpush1.bf16.msra.mxu0 %v971
      %993 = vmatprep.subr.bf16.mxu0 0
      %994 = vmatpush1.bf16.msra.mxu0 %v972
      %995 = vmatprep.subr.bf16.mxu0 0
      %996 = vmatpush1.bf16.msra.mxu0 %v973
      %997 = vmatprep.subr.bf16.mxu0 0
      %998 = vmatpush1.bf16.msra.mxu0 %v974
      %999 = vmatprep.subr.bf16.mxu0 0
      %1000 = vmatpush1.bf16.msra.mxu0 0
      %1001 = vmatprep.subr.bf16.mxu0 0
      %1002 = vmatpush1.bf16.msra.mxu0 0
      %1003 = vmatprep.subr.bf16.mxu0 0
      %1004 = vmatpush1.bf16.msra.mxu0 0
      %1005 = vmatprep.subr.bf16.mxu0 0
      %1006 = vmatpush1.bf16.msra.mxu0 0
      %1007 = vmatprep.subr.bf16.mxu0 0
      %1008 = vmatpush1.bf16.msra.mxu0 0
      %1009 = vmatprep.subr.bf16.mxu0 0
      %1010 = vmatpush1.bf16.msra.mxu0 0
      %1011 = vmatprep.subr.bf16.mxu0 0
      %1012 = vmatpush1.bf16.msra.mxu0 0
      %1013 = vmatprep.subr.bf16.mxu0 0
      %1014 = vmatpush1.bf16.msra.mxu0 0
      %1015 = vmatprep.mubr.bf16.mxu0 0
      %1016 = vmatmul.mubr.bf16.gmra.mrb[0].mxu0 %v918
      %v1017 = vpop.f32.mrb[0].mxu0
      %v1018 = vadd.f32 0.0, %v1017
      %v1019 = vpop.f32.mrb[0].mxu0
      %v1020 = vpop.f32.mrb[0].mxu0
      %v1021 = vadd.f32 0.0, %v1020
      %v1022 = vpop.f32.mrb[0].mxu0
      %1023 = vmatprep.mubr.bf16.mxu0 0
      %1024 = vmatmul.mubr.bf16.gmra.mrb[0].mxu0 %v920
      %v1025 = vpop.f32.mrb[0].mxu0
      %v1026 = vadd.f32 0.0, %v1025
      %v1027 = vpop.f32.mrb[0].mxu0
      %v1028 = vpop.f32.mrb[0].mxu0
      %v1029 = vadd.f32 0.0, %v1028
      %v1030 = vpop.f32.mrb[0].mxu0
      %1031 = vmatprep.mubr.bf16.mxu0 0
      %1032 = vmatmul.mubr.bf16.gmra.mrb[0].mxu0 %v922
      %v1033 = vpop.f32.mrb[0].mxu0
      %v1034 = vadd.f32 0.0, %v1033
      %v1035 = vpop.f32.mrb[0].mxu0
      %v1036 = vpop.f32.mrb[0].mxu0
      %v1037 = vadd.f32 0.0, %v1036
      %v1038 = vpop.f32.mrb[0].mxu0
      %1039 = vmatprep.mubr.bf16.mxu0 0
      %1040 = vmatmul.mubr.bf16.gmra.mrb[0].mxu0 %v924
      %v1041 = vpop.f32.mrb[0].mxu0
      %v1042 = vadd.f32 0.0, %v1041
      %v1043 = vpop.f32.mrb[0].mxu0
      %v1044 = vpop.f32.mrb[0].mxu0
      %v1045 = vadd.f32 0.0, %v1044
      %v1046 = vpop.f32.mrb[0].mxu0
      %1047 = vmatprep.mubr.bf16.mxu0 0
      %1048 = vmatmul.mubr.bf16.gmra.mrb[0].mxu0 %v926
      %v1049 = vpop.f32.mrb[0].mxu0
      %v1050 = vadd.f32 0.0, %v1049
      %v1051 = vpop.f32.mrb[0].mxu0
      %v1052 = vpop.f32.mrb[0].mxu0
      %v1053 = vadd.f32 0.0, %v1052
      %v1054 = vpop.f32.mrb[0].mxu0
      %1055 = vmatprep.mubr.bf16.mxu0 0
      %1056 = vmatmul.mubr.bf16.gmra.mrb[0].mxu0 %v928
      %v1057 = vpop.f32.mrb[0].mxu0
      %v1058 = vadd.f32 0.0, %v1057
      %v1059 = vpop.f32.mrb[0].mxu0
      %v1060 = vpop.f32.mrb[0].mxu0
      %v1061 = vadd.f32 0.0, %v1060
      %v1062 = vpop.f32.mrb[0].mxu0
      %1063 = vdwg.mxu0
      %v1064 = vadd.f32 %v841, %v1018
      %v1065 = vadd.f32 %v842, %v1021
      %v1066 = vadd.f32 %v843, %v1026
      %v1067 = vadd.f32 %v844, %v1029
      %v1068 = vadd.f32 %v845, %v1034
      %v1069 = vadd.f32 %v846, %v1037
      %v1070 = vadd.f32 %v847, %v1042
      %v1071 = vadd.f32 %v848, %v1045
      %v1072 = vadd.f32 %v849, %v1050
      %v1073 = vadd.f32 %v850, %v1053
      %v1074 = vadd.f32 %v851, %v1058
      %v1075 = vadd.f32 %v852, %v1061
      %v1076 = vld [vmem:[%s246 + $0x38] sm:$0x3]
      %s1077 = scalar_lea.vmem %s2, 256
      %v1078 = vld [vmem:[%s1077] sm:$0xf]
      %v1079 = vld [vmem:[%s1077 + $0x4] sm:$0xf]
      %v1080 = vld [vmem:[%s1077 + $0x8] sm:$0xf]
      %v1081 = vld [vmem:[%s1077 + $0xc] sm:$0xf]
      %v1082 = vld [vmem:[%s1077 + $0x10] sm:$0xf]
      %v1083 = vld [vmem:[%s1077 + $0x14] sm:$0xf]
      %v1084 = vld [vmem:[%s1077 + $0x18] sm:$0xf]
      %v1085 = vld [vmem:[%s1077 + $0x1c] sm:$0xf]
      %v1086 = vld [vmem:[%s1077 + $0x20] sm:$0xf]
      %v1087 = vld [vmem:[%s1077 + $0x24] sm:$0xf]
      %v1088 = vld [vmem:[%s1077 + $0x28] sm:$0xf]
      %v1089 = vld [vmem:[%s1077 + $0x2c] sm:$0xf]
      %v1090 = vld [vmem:[%s1077 + $0x30] sm:$0xf]
      %v1091 = vld [vmem:[%s1077 + $0x34] sm:$0xf]
      %v1092 = vld [vmem:[%s1077 + $0x38] sm:$0xf]
      %v1093 = vld [vmem:[%s1077 + $0x3c] sm:$0xf]
      %v1095 = vunpack.c.l.b16 %v1076
      %v1096 = vpack.c.b16 %v1095, %v1095
      %vm1097 = vsmask.f32 6400
      %v1099 = vshrl.u32 %v909, 16
      %v1101 = vrot.slane %v1099, 1
      %v1102 = vshll.u32 %v909, 16
      %v1104 = vrot.slane %v1102, 2
      %v1105 = vor.u32 %v1101, %v1104
      %v1107 = vshrl.u32 %v910, 16
      %v1109 = vrot.slane %v1107, 1
      %v1110 = vshll.u32 %v910, 16
      %v1112 = vrot.slane %v1110, 2
      %v1113 = vor.u32 %v1109, %v1112
      %v1114 = vsel %vm1097, %v1105, %v1113
      %v1116 = vshrl.u32 %v911, 16
      %v1118 = vrot.slane %v1116, 1
      %v1119 = vshll.u32 %v911, 16
      %v1121 = vrot.slane %v1119, 2
      %v1122 = vor.u32 %v1118, %v1121
      %v1123 = vsel %vm1097, %v1113, %v1122
      %v1125 = vshrl.u32 %v912, 16
      %v1127 = vrot.slane %v1125, 1
      %v1128 = vshll.u32 %v912, 16
      %v1130 = vrot.slane %v1128, 2
      %v1131 = vor.u32 %v1127, %v1130
      %v1132 = vsel %vm1097, %v1122, %v1131
      %v1134 = vshrl.u32 %v913, 16
      %v1136 = vrot.slane %v1134, 1
      %v1137 = vshll.u32 %v913, 16
      %v1139 = vrot.slane %v1137, 2
      %v1140 = vor.u32 %v1136, %v1139
      %v1141 = vsel %vm1097, %v1131, %v1140
      %v1143 = vshrl.u32 %v914, 16
      %v1145 = vrot.slane %v1143, 1
      %v1146 = vshll.u32 %v914, 16
      %v1148 = vrot.slane %v1146, 2
      %v1149 = vor.u32 %v1145, %v1148
      %v1150 = vsel %vm1097, %v1140, %v1149
      %v1152 = vshrl.u32 %v1096, 16
      %v1154 = vrot.slane %v1152, 1
      %v1155 = vshll.u32 %v1096, 16
      %v1157 = vrot.slane %v1155, 2
      %v1158 = vor.u32 %v1154, %v1157
      %v1159 = vsel %vm1097, %v1149, %v1158
      %v1182 = vunpack.c.l.b16 %v1078
      %v1183 = vunpack.c.l.b16 %v1079
      %v1184 = vunpack.c.l.b16 %v1080
      %v1185 = vunpack.c.l.b16 %v1081
      %v1186 = vunpack.c.l.b16 %v1082
      %v1187 = vunpack.c.l.b16 %v1083
      %v1188 = vunpack.c.l.b16 %v1084
      %v1189 = vunpack.c.l.b16 %v1085
      %v1190 = vunpack.c.l.b16 %v1086
      %v1191 = vunpack.c.l.b16 %v1087
      %v1192 = vunpack.c.l.b16 %v1088
      %v1193 = vunpack.c.l.b16 %v1089
      %v1194 = vunpack.c.l.b16 %v1090
      %v1195 = vunpack.c.l.b16 %v1091
      %v1196 = vunpack.c.l.b16 %v1092
      %v1197 = vunpack.c.l.b16 %v1093
      %v1198 = vpack.c.b16 %v1183, %v1182
      %v1199 = vpack.c.b16 %v1185, %v1184
      %v1200 = vpack.c.b16 %v1187, %v1186
      %v1201 = vpack.c.b16 %v1189, %v1188
      %v1202 = vpack.c.b16 %v1191, %v1190
      %v1203 = vpack.c.b16 %v1193, %v1192
      %v1204 = vpack.c.b16 %v1195, %v1194
      %v1205 = vpack.c.b16 %v1197, %v1196
      %1214 = vmatprep.subr.bf16.mxu0 0
      %1215 = vmatpush1.bf16.msra.mxu0 %v1198
      %1216 = vmatprep.subr.bf16.mxu0 0
      %1217 = vmatpush1.bf16.msra.mxu0 %v1199
      %1218 = vmatprep.subr.bf16.mxu0 0
      %1219 = vmatpush1.bf16.msra.mxu0 %v1200
      %1220 = vmatprep.subr.bf16.mxu0 0
      %1221 = vmatpush1.bf16.msra.mxu0 %v1201
      %1222 = vmatprep.subr.bf16.mxu0 0
      %1223 = vmatpush1.bf16.msra.mxu0 %v1202
      %1224 = vmatprep.subr.bf16.mxu0 0
      %1225 = vmatpush1.bf16.msra.mxu0 %v1203
      %1226 = vmatprep.subr.bf16.mxu0 0
      %1227 = vmatpush1.bf16.msra.mxu0 %v1204
      %1228 = vmatprep.subr.bf16.mxu0 0
      %1229 = vmatpush1.bf16.msra.mxu0 %v1205
      %1230 = vmatprep.subr.bf16.mxu0 0
      %1231 = vmatpush1.bf16.msra.mxu0 0
      %1232 = vmatprep.subr.bf16.mxu0 0
      %1233 = vmatpush1.bf16.msra.mxu0 0
      %1234 = vmatprep.subr.bf16.mxu0 0
      %1235 = vmatpush1.bf16.msra.mxu0 0
      %1236 = vmatprep.subr.bf16.mxu0 0
      %1237 = vmatpush1.bf16.msra.mxu0 0
      %1238 = vmatprep.subr.bf16.mxu0 0
      %1239 = vmatpush1.bf16.msra.mxu0 0
      %1240 = vmatprep.subr.bf16.mxu0 0
      %1241 = vmatpush1.bf16.msra.mxu0 0
      %1242 = vmatprep.subr.bf16.mxu0 0
      %1243 = vmatpush1.bf16.msra.mxu0 0
      %1244 = vmatprep.subr.bf16.mxu0 0
      %1245 = vmatpush1.bf16.msra.mxu0 0
      %1246 = vmatprep.mubr.bf16.mxu0 0
      %1247 = vmatmul.mubr.bf16.gmra.mrb[0].mxu0 %v1114
      %v1248 = vpop.f32.mrb[0].mxu0
      %v1249 = vadd.f32 0.0, %v1248
      %v1250 = vpop.f32.mrb[0].mxu0
      %v1251 = vpop.f32.mrb[0].mxu0
      %v1252 = vadd.f32 0.0, %v1251
      %v1253 = vpop.f32.mrb[0].mxu0
      %1254 = vmatprep.mubr.bf16.mxu0 0
      %1255 = vmatmul.mubr.bf16.gmra.mrb[0].mxu0 %v1123
      %v1256 = vpop.f32.mrb[0].mxu0
      %v1257 = vadd.f32 0.0, %v1256
      %v1258 = vpop.f32.mrb[0].mxu0
      %v1259 = vpop.f32.mrb[0].mxu0
      %v1260 = vadd.f32 0.0, %v1259
      %v1261 = vpop.f32.mrb[0].mxu0
      %1262 = vmatprep.mubr.bf16.mxu0 0
      %1263 = vmatmul.mubr.bf16.gmra.mrb[0].mxu0 %v1132
      %v1264 = vpop.f32.mrb[0].mxu0
      %v1265 = vadd.f32 0.0, %v1264
      %v1266 = vpop.f32.mrb[0].mxu0
      %v1267 = vpop.f32.mrb[0].mxu0
      %v1268 = vadd.f32 0.0, %v1267
      %v1269 = vpop.f32.mrb[0].mxu0
      %1270 = vmatprep.mubr.bf16.mxu0 0
      %1271 = vmatmul.mubr.bf16.gmra.mrb[0].mxu0 %v1141
      %v1272 = vpop.f32.mrb[0].mxu0
      %v1273 = vadd.f32 0.0, %v1272
      %v1274 = vpop.f32.mrb[0].mxu0
      %v1275 = vpop.f32.mrb[0].mxu0
      %v1276 = vadd.f32 0.0, %v1275
      %v1277 = vpop.f32.mrb[0].mxu0
      %1278 = vmatprep.mubr.bf16.mxu0 0
      %1279 = vmatmul.mubr.bf16.gmra.mrb[0].mxu0 %v1150
      %v1280 = vpop.f32.mrb[0].mxu0
      %v1281 = vadd.f32 0.0, %v1280
      %v1282 = vpop.f32.mrb[0].mxu0
      %v1283 = vpop.f32.mrb[0].mxu0
      %v1284 = vadd.f32 0.0, %v1283
      %v1285 = vpop.f32.mrb[0].mxu0
      %1286 = vmatprep.mubr.bf16.mxu0 0
      %1287 = vmatmul.mubr.bf16.gmra.mrb[0].mxu0 %v1159
      %v1288 = vpop.f32.mrb[0].mxu0
      %v1289 = vadd.f32 0.0, %v1288
      %v1290 = vpop.f32.mrb[0].mxu0
      %v1291 = vpop.f32.mrb[0].mxu0
      %v1292 = vadd.f32 0.0, %v1291
      %v1293 = vpop.f32.mrb[0].mxu0
      %1294 = vdwg.mxu0
      %v1295 = vadd.f32 %v1064, %v1249
      %v1296 = vadd.f32 %v1065, %v1252
      %v1297 = vadd.f32 %v1066, %v1257
      %v1298 = vadd.f32 %v1067, %v1260
      %v1299 = vadd.f32 %v1068, %v1265
      %v1300 = vadd.f32 %v1069, %v1268
      %v1301 = vadd.f32 %v1070, %v1273
      %v1302 = vadd.f32 %v1071, %v1276
      %v1303 = vadd.f32 %v1072, %v1281
      %v1304 = vadd.f32 %v1073, %v1284
      %v1305 = vadd.f32 %v1074, %v1289
      %v1306 = vadd.f32 %v1075, %v1292
      %v1307 = vld [vmem:[%s246 + $0x8] sm:$0xc]
      %s1308 = scalar_lea.vmem %s2, 320
      %v1309 = vld [vmem:[%s1308] sm:$0xf]
      %v1310 = vld [vmem:[%s1308 + $0x4] sm:$0xf]
      %v1311 = vld [vmem:[%s1308 + $0x8] sm:$0xf]
      %v1312 = vld [vmem:[%s1308 + $0xc] sm:$0xf]
      %v1313 = vld [vmem:[%s1308 + $0x10] sm:$0xf]
      %v1314 = vld [vmem:[%s1308 + $0x14] sm:$0xf]
      %v1315 = vld [vmem:[%s1308 + $0x18] sm:$0xf]
      %v1316 = vld [vmem:[%s1308 + $0x1c] sm:$0xf]
      %v1317 = vld [vmem:[%s1308 + $0x20] sm:$0xf]
      %v1318 = vld [vmem:[%s1308 + $0x24] sm:$0xf]
      %v1319 = vld [vmem:[%s1308 + $0x28] sm:$0xf]
      %v1320 = vld [vmem:[%s1308 + $0x2c] sm:$0xf]
      %v1321 = vld [vmem:[%s1308 + $0x30] sm:$0xf]
      %v1322 = vld [vmem:[%s1308 + $0x34] sm:$0xf]
      %v1323 = vld [vmem:[%s1308 + $0x38] sm:$0xf]
      %v1324 = vld [vmem:[%s1308 + $0x3c] sm:$0xf]
      %v1326 = vunpack.c.l.b16 %v1307
      %v1327 = vpack.c.b16 %v897, %v1326
      %vm1328 = vcmask 1045504
      %v1329 = vrot.slane %v1327, 2
      %v1330 = vrot.slane %v910, 2
      %v1331 = vsel %vm1328, %v1329, %v1330
      %v1332 = vrot.slane %v911, 2
      %v1333 = vsel %vm1328, %v1330, %v1332
      %v1334 = vrot.slane %v912, 2
      %v1335 = vsel %vm1328, %v1332, %v1334
      %v1336 = vrot.slane %v913, 2
      %v1337 = vsel %vm1328, %v1334, %v1336
      %v1338 = vrot.slane %v914, 2
      %v1339 = vsel %vm1328, %v1336, %v1338
      %v1340 = vrot.slane %v1096, 2
      %v1341 = vsel %vm1328, %v1338, %v1340
      %v1364 = vunpack.c.l.b16 %v1309
      %v1365 = vunpack.c.l.b16 %v1310
      %v1366 = vunpack.c.l.b16 %v1311
      %v1367 = vunpack.c.l.b16 %v1312
      %v1368 = vunpack.c.l.b16 %v1313
      %v1369 = vunpack.c.l.b16 %v1314
      %v1370 = vunpack.c.l.b16 %v1315
      %v1371 = vunpack.c.l.b16 %v1316
      %v1372 = vunpack.c.l.b16 %v1317
      %v1373 = vunpack.c.l.b16 %v1318
      %v1374 = vunpack.c.l.b16 %v1319
      %v1375 = vunpack.c.l.b16 %v1320
      %v1376 = vunpack.c.l.b16 %v1321
      %v1377 = vunpack.c.l.b16 %v1322
      %v1378 = vunpack.c.l.b16 %v1323
      %v1379 = vunpack.c.l.b16 %v1324
      %v1380 = vpack.c.b16 %v1365, %v1364
      %v1381 = vpack.c.b16 %v1367, %v1366
      %v1382 = vpack.c.b16 %v1369, %v1368
      %v1383 = vpack.c.b16 %v1371, %v1370
      %v1384 = vpack.c.b16 %v1373, %v1372
      %v1385 = vpack.c.b16 %v1375, %v1374
      %v1386 = vpack.c.b16 %v1377, %v1376
      %v1387 = vpack.c.b16 %v1379, %v1378
      %1396 = vmatprep.subr.bf16.mxu0 0
      %1397 = vmatpush1.bf16.msra.mxu0 %v1380
      %1398 = vmatprep.subr.bf16.mxu0 0
      %1399 = vmatpush1.bf16.msra.mxu0 %v1381
      %1400 = vmatprep.subr.bf16.mxu0 0
      %1401 = vmatpush1.bf16.msra.mxu0 %v1382
      %1402 = vmatprep.subr.bf16.mxu0 0
      %1403 = vmatpush1.bf16.msra.mxu0 %v1383
      %1404 = vmatprep.subr.bf16.mxu0 0
      %1405 = vmatpush1.bf16.msra.mxu0 %v1384
      %1406 = vmatprep.subr.bf16.mxu0 0
      %1407 = vmatpush1.bf16.msra.mxu0 %v1385
      %1408 = vmatprep.subr.bf16.mxu0 0
      %1409 = vmatpush1.bf16.msra.mxu0 %v1386
      %1410 = vmatprep.subr.bf16.mxu0 0
      %1411 = vmatpush1.bf16.msra.mxu0 %v1387
      %1412 = vmatprep.subr.bf16.mxu0 0
      %1413 = vmatpush1.bf16.msra.mxu0 0
      %1414 = vmatprep.subr.bf16.mxu0 0
      %1415 = vmatpush1.bf16.msra.mxu0 0
      %1416 = vmatprep.subr.bf16.mxu0 0
      %1417 = vmatpush1.bf16.msra.mxu0 0
      %1418 = vmatprep.subr.bf16.mxu0 0
      %1419 = vmatpush1.bf16.msra.mxu0 0
      %1420 = vmatprep.subr.bf16.mxu0 0
      %1421 = vmatpush1.bf16.msra.mxu0 0
      %1422 = vmatprep.subr.bf16.mxu0 0
      %1423 = vmatpush1.bf16.msra.mxu0 0
      %1424 = vmatprep.subr.bf16.mxu0 0
      %1425 = vmatpush1.bf16.msra.mxu0 0
      %1426 = vmatprep.subr.bf16.mxu0 0
      %1427 = vmatpush1.bf16.msra.mxu0 0
      %1428 = vmatprep.mubr.bf16.mxu0 0
      %1429 = vmatmul.mubr.bf16.gmra.mrb[0].mxu0 %v1331
      %v1430 = vpop.f32.mrb[0].mxu0
      %v1431 = vadd.f32 0.0, %v1430
      %v1432 = vpop.f32.mrb[0].mxu0
      %v1433 = vpop.f32.mrb[0].mxu0
      %v1434 = vadd.f32 0.0, %v1433
      %v1435 = vpop.f32.mrb[0].mxu0
      %1436 = vmatprep.mubr.bf16.mxu0 0
      %1437 = vmatmul.mubr.bf16.gmra.mrb[0].mxu0 %v1333
      %v1438 = vpop.f32.mrb[0].mxu0
      %v1439 = vadd.f32 0.0, %v1438
      %v1440 = vpop.f32.mrb[0].mxu0
      %v1441 = vpop.f32.mrb[0].mxu0
      %v1442 = vadd.f32 0.0, %v1441
      %v1443 = vpop.f32.mrb[0].mxu0
      %1444 = vmatprep.mubr.bf16.mxu0 0
      %1445 = vmatmul.mubr.bf16.gmra.mrb[0].mxu0 %v1335
      %v1446 = vpop.f32.mrb[0].mxu0
      %v1447 = vadd.f32 0.0, %v1446
      %v1448 = vpop.f32.mrb[0].mxu0
      %v1449 = vpop.f32.mrb[0].mxu0
      %v1450 = vadd.f32 0.0, %v1449
      %v1451 = vpop.f32.mrb[0].mxu0
      %1452 = vmatprep.mubr.bf16.mxu0 0
      %1453 = vmatmul.mubr.bf16.gmra.mrb[0].mxu0 %v1337
      %v1454 = vpop.f32.mrb[0].mxu0
      %v1455 = vadd.f32 0.0, %v1454
      %v1456 = vpop.f32.mrb[0].mxu0
      %v1457 = vpop.f32.mrb[0].mxu0
      %v1458 = vadd.f32 0.0, %v1457
      %v1459 = vpop.f32.mrb[0].mxu0
      %1460 = vmatprep.mubr.bf16.mxu0 0
      %1461 = vmatmul.mubr.bf16.gmra.mrb[0].mxu0 %v1339
      %v1462 = vpop.f32.mrb[0].mxu0
      %v1463 = vadd.f32 0.0, %v1462
      %v1464 = vpop.f32.mrb[0].mxu0
      %v1465 = vpop.f32.mrb[0].mxu0
      %v1466 = vadd.f32 0.0, %v1465
      %v1467 = vpop.f32.mrb[0].mxu0
      %1468 = vmatprep.mubr.bf16.mxu0 0
      %1469 = vmatmul.mubr.bf16.gmra.mrb[0].mxu0 %v1341
      %v1470 = vpop.f32.mrb[0].mxu0
      %v1471 = vadd.f32 0.0, %v1470
      %v1472 = vpop.f32.mrb[0].mxu0
      %v1473 = vpop.f32.mrb[0].mxu0
      %v1474 = vadd.f32 0.0, %v1473
      %v1475 = vpop.f32.mrb[0].mxu0
      %1476 = vdwg.mxu0
      %v1477 = vadd.f32 %v1295, %v1431
      %v1478 = vadd.f32 %v1296, %v1434
      %v1479 = vadd.f32 %v1297, %v1439
      %v1480 = vadd.f32 %v1298, %v1442
      %v1481 = vadd.f32 %v1299, %v1447
      %v1482 = vadd.f32 %v1300, %v1450
      %v1483 = vadd.f32 %v1301, %v1455
      %v1484 = vadd.f32 %v1302, %v1458
      %v1485 = vadd.f32 %v1303, %v1463
      %v1486 = vadd.f32 %v1304, %v1466
      %v1487 = vadd.f32 %v1305, %v1471
      %v1488 = vadd.f32 %v1306, %v1474
      %v1489 = vld [vmem:[%s246 + $0x10] sm:$0xc]
      %v1490 = vld [vmem:[%s246 + $0x14] sm:$0xf]
      %v1491 = vld [vmem:[%s246 + $0x18] sm:$0xf]
      %v1492 = vld [vmem:[%s246 + $0x1c] sm:$0xf]
      %v1493 = vld [vmem:[%s246 + $0x20] sm:$0xf]
      %v1494 = vld [vmem:[%s246 + $0x24] sm:$0xf]
      %v1495 = vld [vmem:[%s246 + $0x28] sm:$0xf]
      %v1496 = vld [vmem:[%s246 + $0x2c] sm:$0xf]
      %v1497 = vld [vmem:[%s246 + $0x30] sm:$0xf]
      %v1498 = vld [vmem:[%s246 + $0x34] sm:$0xf]
      %v1499 = vld [vmem:[%s246 + $0x38] sm:$0xf]
      %v1500 = vld [vmem:[%s246 + $0x3c] sm:$0xf]
      %v1501 = vld [vmem:[%s246 + $0x40] sm:$0x3]
      %s1502 = scalar_lea.vmem %s2, 384
      %v1503 = vld [vmem:[%s1502] sm:$0xf]
      %v1504 = vld [vmem:[%s1502 + $0x4] sm:$0xf]
      %v1505 = vld [vmem:[%s1502 + $0x8] sm:$0xf]
      %v1506 = vld [vmem:[%s1502 + $0xc] sm:$0xf]
      %v1507 = vld [vmem:[%s1502 + $0x10] sm:$0xf]
      %v1508 = vld [vmem:[%s1502 + $0x14] sm:$0xf]
      %v1509 = vld [vmem:[%s1502 + $0x18] sm:$0xf]
      %v1510 = vld [vmem:[%s1502 + $0x1c] sm:$0xf]
      %v1511 = vld [vmem:[%s1502 + $0x20] sm:$0xf]
      %v1512 = vld [vmem:[%s1502 + $0x24] sm:$0xf]
      %v1513 = vld [vmem:[%s1502 + $0x28] sm:$0xf]
      %v1514 = vld [vmem:[%s1502 + $0x2c] sm:$0xf]
      %v1515 = vld [vmem:[%s1502 + $0x30] sm:$0xf]
      %v1516 = vld [vmem:[%s1502 + $0x34] sm:$0xf]
      %v1517 = vld [vmem:[%s1502 + $0x38] sm:$0xf]
      %v1518 = vld [vmem:[%s1502 + $0x3c] sm:$0xf]
      %v1532 = vunpack.c.l.b16 %v1489
      %v1533 = vunpack.c.l.b16 %v1490
      %v1534 = vunpack.c.l.b16 %v1491
      %v1535 = vunpack.c.l.b16 %v1492
      %v1536 = vunpack.c.l.b16 %v1493
      %v1537 = vunpack.c.l.b16 %v1494
      %v1538 = vunpack.c.l.b16 %v1495
      %v1539 = vunpack.c.l.b16 %v1496
      %v1540 = vunpack.c.l.b16 %v1497
      %v1541 = vunpack.c.l.b16 %v1498
      %v1542 = vunpack.c.l.b16 %v1499
      %v1543 = vunpack.c.l.b16 %v1500
      %v1544 = vunpack.c.l.b16 %v1501
      %v1545 = vpack.c.b16 %v1533, %v1532
      %v1546 = vpack.c.b16 %v1535, %v1534
      %v1547 = vpack.c.b16 %v1537, %v1536
      %v1548 = vpack.c.b16 %v1539, %v1538
      %v1549 = vpack.c.b16 %v1541, %v1540
      %v1550 = vpack.c.b16 %v1543, %v1542
      %v1551 = vpack.c.b16 %v1544, %v1544
      %v1552 = vrot.slane %v1545, 2
      %v1553 = vrot.slane %v1546, 2
      %v1554 = vsel %vm1328, %v1552, %v1553
      %v1555 = vrot.slane %v1547, 2
      %v1556 = vsel %vm1328, %v1553, %v1555
      %v1557 = vrot.slane %v1548, 2
      %v1558 = vsel %vm1328, %v1555, %v1557
      %v1559 = vrot.slane %v1549, 2
      %v1560 = vsel %vm1328, %v1557, %v1559
      %v1561 = vrot.slane %v1550, 2
      %v1562 = vsel %vm1328, %v1559, %v1561
      %v1563 = vrot.slane %v1551, 2
      %v1564 = vsel %vm1328, %v1561, %v1563
      %v1587 = vunpack.c.l.b16 %v1503
      %v1588 = vunpack.c.l.b16 %v1504
      %v1589 = vunpack.c.l.b16 %v1505
      %v1590 = vunpack.c.l.b16 %v1506
      %v1591 = vunpack.c.l.b16 %v1507
      %v1592 = vunpack.c.l.b16 %v1508
      %v1593 = vunpack.c.l.b16 %v1509
      %v1594 = vunpack.c.l.b16 %v1510
      %v1595 = vunpack.c.l.b16 %v1511
      %v1596 = vunpack.c.l.b16 %v1512
      %v1597 = vunpack.c.l.b16 %v1513
      %v1598 = vunpack.c.l.b16 %v1514
      %v1599 = vunpack.c.l.b16 %v1515
      %v1600 = vunpack.c.l.b16 %v1516
      %v1601 = vunpack.c.l.b16 %v1517
      %v1602 = vunpack.c.l.b16 %v1518
      %v1603 = vpack.c.b16 %v1588, %v1587
      %v1604 = vpack.c.b16 %v1590, %v1589
      %v1605 = vpack.c.b16 %v1592, %v1591
      %v1606 = vpack.c.b16 %v1594, %v1593
      %v1607 = vpack.c.b16 %v1596, %v1595
      %v1608 = vpack.c.b16 %v1598, %v1597
      %v1609 = vpack.c.b16 %v1600, %v1599
      %v1610 = vpack.c.b16 %v1602, %v1601
      %1619 = vmatprep.subr.bf16.mxu0 0
      %1620 = vmatpush1.bf16.msra.mxu0 %v1603
      %1621 = vmatprep.subr.bf16.mxu0 0
      %1622 = vmatpush1.bf16.msra.mxu0 %v1604
      %1623 = vmatprep.subr.bf16.mxu0 0
      %1624 = vmatpush1.bf16.msra.mxu0 %v1605
      %1625 = vmatprep.subr.bf16.mxu0 0
      %1626 = vmatpush1.bf16.msra.mxu0 %v1606
      %1627 = vmatprep.subr.bf16.mxu0 0
      %1628 = vmatpush1.bf16.msra.mxu0 %v1607
      %1629 = vmatprep.subr.bf16.mxu0 0
      %1630 = vmatpush1.bf16.msra.mxu0 %v1608
      %1631 = vmatprep.subr.bf16.mxu0 0
      %1632 = vmatpush1.bf16.msra.mxu0 %v1609
      %1633 = vmatprep.subr.bf16.mxu0 0
      %1634 = vmatpush1.bf16.msra.mxu0 %v1610
      %1635 = vmatprep.subr.bf16.mxu0 0
      %1636 = vmatpush1.bf16.msra.mxu0 0
      %1637 = vmatprep.subr.bf16.mxu0 0
      %1638 = vmatpush1.bf16.msra.mxu0 0
      %1639 = vmatprep.subr.bf16.mxu0 0
      %1640 = vmatpush1.bf16.msra.mxu0 0
      %1641 = vmatprep.subr.bf16.mxu0 0
      %1642 = vmatpush1.bf16.msra.mxu0 0
      %1643 = vmatprep.subr.bf16.mxu0 0
      %1644 = vmatpush1.bf16.msra.mxu0 0
      %1645 = vmatprep.subr.bf16.mxu0 0
      %1646 = vmatpush1.bf16.msra.mxu0 0
      %1647 = vmatprep.subr.bf16.mxu0 0
      %1648 = vmatpush1.bf16.msra.mxu0 0
      %1649 = vmatprep.subr.bf16.mxu0 0
      %1650 = vmatpush1.bf16.msra.mxu0 0
      %1651 = vmatprep.mubr.bf16.mxu0 0
      %1652 = vmatmul.mubr.bf16.gmra.mrb[0].mxu0 %v1554
      %v1653 = vpop.f32.mrb[0].mxu0
      %v1654 = vadd.f32 0.0, %v1653
      %v1655 = vpop.f32.mrb[0].mxu0
      %v1656 = vpop.f32.mrb[0].mxu0
      %v1657 = vadd.f32 0.0, %v1656
      %v1658 = vpop.f32.mrb[0].mxu0
      %1659 = vmatprep.mubr.bf16.mxu0 0
      %1660 = vmatmul.mubr.bf16.gmra.mrb[0].mxu0 %v1556
      %v1661 = vpop.f32.mrb[0].mxu0
      %v1662 = vadd.f32 0.0, %v1661
      %v1663 = vpop.f32.mrb[0].mxu0
      %v1664 = vpop.f32.mrb[0].mxu0
      %v1665 = vadd.f32 0.0, %v1664
      %v1666 = vpop.f32.mrb[0].mxu0
      %1667 = vmatprep.mubr.bf16.mxu0 0
      %1668 = vmatmul.mubr.bf16.gmra.mrb[0].mxu0 %v1558
      %v1669 = vpop.f32.mrb[0].mxu0
      %v1670 = vadd.f32 0.0, %v1669
      %v1671 = vpop.f32.mrb[0].mxu0
      %v1672 = vpop.f32.mrb[0].mxu0
      %v1673 = vadd.f32 0.0, %v1672
      %v1674 = vpop.f32.mrb[0].mxu0
      %1675 = vmatprep.mubr.bf16.mxu0 0
      %1676 = vmatmul.mubr.bf16.gmra.mrb[0].mxu0 %v1560
      %v1677 = vpop.f32.mrb[0].mxu0
      %v1678 = vadd.f32 0.0, %v1677
      %v1679 = vpop.f32.mrb[0].mxu0
      %v1680 = vpop.f32.mrb[0].mxu0
      %v1681 = vadd.f32 0.0, %v1680
      %v1682 = vpop.f32.mrb[0].mxu0
      %1683 = vmatprep.mubr.bf16.mxu0 0
      %1684 = vmatmul.mubr.bf16.gmra.mrb[0].mxu0 %v1562
      %v1685 = vpop.f32.mrb[0].mxu0
      %v1686 = vadd.f32 0.0, %v1685
      %v1687 = vpop.f32.mrb[0].mxu0
      %v1688 = vpop.f32.mrb[0].mxu0
      %v1689 = vadd.f32 0.0, %v1688
      %v1690 = vpop.f32.mrb[0].mxu0
      %1691 = vmatprep.mubr.bf16.mxu0 0
      %1692 = vmatmul.mubr.bf16.gmra.mrb[0].mxu0 %v1564
      %v1693 = vpop.f32.mrb[0].mxu0
      %v1694 = vadd.f32 0.0, %v1693
      %v1695 = vpop.f32.mrb[0].mxu0
      %v1696 = vpop.f32.mrb[0].mxu0
      %v1697 = vadd.f32 0.0, %v1696
      %v1698 = vpop.f32.mrb[0].mxu0
      %1699 = vdwg.mxu0
      %v1700 = vadd.f32 %v1477, %v1654
      %v1701 = vadd.f32 %v1478, %v1657
      %v1702 = vadd.f32 %v1479, %v1662
      %v1703 = vadd.f32 %v1480, %v1665
      %v1704 = vadd.f32 %v1481, %v1670
      %v1705 = vadd.f32 %v1482, %v1673
      %v1706 = vadd.f32 %v1483, %v1678
      %v1707 = vadd.f32 %v1484, %v1681
      %v1708 = vadd.f32 %v1485, %v1686
      %v1709 = vadd.f32 %v1486, %v1689
      %v1710 = vadd.f32 %v1487, %v1694
      %v1711 = vadd.f32 %v1488, %v1697
      %v1712 = vld [vmem:[%s246 + $0x40] sm:$0x7]
      %s1713 = scalar_lea.vmem %s2, 448
      %v1714 = vld [vmem:[%s1713] sm:$0xf]
      %v1715 = vld [vmem:[%s1713 + $0x4] sm:$0xf]
      %v1716 = vld [vmem:[%s1713 + $0x8] sm:$0xf]
      %v1717 = vld [vmem:[%s1713 + $0xc] sm:$0xf]
      %v1718 = vld [vmem:[%s1713 + $0x10] sm:$0xf]
      %v1719 = vld [vmem:[%s1713 + $0x14] sm:$0xf]
      %v1720 = vld [vmem:[%s1713 + $0x18] sm:$0xf]
      %v1721 = vld [vmem:[%s1713 + $0x1c] sm:$0xf]
      %v1722 = vld [vmem:[%s1713 + $0x20] sm:$0xf]
      %v1723 = vld [vmem:[%s1713 + $0x24] sm:$0xf]
      %v1724 = vld [vmem:[%s1713 + $0x28] sm:$0xf]
      %v1725 = vld [vmem:[%s1713 + $0x2c] sm:$0xf]
      %v1726 = vld [vmem:[%s1713 + $0x30] sm:$0xf]
      %v1727 = vld [vmem:[%s1713 + $0x34] sm:$0xf]
      %v1728 = vld [vmem:[%s1713 + $0x38] sm:$0xf]
      %v1729 = vld [vmem:[%s1713 + $0x3c] sm:$0xf]
      %v1731 = vunpack.c.l.b16 %v1712
      %v1732 = vpack.c.b16 %v1731, %v1731
      %vm1733 = vsmask.f32 5376
      %v1735 = vshrl.u32 %v1545, 16
      %v1737 = vrot.slane %v1735, 2
      %v1738 = vshll.u32 %v1545, 16
      %v1740 = vrot.slane %v1738, 3
      %v1741 = vor.u32 %v1737, %v1740
      %v1743 = vshrl.u32 %v1546, 16
      %v1745 = vrot.slane %v1743, 2
      %v1746 = vshll.u32 %v1546, 16
      %v1748 = vrot.slane %v1746, 3
      %v1749 = vor.u32 %v1745, %v1748
      %v1750 = vsel %vm1733, %v1741, %v1749
      %v1752 = vshrl.u32 %v1547, 16
      %v1754 = vrot.slane %v1752, 2
      %v1755 = vshll.u32 %v1547, 16
      %v1757 = vrot.slane %v1755, 3
      %v1758 = vor.u32 %v1754, %v1757
      %v1759 = vsel %vm1733, %v1749, %v1758
      %v1761 = vshrl.u32 %v1548, 16
      %v1763 = vrot.slane %v1761, 2
      %v1764 = vshll.u32 %v1548, 16
      %v1766 = vrot.slane %v1764, 3
      %v1767 = vor.u32 %v1763, %v1766
      %v1768 = vsel %vm1733, %v1758, %v1767
      %v1770 = vshrl.u32 %v1549, 16
      %v1772 = vrot.slane %v1770, 2
      %v1773 = vshll.u32 %v1549, 16
      %v1775 = vrot.slane %v1773, 3
      %v1776 = vor.u32 %v1772, %v1775
      %v1777 = vsel %vm1733, %v1767, %v1776
      %v1779 = vshrl.u32 %v1550, 16
      %v1781 = vrot.slane %v1779, 2
      %v1782 = vshll.u32 %v1550, 16
      %v1784 = vrot.slane %v1782, 3
      %v1785 = vor.u32 %v1781, %v1784
      %v1786 = vsel %vm1733, %v1776, %v1785
      %v1788 = vshrl.u32 %v1732, 16
      %v1790 = vrot.slane %v1788, 2
      %v1791 = vshll.u32 %v1732, 16
      %v1793 = vrot.slane %v1791, 3
      %v1794 = vor.u32 %v1790, %v1793
      %v1795 = vsel %vm1733, %v1785, %v1794
      %v1818 = vunpack.c.l.b16 %v1714
      %v1819 = vunpack.c.l.b16 %v1715
      %v1820 = vunpack.c.l.b16 %v1716
      %v1821 = vunpack.c.l.b16 %v1717
      %v1822 = vunpack.c.l.b16 %v1718
      %v1823 = vunpack.c.l.b16 %v1719
      %v1824 = vunpack.c.l.b16 %v1720
      %v1825 = vunpack.c.l.b16 %v1721
      %v1826 = vunpack.c.l.b16 %v1722
      %v1827 = vunpack.c.l.b16 %v1723
      %v1828 = vunpack.c.l.b16 %v1724
      %v1829 = vunpack.c.l.b16 %v1725
      %v1830 = vunpack.c.l.b16 %v1726
      %v1831 = vunpack.c.l.b16 %v1727
      %v1832 = vunpack.c.l.b16 %v1728
      %v1833 = vunpack.c.l.b16 %v1729
      %v1834 = vpack.c.b16 %v1819, %v1818
      %v1835 = vpack.c.b16 %v1821, %v1820
      %v1836 = vpack.c.b16 %v1823, %v1822
      %v1837 = vpack.c.b16 %v1825, %v1824
      %v1838 = vpack.c.b16 %v1827, %v1826
      %v1839 = vpack.c.b16 %v1829, %v1828
      %v1840 = vpack.c.b16 %v1831, %v1830
      %v1841 = vpack.c.b16 %v1833, %v1832
      %1850 = vmatprep.subr.bf16.mxu0 0
      %1851 = vmatpush1.bf16.msra.mxu0 %v1834
      %1852 = vmatprep.subr.bf16.mxu0 0
      %1853 = vmatpush1.bf16.msra.mxu0 %v1835
      %1854 = vmatprep.subr.bf16.mxu0 0
      %1855 = vmatpush1.bf16.msra.mxu0 %v1836
      %1856 = vmatprep.subr.bf16.mxu0 0
      %1857 = vmatpush1.bf16.msra.mxu0 %v1837
      %1858 = vmatprep.subr.bf16.mxu0 0
      %1859 = vmatpush1.bf16.msra.mxu0 %v1838
      %1860 = vmatprep.subr.bf16.mxu0 0
      %1861 = vmatpush1.bf16.msra.mxu0 %v1839
      %1862 = vmatprep.subr.bf16.mxu0 0
      %1863 = vmatpush1.bf16.msra.mxu0 %v1840
      %1864 = vmatprep.subr.bf16.mxu0 0
      %1865 = vmatpush1.bf16.msra.mxu0 %v1841
      %1866 = vmatprep.subr.bf16.mxu0 0
      %1867 = vmatpush1.bf16.msra.mxu0 0
      %1868 = vmatprep.subr.bf16.mxu0 0
      %1869 = vmatpush1.bf16.msra.mxu0 0
      %1870 = vmatprep.subr.bf16.mxu0 0
      %1871 = vmatpush1.bf16.msra.mxu0 0
      %1872 = vmatprep.subr.bf16.mxu0 0
      %1873 = vmatpush1.bf16.msra.mxu0 0
      %1874 = vmatprep.subr.bf16.mxu0 0
      %1875 = vmatpush1.bf16.msra.mxu0 0
      %1876 = vmatprep.subr.bf16.mxu0 0
      %1877 = vmatpush1.bf16.msra.mxu0 0
      %1878 = vmatprep.subr.bf16.mxu0 0
      %1879 = vmatpush1.bf16.msra.mxu0 0
      %1880 = vmatprep.subr.bf16.mxu0 0
      %1881 = vmatpush1.bf16.msra.mxu0 0
      %1882 = vmatprep.mubr.bf16.mxu0 0
      %1883 = vmatmul.mubr.bf16.gmra.mrb[0].mxu0 %v1750
      %v1884 = vpop.f32.mrb[0].mxu0
      %v1885 = vadd.f32 0.0, %v1884
      %v1886 = vpop.f32.mrb[0].mxu0
      %v1887 = vpop.f32.mrb[0].mxu0
      %v1888 = vadd.f32 0.0, %v1887
      %v1889 = vpop.f32.mrb[0].mxu0
      %1890 = vmatprep.mubr.bf16.mxu0 0
      %1891 = vmatmul.mubr.bf16.gmra.mrb[0].mxu0 %v1759
      %v1892 = vpop.f32.mrb[0].mxu0
      %v1893 = vadd.f32 0.0, %v1892
      %v1894 = vpop.f32.mrb[0].mxu0
      %v1895 = vpop.f32.mrb[0].mxu0
      %v1896 = vadd.f32 0.0, %v1895
      %v1897 = vpop.f32.mrb[0].mxu0
      %1898 = vmatprep.mubr.bf16.mxu0 0
      %1899 = vmatmul.mubr.bf16.gmra.mrb[0].mxu0 %v1768
      %v1900 = vpop.f32.mrb[0].mxu0
      %v1901 = vadd.f32 0.0, %v1900
      %v1902 = vpop.f32.mrb[0].mxu0
      %v1903 = vpop.f32.mrb[0].mxu0
      %v1904 = vadd.f32 0.0, %v1903
      %v1905 = vpop.f32.mrb[0].mxu0
      %1906 = vmatprep.mubr.bf16.mxu0 0
      %1907 = vmatmul.mubr.bf16.gmra.mrb[0].mxu0 %v1777
      %v1908 = vpop.f32.mrb[0].mxu0
      %v1909 = vadd.f32 0.0, %v1908
      %v1910 = vpop.f32.mrb[0].mxu0
      %v1911 = vpop.f32.mrb[0].mxu0
      %v1912 = vadd.f32 0.0, %v1911
      %v1913 = vpop.f32.mrb[0].mxu0
      %1914 = vmatprep.mubr.bf16.mxu0 0
      %1915 = vmatmul.mubr.bf16.gmra.mrb[0].mxu0 %v1786
      %v1916 = vpop.f32.mrb[0].mxu0
      %v1917 = vadd.f32 0.0, %v1916
      %v1918 = vpop.f32.mrb[0].mxu0
      %v1919 = vpop.f32.mrb[0].mxu0
      %v1920 = vadd.f32 0.0, %v1919
      %v1921 = vpop.f32.mrb[0].mxu0
      %1922 = vmatprep.mubr.bf16.mxu0 0
      %1923 = vmatmul.mubr.bf16.gmra.mrb[0].mxu0 %v1795
      %v1924 = vpop.f32.mrb[0].mxu0
      %v1925 = vadd.f32 0.0, %v1924
      %v1926 = vpop.f32.mrb[0].mxu0
      %v1927 = vpop.f32.mrb[0].mxu0
      %v1928 = vadd.f32 0.0, %v1927
      %v1929 = vpop.f32.mrb[0].mxu0
      %1930 = vdwg.mxu0
      %v1931 = vadd.f32 %v1700, %v1885
      %v1932 = vadd.f32 %v1701, %v1888
      %v1933 = vadd.f32 %v1702, %v1893
      %v1934 = vadd.f32 %v1703, %v1896
      %v1935 = vadd.f32 %v1704, %v1901
      %v1936 = vadd.f32 %v1705, %v1904
      %v1937 = vadd.f32 %v1706, %v1909
      %v1938 = vadd.f32 %v1707, %v1912
      %v1939 = vadd.f32 %v1708, %v1917
      %v1940 = vadd.f32 %v1709, %v1920
      %v1941 = vadd.f32 %v1710, %v1925
      %v1942 = vadd.f32 %v1711, %v1928
      %v1943 = vld [vmem:[%s246 + $0x10] sm:$0x8]
      %s1944 = scalar_lea.vmem %s2, 512
      %v1945 = vld [vmem:[%s1944] sm:$0xf]
      %v1946 = vld [vmem:[%s1944 + $0x4] sm:$0xf]
      %v1947 = vld [vmem:[%s1944 + $0x8] sm:$0xf]
      %v1948 = vld [vmem:[%s1944 + $0xc] sm:$0xf]
      %v1949 = vld [vmem:[%s1944 + $0x10] sm:$0xf]
      %v1950 = vld [vmem:[%s1944 + $0x14] sm:$0xf]
      %v1951 = vld [vmem:[%s1944 + $0x18] sm:$0xf]
      %v1952 = vld [vmem:[%s1944 + $0x1c] sm:$0xf]
      %v1953 = vld [vmem:[%s1944 + $0x20] sm:$0xf]
      %v1954 = vld [vmem:[%s1944 + $0x24] sm:$0xf]
      %v1955 = vld [vmem:[%s1944 + $0x28] sm:$0xf]
      %v1956 = vld [vmem:[%s1944 + $0x2c] sm:$0xf]
      %v1957 = vld [vmem:[%s1944 + $0x30] sm:$0xf]
      %v1958 = vld [vmem:[%s1944 + $0x34] sm:$0xf]
      %v1959 = vld [vmem:[%s1944 + $0x38] sm:$0xf]
      %v1960 = vld [vmem:[%s1944 + $0x3c] sm:$0xf]
      %v1962 = vunpack.c.l.b16 %v1943
      %v1963 = vpack.c.b16 %v1533, %v1962
      %vm1964 = vcmask 1044480
      %v1965 = vrot.slane %v1963, 3
      %v1966 = vrot.slane %v1546, 3
      %v1967 = vsel %vm1964, %v1965, %v1966
      %v1968 = vrot.slane %v1547, 3
      %v1969 = vsel %vm1964, %v1966, %v1968
      %v1970 = vrot.slane %v1548, 3
      %v1971 = vsel %vm1964, %v1968, %v1970
      %v1972 = vrot.slane %v1549, 3
      %v1973 = vsel %vm1964, %v1970, %v1972
      %v1974 = vrot.slane %v1550, 3
      %v1975 = vsel %vm1964, %v1972, %v1974
      %v1976 = vrot.slane %v1732, 3
      %v1977 = vsel %vm1964, %v1974, %v1976
      %v2000 = vunpack.c.l.b16 %v1945
      %v2001 = vunpack.c.l.b16 %v1946
      %v2002 = vunpack.c.l.b16 %v1947
      %v2003 = vunpack.c.l.b16 %v1948
      %v2004 = vunpack.c.l.b16 %v1949
      %v2005 = vunpack.c.l.b16 %v1950
      %v2006 = vunpack.c.l.b16 %v1951
      %v2007 = vunpack.c.l.b16 %v1952
      %v2008 = vunpack.c.l.b16 %v1953
      %v2009 = vunpack.c.l.b16 %v1954
      %v2010 = vunpack.c.l.b16 %v1955
      %v2011 = vunpack.c.l.b16 %v1956
      %v2012 = vunpack.c.l.b16 %v1957
      %v2013 = vunpack.c.l.b16 %v1958
      %v2014 = vunpack.c.l.b16 %v1959
      %v2015 = vunpack.c.l.b16 %v1960
      %v2016 = vpack.c.b16 %v2001, %v2000
      %v2017 = vpack.c.b16 %v2003, %v2002
      %v2018 = vpack.c.b16 %v2005, %v2004
      %v2019 = vpack.c.b16 %v2007, %v2006
      %v2020 = vpack.c.b16 %v2009, %v2008
      %v2021 = vpack.c.b16 %v2011, %v2010
      %v2022 = vpack.c.b16 %v2013, %v2012
      %v2023 = vpack.c.b16 %v2015, %v2014
      %2032 = vmatprep.subr.bf16.mxu0 0
      %2033 = vmatpush1.bf16.msra.mxu0 %v2016
      %2034 = vmatprep.subr.bf16.mxu0 0
      %2035 = vmatpush1.bf16.msra.mxu0 %v2017
      %2036 = vmatprep.subr.bf16.mxu0 0
      %2037 = vmatpush1.bf16.msra.mxu0 %v2018
      %2038 = vmatprep.subr.bf16.mxu0 0
      %2039 = vmatpush1.bf16.msra.mxu0 %v2019
      %2040 = vmatprep.subr.bf16.mxu0 0
      %2041 = vmatpush1.bf16.msra.mxu0 %v2020
      %2042 = vmatprep.subr.bf16.mxu0 0
      %2043 = vmatpush1.bf16.msra.mxu0 %v2021
      %2044 = vmatprep.subr.bf16.mxu0 0
      %2045 = vmatpush1.bf16.msra.mxu0 %v2022
      %2046 = vmatprep.subr.bf16.mxu0 0
      %2047 = vmatpush1.bf16.msra.mxu0 %v2023
      %2048 = vmatprep.subr.bf16.mxu0 0
      %2049 = vmatpush1.bf16.msra.mxu0 0
      %2050 = vmatprep.subr.bf16.mxu0 0
      %2051 = vmatpush1.bf16.msra.mxu0 0
      %2052 = vmatprep.subr.bf16.mxu0 0
      %2053 = vmatpush1.bf16.msra.mxu0 0
      %2054 = vmatprep.subr.bf16.mxu0 0
      %2055 = vmatpush1.bf16.msra.mxu0 0
      %2056 = vmatprep.subr.bf16.mxu0 0
      %2057 = vmatpush1.bf16.msra.mxu0 0
      %2058 = vmatprep.subr.bf16.mxu0 0
      %2059 = vmatpush1.bf16.msra.mxu0 0
      %2060 = vmatprep.subr.bf16.mxu0 0
      %2061 = vmatpush1.bf16.msra.mxu0 0
      %2062 = vmatprep.subr.bf16.mxu0 0
      %2063 = vmatpush1.bf16.msra.mxu0 0
      %2064 = vmatprep.mubr.bf16.mxu0 0
      %2065 = vmatmul.mubr.bf16.gmra.mrb[0].mxu0 %v1967
      %v2066 = vpop.f32.mrb[0].mxu0
      %v2067 = vadd.f32 0.0, %v2066
      %v2068 = vpop.f32.mrb[0].mxu0
      %v2069 = vpop.f32.mrb[0].mxu0
      %v2070 = vadd.f32 0.0, %v2069
      %v2071 = vpop.f32.mrb[0].mxu0
      %2072 = vmatprep.mubr.bf16.mxu0 0
      %2073 = vmatmul.mubr.bf16.gmra.mrb[0].mxu0 %v1969
      %v2074 = vpop.f32.mrb[0].mxu0
      %v2075 = vadd.f32 0.0, %v2074
      %v2076 = vpop.f32.mrb[0].mxu0
      %v2077 = vpop.f32.mrb[0].mxu0
      %v2078 = vadd.f32 0.0, %v2077
      %v2079 = vpop.f32.mrb[0].mxu0
      %2080 = vmatprep.mubr.bf16.mxu0 0
      %2081 = vmatmul.mubr.bf16.gmra.mrb[0].mxu0 %v1971
      %v2082 = vpop.f32.mrb[0].mxu0
      %v2083 = vadd.f32 0.0, %v2082
      %v2084 = vpop.f32.mrb[0].mxu0
      %v2085 = vpop.f32.mrb[0].mxu0
      %v2086 = vadd.f32 0.0, %v2085
      %v2087 = vpop.f32.mrb[0].mxu0
      %2088 = vmatprep.mubr.bf16.mxu0 0
      %2089 = vmatmul.mubr.bf16.gmra.mrb[0].mxu0 %v1973
      %v2090 = vpop.f32.mrb[0].mxu0
      %v2091 = vadd.f32 0.0, %v2090
      %v2092 = vpop.f32.mrb[0].mxu0
      %v2093 = vpop.f32.mrb[0].mxu0
      %v2094 = vadd.f32 0.0, %v2093
      %v2095 = vpop.f32.mrb[0].mxu0
      %2096 = vmatprep.mubr.bf16.mxu0 0
      %2097 = vmatmul.mubr.bf16.gmra.mrb[0].mxu0 %v1975
      %v2098 = vpop.f32.mrb[0].mxu0
      %v2099 = vadd.f32 0.0, %v2098
      %v2100 = vpop.f32.mrb[0].mxu0
      %v2101 = vpop.f32.mrb[0].mxu0
      %v2102 = vadd.f32 0.0, %v2101
      %v2103 = vpop.f32.mrb[0].mxu0
      %2104 = vmatprep.mubr.bf16.mxu0 0
      %2105 = vmatmul.mubr.bf16.gmra.mrb[0].mxu0 %v1977
      %v2106 = vpop.f32.mrb[0].mxu0
      %v2107 = vadd.f32 0.0, %v2106
      %v2108 = vpop.f32.mrb[0].mxu0
      %v2109 = vpop.f32.mrb[0].mxu0
      %v2110 = vadd.f32 0.0, %v2109
      %v2111 = vpop.f32.mrb[0].mxu0
      %2112 = vdwg.mxu0
      %v2113 = vadd.f32 %v1931, %v2067
      %v2114 = vadd.f32 %v1932, %v2070
      %v2115 = vadd.f32 %v1933, %v2075
      %v2116 = vadd.f32 %v1934, %v2078
      %v2117 = vadd.f32 %v1935, %v2083
      %v2118 = vadd.f32 %v1936, %v2086
      %v2119 = vadd.f32 %v1937, %v2091
      %v2120 = vadd.f32 %v1938, %v2094
      %v2121 = vadd.f32 %v1939, %v2099
      %v2122 = vadd.f32 %v1940, %v2102
      %v2123 = vadd.f32 %v1941, %v2107
      %v2124 = vadd.f32 %v1942, %v2110
      %v2125 = vld [vmem:[%s4] sm:$0x1]
      %v2127 = vlaneseq
      %v2128 = vshrl.u32 %v2127, 7
      %v2129 = vsub.s32 0, %v2128
      %v2130 = vrot.slane %v2125, %v2129
      %v2132 = vadd.f32 %v2113, %v2130
      %v2133 = vadd.f32 %v2114, %v2130
      %v2134 = vadd.f32 %v2115, %v2130
      %v2135 = vadd.f32 %v2116, %v2130
      %v2136 = vadd.f32 %v2117, %v2130
      %v2137 = vadd.f32 %v2118, %v2130
      %v2138 = vadd.f32 %v2119, %v2130
      %v2139 = vadd.f32 %v2120, %v2130
      %v2140 = vadd.f32 %v2121, %v2130
      %v2141 = vadd.f32 %v2122, %v2130
      %v2142 = vadd.f32 %v2123, %v2130
      %v2143 = vadd.f32 %v2124, %v2130
      %v2144 = vmax.f32 %v2132, 0.0
      %v2145 = vmax.f32 %v2133, 0.0
      %v2146 = vmax.f32 %v2134, 0.0
      %v2147 = vmax.f32 %v2135, 0.0
      %v2148 = vmax.f32 %v2136, 0.0
      %v2149 = vmax.f32 %v2137, 0.0
      %v2150 = vmax.f32 %v2138, 0.0
      %v2151 = vmax.f32 %v2139, 0.0
      %v2152 = vmax.f32 %v2140, 0.0
      %v2153 = vmax.f32 %v2141, 0.0
      %v2154 = vmax.f32 %v2142, 0.0
      %v2155 = vmax.f32 %v2143, 0.0
      %v2156 = vld [vmem:[%s1] sm:$0xff]
      %v2157 = vld [vmem:[%s1 + $0x8] sm:$0xff]
      %v2158 = vld [vmem:[%s1 + $0x10] sm:$0xff]
      %v2159 = vld [vmem:[%s1 + $0x18] sm:$0xff]
      %v2160 = vld [vmem:[%s1 + $0x20] sm:$0xff]
      %v2161 = vld [vmem:[%s1 + $0x28] sm:$0xff]
      %v2162 = vld [vmem:[%s1 + $0x30] sm:$0xff]
      %v2163 = vld [vmem:[%s1 + $0x38] sm:$0xff]
      %v2164 = vld [vmem:[%s1 + $0x40] sm:$0xff]
      %v2165 = vld [vmem:[%s1 + $0x48] sm:$0xff]
      %v2166 = vld [vmem:[%s1 + $0x50] sm:$0xff]
      %v2167 = vld [vmem:[%s1 + $0x58] sm:$0xff]
      %2169 = vset.pattern.permute.xlu0 0
      %2170 = vperm.xlu0 %2169, %v2156
      %v2171 = vpop.permute.xlu0 %2170
      %2174 = vset.pattern.permute.xlu0 0
      %2175 = vperm.xlu0 %2174, %v2157
      %v2176 = vpop.permute.xlu0 %2175
      %2179 = vset.pattern.permute.xlu0 0
      %2180 = vperm.xlu0 %2179, %v2158
      %v2181 = vpop.permute.xlu0 %2180
      %2184 = vset.pattern.permute.xlu0 0
      %2185 = vperm.xlu0 %2184, %v2159
      %v2186 = vpop.permute.xlu0 %2185
      %2189 = vset.pattern.permute.xlu0 0
      %2190 = vperm.xlu0 %2189, %v2160
      %v2191 = vpop.permute.xlu0 %2190
      %2194 = vset.pattern.permute.xlu0 0
      %2195 = vperm.xlu0 %2194, %v2161
      %v2196 = vpop.permute.xlu0 %2195
      %2199 = vset.pattern.permute.xlu0 0
      %2200 = vperm.xlu0 %2199, %v2162
      %v2201 = vpop.permute.xlu0 %2200
      %2204 = vset.pattern.permute.xlu0 0
      %2205 = vperm.xlu0 %2204, %v2163
      %v2206 = vpop.permute.xlu0 %2205
      %2209 = vset.pattern.permute.xlu0 0
      %2210 = vperm.xlu0 %2209, %v2164
      %v2211 = vpop.permute.xlu0 %2210
      %2214 = vset.pattern.permute.xlu0 0
      %2215 = vperm.xlu0 %2214, %v2165
      %v2216 = vpop.permute.xlu0 %2215
      %2219 = vset.pattern.permute.xlu0 0
      %2220 = vperm.xlu0 %2219, %v2166
      %v2221 = vpop.permute.xlu0 %2220
      %2224 = vset.pattern.permute.xlu0 0
      %2225 = vperm.xlu0 %2224, %v2167
      %v2226 = vpop.permute.xlu0 %2225
      %v2228 = vmul.f32 %v2144, %v2171
      %v2229 = vmul.f32 %v2145, %v2176
      %v2230 = vmul.f32 %v2146, %v2181
      %v2231 = vmul.f32 %v2147, %v2186
      %v2232 = vmul.f32 %v2148, %v2191
      %v2233 = vmul.f32 %v2149, %v2196
      %v2234 = vmul.f32 %v2150, %v2201
      %v2235 = vmul.f32 %v2151, %v2206
      %v2236 = vmul.f32 %v2152, %v2211
      %v2237 = vmul.f32 %v2153, %v2216
      %v2238 = vmul.f32 %v2154, %v2221
      %v2239 = vmul.f32 %v2155, %v2226
      %v2240 = vpack.c.bf16 %v2229, %v2228
      %v2241 = vpack.c.bf16 %v2231, %v2230
      %v2242 = vpack.c.bf16 %v2233, %v2232
      %v2243 = vpack.c.bf16 %v2235, %v2234
      %v2244 = vpack.c.bf16 %v2237, %v2236
      %v2245 = vpack.c.bf16 %v2239, %v2238
      %v2252 = vunpack.c.l.b16 %v2240
      %v2253 = vunpack.c.h.b16 %v2240
      %v2254 = vunpack.c.l.b16 %v2241
      %v2255 = vunpack.c.h.b16 %v2241
      %v2256 = vunpack.c.l.b16 %v2242
      %v2257 = vunpack.c.h.b16 %v2242
      %v2258 = vunpack.c.l.b16 %v2243
      %v2259 = vunpack.c.h.b16 %v2243
      %v2260 = vunpack.c.l.b16 %v2244
      %v2261 = vunpack.c.h.b16 %v2244
      %v2262 = vunpack.c.l.b16 %v2245
      %v2263 = vunpack.c.h.b16 %v2245
      %v2264 = vpack.c.b16 %v2252, %v2252
      %v2265 = vpack.c.b16 %v2253, %v2253
      %v2266 = vpack.c.b16 %v2254, %v2254
      %v2267 = vpack.c.b16 %v2255, %v2255
      %v2268 = vpack.c.b16 %v2256, %v2256
      %v2269 = vpack.c.b16 %v2257, %v2257
      %v2270 = vpack.c.b16 %v2258, %v2258
      %v2271 = vpack.c.b16 %v2259, %v2259
      %v2272 = vpack.c.b16 %v2260, %v2260
      %v2273 = vpack.c.b16 %v2261, %v2261
      %v2274 = vpack.c.b16 %v2262, %v2262
      %v2275 = vpack.c.b16 %v2263, %v2263
      %vm2276 = vsmask.f32 5392
      %vm2277 = vmor %vm256, %vm2276
      %v2279 = vshrl.u32 %v2264, 16
      %v2281 = vrot.slane %v2279, 6
      %v2282 = vshll.u32 %v2264, 16
      %v2284 = vrot.slane %v2282, 7
      %v2285 = vor.u32 %v2281, %v2284
      %v2286 = vrot.slane %v2285, 4
      %v2288 = vshrl.u32 %v2265, 16
      %v2290 = vrot.slane %v2288, 6
      %v2291 = vshll.u32 %v2265, 16
      %v2293 = vrot.slane %v2291, 7
      %v2294 = vor.u32 %v2290, %v2293
      %v2295 = vsel %vm2277, %v2286, %v2294
      %v2296 = vrot.slane %v2294, 4
      %v2298 = vshrl.u32 %v2266, 16
      %v2300 = vrot.slane %v2298, 6
      %v2301 = vshll.u32 %v2266, 16
      %v2303 = vrot.slane %v2301, 7
      %v2304 = vor.u32 %v2300, %v2303
      %v2305 = vsel %vm2277, %v2296, %v2304
      %v2306 = vrot.slane %v2304, 4
      %v2308 = vshrl.u32 %v2267, 16
      %v2310 = vrot.slane %v2308, 6
      %v2311 = vshll.u32 %v2267, 16
      %v2313 = vrot.slane %v2311, 7
      %v2314 = vor.u32 %v2310, %v2313
      %v2315 = vsel %vm2277, %v2306, %v2314
      %v2316 = vrot.slane %v2314, 4
      %v2318 = vshrl.u32 %v2268, 16
      %v2320 = vrot.slane %v2318, 6
      %v2321 = vshll.u32 %v2268, 16
      %v2323 = vrot.slane %v2321, 7
      %v2324 = vor.u32 %v2320, %v2323
      %v2325 = vsel %vm2277, %v2316, %v2324
      %v2326 = vrot.slane %v2324, 4
      %v2328 = vshrl.u32 %v2269, 16
      %v2330 = vrot.slane %v2328, 6
      %v2331 = vshll.u32 %v2269, 16
      %v2333 = vrot.slane %v2331, 7
      %v2334 = vor.u32 %v2330, %v2333
      %v2335 = vsel %vm2277, %v2326, %v2334
      %v2336 = vrot.slane %v2334, 4
      %v2338 = vshrl.u32 %v2270, 16
      %v2340 = vrot.slane %v2338, 6
      %v2341 = vshll.u32 %v2270, 16
      %v2343 = vrot.slane %v2341, 7
      %v2344 = vor.u32 %v2340, %v2343
      %v2345 = vsel %vm2277, %v2336, %v2344
      %v2346 = vrot.slane %v2344, 4
      %v2348 = vshrl.u32 %v2271, 16
      %v2350 = vrot.slane %v2348, 6
      %v2351 = vshll.u32 %v2271, 16
      %v2353 = vrot.slane %v2351, 7
      %v2354 = vor.u32 %v2350, %v2353
      %v2355 = vsel %vm2277, %v2346, %v2354
      %v2356 = vrot.slane %v2354, 4
      %v2358 = vshrl.u32 %v2272, 16
      %v2360 = vrot.slane %v2358, 6
      %v2361 = vshll.u32 %v2272, 16
      %v2363 = vrot.slane %v2361, 7
      %v2364 = vor.u32 %v2360, %v2363
      %v2365 = vsel %vm2277, %v2356, %v2364
      %v2366 = vrot.slane %v2364, 4
      %v2368 = vshrl.u32 %v2273, 16
      %v2370 = vrot.slane %v2368, 6
      %v2371 = vshll.u32 %v2273, 16
      %v2373 = vrot.slane %v2371, 7
      %v2374 = vor.u32 %v2370, %v2373
      %v2375 = vsel %vm2277, %v2366, %v2374
      %v2376 = vrot.slane %v2374, 4
      %v2378 = vshrl.u32 %v2274, 16
      %v2380 = vrot.slane %v2378, 6
      %v2381 = vshll.u32 %v2274, 16
      %v2383 = vrot.slane %v2381, 7
      %v2384 = vor.u32 %v2380, %v2383
      %v2385 = vsel %vm2277, %v2376, %v2384
      %v2386 = vrot.slane %v2384, 4
      %v2388 = vshrl.u32 %v2275, 16
      %v2390 = vrot.slane %v2388, 6
      %v2391 = vshll.u32 %v2275, 16
      %v2393 = vrot.slane %v2391, 7
      %v2394 = vor.u32 %v2390, %v2393
      %v2395 = vsel %vm2277, %v2386, %v2394
      %v2396 = vrot.slane %v2394, 4
      %v2410 = vld [vmem:[#allocation2 + $0x8] sm:$0xe]
      %v2411 = vsel %vm263, %v2285, %v2410
      %2412 = vst [vmem:[#allocation2 + $0x8] sm:$0xe] %v2411
      %2413 = vst [vmem:[#allocation2 + $0xc] sm:$0xf] %v2295
      %2414 = vst [vmem:[#allocation2 + $0x10] sm:$0xf] %v2305
      %2415 = vst [vmem:[#allocation2 + $0x14] sm:$0xf] %v2315
      %2416 = vst [vmem:[#allocation2 + $0x18] sm:$0xf] %v2325
      %2417 = vst [vmem:[#allocation2 + $0x1c] sm:$0xf] %v2335
      %2418 = vst [vmem:[#allocation2 + $0x20] sm:$0xf] %v2345
      %2419 = vst [vmem:[#allocation2 + $0x24] sm:$0xf] %v2355
      %2420 = vst [vmem:[#allocation2 + $0x28] sm:$0xf] %v2365
      %2421 = vst [vmem:[#allocation2 + $0x2c] sm:$0xf] %v2375
      %2422 = vst [vmem:[#allocation2 + $0x30] sm:$0xf] %v2385
      %2423 = vst [vmem:[#allocation2 + $0x34] sm:$0xf] %v2395
      %v2424 = vld [vmem:[#allocation2 + $0x38] sm:$0x3]
      %v2425 = vsel %vm257, %v2396, %v2424
      %2426 = vst [vmem:[#allocation2 + $0x38] sm:$0x3] %v2425
      %v2427 = vld [vmem:[%s246 + $0x30] sm:$0xf]
      %v2428 = vld [vmem:[%s246 + $0x34] sm:$0xf]
      %v2429 = vld [vmem:[%s246 + $0x38] sm:$0xf]
      %v2430 = vld [vmem:[%s246 + $0x3c] sm:$0xf]
      %v2431 = vld [vmem:[%s246 + $0x40] sm:$0xf]
      %v2432 = vld [vmem:[%s246 + $0x44] sm:$0xf]
      %v2433 = vld [vmem:[%s246 + $0x48] sm:$0xf]
      %v2434 = vld [vmem:[%s246 + $0x4c] sm:$0xf]
      %v2435 = vld [vmem:[%s246 + $0x50] sm:$0xf]
      %v2436 = vld [vmem:[%s246 + $0x54] sm:$0xf]
      %v2437 = vld [vmem:[%s246 + $0x58] sm:$0xf]
      %v2438 = vld [vmem:[%s246 + $0x5c] sm:$0xf]
      %v2439 = vld [vmem:[%s2] sm:$0xf]
      %v2440 = vld [vmem:[%s2 + $0x4] sm:$0xf]
      %v2441 = vld [vmem:[%s2 + $0x8] sm:$0xf]
      %v2442 = vld [vmem:[%s2 + $0xc] sm:$0xf]
      %v2443 = vld [vmem:[%s2 + $0x10] sm:$0xf]
      %v2444 = vld [vmem:[%s2 + $0x14] sm:$0xf]
      %v2445 = vld [vmem:[%s2 + $0x18] sm:$0xf]
      %v2446 = vld [vmem:[%s2 + $0x1c] sm:$0xf]
      %v2447 = vld [vmem:[%s2 + $0x20] sm:$0xf]
      %v2448 = vld [vmem:[%s2 + $0x24] sm:$0xf]
      %v2449 = vld [vmem:[%s2 + $0x28] sm:$0xf]
      %v2450 = vld [vmem:[%s2 + $0x2c] sm:$0xf]
      %v2451 = vld [vmem:[%s2 + $0x30] sm:$0xf]
      %v2452 = vld [vmem:[%s2 + $0x34] sm:$0xf]
      %v2453 = vld [vmem:[%s2 + $0x38] sm:$0xf]
      %v2454 = vld [vmem:[%s2 + $0x3c] sm:$0xf]
      %v2455 = vld [vmem:[%s246 + $0x60] sm:$0x1]
      %v2456 = vld [vmem:[%s298] sm:$0xf]
      %v2457 = vld [vmem:[%s298 + $0x4] sm:$0xf]
      %v2458 = vld [vmem:[%s298 + $0x8] sm:$0xf]
      %v2459 = vld [vmem:[%s298 + $0xc] sm:$0xf]
      %v2460 = vld [vmem:[%s298 + $0x10] sm:$0xf]
      %v2461 = vld [vmem:[%s298 + $0x14] sm:$0xf]
      %v2462 = vld [vmem:[%s298 + $0x18] sm:$0xf]
      %v2463 = vld [vmem:[%s298 + $0x1c] sm:$0xf]
      %v2464 = vld [vmem:[%s298 + $0x20] sm:$0xf]
      %v2465 = vld [vmem:[%s298 + $0x24] sm:$0xf]
      %v2466 = vld [vmem:[%s298 + $0x28] sm:$0xf]
      %v2467 = vld [vmem:[%s298 + $0x2c] sm:$0xf]
      %v2468 = vld [vmem:[%s298 + $0x30] sm:$0xf]
      %v2469 = vld [vmem:[%s298 + $0x34] sm:$0xf]
      %v2470 = vld [vmem:[%s298 + $0x38] sm:$0xf]
      %v2471 = vld [vmem:[%s298 + $0x3c] sm:$0xf]
      %v2485 = vunpack.c.l.b16 %v2427
      %v2486 = vunpack.c.l.b16 %v2428
      %v2487 = vunpack.c.l.b16 %v2429
      %v2488 = vunpack.c.l.b16 %v2430
      %v2489 = vunpack.c.l.b16 %v2431
      %v2490 = vunpack.c.l.b16 %v2432
      %v2491 = vunpack.c.l.b16 %v2433
      %v2492 = vunpack.c.l.b16 %v2434
      %v2493 = vunpack.c.l.b16 %v2435
      %v2494 = vunpack.c.l.b16 %v2436
      %v2495 = vunpack.c.l.b16 %v2437
      %v2496 = vunpack.c.l.b16 %v2438
      %v2497 = vunpack.c.l.b16 %v2455
      %v2498 = vpack.c.b16 %v2486, %v2485
      %v2499 = vpack.c.b16 %v2488, %v2487
      %v2500 = vpack.c.b16 %v2490, %v2489
      %v2501 = vpack.c.b16 %v2492, %v2491
      %v2502 = vpack.c.b16 %v2494, %v2493
      %v2503 = vpack.c.b16 %v2496, %v2495
      %v2504 = vpack.c.b16 %v2497, %v2497
      %v2506 = vshrl.u32 %v2498, 16
      %v2508 = vshll.u32 %v2498, 16
      %v2510 = vrot.slane %v2508, 1
      %v2511 = vor.u32 %v2506, %v2510
      %v2513 = vshll.u32 %v2499, 16
      %v2515 = vrot.slane %v2513, 1
      %v2516 = vsel %vm348, %v2511, %v2515
      %v2517 = vshrl.u32 %v2499, 16
      %v2519 = vor.u32 %v2517, %v2515
      %v2521 = vshll.u32 %v2500, 16
      %v2523 = vrot.slane %v2521, 1
      %v2524 = vsel %vm348, %v2519, %v2523
      %v2525 = vshrl.u32 %v2500, 16
      %v2527 = vor.u32 %v2525, %v2523
      %v2529 = vshll.u32 %v2501, 16
      %v2531 = vrot.slane %v2529, 1
      %v2532 = vsel %vm348, %v2527, %v2531
      %v2533 = vshrl.u32 %v2501, 16
      %v2535 = vor.u32 %v2533, %v2531
      %v2537 = vshll.u32 %v2502, 16
      %v2539 = vrot.slane %v2537, 1
      %v2540 = vsel %vm348, %v2535, %v2539
      %v2541 = vshrl.u32 %v2502, 16
      %v2543 = vor.u32 %v2541, %v2539
      %v2545 = vshll.u32 %v2503, 16
      %v2547 = vrot.slane %v2545, 1
      %v2548 = vsel %vm348, %v2543, %v2547
      %v2549 = vshrl.u32 %v2503, 16
      %v2551 = vor.u32 %v2549, %v2547
      %v2553 = vshll.u32 %v2504, 16
      %v2555 = vrot.slane %v2553, 1
      %v2556 = vsel %vm348, %v2551, %v2555
      %v2579 = vunpack.c.l.b16 %v2456
      %v2580 = vunpack.c.l.b16 %v2457
      %v2581 = vunpack.c.l.b16 %v2458
      %v2582 = vunpack.c.l.b16 %v2459
      %v2583 = vunpack.c.l.b16 %v2460
      %v2584 = vunpack.c.l.b16 %v2461
      %v2585 = vunpack.c.l.b16 %v2462
      %v2586 = vunpack.c.l.b16 %v2463
      %v2587 = vunpack.c.l.b16 %v2464
      %v2588 = vunpack.c.l.b16 %v2465
      %v2589 = vunpack.c.l.b16 %v2466
      %v2590 = vunpack.c.l.b16 %v2467
      %v2591 = vunpack.c.l.b16 %v2468
      %v2592 = vunpack.c.l.b16 %v2469
      %v2593 = vunpack.c.l.b16 %v2470
      %v2594 = vunpack.c.l.b16 %v2471
      %v2595 = vpack.c.b16 %v2580, %v2579
      %v2596 = vpack.c.b16 %v2582, %v2581
      %v2597 = vpack.c.b16 %v2584, %v2583
      %v2598 = vpack.c.b16 %v2586, %v2585
      %v2599 = vpack.c.b16 %v2588, %v2587
      %v2600 = vpack.c.b16 %v2590, %v2589
      %v2601 = vpack.c.b16 %v2592, %v2591
      %v2602 = vpack.c.b16 %v2594, %v2593
      %2611 = vmatprep.subr.bf16.mxu0 0
      %2612 = vmatpush1.bf16.msra.mxu0 %v2595
      %2613 = vmatprep.subr.bf16.mxu0 0
      %2614 = vmatpush1.bf16.msra.mxu0 %v2596
      %2615 = vmatprep.subr.bf16.mxu0 0
      %2616 = vmatpush1.bf16.msra.mxu0 %v2597
      %2617 = vmatprep.subr.bf16.mxu0 0
      %2618 = vmatpush1.bf16.msra.mxu0 %v2598
      %2619 = vmatprep.subr.bf16.mxu0 0
      %2620 = vmatpush1.bf16.msra.mxu0 %v2599
      %2621 = vmatprep.subr.bf16.mxu0 0
      %2622 = vmatpush1.bf16.msra.mxu0 %v2600
      %2623 = vmatprep.subr.bf16.mxu0 0
      %2624 = vmatpush1.bf16.msra.mxu0 %v2601
      %2625 = vmatprep.subr.bf16.mxu0 0
      %2626 = vmatpush1.bf16.msra.mxu0 %v2602
      %2627 = vmatprep.subr.bf16.mxu0 0
      %2628 = vmatpush1.bf16.msra.mxu0 0
      %2629 = vmatprep.subr.bf16.mxu0 0
      %2630 = vmatpush1.bf16.msra.mxu0 0
      %2631 = vmatprep.subr.bf16.mxu0 0
      %2632 = vmatpush1.bf16.msra.mxu0 0
      %2633 = vmatprep.subr.bf16.mxu0 0
      %2634 = vmatpush1.bf16.msra.mxu0 0
      %2635 = vmatprep.subr.bf16.mxu0 0
      %2636 = vmatpush1.bf16.msra.mxu0 0
      %2637 = vmatprep.subr.bf16.mxu0 0
      %2638 = vmatpush1.bf16.msra.mxu0 0
      %2639 = vmatprep.subr.bf16.mxu0 0
      %2640 = vmatpush1.bf16.msra.mxu0 0
      %2641 = vmatprep.subr.bf16.mxu0 0
      %2642 = vmatpush1.bf16.msra.mxu0 0
      %2643 = vmatprep.mubr.bf16.mxu0 0
      %2644 = vmatmul.mubr.bf16.gmra.mrb[0].mxu0 %v2516
      %v2645 = vpop.f32.mrb[0].mxu0
      %v2646 = vadd.f32 0.0, %v2645
      %v2647 = vpop.f32.mrb[0].mxu0
      %v2648 = vpop.f32.mrb[0].mxu0
      %v2649 = vadd.f32 0.0, %v2648
      %v2650 = vpop.f32.mrb[0].mxu0
      %2651 = vmatprep.mubr.bf16.mxu0 0
      %2652 = vmatmul.mubr.bf16.gmra.mrb[0].mxu0 %v2524
      %v2653 = vpop.f32.mrb[0].mxu0
      %v2654 = vadd.f32 0.0, %v2653
      %v2655 = vpop.f32.mrb[0].mxu0
      %v2656 = vpop.f32.mrb[0].mxu0
      %v2657 = vadd.f32 0.0, %v2656
      %v2658 = vpop.f32.mrb[0].mxu0
      %2659 = vmatprep.mubr.bf16.mxu0 0
      %2660 = vmatmul.mubr.bf16.gmra.mrb[0].mxu0 %v2532
      %v2661 = vpop.f32.mrb[0].mxu0
      %v2662 = vadd.f32 0.0, %v2661
      %v2663 = vpop.f32.mrb[0].mxu0
      %v2664 = vpop.f32.mrb[0].mxu0
      %v2665 = vadd.f32 0.0, %v2664
      %v2666 = vpop.f32.mrb[0].mxu0
      %2667 = vmatprep.mubr.bf16.mxu0 0
      %2668 = vmatmul.mubr.bf16.gmra.mrb[0].mxu0 %v2540
      %v2669 = vpop.f32.mrb[0].mxu0
      %v2670 = vadd.f32 0.0, %v2669
      %v2671 = vpop.f32.mrb[0].mxu0
      %v2672 = vpop.f32.mrb[0].mxu0
      %v2673 = vadd.f32 0.0, %v2672
      %v2674 = vpop.f32.mrb[0].mxu0
      %2675 = vmatprep.mubr.bf16.mxu0 0
      %2676 = vmatmul.mubr.bf16.gmra.mrb[0].mxu0 %v2548
      %v2677 = vpop.f32.mrb[0].mxu0
      %v2678 = vadd.f32 0.0, %v2677
      %v2679 = vpop.f32.mrb[0].mxu0
      %v2680 = vpop.f32.mrb[0].mxu0
      %v2681 = vadd.f32 0.0, %v2680
      %v2682 = vpop.f32.mrb[0].mxu0
      %2683 = vmatprep.mubr.bf16.mxu0 0
      %2684 = vmatmul.mubr.bf16.gmra.mrb[0].mxu0 %v2556
      %v2685 = vpop.f32.mrb[0].mxu0
      %v2686 = vadd.f32 0.0, %v2685
      %v2687 = vpop.f32.mrb[0].mxu0
      %v2688 = vpop.f32.mrb[0].mxu0
      %v2689 = vadd.f32 0.0, %v2688
      %v2690 = vpop.f32.mrb[0].mxu0
      %2691 = vdwg.mxu0
      %v2714 = vunpack.c.l.b16 %v2439
      %v2715 = vunpack.c.l.b16 %v2440
      %v2716 = vunpack.c.l.b16 %v2441
      %v2717 = vunpack.c.l.b16 %v2442
      %v2718 = vunpack.c.l.b16 %v2443
      %v2719 = vunpack.c.l.b16 %v2444
      %v2720 = vunpack.c.l.b16 %v2445
      %v2721 = vunpack.c.l.b16 %v2446
      %v2722 = vunpack.c.l.b16 %v2447
      %v2723 = vunpack.c.l.b16 %v2448
      %v2724 = vunpack.c.l.b16 %v2449
      %v2725 = vunpack.c.l.b16 %v2450
      %v2726 = vunpack.c.l.b16 %v2451
      %v2727 = vunpack.c.l.b16 %v2452
      %v2728 = vunpack.c.l.b16 %v2453
      %v2729 = vunpack.c.l.b16 %v2454
      %v2730 = vpack.c.b16 %v2715, %v2714
      %v2731 = vpack.c.b16 %v2717, %v2716
      %v2732 = vpack.c.b16 %v2719, %v2718
      %v2733 = vpack.c.b16 %v2721, %v2720
      %v2734 = vpack.c.b16 %v2723, %v2722
      %v2735 = vpack.c.b16 %v2725, %v2724
      %v2736 = vpack.c.b16 %v2727, %v2726
      %v2737 = vpack.c.b16 %v2729, %v2728
      %2746 = vmatprep.subr.bf16.mxu0 0
      %2747 = vmatpush1.bf16.msra.mxu0 %v2730
      %2748 = vmatprep.subr.bf16.mxu0 0
      %2749 = vmatpush1.bf16.msra.mxu0 %v2731
      %2750 = vmatprep.subr.bf16.mxu0 0
      %2751 = vmatpush1.bf16.msra.mxu0 %v2732
      %2752 = vmatprep.subr.bf16.mxu0 0
      %2753 = vmatpush1.bf16.msra.mxu0 %v2733
      %2754 = vmatprep.subr.bf16.mxu0 0
      %2755 = vmatpush1.bf16.msra.mxu0 %v2734
      %2756 = vmatprep.subr.bf16.mxu0 0
      %2757 = vmatpush1.bf16.msra.mxu0 %v2735
      %2758 = vmatprep.subr.bf16.mxu0 0
      %2759 = vmatpush1.bf16.msra.mxu0 %v2736
      %2760 = vmatprep.subr.bf16.mxu0 0
      %2761 = vmatpush1.bf16.msra.mxu0 %v2737
      %2762 = vmatprep.subr.bf16.mxu0 0
      %2763 = vmatpush1.bf16.msra.mxu0 0
      %2764 = vmatprep.subr.bf16.mxu0 0
      %2765 = vmatpush1.bf16.msra.mxu0 0
      %2766 = vmatprep.subr.bf16.mxu0 0
      %2767 = vmatpush1.bf16.msra.mxu0 0
      %2768 = vmatprep.subr.bf16.mxu0 0
      %2769 = vmatpush1.bf16.msra.mxu0 0
      %2770 = vmatprep.subr.bf16.mxu0 0
      %2771 = vmatpush1.bf16.msra.mxu0 0
      %2772 = vmatprep.subr.bf16.mxu0 0
      %2773 = vmatpush1.bf16.msra.mxu0 0
      %2774 = vmatprep.subr.bf16.mxu0 0
      %2775 = vmatpush1.bf16.msra.mxu0 0
      %2776 = vmatprep.subr.bf16.mxu0 0
      %2777 = vmatpush1.bf16.msra.mxu0 0
      %2778 = vmatprep.mubr.bf16.mxu0 0
      %2779 = vmatmul.mubr.bf16.gmra.mrb[0].mxu0 %v2498
      %v2780 = vpop.f32.mrb[0].mxu0
      %v2781 = vadd.f32 %v2646, %v2780
      %v2782 = vpop.f32.mrb[0].mxu0
      %v2783 = vpop.f32.mrb[0].mxu0
      %v2784 = vadd.f32 %v2649, %v2783
      %v2785 = vpop.f32.mrb[0].mxu0
      %2786 = vmatprep.mubr.bf16.mxu0 0
      %2787 = vmatmul.mubr.bf16.gmra.mrb[0].mxu0 %v2499
      %v2788 = vpop.f32.mrb[0].mxu0
      %v2789 = vadd.f32 %v2654, %v2788
      %v2790 = vpop.f32.mrb[0].mxu0
      %v2791 = vpop.f32.mrb[0].mxu0
      %v2792 = vadd.f32 %v2657, %v2791
      %v2793 = vpop.f32.mrb[0].mxu0
      %2794 = vmatprep.mubr.bf16.mxu0 0
      %2795 = vmatmul.mubr.bf16.gmra.mrb[0].mxu0 %v2500
      %v2796 = vpop.f32.mrb[0].mxu0
      %v2797 = vadd.f32 %v2662, %v2796
      %v2798 = vpop.f32.mrb[0].mxu0
      %v2799 = vpop.f32.mrb[0].mxu0
      %v2800 = vadd.f32 %v2665, %v2799
      %v2801 = vpop.f32.mrb[0].mxu0
      %2802 = vmatprep.mubr.bf16.mxu0 0
      %2803 = vmatmul.mubr.bf16.gmra.mrb[0].mxu0 %v2501
      %v2804 = vpop.f32.mrb[0].mxu0
      %v2805 = vadd.f32 %v2670, %v2804
      %v2806 = vpop.f32.mrb[0].mxu0
      %v2807 = vpop.f32.mrb[0].mxu0
      %v2808 = vadd.f32 %v2673, %v2807
      %v2809 = vpop.f32.mrb[0].mxu0
      %2810 = vmatprep.mubr.bf16.mxu0 0
      %2811 = vmatmul.mubr.bf16.gmra.mrb[0].mxu0 %v2502
      %v2812 = vpop.f32.mrb[0].mxu0
      %v2813 = vadd.f32 %v2678, %v2812
      %v2814 = vpop.f32.mrb[0].mxu0
      %v2815 = vpop.f32.mrb[0].mxu0
      %v2816 = vadd.f32 %v2681, %v2815
      %v2817 = vpop.f32.mrb[0].mxu0
      %2818 = vmatprep.mubr.bf16.mxu0 0
      %2819 = vmatmul.mubr.bf16.gmra.mrb[0].mxu0 %v2503
      %v2820 = vpop.f32.mrb[0].mxu0
      %v2821 = vadd.f32 %v2686, %v2820
      %v2822 = vpop.f32.mrb[0].mxu0
      %v2823 = vpop.f32.mrb[0].mxu0
      %v2824 = vadd.f32 %v2689, %v2823
      %v2825 = vpop.f32.mrb[0].mxu0
      %2826 = vdwg.mxu0
      %v2827 = vld [vmem:[%s246 + $0x30] sm:$0xe]
      %v2828 = vld [vmem:[%s672] sm:$0xf]
      %v2829 = vld [vmem:[%s672 + $0x4] sm:$0xf]
      %v2830 = vld [vmem:[%s672 + $0x8] sm:$0xf]
      %v2831 = vld [vmem:[%s672 + $0xc] sm:$0xf]
      %v2832 = vld [vmem:[%s672 + $0x10] sm:$0xf]
      %v2833 = vld [vmem:[%s672 + $0x14] sm:$0xf]
      %v2834 = vld [vmem:[%s672 + $0x18] sm:$0xf]
      %v2835 = vld [vmem:[%s672 + $0x1c] sm:$0xf]
      %v2836 = vld [vmem:[%s672 + $0x20] sm:$0xf]
      %v2837 = vld [vmem:[%s672 + $0x24] sm:$0xf]
      %v2838 = vld [vmem:[%s672 + $0x28] sm:$0xf]
      %v2839 = vld [vmem:[%s672 + $0x2c] sm:$0xf]
      %v2840 = vld [vmem:[%s672 + $0x30] sm:$0xf]
      %v2841 = vld [vmem:[%s672 + $0x34] sm:$0xf]
      %v2842 = vld [vmem:[%s672 + $0x38] sm:$0xf]
      %v2843 = vld [vmem:[%s672 + $0x3c] sm:$0xf]
      %v2845 = vunpack.c.l.b16 %v2827
      %v2846 = vpack.c.b16 %v2486, %v2845
      %v2847 = vrot.slane %v2846, 1
      %v2848 = vrot.slane %v2499, 1
      %v2849 = vsel %vm692, %v2847, %v2848
      %v2850 = vrot.slane %v2500, 1
      %v2851 = vsel %vm692, %v2848, %v2850
      %v2852 = vrot.slane %v2501, 1
      %v2853 = vsel %vm692, %v2850, %v2852
      %v2854 = vrot.slane %v2502, 1
      %v2855 = vsel %vm692, %v2852, %v2854
      %v2856 = vrot.slane %v2503, 1
      %v2857 = vsel %vm692, %v2854, %v2856
      %v2858 = vrot.slane %v2504, 1
      %v2859 = vsel %vm692, %v2856, %v2858
      %v2882 = vunpack.c.l.b16 %v2828
      %v2883 = vunpack.c.l.b16 %v2829
      %v2884 = vunpack.c.l.b16 %v2830
      %v2885 = vunpack.c.l.b16 %v2831
      %v2886 = vunpack.c.l.b16 %v2832
      %v2887 = vunpack.c.l.b16 %v2833
      %v2888 = vunpack.c.l.b16 %v2834
      %v2889 = vunpack.c.l.b16 %v2835
      %v2890 = vunpack.c.l.b16 %v2836
      %v2891 = vunpack.c.l.b16 %v2837
      %v2892 = vunpack.c.l.b16 %v2838
      %v2893 = vunpack.c.l.b16 %v2839
      %v2894 = vunpack.c.l.b16 %v2840
      %v2895 = vunpack.c.l.b16 %v2841
      %v2896 = vunpack.c.l.b16 %v2842
      %v2897 = vunpack.c.l.b16 %v2843
      %v2898 = vpack.c.b16 %v2883, %v2882
      %v2899 = vpack.c.b16 %v2885, %v2884
      %v2900 = vpack.c.b16 %v2887, %v2886
      %v2901 = vpack.c.b16 %v2889, %v2888
      %v2902 = vpack.c.b16 %v2891, %v2890
      %v2903 = vpack.c.b16 %v2893, %v2892
      %v2904 = vpack.c.b16 %v2895, %v2894
      %v2905 = vpack.c.b16 %v2897, %v2896
      %2914 = vmatprep.subr.bf16.mxu0 0
      %2915 = vmatpush1.bf16.msra.mxu0 %v2898
      %2916 = vmatprep.subr.bf16.mxu0 0
      %2917 = vmatpush1.bf16.msra.mxu0 %v2899
      %2918 = vmatprep.subr.bf16.mxu0 0
      %2919 = vmatpush1.bf16.msra.mxu0 %v2900
      %2920 = vmatprep.subr.bf16.mxu0 0
      %2921 = vmatpush1.bf16.msra.mxu0 %v2901
      %2922 = vmatprep.subr.bf16.mxu0 0
      %2923 = vmatpush1.bf16.msra.mxu0 %v2902
      %2924 = vmatprep.subr.bf16.mxu0 0
      %2925 = vmatpush1.bf16.msra.mxu0 %v2903
      %2926 = vmatprep.subr.bf16.mxu0 0
      %2927 = vmatpush1.bf16.msra.mxu0 %v2904
      %2928 = vmatprep.subr.bf16.mxu0 0
      %2929 = vmatpush1.bf16.msra.mxu0 %v2905
      %2930 = vmatprep.subr.bf16.mxu0 0
      %2931 = vmatpush1.bf16.msra.mxu0 0
      %2932 = vmatprep.subr.bf16.mxu0 0
      %2933 = vmatpush1.bf16.msra.mxu0 0
      %2934 = vmatprep.subr.bf16.mxu0 0
      %2935 = vmatpush1.bf16.msra.mxu0 0
      %2936 = vmatprep.subr.bf16.mxu0 0
      %2937 = vmatpush1.bf16.msra.mxu0 0
      %2938 = vmatprep.subr.bf16.mxu0 0
      %2939 = vmatpush1.bf16.msra.mxu0 0
      %2940 = vmatprep.subr.bf16.mxu0 0
      %2941 = vmatpush1.bf16.msra.mxu0 0
      %2942 = vmatprep.subr.bf16.mxu0 0
      %2943 = vmatpush1.bf16.msra.mxu0 0
      %2944 = vmatprep.subr.bf16.mxu0 0
      %2945 = vmatpush1.bf16.msra.mxu0 0
      %2946 = vmatprep.mubr.bf16.mxu0 0
      %2947 = vmatmul.mubr.bf16.gmra.mrb[0].mxu0 %v2849
      %v2948 = vpop.f32.mrb[0].mxu0
      %v2949 = vadd.f32 0.0, %v2948
      %v2950 = vpop.f32.mrb[0].mxu0
      %v2951 = vpop.f32.mrb[0].mxu0
      %v2952 = vadd.f32 0.0, %v2951
      %v2953 = vpop.f32.mrb[0].mxu0
      %2954 = vmatprep.mubr.bf16.mxu0 0
      %2955 = vmatmul.mubr.bf16.gmra.mrb[0].mxu0 %v2851
      %v2956 = vpop.f32.mrb[0].mxu0
      %v2957 = vadd.f32 0.0, %v2956
      %v2958 = vpop.f32.mrb[0].mxu0
      %v2959 = vpop.f32.mrb[0].mxu0
      %v2960 = vadd.f32 0.0, %v2959
      %v2961 = vpop.f32.mrb[0].mxu0
      %2962 = vmatprep.mubr.bf16.mxu0 0
      %2963 = vmatmul.mubr.bf16.gmra.mrb[0].mxu0 %v2853
      %v2964 = vpop.f32.mrb[0].mxu0
      %v2965 = vadd.f32 0.0, %v2964
      %v2966 = vpop.f32.mrb[0].mxu0
      %v2967 = vpop.f32.mrb[0].mxu0
      %v2968 = vadd.f32 0.0, %v2967
      %v2969 = vpop.f32.mrb[0].mxu0
      %2970 = vmatprep.mubr.bf16.mxu0 0
      %2971 = vmatmul.mubr.bf16.gmra.mrb[0].mxu0 %v2855
      %v2972 = vpop.f32.mrb[0].mxu0
      %v2973 = vadd.f32 0.0, %v2972
      %v2974 = vpop.f32.mrb[0].mxu0
      %v2975 = vpop.f32.mrb[0].mxu0
      %v2976 = vadd.f32 0.0, %v2975
      %v2977 = vpop.f32.mrb[0].mxu0
      %2978 = vmatprep.mubr.bf16.mxu0 0
      %2979 = vmatmul.mubr.bf16.gmra.mrb[0].mxu0 %v2857
      %v2980 = vpop.f32.mrb[0].mxu0
      %v2981 = vadd.f32 0.0, %v2980
      %v2982 = vpop.f32.mrb[0].mxu0
      %v2983 = vpop.f32.mrb[0].mxu0
      %v2984 = vadd.f32 0.0, %v2983
      %v2985 = vpop.f32.mrb[0].mxu0
      %2986 = vmatprep.mubr.bf16.mxu0 0
      %2987 = vmatmul.mubr.bf16.gmra.mrb[0].mxu0 %v2859
      %v2988 = vpop.f32.mrb[0].mxu0
      %v2989 = vadd.f32 0.0, %v2988
      %v2990 = vpop.f32.mrb[0].mxu0
      %v2991 = vpop.f32.mrb[0].mxu0
      %v2992 = vadd.f32 0.0, %v2991
      %v2993 = vpop.f32.mrb[0].mxu0
      %2994 = vdwg.mxu0
      %v2995 = vadd.f32 %v2781, %v2949
      %v2996 = vadd.f32 %v2784, %v2952
      %v2997 = vadd.f32 %v2789, %v2957
      %v2998 = vadd.f32 %v2792, %v2960
      %v2999 = vadd.f32 %v2797, %v2965
      %v3000 = vadd.f32 %v2800, %v2968
      %v3001 = vadd.f32 %v2805, %v2973
      %v3002 = vadd.f32 %v2808, %v2976
      %v3003 = vadd.f32 %v2813, %v2981
      %v3004 = vadd.f32 %v2816, %v2984
      %v3005 = vadd.f32 %v2821, %v2989
      %v3006 = vadd.f32 %v2824, %v2992
      %v3007 = vld [vmem:[%s246 + $0x38] sm:$0xe]
      %v3008 = vld [vmem:[%s246 + $0x3c] sm:$0xf]
      %v3009 = vld [vmem:[%s246 + $0x40] sm:$0xf]
      %v3010 = vld [vmem:[%s246 + $0x44] sm:$0xf]
      %v3011 = vld [vmem:[%s246 + $0x48] sm:$0xf]
      %v3012 = vld [vmem:[%s246 + $0x4c] sm:$0xf]
      %v3013 = vld [vmem:[%s246 + $0x50] sm:$0xf]
      %v3014 = vld [vmem:[%s246 + $0x54] sm:$0xf]
      %v3015 = vld [vmem:[%s246 + $0x58] sm:$0xf]
      %v3016 = vld [vmem:[%s246 + $0x5c] sm:$0xf]
      %v3017 = vld [vmem:[%s246 + $0x60] sm:$0xf]
      %v3018 = vld [vmem:[%s246 + $0x64] sm:$0xf]
      %v3019 = vld [vmem:[%s246 + $0x68] sm:$0x1]
      %v3020 = vld [vmem:[%s866] sm:$0xf]
      %v3021 = vld [vmem:[%s866 + $0x4] sm:$0xf]
      %v3022 = vld [vmem:[%s866 + $0x8] sm:$0xf]
      %v3023 = vld [vmem:[%s866 + $0xc] sm:$0xf]
      %v3024 = vld [vmem:[%s866 + $0x10] sm:$0xf]
      %v3025 = vld [vmem:[%s866 + $0x14] sm:$0xf]
      %v3026 = vld [vmem:[%s866 + $0x18] sm:$0xf]
      %v3027 = vld [vmem:[%s866 + $0x1c] sm:$0xf]
      %v3028 = vld [vmem:[%s866 + $0x20] sm:$0xf]
      %v3029 = vld [vmem:[%s866 + $0x24] sm:$0xf]
      %v3030 = vld [vmem:[%s866 + $0x28] sm:$0xf]
      %v3031 = vld [vmem:[%s866 + $0x2c] sm:$0xf]
      %v3032 = vld [vmem:[%s866 + $0x30] sm:$0xf]
      %v3033 = vld [vmem:[%s866 + $0x34] sm:$0xf]
      %v3034 = vld [vmem:[%s866 + $0x38] sm:$0xf]
      %v3035 = vld [vmem:[%s866 + $0x3c] sm:$0xf]
      %v3049 = vunpack.c.l.b16 %v3007
      %v3050 = vunpack.c.l.b16 %v3008
      %v3051 = vunpack.c.l.b16 %v3009
      %v3052 = vunpack.c.l.b16 %v3010
      %v3053 = vunpack.c.l.b16 %v3011
      %v3054 = vunpack.c.l.b16 %v3012
      %v3055 = vunpack.c.l.b16 %v3013
      %v3056 = vunpack.c.l.b16 %v3014
      %v3057 = vunpack.c.l.b16 %v3015
      %v3058 = vunpack.c.l.b16 %v3016
      %v3059 = vunpack.c.l.b16 %v3017
      %v3060 = vunpack.c.l.b16 %v3018
      %v3061 = vunpack.c.l.b16 %v3019
      %v3062 = vpack.c.b16 %v3050, %v3049
      %v3063 = vpack.c.b16 %v3052, %v3051
      %v3064 = vpack.c.b16 %v3054, %v3053
      %v3065 = vpack.c.b16 %v3056, %v3055
      %v3066 = vpack.c.b16 %v3058, %v3057
      %v3067 = vpack.c.b16 %v3060, %v3059
      %v3068 = vpack.c.b16 %v3061, %v3061
      %v3069 = vrot.slane %v3062, 1
      %v3070 = vrot.slane %v3063, 1
      %v3071 = vsel %vm692, %v3069, %v3070
      %v3072 = vrot.slane %v3064, 1
      %v3073 = vsel %vm692, %v3070, %v3072
      %v3074 = vrot.slane %v3065, 1
      %v3075 = vsel %vm692, %v3072, %v3074
      %v3076 = vrot.slane %v3066, 1
      %v3077 = vsel %vm692, %v3074, %v3076
      %v3078 = vrot.slane %v3067, 1
      %v3079 = vsel %vm692, %v3076, %v3078
      %v3080 = vrot.slane %v3068, 1
      %v3081 = vsel %vm692, %v3078, %v3080
      %v3104 = vunpack.c.l.b16 %v3020
      %v3105 = vunpack.c.l.b16 %v3021
      %v3106 = vunpack.c.l.b16 %v3022
      %v3107 = vunpack.c.l.b16 %v3023
      %v3108 = vunpack.c.l.b16 %v3024
      %v3109 = vunpack.c.l.b16 %v3025
      %v3110 = vunpack.c.l.b16 %v3026
      %v3111 = vunpack.c.l.b16 %v3027
      %v3112 = vunpack.c.l.b16 %v3028
      %v3113 = vunpack.c.l.b16 %v3029
      %v3114 = vunpack.c.l.b16 %v3030
      %v3115 = vunpack.c.l.b16 %v3031
      %v3116 = vunpack.c.l.b16 %v3032
      %v3117 = vunpack.c.l.b16 %v3033
      %v3118 = vunpack.c.l.b16 %v3034
      %v3119 = vunpack.c.l.b16 %v3035
      %v3120 = vpack.c.b16 %v3105, %v3104
      %v3121 = vpack.c.b16 %v3107, %v3106
      %v3122 = vpack.c.b16 %v3109, %v3108
      %v3123 = vpack.c.b16 %v3111, %v3110
      %v3124 = vpack.c.b16 %v3113, %v3112
      %v3125 = vpack.c.b16 %v3115, %v3114
      %v3126 = vpack.c.b16 %v3117, %v3116
      %v3127 = vpack.c.b16 %v3119, %v3118
      %3136 = vmatprep.subr.bf16.mxu0 0
      %3137 = vmatpush1.bf16.msra.mxu0 %v3120
      %3138 = vmatprep.subr.bf16.mxu0 0
      %3139 = vmatpush1.bf16.msra.mxu0 %v3121
      %3140 = vmatprep.subr.bf16.mxu0 0
      %3141 = vmatpush1.bf16.msra.mxu0 %v3122
      %3142 = vmatprep.subr.bf16.mxu0 0
      %3143 = vmatpush1.bf16.msra.mxu0 %v3123
      %3144 = vmatprep.subr.bf16.mxu0 0
      %3145 = vmatpush1.bf16.msra.mxu0 %v3124
      %3146 = vmatprep.subr.bf16.mxu0 0
      %3147 = vmatpush1.bf16.msra.mxu0 %v3125
      %3148 = vmatprep.subr.bf16.mxu0 0
      %3149 = vmatpush1.bf16.msra.mxu0 %v3126
      %3150 = vmatprep.subr.bf16.mxu0 0
      %3151 = vmatpush1.bf16.msra.mxu0 %v3127
      %3152 = vmatprep.subr.bf16.mxu0 0
      %3153 = vmatpush1.bf16.msra.mxu0 0
      %3154 = vmatprep.subr.bf16.mxu0 0
      %3155 = vmatpush1.bf16.msra.mxu0 0
      %3156 = vmatprep.subr.bf16.mxu0 0
      %3157 = vmatpush1.bf16.msra.mxu0 0
      %3158 = vmatprep.subr.bf16.mxu0 0
      %3159 = vmatpush1.bf16.msra.mxu0 0
      %3160 = vmatprep.subr.bf16.mxu0 0
      %3161 = vmatpush1.bf16.msra.mxu0 0
      %3162 = vmatprep.subr.bf16.mxu0 0
      %3163 = vmatpush1.bf16.msra.mxu0 0
      %3164 = vmatprep.subr.bf16.mxu0 0
      %3165 = vmatpush1.bf16.msra.mxu0 0
      %3166 = vmatprep.subr.bf16.mxu0 0
      %3167 = vmatpush1.bf16.msra.mxu0 0
      %3168 = vmatprep.mubr.bf16.mxu0 0
      %3169 = vmatmul.mubr.bf16.gmra.mrb[0].mxu0 %v3071
      %v3170 = vpop.f32.mrb[0].mxu0
      %v3171 = vadd.f32 0.0, %v3170
      %v3172 = vpop.f32.mrb[0].mxu0
      %v3173 = vpop.f32.mrb[0].mxu0
      %v3174 = vadd.f32 0.0, %v3173
      %v3175 = vpop.f32.mrb[0].mxu0
      %3176 = vmatprep.mubr.bf16.mxu0 0
      %3177 = vmatmul.mubr.bf16.gmra.mrb[0].mxu0 %v3073
      %v3178 = vpop.f32.mrb[0].mxu0
      %v3179 = vadd.f32 0.0, %v3178
      %v3180 = vpop.f32.mrb[0].mxu0
      %v3181 = vpop.f32.mrb[0].mxu0
      %v3182 = vadd.f32 0.0, %v3181
      %v3183 = vpop.f32.mrb[0].mxu0
      %3184 = vmatprep.mubr.bf16.mxu0 0
      %3185 = vmatmul.mubr.bf16.gmra.mrb[0].mxu0 %v3075
      %v3186 = vpop.f32.mrb[0].mxu0
      %v3187 = vadd.f32 0.0, %v3186
      %v3188 = vpop.f32.mrb[0].mxu0
      %v3189 = vpop.f32.mrb[0].mxu0
      %v3190 = vadd.f32 0.0, %v3189
      %v3191 = vpop.f32.mrb[0].mxu0
      %3192 = vmatprep.mubr.bf16.mxu0 0
      %3193 = vmatmul.mubr.bf16.gmra.mrb[0].mxu0 %v3077
      %v3194 = vpop.f32.mrb[0].mxu0
      %v3195 = vadd.f32 0.0, %v3194
      %v3196 = vpop.f32.mrb[0].mxu0
      %v3197 = vpop.f32.mrb[0].mxu0
      %v3198 = vadd.f32 0.0, %v3197
      %v3199 = vpop.f32.mrb[0].mxu0
      %3200 = vmatprep.mubr.bf16.mxu0 0
      %3201 = vmatmul.mubr.bf16.gmra.mrb[0].mxu0 %v3079
      %v3202 = vpop.f32.mrb[0].mxu0
      %v3203 = vadd.f32 0.0, %v3202
      %v3204 = vpop.f32.mrb[0].mxu0
      %v3205 = vpop.f32.mrb[0].mxu0
      %v3206 = vadd.f32 0.0, %v3205
      %v3207 = vpop.f32.mrb[0].mxu0
      %3208 = vmatprep.mubr.bf16.mxu0 0
      %3209 = vmatmul.mubr.bf16.gmra.mrb[0].mxu0 %v3081
      %v3210 = vpop.f32.mrb[0].mxu0
      %v3211 = vadd.f32 0.0, %v3210
      %v3212 = vpop.f32.mrb[0].mxu0
      %v3213 = vpop.f32.mrb[0].mxu0
      %v3214 = vadd.f32 0.0, %v3213
      %v3215 = vpop.f32.mrb[0].mxu0
      %3216 = vdwg.mxu0
      %v3217 = vadd.f32 %v2995, %v3171
      %v3218 = vadd.f32 %v2996, %v3174
      %v3219 = vadd.f32 %v2997, %v3179
      %v3220 = vadd.f32 %v2998, %v3182
      %v3221 = vadd.f32 %v2999, %v3187
      %v3222 = vadd.f32 %v3000, %v3190
      %v3223 = vadd.f32 %v3001, %v3195
      %v3224 = vadd.f32 %v3002, %v3198
      %v3225 = vadd.f32 %v3003, %v3203
      %v3226 = vadd.f32 %v3004, %v3206
      %v3227 = vadd.f32 %v3005, %v3211
      %v3228 = vadd.f32 %v3006, %v3214
      %v3229 = vld [vmem:[%s246 + $0x68] sm:$0x3]
      %v3230 = vld [vmem:[%s1077] sm:$0xf]
      %v3231 = vld [vmem:[%s1077 + $0x4] sm:$0xf]
      %v3232 = vld [vmem:[%s1077 + $0x8] sm:$0xf]
      %v3233 = vld [vmem:[%s1077 + $0xc] sm:$0xf]
      %v3234 = vld [vmem:[%s1077 + $0x10] sm:$0xf]
      %v3235 = vld [vmem:[%s1077 + $0x14] sm:$0xf]
      %v3236 = vld [vmem:[%s1077 + $0x18] sm:$0xf]
      %v3237 = vld [vmem:[%s1077 + $0x1c] sm:$0xf]
      %v3238 = vld [vmem:[%s1077 + $0x20] sm:$0xf]
      %v3239 = vld [vmem:[%s1077 + $0x24] sm:$0xf]
      %v3240 = vld [vmem:[%s1077 + $0x28] sm:$0xf]
      %v3241 = vld [vmem:[%s1077 + $0x2c] sm:$0xf]
      %v3242 = vld [vmem:[%s1077 + $0x30] sm:$0xf]
      %v3243 = vld [vmem:[%s1077 + $0x34] sm:$0xf]
      %v3244 = vld [vmem:[%s1077 + $0x38] sm:$0xf]
      %v3245 = vld [vmem:[%s1077 + $0x3c] sm:$0xf]
      %v3247 = vunpack.c.l.b16 %v3229
      %v3248 = vpack.c.b16 %v3247, %v3247
      %v3250 = vshrl.u32 %v3062, 16
      %v3252 = vrot.slane %v3250, 1
      %v3253 = vshll.u32 %v3062, 16
      %v3255 = vrot.slane %v3253, 2
      %v3256 = vor.u32 %v3252, %v3255
      %v3258 = vshrl.u32 %v3063, 16
      %v3260 = vrot.slane %v3258, 1
      %v3261 = vshll.u32 %v3063, 16
      %v3263 = vrot.slane %v3261, 2
      %v3264 = vor.u32 %v3260, %v3263
      %v3265 = vsel %vm1097, %v3256, %v3264
      %v3267 = vshrl.u32 %v3064, 16
      %v3269 = vrot.slane %v3267, 1
      %v3270 = vshll.u32 %v3064, 16
      %v3272 = vrot.slane %v3270, 2
      %v3273 = vor.u32 %v3269, %v3272
      %v3274 = vsel %vm1097, %v3264, %v3273
      %v3276 = vshrl.u32 %v3065, 16
      %v3278 = vrot.slane %v3276, 1
      %v3279 = vshll.u32 %v3065, 16
      %v3281 = vrot.slane %v3279, 2
      %v3282 = vor.u32 %v3278, %v3281
      %v3283 = vsel %vm1097, %v3273, %v3282
      %v3285 = vshrl.u32 %v3066, 16
      %v3287 = vrot.slane %v3285, 1
      %v3288 = vshll.u32 %v3066, 16
      %v3290 = vrot.slane %v3288, 2
      %v3291 = vor.u32 %v3287, %v3290
      %v3292 = vsel %vm1097, %v3282, %v3291
      %v3294 = vshrl.u32 %v3067, 16
      %v3296 = vrot.slane %v3294, 1
      %v3297 = vshll.u32 %v3067, 16
      %v3299 = vrot.slane %v3297, 2
      %v3300 = vor.u32 %v3296, %v3299
      %v3301 = vsel %vm1097, %v3291, %v3300
      %v3303 = vshrl.u32 %v3248, 16
      %v3305 = vrot.slane %v3303, 1
      %v3306 = vshll.u32 %v3248, 16
      %v3308 = vrot.slane %v3306, 2
      %v3309 = vor.u32 %v3305, %v3308
      %v3310 = vsel %vm1097, %v3300, %v3309
      %v3333 = vunpack.c.l.b16 %v3230
      %v3334 = vunpack.c.l.b16 %v3231
      %v3335 = vunpack.c.l.b16 %v3232
      %v3336 = vunpack.c.l.b16 %v3233
      %v3337 = vunpack.c.l.b16 %v3234
      %v3338 = vunpack.c.l.b16 %v3235
      %v3339 = vunpack.c.l.b16 %v3236
      %v3340 = vunpack.c.l.b16 %v3237
      %v3341 = vunpack.c.l.b16 %v3238
      %v3342 = vunpack.c.l.b16 %v3239
      %v3343 = vunpack.c.l.b16 %v3240
      %v3344 = vunpack.c.l.b16 %v3241
      %v3345 = vunpack.c.l.b16 %v3242
      %v3346 = vunpack.c.l.b16 %v3243
      %v3347 = vunpack.c.l.b16 %v3244
      %v3348 = vunpack.c.l.b16 %v3245
      %v3349 = vpack.c.b16 %v3334, %v3333
      %v3350 = vpack.c.b16 %v3336, %v3335
      %v3351 = vpack.c.b16 %v3338, %v3337
      %v3352 = vpack.c.b16 %v3340, %v3339
      %v3353 = vpack.c.b16 %v3342, %v3341
      %v3354 = vpack.c.b16 %v3344, %v3343
      %v3355 = vpack.c.b16 %v3346, %v3345
      %v3356 = vpack.c.b16 %v3348, %v3347
      %3365 = vmatprep.subr.bf16.mxu0 0
      %3366 = vmatpush1.bf16.msra.mxu0 %v3349
      %3367 = vmatprep.subr.bf16.mxu0 0
      %3368 = vmatpush1.bf16.msra.mxu0 %v3350
      %3369 = vmatprep.subr.bf16.mxu0 0
      %3370 = vmatpush1.bf16.msra.mxu0 %v3351
      %3371 = vmatprep.subr.bf16.mxu0 0
      %3372 = vmatpush1.bf16.msra.mxu0 %v3352
      %3373 = vmatprep.subr.bf16.mxu0 0
      %3374 = vmatpush1.bf16.msra.mxu0 %v3353
      %3375 = vmatprep.subr.bf16.mxu0 0
      %3376 = vmatpush1.bf16.msra.mxu0 %v3354
      %3377 = vmatprep.subr.bf16.mxu0 0
      %3378 = vmatpush1.bf16.msra.mxu0 %v3355
      %3379 = vmatprep.subr.bf16.mxu0 0
      %3380 = vmatpush1.bf16.msra.mxu0 %v3356
      %3381 = vmatprep.subr.bf16.mxu0 0
      %3382 = vmatpush1.bf16.msra.mxu0 0
      %3383 = vmatprep.subr.bf16.mxu0 0
      %3384 = vmatpush1.bf16.msra.mxu0 0
      %3385 = vmatprep.subr.bf16.mxu0 0
      %3386 = vmatpush1.bf16.msra.mxu0 0
      %3387 = vmatprep.subr.bf16.mxu0 0
      %3388 = vmatpush1.bf16.msra.mxu0 0
      %3389 = vmatprep.subr.bf16.mxu0 0
      %3390 = vmatpush1.bf16.msra.mxu0 0
      %3391 = vmatprep.subr.bf16.mxu0 0
      %3392 = vmatpush1.bf16.msra.mxu0 0
      %3393 = vmatprep.subr.bf16.mxu0 0
      %3394 = vmatpush1.bf16.msra.mxu0 0
      %3395 = vmatprep.subr.bf16.mxu0 0
      %3396 = vmatpush1.bf16.msra.mxu0 0
      %3397 = vmatprep.mubr.bf16.mxu0 0
      %3398 = vmatmul.mubr.bf16.gmra.mrb[0].mxu0 %v3265
      %v3399 = vpop.f32.mrb[0].mxu0
      %v3400 = vadd.f32 0.0, %v3399
      %v3401 = vpop.f32.mrb[0].mxu0
      %v3402 = vpop.f32.mrb[0].mxu0
      %v3403 = vadd.f32 0.0, %v3402
      %v3404 = vpop.f32.mrb[0].mxu0
      %3405 = vmatprep.mubr.bf16.mxu0 0
      %3406 = vmatmul.mubr.bf16.gmra.mrb[0].mxu0 %v3274
      %v3407 = vpop.f32.mrb[0].mxu0
      %v3408 = vadd.f32 0.0, %v3407
      %v3409 = vpop.f32.mrb[0].mxu0
      %v3410 = vpop.f32.mrb[0].mxu0
      %v3411 = vadd.f32 0.0, %v3410
      %v3412 = vpop.f32.mrb[0].mxu0
      %3413 = vmatprep.mubr.bf16.mxu0 0
      %3414 = vmatmul.mubr.bf16.gmra.mrb[0].mxu0 %v3283
      %v3415 = vpop.f32.mrb[0].mxu0
      %v3416 = vadd.f32 0.0, %v3415
      %v3417 = vpop.f32.mrb[0].mxu0
      %v3418 = vpop.f32.mrb[0].mxu0
      %v3419 = vadd.f32 0.0, %v3418
      %v3420 = vpop.f32.mrb[0].mxu0
      %3421 = vmatprep.mubr.bf16.mxu0 0
      %3422 = vmatmul.mubr.bf16.gmra.mrb[0].mxu0 %v3292
      %v3423 = vpop.f32.mrb[0].mxu0
      %v3424 = vadd.f32 0.0, %v3423
      %v3425 = vpop.f32.mrb[0].mxu0
      %v3426 = vpop.f32.mrb[0].mxu0
      %v3427 = vadd.f32 0.0, %v3426
      %v3428 = vpop.f32.mrb[0].mxu0
      %3429 = vmatprep.mubr.bf16.mxu0 0
      %3430 = vmatmul.mubr.bf16.gmra.mrb[0].mxu0 %v3301
      %v3431 = vpop.f32.mrb[0].mxu0
      %v3432 = vadd.f32 0.0, %v3431
      %v3433 = vpop.f32.mrb[0].mxu0
      %v3434 = vpop.f32.mrb[0].mxu0
      %v3435 = vadd.f32 0.0, %v3434
      %v3436 = vpop.f32.mrb[0].mxu0
      %3437 = vmatprep.mubr.bf16.mxu0 0
      %3438 = vmatmul.mubr.bf16.gmra.mrb[0].mxu0 %v3310
      %v3439 = vpop.f32.mrb[0].mxu0
      %v3440 = vadd.f32 0.0, %v3439
      %v3441 = vpop.f32.mrb[0].mxu0
      %v3442 = vpop.f32.mrb[0].mxu0
      %v3443 = vadd.f32 0.0, %v3442
      %v3444 = vpop.f32.mrb[0].mxu0
      %3445 = vdwg.mxu0
      %v3446 = vadd.f32 %v3217, %v3400
      %v3447 = vadd.f32 %v3218, %v3403
      %v3448 = vadd.f32 %v3219, %v3408
      %v3449 = vadd.f32 %v3220, %v3411
      %v3450 = vadd.f32 %v3221, %v3416
      %v3451 = vadd.f32 %v3222, %v3419
      %v3452 = vadd.f32 %v3223, %v3424
      %v3453 = vadd.f32 %v3224, %v3427
      %v3454 = vadd.f32 %v3225, %v3432
      %v3455 = vadd.f32 %v3226, %v3435
      %v3456 = vadd.f32 %v3227, %v3440
      %v3457 = vadd.f32 %v3228, %v3443
      %v3458 = vld [vmem:[%s246 + $0x38] sm:$0xc]
      %v3459 = vld [vmem:[%s1308] sm:$0xf]
      %v3460 = vld [vmem:[%s1308 + $0x4] sm:$0xf]
      %v3461 = vld [vmem:[%s1308 + $0x8] sm:$0xf]
      %v3462 = vld [vmem:[%s1308 + $0xc] sm:$0xf]
      %v3463 = vld [vmem:[%s1308 + $0x10] sm:$0xf]
      %v3464 = vld [vmem:[%s1308 + $0x14] sm:$0xf]
      %v3465 = vld [vmem:[%s1308 + $0x18] sm:$0xf]
      %v3466 = vld [vmem:[%s1308 + $0x1c] sm:$0xf]
      %v3467 = vld [vmem:[%s1308 + $0x20] sm:$0xf]
      %v3468 = vld [vmem:[%s1308 + $0x24] sm:$0xf]
      %v3469 = vld [vmem:[%s1308 + $0x28] sm:$0xf]
      %v3470 = vld [vmem:[%s1308 + $0x2c] sm:$0xf]
      %v3471 = vld [vmem:[%s1308 + $0x30] sm:$0xf]
      %v3472 = vld [vmem:[%s1308 + $0x34] sm:$0xf]
      %v3473 = vld [vmem:[%s1308 + $0x38] sm:$0xf]
      %v3474 = vld [vmem:[%s1308 + $0x3c] sm:$0xf]
      %v3476 = vunpack.c.l.b16 %v3458
      %v3477 = vpack.c.b16 %v3050, %v3476
      %v3478 = vrot.slane %v3477, 2
      %v3479 = vrot.slane %v3063, 2
      %v3480 = vsel %vm1328, %v3478, %v3479
      %v3481 = vrot.slane %v3064, 2
      %v3482 = vsel %vm1328, %v3479, %v3481
      %v3483 = vrot.slane %v3065, 2
      %v3484 = vsel %vm1328, %v3481, %v3483
      %v3485 = vrot.slane %v3066, 2
      %v3486 = vsel %vm1328, %v3483, %v3485
      %v3487 = vrot.slane %v3067, 2
      %v3488 = vsel %vm1328, %v3485, %v3487
      %v3489 = vrot.slane %v3248, 2
      %v3490 = vsel %vm1328, %v3487, %v3489
      %v3513 = vunpack.c.l.b16 %v3459
      %v3514 = vunpack.c.l.b16 %v3460
      %v3515 = vunpack.c.l.b16 %v3461
      %v3516 = vunpack.c.l.b16 %v3462
      %v3517 = vunpack.c.l.b16 %v3463
      %v3518 = vunpack.c.l.b16 %v3464
      %v3519 = vunpack.c.l.b16 %v3465
      %v3520 = vunpack.c.l.b16 %v3466
      %v3521 = vunpack.c.l.b16 %v3467
      %v3522 = vunpack.c.l.b16 %v3468
      %v3523 = vunpack.c.l.b16 %v3469
      %v3524 = vunpack.c.l.b16 %v3470
      %v3525 = vunpack.c.l.b16 %v3471
      %v3526 = vunpack.c.l.b16 %v3472
      %v3527 = vunpack.c.l.b16 %v3473
      %v3528 = vunpack.c.l.b16 %v3474
      %v3529 = vpack.c.b16 %v3514, %v3513
      %v3530 = vpack.c.b16 %v3516, %v3515
      %v3531 = vpack.c.b16 %v3518, %v3517
      %v3532 = vpack.c.b16 %v3520, %v3519
      %v3533 = vpack.c.b16 %v3522, %v3521
      %v3534 = vpack.c.b16 %v3524, %v3523
      %v3535 = vpack.c.b16 %v3526, %v3525
      %v3536 = vpack.c.b16 %v3528, %v3527
      %3545 = vmatprep.subr.bf16.mxu0 0
      %3546 = vmatpush1.bf16.msra.mxu0 %v3529
      %3547 = vmatprep.subr.bf16.mxu0 0
      %3548 = vmatpush1.bf16.msra.mxu0 %v3530
      %3549 = vmatprep.subr.bf16.mxu0 0
      %3550 = vmatpush1.bf16.msra.mxu0 %v3531
      %3551 = vmatprep.subr.bf16.mxu0 0
      %3552 = vmatpush1.bf16.msra.mxu0 %v3532
      %3553 = vmatprep.subr.bf16.mxu0 0
      %3554 = vmatpush1.bf16.msra.mxu0 %v3533
      %3555 = vmatprep.subr.bf16.mxu0 0
      %3556 = vmatpush1.bf16.msra.mxu0 %v3534
      %3557 = vmatprep.subr.bf16.mxu0 0
      %3558 = vmatpush1.bf16.msra.mxu0 %v3535
      %3559 = vmatprep.subr.bf16.mxu0 0
      %3560 = vmatpush1.bf16.msra.mxu0 %v3536
      %3561 = vmatprep.subr.bf16.mxu0 0
      %3562 = vmatpush1.bf16.msra.mxu0 0
      %3563 = vmatprep.subr.bf16.mxu0 0
      %3564 = vmatpush1.bf16.msra.mxu0 0
      %3565 = vmatprep.subr.bf16.mxu0 0
      %3566 = vmatpush1.bf16.msra.mxu0 0
      %3567 = vmatprep.subr.bf16.mxu0 0
      %3568 = vmatpush1.bf16.msra.mxu0 0
      %3569 = vmatprep.subr.bf16.mxu0 0
      %3570 = vmatpush1.bf16.msra.mxu0 0
      %3571 = vmatprep.subr.bf16.mxu0 0
      %3572 = vmatpush1.bf16.msra.mxu0 0
      %3573 = vmatprep.subr.bf16.mxu0 0
      %3574 = vmatpush1.bf16.msra.mxu0 0
      %3575 = vmatprep.subr.bf16.mxu0 0
      %3576 = vmatpush1.bf16.msra.mxu0 0
      %3577 = vmatprep.mubr.bf16.mxu0 0
      %3578 = vmatmul.mubr.bf16.gmra.mrb[0].mxu0 %v3480
      %v3579 = vpop.f32.mrb[0].mxu0
      %v3580 = vadd.f32 0.0, %v3579
      %v3581 = vpop.f32.mrb[0].mxu0
      %v3582 = vpop.f32.mrb[0].mxu0
      %v3583 = vadd.f32 0.0, %v3582
      %v3584 = vpop.f32.mrb[0].mxu0
      %3585 = vmatprep.mubr.bf16.mxu0 0
      %3586 = vmatmul.mubr.bf16.gmra.mrb[0].mxu0 %v3482
      %v3587 = vpop.f32.mrb[0].mxu0
      %v3588 = vadd.f32 0.0, %v3587
      %v3589 = vpop.f32.mrb[0].mxu0
      %v3590 = vpop.f32.mrb[0].mxu0
      %v3591 = vadd.f32 0.0, %v3590
      %v3592 = vpop.f32.mrb[0].mxu0
      %3593 = vmatprep.mubr.bf16.mxu0 0
      %3594 = vmatmul.mubr.bf16.gmra.mrb[0].mxu0 %v3484
      %v3595 = vpop.f32.mrb[0].mxu0
      %v3596 = vadd.f32 0.0, %v3595
      %v3597 = vpop.f32.mrb[0].mxu0
      %v3598 = vpop.f32.mrb[0].mxu0
      %v3599 = vadd.f32 0.0, %v3598
      %v3600 = vpop.f32.mrb[0].mxu0
      %3601 = vmatprep.mubr.bf16.mxu0 0
      %3602 = vmatmul.mubr.bf16.gmra.mrb[0].mxu0 %v3486
      %v3603 = vpop.f32.mrb[0].mxu0
      %v3604 = vadd.f32 0.0, %v3603
      %v3605 = vpop.f32.mrb[0].mxu0
      %v3606 = vpop.f32.mrb[0].mxu0
      %v3607 = vadd.f32 0.0, %v3606
      %v3608 = vpop.f32.mrb[0].mxu0
      %3609 = vmatprep.mubr.bf16.mxu0 0
      %3610 = vmatmul.mubr.bf16.gmra.mrb[0].mxu0 %v3488
      %v3611 = vpop.f32.mrb[0].mxu0
      %v3612 = vadd.f32 0.0, %v3611
      %v3613 = vpop.f32.mrb[0].mxu0
      %v3614 = vpop.f32.mrb[0].mxu0
      %v3615 = vadd.f32 0.0, %v3614
      %v3616 = vpop.f32.mrb[0].mxu0
      %3617 = vmatprep.mubr.bf16.mxu0 0
      %3618 = vmatmul.mubr.bf16.gmra.mrb[0].mxu0 %v3490
      %v3619 = vpop.f32.mrb[0].mxu0
      %v3620 = vadd.f32 0.0, %v3619
      %v3621 = vpop.f32.mrb[0].mxu0
      %v3622 = vpop.f32.mrb[0].mxu0
      %v3623 = vadd.f32 0.0, %v3622
      %v3624 = vpop.f32.mrb[0].mxu0
      %3625 = vdwg.mxu0
      %v3626 = vadd.f32 %v3446, %v3580
      %v3627 = vadd.f32 %v3447, %v3583
      %v3628 = vadd.f32 %v3448, %v3588
      %v3629 = vadd.f32 %v3449, %v3591
      %v3630 = vadd.f32 %v3450, %v3596
      %v3631 = vadd.f32 %v3451, %v3599
      %v3632 = vadd.f32 %v3452, %v3604
      %v3633 = vadd.f32 %v3453, %v3607
      %v3634 = vadd.f32 %v3454, %v3612
      %v3635 = vadd.f32 %v3455, %v3615
      %v3636 = vadd.f32 %v3456, %v3620
      %v3637 = vadd.f32 %v3457, %v3623
      %v3638 = vld [vmem:[%s246 + $0x40] sm:$0xc]
      %v3639 = vld [vmem:[%s246 + $0x44] sm:$0xf]
      %v3640 = vld [vmem:[%s246 + $0x48] sm:$0xf]
      %v3641 = vld [vmem:[%s246 + $0x4c] sm:$0xf]
      %v3642 = vld [vmem:[%s246 + $0x50] sm:$0xf]
      %v3643 = vld [vmem:[%s246 + $0x54] sm:$0xf]
      %v3644 = vld [vmem:[%s246 + $0x58] sm:$0xf]
      %v3645 = vld [vmem:[%s246 + $0x5c] sm:$0xf]
      %v3646 = vld [vmem:[%s246 + $0x60] sm:$0xf]
      %v3647 = vld [vmem:[%s246 + $0x64] sm:$0xf]
      %v3648 = vld [vmem:[%s246 + $0x68] sm:$0xf]
      %v3649 = vld [vmem:[%s246 + $0x6c] sm:$0xf]
      %v3650 = vld [vmem:[%s246 + $0x70] sm:$0x3]
      %v3651 = vld [vmem:[%s1502] sm:$0xf]
      %v3652 = vld [vmem:[%s1502 + $0x4] sm:$0xf]
      %v3653 = vld [vmem:[%s1502 + $0x8] sm:$0xf]
      %v3654 = vld [vmem:[%s1502 + $0xc] sm:$0xf]
      %v3655 = vld [vmem:[%s1502 + $0x10] sm:$0xf]
      %v3656 = vld [vmem:[%s1502 + $0x14] sm:$0xf]
      %v3657 = vld [vmem:[%s1502 + $0x18] sm:$0xf]
      %v3658 = vld [vmem:[%s1502 + $0x1c] sm:$0xf]
      %v3659 = vld [vmem:[%s1502 + $0x20] sm:$0xf]
      %v3660 = vld [vmem:[%s1502 + $0x24] sm:$0xf]
      %v3661 = vld [vmem:[%s1502 + $0x28] sm:$0xf]
      %v3662 = vld [vmem:[%s1502 + $0x2c] sm:$0xf]
      %v3663 = vld [vmem:[%s1502 + $0x30] sm:$0xf]
      %v3664 = vld [vmem:[%s1502 + $0x34] sm:$0xf]
      %v3665 = vld [vmem:[%s1502 + $0x38] sm:$0xf]
      %v3666 = vld [vmem:[%s1502 + $0x3c] sm:$0xf]
      %v3680 = vunpack.c.l.b16 %v3638
      %v3681 = vunpack.c.l.b16 %v3639
      %v3682 = vunpack.c.l.b16 %v3640
      %v3683 = vunpack.c.l.b16 %v3641
      %v3684 = vunpack.c.l.b16 %v3642
      %v3685 = vunpack.c.l.b16 %v3643
      %v3686 = vunpack.c.l.b16 %v3644
      %v3687 = vunpack.c.l.b16 %v3645
      %v3688 = vunpack.c.l.b16 %v3646
      %v3689 = vunpack.c.l.b16 %v3647
      %v3690 = vunpack.c.l.b16 %v3648
      %v3691 = vunpack.c.l.b16 %v3649
      %v3692 = vunpack.c.l.b16 %v3650
      %v3693 = vpack.c.b16 %v3681, %v3680
      %v3694 = vpack.c.b16 %v3683, %v3682
      %v3695 = vpack.c.b16 %v3685, %v3684
      %v3696 = vpack.c.b16 %v3687, %v3686
      %v3697 = vpack.c.b16 %v3689, %v3688
      %v3698 = vpack.c.b16 %v3691, %v3690
      %v3699 = vpack.c.b16 %v3692, %v3692
      %v3700 = vrot.slane %v3693, 2
      %v3701 = vrot.slane %v3694, 2
      %v3702 = vsel %vm1328, %v3700, %v3701
      %v3703 = vrot.slane %v3695, 2
      %v3704 = vsel %vm1328, %v3701, %v3703
      %v3705 = vrot.slane %v3696, 2
      %v3706 = vsel %vm1328, %v3703, %v3705
      %v3707 = vrot.slane %v3697, 2
      %v3708 = vsel %vm1328, %v3705, %v3707
      %v3709 = vrot.slane %v3698, 2
      %v3710 = vsel %vm1328, %v3707, %v3709
      %v3711 = vrot.slane %v3699, 2
      %v3712 = vsel %vm1328, %v3709, %v3711
      %v3735 = vunpack.c.l.b16 %v3651
      %v3736 = vunpack.c.l.b16 %v3652
      %v3737 = vunpack.c.l.b16 %v3653
      %v3738 = vunpack.c.l.b16 %v3654
      %v3739 = vunpack.c.l.b16 %v3655
      %v3740 = vunpack.c.l.b16 %v3656
      %v3741 = vunpack.c.l.b16 %v3657
      %v3742 = vunpack.c.l.b16 %v3658
      %v3743 = vunpack.c.l.b16 %v3659
      %v3744 = vunpack.c.l.b16 %v3660
      %v3745 = vunpack.c.l.b16 %v3661
      %v3746 = vunpack.c.l.b16 %v3662
      %v3747 = vunpack.c.l.b16 %v3663
      %v3748 = vunpack.c.l.b16 %v3664
      %v3749 = vunpack.c.l.b16 %v3665
      %v3750 = vunpack.c.l.b16 %v3666
      %v3751 = vpack.c.b16 %v3736, %v3735
      %v3752 = vpack.c.b16 %v3738, %v3737
      %v3753 = vpack.c.b16 %v3740, %v3739
      %v3754 = vpack.c.b16 %v3742, %v3741
      %v3755 = vpack.c.b16 %v3744, %v3743
      %v3756 = vpack.c.b16 %v3746, %v3745
      %v3757 = vpack.c.b16 %v3748, %v3747
      %v3758 = vpack.c.b16 %v3750, %v3749
      %3767 = vmatprep.subr.bf16.mxu0 0
      %3768 = vmatpush1.bf16.msra.mxu0 %v3751
      %3769 = vmatprep.subr.bf16.mxu0 0
      %3770 = vmatpush1.bf16.msra.mxu0 %v3752
      %3771 = vmatprep.subr.bf16.mxu0 0
      %3772 = vmatpush1.bf16.msra.mxu0 %v3753
      %3773 = vmatprep.subr.bf16.mxu0 0
      %3774 = vmatpush1.bf16.msra.mxu0 %v3754
      %3775 = vmatprep.subr.bf16.mxu0 0
      %3776 = vmatpush1.bf16.msra.mxu0 %v3755
      %3777 = vmatprep.subr.bf16.mxu0 0
      %3778 = vmatpush1.bf16.msra.mxu0 %v3756
      %3779 = vmatprep.subr.bf16.mxu0 0
      %3780 = vmatpush1.bf16.msra.mxu0 %v3757
      %3781 = vmatprep.subr.bf16.mxu0 0
      %3782 = vmatpush1.bf16.msra.mxu0 %v3758
      %3783 = vmatprep.subr.bf16.mxu0 0
      %3784 = vmatpush1.bf16.msra.mxu0 0
      %3785 = vmatprep.subr.bf16.mxu0 0
      %3786 = vmatpush1.bf16.msra.mxu0 0
      %3787 = vmatprep.subr.bf16.mxu0 0
      %3788 = vmatpush1.bf16.msra.mxu0 0
      %3789 = vmatprep.subr.bf16.mxu0 0
      %3790 = vmatpush1.bf16.msra.mxu0 0
      %3791 = vmatprep.subr.bf16.mxu0 0
      %3792 = vmatpush1.bf16.msra.mxu0 0
      %3793 = vmatprep.subr.bf16.mxu0 0
      %3794 = vmatpush1.bf16.msra.mxu0 0
      %3795 = vmatprep.subr.bf16.mxu0 0
      %3796 = vmatpush1.bf16.msra.mxu0 0
      %3797 = vmatprep.subr.bf16.mxu0 0
      %3798 = vmatpush1.bf16.msra.mxu0 0
      %3799 = vmatprep.mubr.bf16.mxu0 0
      %3800 = vmatmul.mubr.bf16.gmra.mrb[0].mxu0 %v3702
      %v3801 = vpop.f32.mrb[0].mxu0
      %v3802 = vadd.f32 0.0, %v3801
      %v3803 = vpop.f32.mrb[0].mxu0
      %v3804 = vpop.f32.mrb[0].mxu0
      %v3805 = vadd.f32 0.0, %v3804
      %v3806 = vpop.f32.mrb[0].mxu0
      %3807 = vmatprep.mubr.bf16.mxu0 0
      %3808 = vmatmul.mubr.bf16.gmra.mrb[0].mxu0 %v3704
      %v3809 = vpop.f32.mrb[0].mxu0
      %v3810 = vadd.f32 0.0, %v3809
      %v3811 = vpop.f32.mrb[0].mxu0
      %v3812 = vpop.f32.mrb[0].mxu0
      %v3813 = vadd.f32 0.0, %v3812
      %v3814 = vpop.f32.mrb[0].mxu0
      %3815 = vmatprep.mubr.bf16.mxu0 0
      %3816 = vmatmul.mubr.bf16.gmra.mrb[0].mxu0 %v3706
      %v3817 = vpop.f32.mrb[0].mxu0
      %v3818 = vadd.f32 0.0, %v3817
      %v3819 = vpop.f32.mrb[0].mxu0
      %v3820 = vpop.f32.mrb[0].mxu0
      %v3821 = vadd.f32 0.0, %v3820
      %v3822 = vpop.f32.mrb[0].mxu0
      %3823 = vmatprep.mubr.bf16.mxu0 0
      %3824 = vmatmul.mubr.bf16.gmra.mrb[0].mxu0 %v3708
      %v3825 = vpop.f32.mrb[0].mxu0
      %v3826 = vadd.f32 0.0, %v3825
      %v3827 = vpop.f32.mrb[0].mxu0
      %v3828 = vpop.f32.mrb[0].mxu0
      %v3829 = vadd.f32 0.0, %v3828
      %v3830 = vpop.f32.mrb[0].mxu0
      %3831 = vmatprep.mubr.bf16.mxu0 0
      %3832 = vmatmul.mubr.bf16.gmra.mrb[0].mxu0 %v3710
      %v3833 = vpop.f32.mrb[0].mxu0
      %v3834 = vadd.f32 0.0, %v3833
      %v3835 = vpop.f32.mrb[0].mxu0
      %v3836 = vpop.f32.mrb[0].mxu0
      %v3837 = vadd.f32 0.0, %v3836
      %v3838 = vpop.f32.mrb[0].mxu0
      %3839 = vmatprep.mubr.bf16.mxu0 0
      %3840 = vmatmul.mubr.bf16.gmra.mrb[0].mxu0 %v3712
      %v3841 = vpop.f32.mrb[0].mxu0
      %v3842 = vadd.f32 0.0, %v3841
      %v3843 = vpop.f32.mrb[0].mxu0
      %v3844 = vpop.f32.mrb[0].mxu0
      %v3845 = vadd.f32 0.0, %v3844
      %v3846 = vpop.f32.mrb[0].mxu0
      %3847 = vdwg.mxu0
      %v3848 = vadd.f32 %v3626, %v3802
      %v3849 = vadd.f32 %v3627, %v3805
      %v3850 = vadd.f32 %v3628, %v3810
      %v3851 = vadd.f32 %v3629, %v3813
      %v3852 = vadd.f32 %v3630, %v3818
      %v3853 = vadd.f32 %v3631, %v3821
      %v3854 = vadd.f32 %v3632, %v3826
      %v3855 = vadd.f32 %v3633, %v3829
      %v3856 = vadd.f32 %v3634, %v3834
      %v3857 = vadd.f32 %v3635, %v3837
      %v3858 = vadd.f32 %v3636, %v3842
      %v3859 = vadd.f32 %v3637, %v3845
      %v3860 = vld [vmem:[%s246 + $0x70] sm:$0x7]
      %v3861 = vld [vmem:[%s1713] sm:$0xf]
      %v3862 = vld [vmem:[%s1713 + $0x4] sm:$0xf]
      %v3863 = vld [vmem:[%s1713 + $0x8] sm:$0xf]
      %v3864 = vld [vmem:[%s1713 + $0xc] sm:$0xf]
      %v3865 = vld [vmem:[%s1713 + $0x10] sm:$0xf]
      %v3866 = vld [vmem:[%s1713 + $0x14] sm:$0xf]
      %v3867 = vld [vmem:[%s1713 + $0x18] sm:$0xf]
      %v3868 = vld [vmem:[%s1713 + $0x1c] sm:$0xf]
      %v3869 = vld [vmem:[%s1713 + $0x20] sm:$0xf]
      %v3870 = vld [vmem:[%s1713 + $0x24] sm:$0xf]
      %v3871 = vld [vmem:[%s1713 + $0x28] sm:$0xf]
      %v3872 = vld [vmem:[%s1713 + $0x2c] sm:$0xf]
      %v3873 = vld [vmem:[%s1713 + $0x30] sm:$0xf]
      %v3874 = vld [vmem:[%s1713 + $0x34] sm:$0xf]
      %v3875 = vld [vmem:[%s1713 + $0x38] sm:$0xf]
      %v3876 = vld [vmem:[%s1713 + $0x3c] sm:$0xf]
      %v3878 = vunpack.c.l.b16 %v3860
      %v3879 = vpack.c.b16 %v3878, %v3878
      %v3881 = vshrl.u32 %v3693, 16
      %v3883 = vrot.slane %v3881, 2
      %v3884 = vshll.u32 %v3693, 16
      %v3886 = vrot.slane %v3884, 3
      %v3887 = vor.u32 %v3883, %v3886
      %v3889 = vshrl.u32 %v3694, 16
      %v3891 = vrot.slane %v3889, 2
      %v3892 = vshll.u32 %v3694, 16
      %v3894 = vrot.slane %v3892, 3
      %v3895 = vor.u32 %v3891, %v3894
      %v3896 = vsel %vm1733, %v3887, %v3895
      %v3898 = vshrl.u32 %v3695, 16
      %v3900 = vrot.slane %v3898, 2
      %v3901 = vshll.u32 %v3695, 16
      %v3903 = vrot.slane %v3901, 3
      %v3904 = vor.u32 %v3900, %v3903
      %v3905 = vsel %vm1733, %v3895, %v3904
      %v3907 = vshrl.u32 %v3696, 16
      %v3909 = vrot.slane %v3907, 2
      %v3910 = vshll.u32 %v3696, 16
      %v3912 = vrot.slane %v3910, 3
      %v3913 = vor.u32 %v3909, %v3912
      %v3914 = vsel %vm1733, %v3904, %v3913
      %v3916 = vshrl.u32 %v3697, 16
      %v3918 = vrot.slane %v3916, 2
      %v3919 = vshll.u32 %v3697, 16
      %v3921 = vrot.slane %v3919, 3
      %v3922 = vor.u32 %v3918, %v3921
      %v3923 = vsel %vm1733, %v3913, %v3922
      %v3925 = vshrl.u32 %v3698, 16
      %v3927 = vrot.slane %v3925, 2
      %v3928 = vshll.u32 %v3698, 16
      %v3930 = vrot.slane %v3928, 3
      %v3931 = vor.u32 %v3927, %v3930
      %v3932 = vsel %vm1733, %v3922, %v3931
      %v3934 = vshrl.u32 %v3879, 16
      %v3936 = vrot.slane %v3934, 2
      %v3937 = vshll.u32 %v3879, 16
      %v3939 = vrot.slane %v3937, 3
      %v3940 = vor.u32 %v3936, %v3939
      %v3941 = vsel %vm1733, %v3931, %v3940
      %v3964 = vunpack.c.l.b16 %v3861
      %v3965 = vunpack.c.l.b16 %v3862
      %v3966 = vunpack.c.l.b16 %v3863
      %v3967 = vunpack.c.l.b16 %v3864
      %v3968 = vunpack.c.l.b16 %v3865
      %v3969 = vunpack.c.l.b16 %v3866
      %v3970 = vunpack.c.l.b16 %v3867
      %v3971 = vunpack.c.l.b16 %v3868
      %v3972 = vunpack.c.l.b16 %v3869
      %v3973 = vunpack.c.l.b16 %v3870
      %v3974 = vunpack.c.l.b16 %v3871
      %v3975 = vunpack.c.l.b16 %v3872
      %v3976 = vunpack.c.l.b16 %v3873
      %v3977 = vunpack.c.l.b16 %v3874
      %v3978 = vunpack.c.l.b16 %v3875
      %v3979 = vunpack.c.l.b16 %v3876
      %v3980 = vpack.c.b16 %v3965, %v3964
      %v3981 = vpack.c.b16 %v3967, %v3966
      %v3982 = vpack.c.b16 %v3969, %v3968
      %v3983 = vpack.c.b16 %v3971, %v3970
      %v3984 = vpack.c.b16 %v3973, %v3972
      %v3985 = vpack.c.b16 %v3975, %v3974
      %v3986 = vpack.c.b16 %v3977, %v3976
      %v3987 = vpack.c.b16 %v3979, %v3978
      %3996 = vmatprep.subr.bf16.mxu0 0
      %3997 = vmatpush1.bf16.msra.mxu0 %v3980
      %3998 = vmatprep.subr.bf16.mxu0 0
      %3999 = vmatpush1.bf16.msra.mxu0 %v3981
      %4000 = vmatprep.subr.bf16.mxu0 0
      %4001 = vmatpush1.bf16.msra.mxu0 %v3982
      %4002 = vmatprep.subr.bf16.mxu0 0
      %4003 = vmatpush1.bf16.msra.mxu0 %v3983
      %4004 = vmatprep.subr.bf16.mxu0 0
      %4005 = vmatpush1.bf16.msra.mxu0 %v3984
      %4006 = vmatprep.subr.bf16.mxu0 0
      %4007 = vmatpush1.bf16.msra.mxu0 %v3985
      %4008 = vmatprep.subr.bf16.mxu0 0
      %4009 = vmatpush1.bf16.msra.mxu0 %v3986
      %4010 = vmatprep.subr.bf16.mxu0 0
      %4011 = vmatpush1.bf16.msra.mxu0 %v3987
      %4012 = vmatprep.subr.bf16.mxu0 0
      %4013 = vmatpush1.bf16.msra.mxu0 0
      %4014 = vmatprep.subr.bf16.mxu0 0
      %4015 = vmatpush1.bf16.msra.mxu0 0
      %4016 = vmatprep.subr.bf16.mxu0 0
      %4017 = vmatpush1.bf16.msra.mxu0 0
      %4018 = vmatprep.subr.bf16.mxu0 0
      %4019 = vmatpush1.bf16.msra.mxu0 0
      %4020 = vmatprep.subr.bf16.mxu0 0
      %4021 = vmatpush1.bf16.msra.mxu0 0
      %4022 = vmatprep.subr.bf16.mxu0 0
      %4023 = vmatpush1.bf16.msra.mxu0 0
      %4024 = vmatprep.subr.bf16.mxu0 0
      %4025 = vmatpush1.bf16.msra.mxu0 0
      %4026 = vmatprep.subr.bf16.mxu0 0
      %4027 = vmatpush1.bf16.msra.mxu0 0
      %4028 = vmatprep.mubr.bf16.mxu0 0
      %4029 = vmatmul.mubr.bf16.gmra.mrb[0].mxu0 %v3896
      %v4030 = vpop.f32.mrb[0].mxu0
      %v4031 = vadd.f32 0.0, %v4030
      %v4032 = vpop.f32.mrb[0].mxu0
      %v4033 = vpop.f32.mrb[0].mxu0
      %v4034 = vadd.f32 0.0, %v4033
      %v4035 = vpop.f32.mrb[0].mxu0
      %4036 = vmatprep.mubr.bf16.mxu0 0
      %4037 = vmatmul.mubr.bf16.gmra.mrb[0].mxu0 %v3905
      %v4038 = vpop.f32.mrb[0].mxu0
      %v4039 = vadd.f32 0.0, %v4038
      %v4040 = vpop.f32.mrb[0].mxu0
      %v4041 = vpop.f32.mrb[0].mxu0
      %v4042 = vadd.f32 0.0, %v4041
      %v4043 = vpop.f32.mrb[0].mxu0
      %4044 = vmatprep.mubr.bf16.mxu0 0
      %4045 = vmatmul.mubr.bf16.gmra.mrb[0].mxu0 %v3914
      %v4046 = vpop.f32.mrb[0].mxu0
      %v4047 = vadd.f32 0.0, %v4046
      %v4048 = vpop.f32.mrb[0].mxu0
      %v4049 = vpop.f32.mrb[0].mxu0
      %v4050 = vadd.f32 0.0, %v4049
      %v4051 = vpop.f32.mrb[0].mxu0
      %4052 = vmatprep.mubr.bf16.mxu0 0
      %4053 = vmatmul.mubr.bf16.gmra.mrb[0].mxu0 %v3923
      %v4054 = vpop.f32.mrb[0].mxu0
      %v4055 = vadd.f32 0.0, %v4054
      %v4056 = vpop.f32.mrb[0].mxu0
      %v4057 = vpop.f32.mrb[0].mxu0
      %v4058 = vadd.f32 0.0, %v4057
      %v4059 = vpop.f32.mrb[0].mxu0
      %4060 = vmatprep.mubr.bf16.mxu0 0
      %4061 = vmatmul.mubr.bf16.gmra.mrb[0].mxu0 %v3932
      %v4062 = vpop.f32.mrb[0].mxu0
      %v4063 = vadd.f32 0.0, %v4062
      %v4064 = vpop.f32.mrb[0].mxu0
      %v4065 = vpop.f32.mrb[0].mxu0
      %v4066 = vadd.f32 0.0, %v4065
      %v4067 = vpop.f32.mrb[0].mxu0
      %4068 = vmatprep.mubr.bf16.mxu0 0
      %4069 = vmatmul.mubr.bf16.gmra.mrb[0].mxu0 %v3941
      %v4070 = vpop.f32.mrb[0].mxu0
      %v4071 = vadd.f32 0.0, %v4070
      %v4072 = vpop.f32.mrb[0].mxu0
      %v4073 = vpop.f32.mrb[0].mxu0
      %v4074 = vadd.f32 0.0, %v4073
      %v4075 = vpop.f32.mrb[0].mxu0
      %4076 = vdwg.mxu0
      %v4077 = vadd.f32 %v3848, %v4031
      %v4078 = vadd.f32 %v3849, %v4034
      %v4079 = vadd.f32 %v3850, %v4039
      %v4080 = vadd.f32 %v3851, %v4042
      %v4081 = vadd.f32 %v3852, %v4047
      %v4082 = vadd.f32 %v3853, %v4050
      %v4083 = vadd.f32 %v3854, %v4055
      %v4084 = vadd.f32 %v3855, %v4058
      %v4085 = vadd.f32 %v3856, %v4063
      %v4086 = vadd.f32 %v3857, %v4066
      %v4087 = vadd.f32 %v3858, %v4071
      %v4088 = vadd.f32 %v3859, %v4074
      %v4089 = vld [vmem:[%s246 + $0x40] sm:$0x8]
      %v4090 = vld [vmem:[%s1944] sm:$0xf]
      %v4091 = vld [vmem:[%s1944 + $0x4] sm:$0xf]
      %v4092 = vld [vmem:[%s1944 + $0x8] sm:$0xf]
      %v4093 = vld [vmem:[%s1944 + $0xc] sm:$0xf]
      %v4094 = vld [vmem:[%s1944 + $0x10] sm:$0xf]
      %v4095 = vld [vmem:[%s1944 + $0x14] sm:$0xf]
      %v4096 = vld [vmem:[%s1944 + $0x18] sm:$0xf]
      %v4097 = vld [vmem:[%s1944 + $0x1c] sm:$0xf]
      %v4098 = vld [vmem:[%s1944 + $0x20] sm:$0xf]
      %v4099 = vld [vmem:[%s1944 + $0x24] sm:$0xf]
      %v4100 = vld [vmem:[%s1944 + $0x28] sm:$0xf]
      %v4101 = vld [vmem:[%s1944 + $0x2c] sm:$0xf]
      %v4102 = vld [vmem:[%s1944 + $0x30] sm:$0xf]
      %v4103 = vld [vmem:[%s1944 + $0x34] sm:$0xf]
      %v4104 = vld [vmem:[%s1944 + $0x38] sm:$0xf]
      %v4105 = vld [vmem:[%s1944 + $0x3c] sm:$0xf]
      %v4107 = vunpack.c.l.b16 %v4089
      %v4108 = vpack.c.b16 %v3681, %v4107
      %v4109 = vrot.slane %v4108, 3
      %v4110 = vrot.slane %v3694, 3
      %v4111 = vsel %vm1964, %v4109, %v4110
      %v4112 = vrot.slane %v3695, 3
      %v4113 = vsel %vm1964, %v4110, %v4112
      %v4114 = vrot.slane %v3696, 3
      %v4115 = vsel %vm1964, %v4112, %v4114
      %v4116 = vrot.slane %v3697, 3
      %v4117 = vsel %vm1964, %v4114, %v4116
      %v4118 = vrot.slane %v3698, 3
      %v4119 = vsel %vm1964, %v4116, %v4118
      %v4120 = vrot.slane %v3879, 3
      %v4121 = vsel %vm1964, %v4118, %v4120
      %v4144 = vunpack.c.l.b16 %v4090
      %v4145 = vunpack.c.l.b16 %v4091
      %v4146 = vunpack.c.l.b16 %v4092
      %v4147 = vunpack.c.l.b16 %v4093
      %v4148 = vunpack.c.l.b16 %v4094
      %v4149 = vunpack.c.l.b16 %v4095
      %v4150 = vunpack.c.l.b16 %v4096
      %v4151 = vunpack.c.l.b16 %v4097
      %v4152 = vunpack.c.l.b16 %v4098
      %v4153 = vunpack.c.l.b16 %v4099
      %v4154 = vunpack.c.l.b16 %v4100
      %v4155 = vunpack.c.l.b16 %v4101
      %v4156 = vunpack.c.l.b16 %v4102
      %v4157 = vunpack.c.l.b16 %v4103
      %v4158 = vunpack.c.l.b16 %v4104
      %v4159 = vunpack.c.l.b16 %v4105
      %v4160 = vpack.c.b16 %v4145, %v4144
      %v4161 = vpack.c.b16 %v4147, %v4146
      %v4162 = vpack.c.b16 %v4149, %v4148
      %v4163 = vpack.c.b16 %v4151, %v4150
      %v4164 = vpack.c.b16 %v4153, %v4152
      %v4165 = vpack.c.b16 %v4155, %v4154
      %v4166 = vpack.c.b16 %v4157, %v4156
      %v4167 = vpack.c.b16 %v4159, %v4158
      %4176 = vmatprep.subr.bf16.mxu0 0
      %4177 = vmatpush1.bf16.msra.mxu0 %v4160
      %4178 = vmatprep.subr.bf16.mxu0 0
      %4179 = vmatpush1.bf16.msra.mxu0 %v4161
      %4180 = vmatprep.subr.bf16.mxu0 0
      %4181 = vmatpush1.bf16.msra.mxu0 %v4162
      %4182 = vmatprep.subr.bf16.mxu0 0
      %4183 = vmatpush1.bf16.msra.mxu0 %v4163
      %4184 = vmatprep.subr.bf16.mxu0 0
      %4185 = vmatpush1.bf16.msra.mxu0 %v4164
      %4186 = vmatprep.subr.bf16.mxu0 0
      %4187 = vmatpush1.bf16.msra.mxu0 %v4165
      %4188 = vmatprep.subr.bf16.mxu0 0
      %4189 = vmatpush1.bf16.msra.mxu0 %v4166
      %4190 = vmatprep.subr.bf16.mxu0 0
      %4191 = vmatpush1.bf16.msra.mxu0 %v4167
      %4192 = vmatprep.subr.bf16.mxu0 0
      %4193 = vmatpush1.bf16.msra.mxu0 0
      %4194 = vmatprep.subr.bf16.mxu0 0
      %4195 = vmatpush1.bf16.msra.mxu0 0
      %4196 = vmatprep.subr.bf16.mxu0 0
      %4197 = vmatpush1.bf16.msra.mxu0 0
      %4198 = vmatprep.subr.bf16.mxu0 0
      %4199 = vmatpush1.bf16.msra.mxu0 0
      %4200 = vmatprep.subr.bf16.mxu0 0
      %4201 = vmatpush1.bf16.msra.mxu0 0
      %4202 = vmatprep.subr.bf16.mxu0 0
      %4203 = vmatpush1.bf16.msra.mxu0 0
      %4204 = vmatprep.subr.bf16.mxu0 0
      %4205 = vmatpush1.bf16.msra.mxu0 0
      %4206 = vmatprep.subr.bf16.mxu0 0
      %4207 = vmatpush1.bf16.msra.mxu0 0
      %4208 = vmatprep.mubr.bf16.mxu0 0
      %4209 = vmatmul.mubr.bf16.gmra.mrb[0].mxu0 %v4111
      %v4210 = vpop.f32.mrb[0].mxu0
      %v4211 = vadd.f32 0.0, %v4210
      %v4212 = vpop.f32.mrb[0].mxu0
      %v4213 = vpop.f32.mrb[0].mxu0
      %v4214 = vadd.f32 0.0, %v4213
      %v4215 = vpop.f32.mrb[0].mxu0
      %4216 = vmatprep.mubr.bf16.mxu0 0
      %4217 = vmatmul.mubr.bf16.gmra.mrb[0].mxu0 %v4113
      %v4218 = vpop.f32.mrb[0].mxu0
      %v4219 = vadd.f32 0.0, %v4218
      %v4220 = vpop.f32.mrb[0].mxu0
      %v4221 = vpop.f32.mrb[0].mxu0
      %v4222 = vadd.f32 0.0, %v4221
      %v4223 = vpop.f32.mrb[0].mxu0
      %4224 = vmatprep.mubr.bf16.mxu0 0
      %4225 = vmatmul.mubr.bf16.gmra.mrb[0].mxu0 %v4115
      %v4226 = vpop.f32.mrb[0].mxu0
      %v4227 = vadd.f32 0.0, %v4226
      %v4228 = vpop.f32.mrb[0].mxu0
      %v4229 = vpop.f32.mrb[0].mxu0
      %v4230 = vadd.f32 0.0, %v4229
      %v4231 = vpop.f32.mrb[0].mxu0
      %4232 = vmatprep.mubr.bf16.mxu0 0
      %4233 = vmatmul.mubr.bf16.gmra.mrb[0].mxu0 %v4117
      %v4234 = vpop.f32.mrb[0].mxu0
      %v4235 = vadd.f32 0.0, %v4234
      %v4236 = vpop.f32.mrb[0].mxu0
      %v4237 = vpop.f32.mrb[0].mxu0
      %v4238 = vadd.f32 0.0, %v4237
      %v4239 = vpop.f32.mrb[0].mxu0
      %4240 = vmatprep.mubr.bf16.mxu0 0
      %4241 = vmatmul.mubr.bf16.gmra.mrb[0].mxu0 %v4119
      %v4242 = vpop.f32.mrb[0].mxu0
      %v4243 = vadd.f32 0.0, %v4242
      %v4244 = vpop.f32.mrb[0].mxu0
      %v4245 = vpop.f32.mrb[0].mxu0
      %v4246 = vadd.f32 0.0, %v4245
      %v4247 = vpop.f32.mrb[0].mxu0
      %4248 = vmatprep.mubr.bf16.mxu0 0
      %4249 = vmatmul.mubr.bf16.gmra.mrb[0].mxu0 %v4121
      %v4250 = vpop.f32.mrb[0].mxu0
      %v4251 = vadd.f32 0.0, %v4250
      %v4252 = vpop.f32.mrb[0].mxu0
      %v4253 = vpop.f32.mrb[0].mxu0
      %v4254 = vadd.f32 0.0, %v4253
      %v4255 = vpop.f32.mrb[0].mxu0
      %4256 = vdwg.mxu0
      %v4257 = vadd.f32 %v4077, %v4211
      %v4258 = vadd.f32 %v4078, %v4214
      %v4259 = vadd.f32 %v4079, %v4219
      %v4260 = vadd.f32 %v4080, %v4222
      %v4261 = vadd.f32 %v4081, %v4227
      %v4262 = vadd.f32 %v4082, %v4230
      %v4263 = vadd.f32 %v4083, %v4235
      %v4264 = vadd.f32 %v4084, %v4238
      %v4265 = vadd.f32 %v4085, %v4243
      %v4266 = vadd.f32 %v4086, %v4246
      %v4267 = vadd.f32 %v4087, %v4251
      %v4268 = vadd.f32 %v4088, %v4254
      %v4269 = vld [vmem:[%s4] sm:$0x1]
      %v4271 = vlaneseq
      %v4272 = vshrl.u32 %v4271, 7
      %v4273 = vsub.s32 0, %v4272
      %v4274 = vrot.slane %v4269, %v4273
      %v4276 = vadd.f32 %v4257, %v4274
      %v4277 = vadd.f32 %v4258, %v4274
      %v4278 = vadd.f32 %v4259, %v4274
      %v4279 = vadd.f32 %v4260, %v4274
      %v4280 = vadd.f32 %v4261, %v4274
      %v4281 = vadd.f32 %v4262, %v4274
      %v4282 = vadd.f32 %v4263, %v4274
      %v4283 = vadd.f32 %v4264, %v4274
      %v4284 = vadd.f32 %v4265, %v4274
      %v4285 = vadd.f32 %v4266, %v4274
      %v4286 = vadd.f32 %v4267, %v4274
      %v4287 = vadd.f32 %v4268, %v4274
      %v4288 = vmax.f32 %v4276, 0.0
      %v4289 = vmax.f32 %v4277, 0.0
      %v4290 = vmax.f32 %v4278, 0.0
      %v4291 = vmax.f32 %v4279, 0.0
      %v4292 = vmax.f32 %v4280, 0.0
      %v4293 = vmax.f32 %v4281, 0.0
      %v4294 = vmax.f32 %v4282, 0.0
      %v4295 = vmax.f32 %v4283, 0.0
      %v4296 = vmax.f32 %v4284, 0.0
      %v4297 = vmax.f32 %v4285, 0.0
      %v4298 = vmax.f32 %v4286, 0.0
      %v4299 = vmax.f32 %v4287, 0.0
      %v4300 = vld [vmem:[%s1 + $0x60] sm:$0xff]
      %v4301 = vld [vmem:[%s1 + $0x68] sm:$0xff]
      %v4302 = vld [vmem:[%s1 + $0x70] sm:$0xff]
      %v4303 = vld [vmem:[%s1 + $0x78] sm:$0xff]
      %v4304 = vld [vmem:[%s1 + $0x80] sm:$0xff]
      %v4305 = vld [vmem:[%s1 + $0x88] sm:$0xff]
      %v4306 = vld [vmem:[%s1 + $0x90] sm:$0xff]
      %v4307 = vld [vmem:[%s1 + $0x98] sm:$0xff]
      %v4308 = vld [vmem:[%s1 + $0xa0] sm:$0xff]
      %v4309 = vld [vmem:[%s1 + $0xa8] sm:$0xff]
      %v4310 = vld [vmem:[%s1 + $0xb0] sm:$0xff]
      %v4311 = vld [vmem:[%s1 + $0xb8] sm:$0xff]
      %4313 = vset.pattern.permute.xlu0 0
      %4314 = vperm.xlu0 %4313, %v4300
      %v4315 = vpop.permute.xlu0 %4314
      %4318 = vset.pattern.permute.xlu0 0
      %4319 = vperm.xlu0 %4318, %v4301
      %v4320 = vpop.permute.xlu0 %4319
      %4323 = vset.pattern.permute.xlu0 0
      %4324 = vperm.xlu0 %4323, %v4302
      %v4325 = vpop.permute.xlu0 %4324
      %4328 = vset.pattern.permute.xlu0 0
      %4329 = vperm.xlu0 %4328, %v4303
      %v4330 = vpop.permute.xlu0 %4329
      %4333 = vset.pattern.permute.xlu0 0
      %4334 = vperm.xlu0 %4333, %v4304
      %v4335 = vpop.permute.xlu0 %4334
      %4338 = vset.pattern.permute.xlu0 0
      %4339 = vperm.xlu0 %4338, %v4305
      %v4340 = vpop.permute.xlu0 %4339
      %4343 = vset.pattern.permute.xlu0 0
      %4344 = vperm.xlu0 %4343, %v4306
      %v4345 = vpop.permute.xlu0 %4344
      %4348 = vset.pattern.permute.xlu0 0
      %4349 = vperm.xlu0 %4348, %v4307
      %v4350 = vpop.permute.xlu0 %4349
      %4353 = vset.pattern.permute.xlu0 0
      %4354 = vperm.xlu0 %4353, %v4308
      %v4355 = vpop.permute.xlu0 %4354
      %4358 = vset.pattern.permute.xlu0 0
      %4359 = vperm.xlu0 %4358, %v4309
      %v4360 = vpop.permute.xlu0 %4359
      %4363 = vset.pattern.permute.xlu0 0
      %4364 = vperm.xlu0 %4363, %v4310
      %v4365 = vpop.permute.xlu0 %4364
      %4368 = vset.pattern.permute.xlu0 0
      %4369 = vperm.xlu0 %4368, %v4311
      %v4370 = vpop.permute.xlu0 %4369
      %v4372 = vmul.f32 %v4288, %v4315
      %v4373 = vmul.f32 %v4289, %v4320
      %v4374 = vmul.f32 %v4290, %v4325
      %v4375 = vmul.f32 %v4291, %v4330
      %v4376 = vmul.f32 %v4292, %v4335
      %v4377 = vmul.f32 %v4293, %v4340
      %v4378 = vmul.f32 %v4294, %v4345
      %v4379 = vmul.f32 %v4295, %v4350
      %v4380 = vmul.f32 %v4296, %v4355
      %v4381 = vmul.f32 %v4297, %v4360
      %v4382 = vmul.f32 %v4298, %v4365
      %v4383 = vmul.f32 %v4299, %v4370
      %v4384 = vpack.c.bf16 %v4373, %v4372
      %v4385 = vpack.c.bf16 %v4375, %v4374
      %v4386 = vpack.c.bf16 %v4377, %v4376
      %v4387 = vpack.c.bf16 %v4379, %v4378
      %v4388 = vpack.c.bf16 %v4381, %v4380
      %v4389 = vpack.c.bf16 %v4383, %v4382
      %v4396 = vunpack.c.l.b16 %v4384
      %v4397 = vunpack.c.h.b16 %v4384
      %v4398 = vunpack.c.l.b16 %v4385
      %v4399 = vunpack.c.h.b16 %v4385
      %v4400 = vunpack.c.l.b16 %v4386
      %v4401 = vunpack.c.h.b16 %v4386
      %v4402 = vunpack.c.l.b16 %v4387
      %v4403 = vunpack.c.h.b16 %v4387
      %v4404 = vunpack.c.l.b16 %v4388
      %v4405 = vunpack.c.h.b16 %v4388
      %v4406 = vunpack.c.l.b16 %v4389
      %v4407 = vunpack.c.h.b16 %v4389
      %v4408 = vpack.c.b16 %v4396, %v4396
      %v4409 = vpack.c.b16 %v4397, %v4397
      %v4410 = vpack.c.b16 %v4398, %v4398
      %v4411 = vpack.c.b16 %v4399, %v4399
      %v4412 = vpack.c.b16 %v4400, %v4400
      %v4413 = vpack.c.b16 %v4401, %v4401
      %v4414 = vpack.c.b16 %v4402, %v4402
      %v4415 = vpack.c.b16 %v4403, %v4403
      %v4416 = vpack.c.b16 %v4404, %v4404
      %v4417 = vpack.c.b16 %v4405, %v4405
      %v4418 = vpack.c.b16 %v4406, %v4406
      %v4419 = vpack.c.b16 %v4407, %v4407
      %v4421 = vshrl.u32 %v4408, 16
      %v4423 = vrot.slane %v4421, 6
      %v4424 = vshll.u32 %v4408, 16
      %v4426 = vrot.slane %v4424, 7
      %v4427 = vor.u32 %v4423, %v4426
      %v4428 = vrot.slane %v4427, 4
      %v4430 = vshrl.u32 %v4409, 16
      %v4432 = vrot.slane %v4430, 6
      %v4433 = vshll.u32 %v4409, 16
      %v4435 = vrot.slane %v4433, 7
      %v4436 = vor.u32 %v4432, %v4435
      %v4437 = vsel %vm2277, %v4428, %v4436
      %v4438 = vrot.slane %v4436, 4
      %v4440 = vshrl.u32 %v4410, 16
      %v4442 = vrot.slane %v4440, 6
      %v4443 = vshll.u32 %v4410, 16
      %v4445 = vrot.slane %v4443, 7
      %v4446 = vor.u32 %v4442, %v4445
      %v4447 = vsel %vm2277, %v4438, %v4446
      %v4448 = vrot.slane %v4446, 4
      %v4450 = vshrl.u32 %v4411, 16
      %v4452 = vrot.slane %v4450, 6
      %v4453 = vshll.u32 %v4411, 16
      %v4455 = vrot.slane %v4453, 7
      %v4456 = vor.u32 %v4452, %v4455
      %v4457 = vsel %vm2277, %v4448, %v4456
      %v4458 = vrot.slane %v4456, 4
      %v4460 = vshrl.u32 %v4412, 16
      %v4462 = vrot.slane %v4460, 6
      %v4463 = vshll.u32 %v4412, 16
      %v4465 = vrot.slane %v4463, 7
      %v4466 = vor.u32 %v4462, %v4465
      %v4467 = vsel %vm2277, %v4458, %v4466
      %v4468 = vrot.slane %v4466, 4
      %v4470 = vshrl.u32 %v4413, 16
      %v4472 = vrot.slane %v4470, 6
      %v4473 = vshll.u32 %v4413, 16
      %v4475 = vrot.slane %v4473, 7
      %v4476 = vor.u32 %v4472, %v4475
      %v4477 = vsel %vm2277, %v4468, %v4476
      %v4478 = vrot.slane %v4476, 4
      %v4480 = vshrl.u32 %v4414, 16
      %v4482 = vrot.slane %v4480, 6
      %v4483 = vshll.u32 %v4414, 16
      %v4485 = vrot.slane %v4483, 7
      %v4486 = vor.u32 %v4482, %v4485
      %v4487 = vsel %vm2277, %v4478, %v4486
      %v4488 = vrot.slane %v4486, 4
      %v4490 = vshrl.u32 %v4415, 16
      %v4492 = vrot.slane %v4490, 6
      %v4493 = vshll.u32 %v4415, 16
      %v4495 = vrot.slane %v4493, 7
      %v4496 = vor.u32 %v4492, %v4495
      %v4497 = vsel %vm2277, %v4488, %v4496
      %v4498 = vrot.slane %v4496, 4
      %v4500 = vshrl.u32 %v4416, 16
      %v4502 = vrot.slane %v4500, 6
      %v4503 = vshll.u32 %v4416, 16
      %v4505 = vrot.slane %v4503, 7
      %v4506 = vor.u32 %v4502, %v4505
      %v4507 = vsel %vm2277, %v4498, %v4506
      %v4508 = vrot.slane %v4506, 4
      %v4510 = vshrl.u32 %v4417, 16
      %v4512 = vrot.slane %v4510, 6
      %v4513 = vshll.u32 %v4417, 16
      %v4515 = vrot.slane %v4513, 7
      %v4516 = vor.u32 %v4512, %v4515
      %v4517 = vsel %vm2277, %v4508, %v4516
      %v4518 = vrot.slane %v4516, 4
      %v4520 = vshrl.u32 %v4418, 16
      %v4522 = vrot.slane %v4520, 6
      %v4523 = vshll.u32 %v4418, 16
      %v4525 = vrot.slane %v4523, 7
      %v4526 = vor.u32 %v4522, %v4525
      %v4527 = vsel %vm2277, %v4518, %v4526
      %v4528 = vrot.slane %v4526, 4
      %v4530 = vshrl.u32 %v4419, 16
      %v4532 = vrot.slane %v4530, 6
      %v4533 = vshll.u32 %v4419, 16
      %v4535 = vrot.slane %v4533, 7
      %v4536 = vor.u32 %v4532, %v4535
      %v4537 = vsel %vm2277, %v4528, %v4536
      %v4538 = vrot.slane %v4536, 4
      %v4552 = vld [vmem:[#allocation2 + $0x38] sm:$0xe]
      %v4553 = vsel %vm263, %v4427, %v4552
      %4554 = vst [vmem:[#allocation2 + $0x38] sm:$0xe] %v4553
      %4555 = vst [vmem:[#allocation2 + $0x3c] sm:$0xf] %v4437
      %4556 = vst [vmem:[#allocation2 + $0x40] sm:$0xf] %v4447
      %4557 = vst [vmem:[#allocation2 + $0x44] sm:$0xf] %v4457
      %4558 = vst [vmem:[#allocation2 + $0x48] sm:$0xf] %v4467
      %4559 = vst [vmem:[#allocation2 + $0x4c] sm:$0xf] %v4477
      %4560 = vst [vmem:[#allocation2 + $0x50] sm:$0xf] %v4487
      %4561 = vst [vmem:[#allocation2 + $0x54] sm:$0xf] %v4497
      %4562 = vst [vmem:[#allocation2 + $0x58] sm:$0xf] %v4507
      %4563 = vst [vmem:[#allocation2 + $0x5c] sm:$0xf] %v4517
      %4564 = vst [vmem:[#allocation2 + $0x60] sm:$0xf] %v4527
      %4565 = vst [vmem:[#allocation2 + $0x64] sm:$0xf] %v4537
      %v4566 = vld [vmem:[#allocation2 + $0x68] sm:$0x3]
      %v4567 = vsel %vm257, %v4538, %v4566
      %4568 = vst [vmem:[#allocation2 + $0x68] sm:$0x3] %v4567
      %v4569 = vld [vmem:[%s246 + $0x60] sm:$0xf]
      %v4570 = vld [vmem:[%s246 + $0x64] sm:$0xf]
      %v4571 = vld [vmem:[%s246 + $0x68] sm:$0xf]
      %v4572 = vld [vmem:[%s246 + $0x6c] sm:$0xf]
      %v4573 = vld [vmem:[%s246 + $0x70] sm:$0xf]
      %v4574 = vld [vmem:[%s246 + $0x74] sm:$0xf]
      %v4575 = vld [vmem:[%s246 + $0x78] sm:$0xf]
      %v4576 = vld [vmem:[%s246 + $0x7c] sm:$0xf]
      %v4577 = vld [vmem:[%s246 + $0x80] sm:$0xf]
      %v4578 = vld [vmem:[%s246 + $0x84] sm:$0xf]
      %v4579 = vld [vmem:[%s246 + $0x88] sm:$0xf]
      %v4580 = vld [vmem:[%s246 + $0x8c] sm:$0xf]
      %v4581 = vld [vmem:[%s2] sm:$0xf]
      %v4582 = vld [vmem:[%s2 + $0x4] sm:$0xf]
      %v4583 = vld [vmem:[%s2 + $0x8] sm:$0xf]
      %v4584 = vld [vmem:[%s2 + $0xc] sm:$0xf]
      %v4585 = vld [vmem:[%s2 + $0x10] sm:$0xf]
      %v4586 = vld [vmem:[%s2 + $0x14] sm:$0xf]
      %v4587 = vld [vmem:[%s2 + $0x18] sm:$0xf]
      %v4588 = vld [vmem:[%s2 + $0x1c] sm:$0xf]
      %v4589 = vld [vmem:[%s2 + $0x20] sm:$0xf]
      %v4590 = vld [vmem:[%s2 + $0x24] sm:$0xf]
      %v4591 = vld [vmem:[%s2 + $0x28] sm:$0xf]
      %v4592 = vld [vmem:[%s2 + $0x2c] sm:$0xf]
      %v4593 = vld [vmem:[%s2 + $0x30] sm:$0xf]
      %v4594 = vld [vmem:[%s2 + $0x34] sm:$0xf]
      %v4595 = vld [vmem:[%s2 + $0x38] sm:$0xf]
      %v4596 = vld [vmem:[%s2 + $0x3c] sm:$0xf]
      %v4597 = vld [vmem:[%s246 + $0x90] sm:$0x1]
      %v4598 = vld [vmem:[%s298] sm:$0xf]
      %v4599 = vld [vmem:[%s298 + $0x4] sm:$0xf]
      %v4600 = vld [vmem:[%s298 + $0x8] sm:$0xf]
      %v4601 = vld [vmem:[%s298 + $0xc] sm:$0xf]
      %v4602 = vld [vmem:[%s298 + $0x10] sm:$0xf]
      %v4603 = vld [vmem:[%s298 + $0x14] sm:$0xf]
      %v4604 = vld [vmem:[%s298 + $0x18] sm:$0xf]
      %v4605 = vld [vmem:[%s298 + $0x1c] sm:$0xf]
      %v4606 = vld [vmem:[%s298 + $0x20] sm:$0xf]
      %v4607 = vld [vmem:[%s298 + $0x24] sm:$0xf]
      %v4608 = vld [vmem:[%s298 + $0x28] sm:$0xf]
      %v4609 = vld [vmem:[%s298 + $0x2c] sm:$0xf]
      %v4610 = vld [vmem:[%s298 + $0x30] sm:$0xf]
      %v4611 = vld [vmem:[%s298 + $0x34] sm:$0xf]
      %v4612 = vld [vmem:[%s298 + $0x38] sm:$0xf]
      %v4613 = vld [vmem:[%s298 + $0x3c] sm:$0xf]
      %v4627 = vunpack.c.l.b16 %v4569
      %v4628 = vunpack.c.l.b16 %v4570
      %v4629 = vunpack.c.l.b16 %v4571
      %v4630 = vunpack.c.l.b16 %v4572
      %v4631 = vunpack.c.l.b16 %v4573
      %v4632 = vunpack.c.l.b16 %v4574
      %v4633 = vunpack.c.l.b16 %v4575
      %v4634 = vunpack.c.l.b16 %v4576
      %v4635 = vunpack.c.l.b16 %v4577
      %v4636 = vunpack.c.l.b16 %v4578
      %v4637 = vunpack.c.l.b16 %v4579
      %v4638 = vunpack.c.l.b16 %v4580
      %v4639 = vunpack.c.l.b16 %v4597
      %v4640 = vpack.c.b16 %v4628, %v4627
      %v4641 = vpack.c.b16 %v4630, %v4629
      %v4642 = vpack.c.b16 %v4632, %v4631
      %v4643 = vpack.c.b16 %v4634, %v4633
      %v4644 = vpack.c.b16 %v4636, %v4635
      %v4645 = vpack.c.b16 %v4638, %v4637
      %v4646 = vpack.c.b16 %v4639, %v4639
      %v4648 = vshrl.u32 %v4640, 16
      %v4650 = vshll.u32 %v4640, 16
      %v4652 = vrot.slane %v4650, 1
      %v4653 = vor.u32 %v4648, %v4652
      %v4655 = vshll.u32 %v4641, 16
      %v4657 = vrot.slane %v4655, 1
      %v4658 = vsel %vm348, %v4653, %v4657
      %v4659 = vshrl.u32 %v4641, 16
      %v4661 = vor.u32 %v4659, %v4657
      %v4663 = vshll.u32 %v4642, 16
      %v4665 = vrot.slane %v4663, 1
      %v4666 = vsel %vm348, %v4661, %v4665
      %v4667 = vshrl.u32 %v4642, 16
      %v4669 = vor.u32 %v4667, %v4665
      %v4671 = vshll.u32 %v4643, 16
      %v4673 = vrot.slane %v4671, 1
      %v4674 = vsel %vm348, %v4669, %v4673
      %v4675 = vshrl.u32 %v4643, 16
      %v4677 = vor.u32 %v4675, %v4673
      %v4679 = vshll.u32 %v4644, 16
      %v4681 = vrot.slane %v4679, 1
      %v4682 = vsel %vm348, %v4677, %v4681
      %v4683 = vshrl.u32 %v4644, 16
      %v4685 = vor.u32 %v4683, %v4681
      %v4687 = vshll.u32 %v4645, 16
      %v4689 = vrot.slane %v4687, 1
      %v4690 = vsel %vm348, %v4685, %v4689
      %v4691 = vshrl.u32 %v4645, 16
      %v4693 = vor.u32 %v4691, %v4689
      %v4695 = vshll.u32 %v4646, 16
      %v4697 = vrot.slane %v4695, 1
      %v4698 = vsel %vm348, %v4693, %v4697
      %v4721 = vunpack.c.l.b16 %v4598
      %v4722 = vunpack.c.l.b16 %v4599
      %v4723 = vunpack.c.l.b16 %v4600
      %v4724 = vunpack.c.l.b16 %v4601
      %v4725 = vunpack.c.l.b16 %v4602
      %v4726 = vunpack.c.l.b16 %v4603
      %v4727 = vunpack.c.l.b16 %v4604
      %v4728 = vunpack.c.l.b16 %v4605
      %v4729 = vunpack.c.l.b16 %v4606
      %v4730 = vunpack.c.l.b16 %v4607
      %v4731 = vunpack.c.l.b16 %v4608
      %v4732 = vunpack.c.l.b16 %v4609
      %v4733 = vunpack.c.l.b16 %v4610
      %v4734 = vunpack.c.l.b16 %v4611
      %v4735 = vunpack.c.l.b16 %v4612
      %v4736 = vunpack.c.l.b16 %v4613
      %v4737 = vpack.c.b16 %v4722, %v4721
      %v4738 = vpack.c.b16 %v4724, %v4723
      %v4739 = vpack.c.b16 %v4726, %v4725
      %v4740 = vpack.c.b16 %v4728, %v4727
      %v4741 = vpack.c.b16 %v4730, %v4729
      %v4742 = vpack.c.b16 %v4732, %v4731
      %v4743 = vpack.c.b16 %v4734, %v4733
      %v4744 = vpack.c.b16 %v4736, %v4735
      %4753 = vmatprep.subr.bf16.mxu0 0
      %4754 = vmatpush1.bf16.msra.mxu0 %v4737
      %4755 = vmatprep.subr.bf16.mxu0 0
      %4756 = vmatpush1.bf16.msra.mxu0 %v4738
      %4757 = vmatprep.subr.bf16.mxu0 0
      %4758 = vmatpush1.bf16.msra.mxu0 %v4739
      %4759 = vmatprep.subr.bf16.mxu0 0
      %4760 = vmatpush1.bf16.msra.mxu0 %v4740
      %4761 = vmatprep.subr.bf16.mxu0 0
      %4762 = vmatpush1.bf16.msra.mxu0 %v4741
      %4763 = vmatprep.subr.bf16.mxu0 0
      %4764 = vmatpush1.bf16.msra.mxu0 %v4742
      %4765 = vmatprep.subr.bf16.mxu0 0
      %4766 = vmatpush1.bf16.msra.mxu0 %v4743
      %4767 = vmatprep.subr.bf16.mxu0 0
      %4768 = vmatpush1.bf16.msra.mxu0 %v4744
      %4769 = vmatprep.subr.bf16.mxu0 0
      %4770 = vmatpush1.bf16.msra.mxu0 0
      %4771 = vmatprep.subr.bf16.mxu0 0
      %4772 = vmatpush1.bf16.msra.mxu0 0
      %4773 = vmatprep.subr.bf16.mxu0 0
      %4774 = vmatpush1.bf16.msra.mxu0 0
      %4775 = vmatprep.subr.bf16.mxu0 0
      %4776 = vmatpush1.bf16.msra.mxu0 0
      %4777 = vmatprep.subr.bf16.mxu0 0
      %4778 = vmatpush1.bf16.msra.mxu0 0
      %4779 = vmatprep.subr.bf16.mxu0 0
      %4780 = vmatpush1.bf16.msra.mxu0 0
      %4781 = vmatprep.subr.bf16.mxu0 0
      %4782 = vmatpush1.bf16.msra.mxu0 0
      %4783 = vmatprep.subr.bf16.mxu0 0
      %4784 = vmatpush1.bf16.msra.mxu0 0
      %4785 = vmatprep.mubr.bf16.mxu0 0
      %4786 = vmatmul.mubr.bf16.gmra.mrb[0].mxu0 %v4658
      %v4787 = vpop.f32.mrb[0].mxu0
      %v4788 = vadd.f32 0.0, %v4787
      %v4789 = vpop.f32.mrb[0].mxu0
      %v4790 = vpop.f32.mrb[0].mxu0
      %v4791 = vadd.f32 0.0, %v4790
      %v4792 = vpop.f32.mrb[0].mxu0
      %4793 = vmatprep.mubr.bf16.mxu0 0
      %4794 = vmatmul.mubr.bf16.gmra.mrb[0].mxu0 %v4666
      %v4795 = vpop.f32.mrb[0].mxu0
      %v4796 = vadd.f32 0.0, %v4795
      %v4797 = vpop.f32.mrb[0].mxu0
      %v4798 = vpop.f32.mrb[0].mxu0
      %v4799 = vadd.f32 0.0, %v4798
      %v4800 = vpop.f32.mrb[0].mxu0
      %4801 = vmatprep.mubr.bf16.mxu0 0
      %4802 = vmatmul.mubr.bf16.gmra.mrb[0].mxu0 %v4674
      %v4803 = vpop.f32.mrb[0].mxu0
      %v4804 = vadd.f32 0.0, %v4803
      %v4805 = vpop.f32.mrb[0].mxu0
      %v4806 = vpop.f32.mrb[0].mxu0
      %v4807 = vadd.f32 0.0, %v4806
      %v4808 = vpop.f32.mrb[0].mxu0
      %4809 = vmatprep.mubr.bf16.mxu0 0
      %4810 = vmatmul.mubr.bf16.gmra.mrb[0].mxu0 %v4682
      %v4811 = vpop.f32.mrb[0].mxu0
      %v4812 = vadd.f32 0.0, %v4811
      %v4813 = vpop.f32.mrb[0].mxu0
      %v4814 = vpop.f32.mrb[0].mxu0
      %v4815 = vadd.f32 0.0, %v4814
      %v4816 = vpop.f32.mrb[0].mxu0
      %4817 = vmatprep.mubr.bf16.mxu0 0
      %4818 = vmatmul.mubr.bf16.gmra.mrb[0].mxu0 %v4690
      %v4819 = vpop.f32.mrb[0].mxu0
      %v4820 = vadd.f32 0.0, %v4819
      %v4821 = vpop.f32.mrb[0].mxu0
      %v4822 = vpop.f32.mrb[0].mxu0
      %v4823 = vadd.f32 0.0, %v4822
      %v4824 = vpop.f32.mrb[0].mxu0
      %4825 = vmatprep.mubr.bf16.mxu0 0
      %4826 = vmatmul.mubr.bf16.gmra.mrb[0].mxu0 %v4698
      %v4827 = vpop.f32.mrb[0].mxu0
      %v4828 = vadd.f32 0.0, %v4827
      %v4829 = vpop.f32.mrb[0].mxu0
      %v4830 = vpop.f32.mrb[0].mxu0
      %v4831 = vadd.f32 0.0, %v4830
      %v4832 = vpop.f32.mrb[0].mxu0
      %4833 = vdwg.mxu0
      %v4856 = vunpack.c.l.b16 %v4581
      %v4857 = vunpack.c.l.b16 %v4582
      %v4858 = vunpack.c.l.b16 %v4583
      %v4859 = vunpack.c.l.b16 %v4584
      %v4860 = vunpack.c.l.b16 %v4585
      %v4861 = vunpack.c.l.b16 %v4586
      %v4862 = vunpack.c.l.b16 %v4587
      %v4863 = vunpack.c.l.b16 %v4588
      %v4864 = vunpack.c.l.b16 %v4589
      %v4865 = vunpack.c.l.b16 %v4590
      %v4866 = vunpack.c.l.b16 %v4591
      %v4867 = vunpack.c.l.b16 %v4592
      %v4868 = vunpack.c.l.b16 %v4593
      %v4869 = vunpack.c.l.b16 %v4594
      %v4870 = vunpack.c.l.b16 %v4595
      %v4871 = vunpack.c.l.b16 %v4596
      %v4872 = vpack.c.b16 %v4857, %v4856
      %v4873 = vpack.c.b16 %v4859, %v4858
      %v4874 = vpack.c.b16 %v4861, %v4860
      %v4875 = vpack.c.b16 %v4863, %v4862
      %v4876 = vpack.c.b16 %v4865, %v4864
      %v4877 = vpack.c.b16 %v4867, %v4866
      %v4878 = vpack.c.b16 %v4869, %v4868
      %v4879 = vpack.c.b16 %v4871, %v4870
      %4888 = vmatprep.subr.bf16.mxu0 0
      %4889 = vmatpush1.bf16.msra.mxu0 %v4872
      %4890 = vmatprep.subr.bf16.mxu0 0
      %4891 = vmatpush1.bf16.msra.mxu0 %v4873
      %4892 = vmatprep.subr.bf16.mxu0 0
      %4893 = vmatpush1.bf16.msra.mxu0 %v4874
      %4894 = vmatprep.subr.bf16.mxu0 0
      %4895 = vmatpush1.bf16.msra.mxu0 %v4875
      %4896 = vmatprep.subr.bf16.mxu0 0
      %4897 = vmatpush1.bf16.msra.mxu0 %v4876
      %4898 = vmatprep.subr.bf16.mxu0 0
      %4899 = vmatpush1.bf16.msra.mxu0 %v4877
      %4900 = vmatprep.subr.bf16.mxu0 0
      %4901 = vmatpush1.bf16.msra.mxu0 %v4878
      %4902 = vmatprep.subr.bf16.mxu0 0
      %4903 = vmatpush1.bf16.msra.mxu0 %v4879
      %4904 = vmatprep.subr.bf16.mxu0 0
      %4905 = vmatpush1.bf16.msra.mxu0 0
      %4906 = vmatprep.subr.bf16.mxu0 0
      %4907 = vmatpush1.bf16.msra.mxu0 0
      %4908 = vmatprep.subr.bf16.mxu0 0
      %4909 = vmatpush1.bf16.msra.mxu0 0
      %4910 = vmatprep.subr.bf16.mxu0 0
      %4911 = vmatpush1.bf16.msra.mxu0 0
      %4912 = vmatprep.subr.bf16.mxu0 0
      %4913 = vmatpush1.bf16.msra.mxu0 0
      %4914 = vmatprep.subr.bf16.mxu0 0
      %4915 = vmatpush1.bf16.msra.mxu0 0
      %4916 = vmatprep.subr.bf16.mxu0 0
      %4917 = vmatpush1.bf16.msra.mxu0 0
      %4918 = vmatprep.subr.bf16.mxu0 0
      %4919 = vmatpush1.bf16.msra.mxu0 0
      %4920 = vmatprep.mubr.bf16.mxu0 0
      %4921 = vmatmul.mubr.bf16.gmra.mrb[0].mxu0 %v4640
      %v4922 = vpop.f32.mrb[0].mxu0
      %v4923 = vadd.f32 %v4788, %v4922
      %v4924 = vpop.f32.mrb[0].mxu0
      %v4925 = vpop.f32.mrb[0].mxu0
      %v4926 = vadd.f32 %v4791, %v4925
      %v4927 = vpop.f32.mrb[0].mxu0
      %4928 = vmatprep.mubr.bf16.mxu0 0
      %4929 = vmatmul.mubr.bf16.gmra.mrb[0].mxu0 %v4641
      %v4930 = vpop.f32.mrb[0].mxu0
      %v4931 = vadd.f32 %v4796, %v4930
      %v4932 = vpop.f32.mrb[0].mxu0
      %v4933 = vpop.f32.mrb[0].mxu0
      %v4934 = vadd.f32 %v4799, %v4933
      %v4935 = vpop.f32.mrb[0].mxu0
      %4936 = vmatprep.mubr.bf16.mxu0 0
      %4937 = vmatmul.mubr.bf16.gmra.mrb[0].mxu0 %v4642
      %v4938 = vpop.f32.mrb[0].mxu0
      %v4939 = vadd.f32 %v4804, %v4938
      %v4940 = vpop.f32.mrb[0].mxu0
      %v4941 = vpop.f32.mrb[0].mxu0
      %v4942 = vadd.f32 %v4807, %v4941
      %v4943 = vpop.f32.mrb[0].mxu0
      %4944 = vmatprep.mubr.bf16.mxu0 0
      %4945 = vmatmul.mubr.bf16.gmra.mrb[0].mxu0 %v4643
      %v4946 = vpop.f32.mrb[0].mxu0
      %v4947 = vadd.f32 %v4812, %v4946
      %v4948 = vpop.f32.mrb[0].mxu0
      %v4949 = vpop.f32.mrb[0].mxu0
      %v4950 = vadd.f32 %v4815, %v4949
      %v4951 = vpop.f32.mrb[0].mxu0
      %4952 = vmatprep.mubr.bf16.mxu0 0
      %4953 = vmatmul.mubr.bf16.gmra.mrb[0].mxu0 %v4644
      %v4954 = vpop.f32.mrb[0].mxu0
      %v4955 = vadd.f32 %v4820, %v4954
      %v4956 = vpop.f32.mrb[0].mxu0
      %v4957 = vpop.f32.mrb[0].mxu0
      %v4958 = vadd.f32 %v4823, %v4957
      %v4959 = vpop.f32.mrb[0].mxu0
      %4960 = vmatprep.mubr.bf16.mxu0 0
      %4961 = vmatmul.mubr.bf16.gmra.mrb[0].mxu0 %v4645
      %v4962 = vpop.f32.mrb[0].mxu0
      %v4963 = vadd.f32 %v4828, %v4962
      %v4964 = vpop.f32.mrb[0].mxu0
      %v4965 = vpop.f32.mrb[0].mxu0
      %v4966 = vadd.f32 %v4831, %v4965
      %v4967 = vpop.f32.mrb[0].mxu0
      %4968 = vdwg.mxu0
      %v4969 = vld [vmem:[%s246 + $0x60] sm:$0xe]
      %v4970 = vld [vmem:[%s672] sm:$0xf]
      %v4971 = vld [vmem:[%s672 + $0x4] sm:$0xf]
      %v4972 = vld [vmem:[%s672 + $0x8] sm:$0xf]
      %v4973 = vld [vmem:[%s672 + $0xc] sm:$0xf]
      %v4974 = vld [vmem:[%s672 + $0x10] sm:$0xf]
      %v4975 = vld [vmem:[%s672 + $0x14] sm:$0xf]
      %v4976 = vld [vmem:[%s672 + $0x18] sm:$0xf]
      %v4977 = vld [vmem:[%s672 + $0x1c] sm:$0xf]
      %v4978 = vld [vmem:[%s672 + $0x20] sm:$0xf]
      %v4979 = vld [vmem:[%s672 + $0x24] sm:$0xf]
      %v4980 = vld [vmem:[%s672 + $0x28] sm:$0xf]
      %v4981 = vld [vmem:[%s672 + $0x2c] sm:$0xf]
      %v4982 = vld [vmem:[%s672 + $0x30] sm:$0xf]
      %v4983 = vld [vmem:[%s672 + $0x34] sm:$0xf]
      %v4984 = vld [vmem:[%s672 + $0x38] sm:$0xf]
      %v4985 = vld [vmem:[%s672 + $0x3c] sm:$0xf]
      %v4987 = vunpack.c.l.b16 %v4969
      %v4988 = vpack.c.b16 %v4628, %v4987
      %v4989 = vrot.slane %v4988, 1
      %v4990 = vrot.slane %v4641, 1
      %v4991 = vsel %vm692, %v4989, %v4990
      %v4992 = vrot.slane %v4642, 1
      %v4993 = vsel %vm692, %v4990, %v4992
      %v4994 = vrot.slane %v4643, 1
      %v4995 = vsel %vm692, %v4992, %v4994
      %v4996 = vrot.slane %v4644, 1
      %v4997 = vsel %vm692, %v4994, %v4996
      %v4998 = vrot.slane %v4645, 1
      %v4999 = vsel %vm692, %v4996, %v4998
      %v5000 = vrot.slane %v4646, 1
      %v5001 = vsel %vm692, %v4998, %v5000
      %v5024 = vunpack.c.l.b16 %v4970
      %v5025 = vunpack.c.l.b16 %v4971
      %v5026 = vunpack.c.l.b16 %v4972
      %v5027 = vunpack.c.l.b16 %v4973
      %v5028 = vunpack.c.l.b16 %v4974
      %v5029 = vunpack.c.l.b16 %v4975
      %v5030 = vunpack.c.l.b16 %v4976
      %v5031 = vunpack.c.l.b16 %v4977
      %v5032 = vunpack.c.l.b16 %v4978
      %v5033 = vunpack.c.l.b16 %v4979
      %v5034 = vunpack.c.l.b16 %v4980
      %v5035 = vunpack.c.l.b16 %v4981
      %v5036 = vunpack.c.l.b16 %v4982
      %v5037 = vunpack.c.l.b16 %v4983
      %v5038 = vunpack.c.l.b16 %v4984
      %v5039 = vunpack.c.l.b16 %v4985
      %v5040 = vpack.c.b16 %v5025, %v5024
      %v5041 = vpack.c.b16 %v5027, %v5026
      %v5042 = vpack.c.b16 %v5029, %v5028
      %v5043 = vpack.c.b16 %v5031, %v5030
      %v5044 = vpack.c.b16 %v5033, %v5032
      %v5045 = vpack.c.b16 %v5035, %v5034
      %v5046 = vpack.c.b16 %v5037, %v5036
      %v5047 = vpack.c.b16 %v5039, %v5038
      %5056 = vmatprep.subr.bf16.mxu0 0
      %5057 = vmatpush1.bf16.msra.mxu0 %v5040
      %5058 = vmatprep.subr.bf16.mxu0 0
      %5059 = vmatpush1.bf16.msra.mxu0 %v5041
      %5060 = vmatprep.subr.bf16.mxu0 0
      %5061 = vmatpush1.bf16.msra.mxu0 %v5042
      %5062 = vmatprep.subr.bf16.mxu0 0
      %5063 = vmatpush1.bf16.msra.mxu0 %v5043
      %5064 = vmatprep.subr.bf16.mxu0 0
      %5065 = vmatpush1.bf16.msra.mxu0 %v5044
      %5066 = vmatprep.subr.bf16.mxu0 0
      %5067 = vmatpush1.bf16.msra.mxu0 %v5045
      %5068 = vmatprep.subr.bf16.mxu0 0
      %5069 = vmatpush1.bf16.msra.mxu0 %v5046
      %5070 = vmatprep.subr.bf16.mxu0 0
      %5071 = vmatpush1.bf16.msra.mxu0 %v5047
      %5072 = vmatprep.subr.bf16.mxu0 0
      %5073 = vmatpush1.bf16.msra.mxu0 0
      %5074 = vmatprep.subr.bf16.mxu0 0
      %5075 = vmatpush1.bf16.msra.mxu0 0
      %5076 = vmatprep.subr.bf16.mxu0 0
      %5077 = vmatpush1.bf16.msra.mxu0 0
      %5078 = vmatprep.subr.bf16.mxu0 0
      %5079 = vmatpush1.bf16.msra.mxu0 0
      %5080 = vmatprep.subr.bf16.mxu0 0
      %5081 = vmatpush1.bf16.msra.mxu0 0
      %5082 = vmatprep.subr.bf16.mxu0 0
      %5083 = vmatpush1.bf16.msra.mxu0 0
      %5084 = vmatprep.subr.bf16.mxu0 0
      %5085 = vmatpush1.bf16.msra.mxu0 0
      %5086 = vmatprep.subr.bf16.mxu0 0
      %5087 = vmatpush1.bf16.msra.mxu0 0
      %5088 = vmatprep.mubr.bf16.mxu0 0
      %5089 = vmatmul.mubr.bf16.gmra.mrb[0].mxu0 %v4991
      %v5090 = vpop.f32.mrb[0].mxu0
      %v5091 = vadd.f32 0.0, %v5090
      %v5092 = vpop.f32.mrb[0].mxu0
      %v5093 = vpop.f32.mrb[0].mxu0
      %v5094 = vadd.f32 0.0, %v5093
      %v5095 = vpop.f32.mrb[0].mxu0
      %5096 = vmatprep.mubr.bf16.mxu0 0
      %5097 = vmatmul.mubr.bf16.gmra.mrb[0].mxu0 %v4993
      %v5098 = vpop.f32.mrb[0].mxu0
      %v5099 = vadd.f32 0.0, %v5098
      %v5100 = vpop.f32.mrb[0].mxu0
      %v5101 = vpop.f32.mrb[0].mxu0
      %v5102 = vadd.f32 0.0, %v5101
      %v5103 = vpop.f32.mrb[0].mxu0
      %5104 = vmatprep.mubr.bf16.mxu0 0
      %5105 = vmatmul.mubr.bf16.gmra.mrb[0].mxu0 %v4995
      %v5106 = vpop.f32.mrb[0].mxu0
      %v5107 = vadd.f32 0.0, %v5106
      %v5108 = vpop.f32.mrb[0].mxu0
      %v5109 = vpop.f32.mrb[0].mxu0
      %v5110 = vadd.f32 0.0, %v5109
      %v5111 = vpop.f32.mrb[0].mxu0
      %5112 = vmatprep.mubr.bf16.mxu0 0
      %5113 = vmatmul.mubr.bf16.gmra.mrb[0].mxu0 %v4997
      %v5114 = vpop.f32.mrb[0].mxu0
      %v5115 = vadd.f32 0.0, %v5114
      %v5116 = vpop.f32.mrb[0].mxu0
      %v5117 = vpop.f32.mrb[0].mxu0
      %v5118 = vadd.f32 0.0, %v5117
      %v5119 = vpop.f32.mrb[0].mxu0
      %5120 = vmatprep.mubr.bf16.mxu0 0
      %5121 = vmatmul.mubr.bf16.gmra.mrb[0].mxu0 %v4999
      %v5122 = vpop.f32.mrb[0].mxu0
      %v5123 = vadd.f32 0.0, %v5122
      %v5124 = vpop.f32.mrb[0].mxu0
      %v5125 = vpop.f32.mrb[0].mxu0
      %v5126 = vadd.f32 0.0, %v5125
      %v5127 = vpop.f32.mrb[0].mxu0
      %5128 = vmatprep.mubr.bf16.mxu0 0
      %5129 = vmatmul.mubr.bf16.gmra.mrb[0].mxu0 %v5001
      %v5130 = vpop.f32.mrb[0].mxu0
      %v5131 = vadd.f32 0.0, %v5130
      %v5132 = vpop.f32.mrb[0].mxu0
      %v5133 = vpop.f32.mrb[0].mxu0
      %v5134 = vadd.f32 0.0, %v5133
      %v5135 = vpop.f32.mrb[0].mxu0
      %5136 = vdwg.mxu0
      %v5137 = vadd.f32 %v4923, %v5091
      %v5138 = vadd.f32 %v4926, %v5094
      %v5139 = vadd.f32 %v4931, %v5099
      %v5140 = vadd.f32 %v4934, %v5102
      %v5141 = vadd.f32 %v4939, %v5107
      %v5142 = vadd.f32 %v4942, %v5110
      %v5143 = vadd.f32 %v4947, %v5115
      %v5144 = vadd.f32 %v4950, %v5118
      %v5145 = vadd.f32 %v4955, %v5123
      %v5146 = vadd.f32 %v4958, %v5126
      %v5147 = vadd.f32 %v4963, %v5131
      %v5148 = vadd.f32 %v4966, %v5134
      %v5149 = vld [vmem:[%s246 + $0x68] sm:$0xe]
      %v5150 = vld [vmem:[%s246 + $0x6c] sm:$0xf]
      %v5151 = vld [vmem:[%s246 + $0x70] sm:$0xf]
      %v5152 = vld [vmem:[%s246 + $0x74] sm:$0xf]
      %v5153 = vld [vmem:[%s246 + $0x78] sm:$0xf]
      %v5154 = vld [vmem:[%s246 + $0x7c] sm:$0xf]
      %v5155 = vld [vmem:[%s246 + $0x80] sm:$0xf]
      %v5156 = vld [vmem:[%s246 + $0x84] sm:$0xf]
      %v5157 = vld [vmem:[%s246 + $0x88] sm:$0xf]
      %v5158 = vld [vmem:[%s246 + $0x8c] sm:$0xf]
      %v5159 = vld [vmem:[%s246 + $0x90] sm:$0xf]
      %v5160 = vld [vmem:[%s246 + $0x94] sm:$0xf]
      %v5161 = vld [vmem:[%s246 + $0x98] sm:$0x1]
      %v5162 = vld [vmem:[%s866] sm:$0xf]
      %v5163 = vld [vmem:[%s866 + $0x4] sm:$0xf]
      %v5164 = vld [vmem:[%s866 + $0x8] sm:$0xf]
      %v5165 = vld [vmem:[%s866 + $0xc] sm:$0xf]
      %v5166 = vld [vmem:[%s866 + $0x10] sm:$0xf]
      %v5167 = vld [vmem:[%s866 + $0x14] sm:$0xf]
      %v5168 = vld [vmem:[%s866 + $0x18] sm:$0xf]
      %v5169 = vld [vmem:[%s866 + $0x1c] sm:$0xf]
      %v5170 = vld [vmem:[%s866 + $0x20] sm:$0xf]
      %v5171 = vld [vmem:[%s866 + $0x24] sm:$0xf]
      %v5172 = vld [vmem:[%s866 + $0x28] sm:$0xf]
      %v5173 = vld [vmem:[%s866 + $0x2c] sm:$0xf]
      %v5174 = vld [vmem:[%s866 + $0x30] sm:$0xf]
      %v5175 = vld [vmem:[%s866 + $0x34] sm:$0xf]
      %v5176 = vld [vmem:[%s866 + $0x38] sm:$0xf]
      %v5177 = vld [vmem:[%s866 + $0x3c] sm:$0xf]
      %v5191 = vunpack.c.l.b16 %v5149
      %v5192 = vunpack.c.l.b16 %v5150
      %v5193 = vunpack.c.l.b16 %v5151
      %v5194 = vunpack.c.l.b16 %v5152
      %v5195 = vunpack.c.l.b16 %v5153
      %v5196 = vunpack.c.l.b16 %v5154
      %v5197 = vunpack.c.l.b16 %v5155
      %v5198 = vunpack.c.l.b16 %v5156
      %v5199 = vunpack.c.l.b16 %v5157
      %v5200 = vunpack.c.l.b16 %v5158
      %v5201 = vunpack.c.l.b16 %v5159
      %v5202 = vunpack.c.l.b16 %v5160
      %v5203 = vunpack.c.l.b16 %v5161
      %v5204 = vpack.c.b16 %v5192, %v5191
      %v5205 = vpack.c.b16 %v5194, %v5193
      %v5206 = vpack.c.b16 %v5196, %v5195
      %v5207 = vpack.c.b16 %v5198, %v5197
      %v5208 = vpack.c.b16 %v5200, %v5199
      %v5209 = vpack.c.b16 %v5202, %v5201
      %v5210 = vpack.c.b16 %v5203, %v5203
      %v5211 = vrot.slane %v5204, 1
      %v5212 = vrot.slane %v5205, 1
      %v5213 = vsel %vm692, %v5211, %v5212
      %v5214 = vrot.slane %v5206, 1
      %v5215 = vsel %vm692, %v5212, %v5214
      %v5216 = vrot.slane %v5207, 1
      %v5217 = vsel %vm692, %v5214, %v5216
      %v5218 = vrot.slane %v5208, 1
      %v5219 = vsel %vm692, %v5216, %v5218
      %v5220 = vrot.slane %v5209, 1
      %v5221 = vsel %vm692, %v5218, %v5220
      %v5222 = vrot.slane %v5210, 1
      %v5223 = vsel %vm692, %v5220, %v5222
      %v5246 = vunpack.c.l.b16 %v5162
      %v5247 = vunpack.c.l.b16 %v5163
      %v5248 = vunpack.c.l.b16 %v5164
      %v5249 = vunpack.c.l.b16 %v5165
      %v5250 = vunpack.c.l.b16 %v5166
      %v5251 = vunpack.c.l.b16 %v5167
      %v5252 = vunpack.c.l.b16 %v5168
      %v5253 = vunpack.c.l.b16 %v5169
      %v5254 = vunpack.c.l.b16 %v5170
      %v5255 = vunpack.c.l.b16 %v5171
      %v5256 = vunpack.c.l.b16 %v5172
      %v5257 = vunpack.c.l.b16 %v5173
      %v5258 = vunpack.c.l.b16 %v5174
      %v5259 = vunpack.c.l.b16 %v5175
      %v5260 = vunpack.c.l.b16 %v5176
      %v5261 = vunpack.c.l.b16 %v5177
      %v5262 = vpack.c.b16 %v5247, %v5246
      %v5263 = vpack.c.b16 %v5249, %v5248
      %v5264 = vpack.c.b16 %v5251, %v5250
      %v5265 = vpack.c.b16 %v5253, %v5252
      %v5266 = vpack.c.b16 %v5255, %v5254
      %v5267 = vpack.c.b16 %v5257, %v5256
      %v5268 = vpack.c.b16 %v5259, %v5258
      %v5269 = vpack.c.b16 %v5261, %v5260
      %5278 = vmatprep.subr.bf16.mxu0 0
      %5279 = vmatpush1.bf16.msra.mxu0 %v5262
      %5280 = vmatprep.subr.bf16.mxu0 0
      %5281 = vmatpush1.bf16.msra.mxu0 %v5263
      %5282 = vmatprep.subr.bf16.mxu0 0
      %5283 = vmatpush1.bf16.msra.mxu0 %v5264
      %5284 = vmatprep.subr.bf16.mxu0 0
      %5285 = vmatpush1.bf16.msra.mxu0 %v5265
      %5286 = vmatprep.subr.bf16.mxu0 0
      %5287 = vmatpush1.bf16.msra.mxu0 %v5266
      %5288 = vmatprep.subr.bf16.mxu0 0
      %5289 = vmatpush1.bf16.msra.mxu0 %v5267
      %5290 = vmatprep.subr.bf16.mxu0 0
      %5291 = vmatpush1.bf16.msra.mxu0 %v5268
      %5292 = vmatprep.subr.bf16.mxu0 0
      %5293 = vmatpush1.bf16.msra.mxu0 %v5269
      %5294 = vmatprep.subr.bf16.mxu0 0
      %5295 = vmatpush1.bf16.msra.mxu0 0
      %5296 = vmatprep.subr.bf16.mxu0 0
      %5297 = vmatpush1.bf16.msra.mxu0 0
      %5298 = vmatprep.subr.bf16.mxu0 0
      %5299 = vmatpush1.bf16.msra.mxu0 0
      %5300 = vmatprep.subr.bf16.mxu0 0
      %5301 = vmatpush1.bf16.msra.mxu0 0
      %5302 = vmatprep.subr.bf16.mxu0 0
      %5303 = vmatpush1.bf16.msra.mxu0 0
      %5304 = vmatprep.subr.bf16.mxu0 0
      %5305 = vmatpush1.bf16.msra.mxu0 0
      %5306 = vmatprep.subr.bf16.mxu0 0
      %5307 = vmatpush1.bf16.msra.mxu0 0
      %5308 = vmatprep.subr.bf16.mxu0 0
      %5309 = vmatpush1.bf16.msra.mxu0 0
      %5310 = vmatprep.mubr.bf16.mxu0 0
      %5311 = vmatmul.mubr.bf16.gmra.mrb[0].mxu0 %v5213
      %v5312 = vpop.f32.mrb[0].mxu0
      %v5313 = vadd.f32 0.0, %v5312
      %v5314 = vpop.f32.mrb[0].mxu0
      %v5315 = vpop.f32.mrb[0].mxu0
      %v5316 = vadd.f32 0.0, %v5315
      %v5317 = vpop.f32.mrb[0].mxu0
      %5318 = vmatprep.mubr.bf16.mxu0 0
      %5319 = vmatmul.mubr.bf16.gmra.mrb[0].mxu0 %v5215
      %v5320 = vpop.f32.mrb[0].mxu0
      %v5321 = vadd.f32 0.0, %v5320
      %v5322 = vpop.f32.mrb[0].mxu0
      %v5323 = vpop.f32.mrb[0].mxu0
      %v5324 = vadd.f32 0.0, %v5323
      %v5325 = vpop.f32.mrb[0].mxu0
      %5326 = vmatprep.mubr.bf16.mxu0 0
      %5327 = vmatmul.mubr.bf16.gmra.mrb[0].mxu0 %v5217
      %v5328 = vpop.f32.mrb[0].mxu0
      %v5329 = vadd.f32 0.0, %v5328
      %v5330 = vpop.f32.mrb[0].mxu0
      %v5331 = vpop.f32.mrb[0].mxu0
      %v5332 = vadd.f32 0.0, %v5331
      %v5333 = vpop.f32.mrb[0].mxu0
      %5334 = vmatprep.mubr.bf16.mxu0 0
      %5335 = vmatmul.mubr.bf16.gmra.mrb[0].mxu0 %v5219
      %v5336 = vpop.f32.mrb[0].mxu0
      %v5337 = vadd.f32 0.0, %v5336
      %v5338 = vpop.f32.mrb[0].mxu0
      %v5339 = vpop.f32.mrb[0].mxu0
      %v5340 = vadd.f32 0.0, %v5339
      %v5341 = vpop.f32.mrb[0].mxu0
      %5342 = vmatprep.mubr.bf16.mxu0 0
      %5343 = vmatmul.mubr.bf16.gmra.mrb[0].mxu0 %v5221
      %v5344 = vpop.f32.mrb[0].mxu0
      %v5345 = vadd.f32 0.0, %v5344
      %v5346 = vpop.f32.mrb[0].mxu0
      %v5347 = vpop.f32.mrb[0].mxu0
      %v5348 = vadd.f32 0.0, %v5347
      %v5349 = vpop.f32.mrb[0].mxu0
      %5350 = vmatprep.mubr.bf16.mxu0 0
      %5351 = vmatmul.mubr.bf16.gmra.mrb[0].mxu0 %v5223
      %v5352 = vpop.f32.mrb[0].mxu0
      %v5353 = vadd.f32 0.0, %v5352
      %v5354 = vpop.f32.mrb[0].mxu0
      %v5355 = vpop.f32.mrb[0].mxu0
      %v5356 = vadd.f32 0.0, %v5355
      %v5357 = vpop.f32.mrb[0].mxu0
      %5358 = vdwg.mxu0
      %v5359 = vadd.f32 %v5137, %v5313
      %v5360 = vadd.f32 %v5138, %v5316
      %v5361 = vadd.f32 %v5139, %v5321
      %v5362 = vadd.f32 %v5140, %v5324
      %v5363 = vadd.f32 %v5141, %v5329
      %v5364 = vadd.f32 %v5142, %v5332
      %v5365 = vadd.f32 %v5143, %v5337
      %v5366 = vadd.f32 %v5144, %v5340
      %v5367 = vadd.f32 %v5145, %v5345
      %v5368 = vadd.f32 %v5146, %v5348
      %v5369 = vadd.f32 %v5147, %v5353
      %v5370 = vadd.f32 %v5148, %v5356
      %v5371 = vld [vmem:[%s246 + $0x98] sm:$0x3]
      %v5372 = vld [vmem:[%s1077] sm:$0xf]
      %v5373 = vld [vmem:[%s1077 + $0x4] sm:$0xf]
      %v5374 = vld [vmem:[%s1077 + $0x8] sm:$0xf]
      %v5375 = vld [vmem:[%s1077 + $0xc] sm:$0xf]
      %v5376 = vld [vmem:[%s1077 + $0x10] sm:$0xf]
      %v5377 = vld [vmem:[%s1077 + $0x14] sm:$0xf]
      %v5378 = vld [vmem:[%s1077 + $0x18] sm:$0xf]
      %v5379 = vld [vmem:[%s1077 + $0x1c] sm:$0xf]
      %v5380 = vld [vmem:[%s1077 + $0x20] sm:$0xf]
      %v5381 = vld [vmem:[%s1077 + $0x24] sm:$0xf]
      %v5382 = vld [vmem:[%s1077 + $0x28] sm:$0xf]
      %v5383 = vld [vmem:[%s1077 + $0x2c] sm:$0xf]
      %v5384 = vld [vmem:[%s1077 + $0x30] sm:$0xf]
      %v5385 = vld [vmem:[%s1077 + $0x34] sm:$0xf]
      %v5386 = vld [vmem:[%s1077 + $0x38] sm:$0xf]
      %v5387 = vld [vmem:[%s1077 + $0x3c] sm:$0xf]
      %v5389 = vunpack.c.l.b16 %v5371
      %v5390 = vpack.c.b16 %v5389, %v5389
      %v5392 = vshrl.u32 %v5204, 16
      %v5394 = vrot.slane %v5392, 1
      %v5395 = vshll.u32 %v5204, 16
      %v5397 = vrot.slane %v5395, 2
      %v5398 = vor.u32 %v5394, %v5397
      %v5400 = vshrl.u32 %v5205, 16
      %v5402 = vrot.slane %v5400, 1
      %v5403 = vshll.u32 %v5205, 16
      %v5405 = vrot.slane %v5403, 2
      %v5406 = vor.u32 %v5402, %v5405
      %v5407 = vsel %vm1097, %v5398, %v5406
      %v5409 = vshrl.u32 %v5206, 16
      %v5411 = vrot.slane %v5409, 1
      %v5412 = vshll.u32 %v5206, 16
      %v5414 = vrot.slane %v5412, 2
      %v5415 = vor.u32 %v5411, %v5414
      %v5416 = vsel %vm1097, %v5406, %v5415
      %v5418 = vshrl.u32 %v5207, 16
      %v5420 = vrot.slane %v5418, 1
      %v5421 = vshll.u32 %v5207, 16
      %v5423 = vrot.slane %v5421, 2
      %v5424 = vor.u32 %v5420, %v5423
      %v5425 = vsel %vm1097, %v5415, %v5424
      %v5427 = vshrl.u32 %v5208, 16
      %v5429 = vrot.slane %v5427, 1
      %v5430 = vshll.u32 %v5208, 16
      %v5432 = vrot.slane %v5430, 2
      %v5433 = vor.u32 %v5429, %v5432
      %v5434 = vsel %vm1097, %v5424, %v5433
      %v5436 = vshrl.u32 %v5209, 16
      %v5438 = vrot.slane %v5436, 1
      %v5439 = vshll.u32 %v5209, 16
      %v5441 = vrot.slane %v5439, 2
      %v5442 = vor.u32 %v5438, %v5441
      %v5443 = vsel %vm1097, %v5433, %v5442
      %v5445 = vshrl.u32 %v5390, 16
      %v5447 = vrot.slane %v5445, 1
      %v5448 = vshll.u32 %v5390, 16
      %v5450 = vrot.slane %v5448, 2
      %v5451 = vor.u32 %v5447, %v5450
      %v5452 = vsel %vm1097, %v5442, %v5451
      %v5475 = vunpack.c.l.b16 %v5372
      %v5476 = vunpack.c.l.b16 %v5373
      %v5477 = vunpack.c.l.b16 %v5374
      %v5478 = vunpack.c.l.b16 %v5375
      %v5479 = vunpack.c.l.b16 %v5376
      %v5480 = vunpack.c.l.b16 %v5377
      %v5481 = vunpack.c.l.b16 %v5378
      %v5482 = vunpack.c.l.b16 %v5379
      %v5483 = vunpack.c.l.b16 %v5380
      %v5484 = vunpack.c.l.b16 %v5381
      %v5485 = vunpack.c.l.b16 %v5382
      %v5486 = vunpack.c.l.b16 %v5383
      %v5487 = vunpack.c.l.b16 %v5384
      %v5488 = vunpack.c.l.b16 %v5385
      %v5489 = vunpack.c.l.b16 %v5386
      %v5490 = vunpack.c.l.b16 %v5387
      %v5491 = vpack.c.b16 %v5476, %v5475
      %v5492 = vpack.c.b16 %v5478, %v5477
      %v5493 = vpack.c.b16 %v5480, %v5479
      %v5494 = vpack.c.b16 %v5482, %v5481
      %v5495 = vpack.c.b16 %v5484, %v5483
      %v5496 = vpack.c.b16 %v5486, %v5485
      %v5497 = vpack.c.b16 %v5488, %v5487
      %v5498 = vpack.c.b16 %v5490, %v5489
      %5507 = vmatprep.subr.bf16.mxu0 0
      %5508 = vmatpush1.bf16.msra.mxu0 %v5491
      %5509 = vmatprep.subr.bf16.mxu0 0
      %5510 = vmatpush1.bf16.msra.mxu0 %v5492
      %5511 = vmatprep.subr.bf16.mxu0 0
      %5512 = vmatpush1.bf16.msra.mxu0 %v5493
      %5513 = vmatprep.subr.bf16.mxu0 0
      %5514 = vmatpush1.bf16.msra.mxu0 %v5494
      %5515 = vmatprep.subr.bf16.mxu0 0
      %5516 = vmatpush1.bf16.msra.mxu0 %v5495
      %5517 = vmatprep.subr.bf16.mxu0 0
      %5518 = vmatpush1.bf16.msra.mxu0 %v5496
      %5519 = vmatprep.subr.bf16.mxu0 0
      %5520 = vmatpush1.bf16.msra.mxu0 %v5497
      %5521 = vmatprep.subr.bf16.mxu0 0
      %5522 = vmatpush1.bf16.msra.mxu0 %v5498
      %5523 = vmatprep.subr.bf16.mxu0 0
      %5524 = vmatpush1.bf16.msra.mxu0 0
      %5525 = vmatprep.subr.bf16.mxu0 0
      %5526 = vmatpush1.bf16.msra.mxu0 0
      %5527 = vmatprep.subr.bf16.mxu0 0
      %5528 = vmatpush1.bf16.msra.mxu0 0
      %5529 = vmatprep.subr.bf16.mxu0 0
      %5530 = vmatpush1.bf16.msra.mxu0 0
      %5531 = vmatprep.subr.bf16.mxu0 0
      %5532 = vmatpush1.bf16.msra.mxu0 0
      %5533 = vmatprep.subr.bf16.mxu0 0
      %5534 = vmatpush1.bf16.msra.mxu0 0
      %5535 = vmatprep.subr.bf16.mxu0 0
      %5536 = vmatpush1.bf16.msra.mxu0 0
      %5537 = vmatprep.subr.bf16.mxu0 0
      %5538 = vmatpush1.bf16.msra.mxu0 0
      %5539 = vmatprep.mubr.bf16.mxu0 0
      %5540 = vmatmul.mubr.bf16.gmra.mrb[0].mxu0 %v5407
      %v5541 = vpop.f32.mrb[0].mxu0
      %v5542 = vadd.f32 0.0, %v5541
      %v5543 = vpop.f32.mrb[0].mxu0
      %v5544 = vpop.f32.mrb[0].mxu0
      %v5545 = vadd.f32 0.0, %v5544
      %v5546 = vpop.f32.mrb[0].mxu0
      %5547 = vmatprep.mubr.bf16.mxu0 0
      %5548 = vmatmul.mubr.bf16.gmra.mrb[0].mxu0 %v5416
      %v5549 = vpop.f32.mrb[0].mxu0
      %v5550 = vadd.f32 0.0, %v5549
      %v5551 = vpop.f32.mrb[0].mxu0
      %v5552 = vpop.f32.mrb[0].mxu0
      %v5553 = vadd.f32 0.0, %v5552
      %v5554 = vpop.f32.mrb[0].mxu0
      %5555 = vmatprep.mubr.bf16.mxu0 0
      %5556 = vmatmul.mubr.bf16.gmra.mrb[0].mxu0 %v5425
      %v5557 = vpop.f32.mrb[0].mxu0
      %v5558 = vadd.f32 0.0, %v5557
      %v5559 = vpop.f32.mrb[0].mxu0
      %v5560 = vpop.f32.mrb[0].mxu0
      %v5561 = vadd.f32 0.0, %v5560
      %v5562 = vpop.f32.mrb[0].mxu0
      %5563 = vmatprep.mubr.bf16.mxu0 0
      %5564 = vmatmul.mubr.bf16.gmra.mrb[0].mxu0 %v5434
      %v5565 = vpop.f32.mrb[0].mxu0
      %v5566 = vadd.f32 0.0, %v5565
      %v5567 = vpop.f32.mrb[0].mxu0
      %v5568 = vpop.f32.mrb[0].mxu0
      %v5569 = vadd.f32 0.0, %v5568
      %v5570 = vpop.f32.mrb[0].mxu0
      %5571 = vmatprep.mubr.bf16.mxu0 0
      %5572 = vmatmul.mubr.bf16.gmra.mrb[0].mxu0 %v5443
      %v5573 = vpop.f32.mrb[0].mxu0
      %v5574 = vadd.f32 0.0, %v5573
      %v5575 = vpop.f32.mrb[0].mxu0
      %v5576 = vpop.f32.mrb[0].mxu0
      %v5577 = vadd.f32 0.0, %v5576
      %v5578 = vpop.f32.mrb[0].mxu0
      %5579 = vmatprep.mubr.bf16.mxu0 0
      %5580 = vmatmul.mubr.bf16.gmra.mrb[0].mxu0 %v5452
      %v5581 = vpop.f32.mrb[0].mxu0
      %v5582 = vadd.f32 0.0, %v5581
      %v5583 = vpop.f32.mrb[0].mxu0
      %v5584 = vpop.f32.mrb[0].mxu0
      %v5585 = vadd.f32 0.0, %v5584
      %v5586 = vpop.f32.mrb[0].mxu0
      %5587 = vdwg.mxu0
      %v5588 = vadd.f32 %v5359, %v5542
      %v5589 = vadd.f32 %v5360, %v5545
      %v5590 = vadd.f32 %v5361, %v5550
      %v5591 = vadd.f32 %v5362, %v5553
      %v5592 = vadd.f32 %v5363, %v5558
      %v5593 = vadd.f32 %v5364, %v5561
      %v5594 = vadd.f32 %v5365, %v5566
      %v5595 = vadd.f32 %v5366, %v5569
      %v5596 = vadd.f32 %v5367, %v5574
      %v5597 = vadd.f32 %v5368, %v5577
      %v5598 = vadd.f32 %v5369, %v5582
      %v5599 = vadd.f32 %v5370, %v5585
      %v5600 = vld [vmem:[%s246 + $0x68] sm:$0xc]
      %v5601 = vld [vmem:[%s1308] sm:$0xf]
      %v5602 = vld [vmem:[%s1308 + $0x4] sm:$0xf]
      %v5603 = vld [vmem:[%s1308 + $0x8] sm:$0xf]
      %v5604 = vld [vmem:[%s1308 + $0xc] sm:$0xf]
      %v5605 = vld [vmem:[%s1308 + $0x10] sm:$0xf]
      %v5606 = vld [vmem:[%s1308 + $0x14] sm:$0xf]
      %v5607 = vld [vmem:[%s1308 + $0x18] sm:$0xf]
      %v5608 = vld [vmem:[%s1308 + $0x1c] sm:$0xf]
      %v5609 = vld [vmem:[%s1308 + $0x20] sm:$0xf]
      %v5610 = vld [vmem:[%s1308 + $0x24] sm:$0xf]
      %v5611 = vld [vmem:[%s1308 + $0x28] sm:$0xf]
      %v5612 = vld [vmem:[%s1308 + $0x2c] sm:$0xf]
      %v5613 = vld [vmem:[%s1308 + $0x30] sm:$0xf]
      %v5614 = vld [vmem:[%s1308 + $0x34] sm:$0xf]
      %v5615 = vld [vmem:[%s1308 + $0x38] sm:$0xf]
      %v5616 = vld [vmem:[%s1308 + $0x3c] sm:$0xf]
      %v5618 = vunpack.c.l.b16 %v5600
      %v5619 = vpack.c.b16 %v5192, %v5618
      %v5620 = vrot.slane %v5619, 2
      %v5621 = vrot.slane %v5205, 2
      %v5622 = vsel %vm1328, %v5620, %v5621
      %v5623 = vrot.slane %v5206, 2
      %v5624 = vsel %vm1328, %v5621, %v5623
      %v5625 = vrot.slane %v5207, 2
      %v5626 = vsel %vm1328, %v5623, %v5625
      %v5627 = vrot.slane %v5208, 2
      %v5628 = vsel %vm1328, %v5625, %v5627
      %v5629 = vrot.slane %v5209, 2
      %v5630 = vsel %vm1328, %v5627, %v5629
      %v5631 = vrot.slane %v5390, 2
      %v5632 = vsel %vm1328, %v5629, %v5631
      %v5655 = vunpack.c.l.b16 %v5601
      %v5656 = vunpack.c.l.b16 %v5602
      %v5657 = vunpack.c.l.b16 %v5603
      %v5658 = vunpack.c.l.b16 %v5604
      %v5659 = vunpack.c.l.b16 %v5605
      %v5660 = vunpack.c.l.b16 %v5606
      %v5661 = vunpack.c.l.b16 %v5607
      %v5662 = vunpack.c.l.b16 %v5608
      %v5663 = vunpack.c.l.b16 %v5609
      %v5664 = vunpack.c.l.b16 %v5610
      %v5665 = vunpack.c.l.b16 %v5611
      %v5666 = vunpack.c.l.b16 %v5612
      %v5667 = vunpack.c.l.b16 %v5613
      %v5668 = vunpack.c.l.b16 %v5614
      %v5669 = vunpack.c.l.b16 %v5615
      %v5670 = vunpack.c.l.b16 %v5616
      %v5671 = vpack.c.b16 %v5656, %v5655
      %v5672 = vpack.c.b16 %v5658, %v5657
      %v5673 = vpack.c.b16 %v5660, %v5659
      %v5674 = vpack.c.b16 %v5662, %v5661
      %v5675 = vpack.c.b16 %v5664, %v5663
      %v5676 = vpack.c.b16 %v5666, %v5665
      %v5677 = vpack.c.b16 %v5668, %v5667
      %v5678 = vpack.c.b16 %v5670, %v5669
      %5687 = vmatprep.subr.bf16.mxu0 0
      %5688 = vmatpush1.bf16.msra.mxu0 %v5671
      %5689 = vmatprep.subr.bf16.mxu0 0
      %5690 = vmatpush1.bf16.msra.mxu0 %v5672
      %5691 = vmatprep.subr.bf16.mxu0 0
      %5692 = vmatpush1.bf16.msra.mxu0 %v5673
      %5693 = vmatprep.subr.bf16.mxu0 0
      %5694 = vmatpush1.bf16.msra.mxu0 %v5674
      %5695 = vmatprep.subr.bf16.mxu0 0
      %5696 = vmatpush1.bf16.msra.mxu0 %v5675
      %5697 = vmatprep.subr.bf16.mxu0 0
      %5698 = vmatpush1.bf16.msra.mxu0 %v5676
      %5699 = vmatprep.subr.bf16.mxu0 0
      %5700 = vmatpush1.bf16.msra.mxu0 %v5677
      %5701 = vmatprep.subr.bf16.mxu0 0
      %5702 = vmatpush1.bf16.msra.mxu0 %v5678
      %5703 = vmatprep.subr.bf16.mxu0 0
      %5704 = vmatpush1.bf16.msra.mxu0 0
      %5705 = vmatprep.subr.bf16.mxu0 0
      %5706 = vmatpush1.bf16.msra.mxu0 0
      %5707 = vmatprep.subr.bf16.mxu0 0
      %5708 = vmatpush1.bf16.msra.mxu0 0
      %5709 = vmatprep.subr.bf16.mxu0 0
      %5710 = vmatpush1.bf16.msra.mxu0 0
      %5711 = vmatprep.subr.bf16.mxu0 0
      %5712 = vmatpush1.bf16.msra.mxu0 0
      %5713 = vmatprep.subr.bf16.mxu0 0
      %5714 = vmatpush1.bf16.msra.mxu0 0
      %5715 = vmatprep.subr.bf16.mxu0 0
      %5716 = vmatpush1.bf16.msra.mxu0 0
      %5717 = vmatprep.subr.bf16.mxu0 0
      %5718 = vmatpush1.bf16.msra.mxu0 0
      %5719 = vmatprep.mubr.bf16.mxu0 0
      %5720 = vmatmul.mubr.bf16.gmra.mrb[0].mxu0 %v5622
      %v5721 = vpop.f32.mrb[0].mxu0
      %v5722 = vadd.f32 0.0, %v5721
      %v5723 = vpop.f32.mrb[0].mxu0
      %v5724 = vpop.f32.mrb[0].mxu0
      %v5725 = vadd.f32 0.0, %v5724
      %v5726 = vpop.f32.mrb[0].mxu0
      %5727 = vmatprep.mubr.bf16.mxu0 0
      %5728 = vmatmul.mubr.bf16.gmra.mrb[0].mxu0 %v5624
      %v5729 = vpop.f32.mrb[0].mxu0
      %v5730 = vadd.f32 0.0, %v5729
      %v5731 = vpop.f32.mrb[0].mxu0
      %v5732 = vpop.f32.mrb[0].mxu0
      %v5733 = vadd.f32 0.0, %v5732
      %v5734 = vpop.f32.mrb[0].mxu0
      %5735 = vmatprep.mubr.bf16.mxu0 0
      %5736 = vmatmul.mubr.bf16.gmra.mrb[0].mxu0 %v5626
      %v5737 = vpop.f32.mrb[0].mxu0
      %v5738 = vadd.f32 0.0, %v5737
      %v5739 = vpop.f32.mrb[0].mxu0
      %v5740 = vpop.f32.mrb[0].mxu0
      %v5741 = vadd.f32 0.0, %v5740
      %v5742 = vpop.f32.mrb[0].mxu0
      %5743 = vmatprep.mubr.bf16.mxu0 0
      %5744 = vmatmul.mubr.bf16.gmra.mrb[0].mxu0 %v5628
      %v5745 = vpop.f32.mrb[0].mxu0
      %v5746 = vadd.f32 0.0, %v5745
      %v5747 = vpop.f32.mrb[0].mxu0
      %v5748 = vpop.f32.mrb[0].mxu0
      %v5749 = vadd.f32 0.0, %v5748
      %v5750 = vpop.f32.mrb[0].mxu0
      %5751 = vmatprep.mubr.bf16.mxu0 0
      %5752 = vmatmul.mubr.bf16.gmra.mrb[0].mxu0 %v5630
      %v5753 = vpop.f32.mrb[0].mxu0
      %v5754 = vadd.f32 0.0, %v5753
      %v5755 = vpop.f32.mrb[0].mxu0
      %v5756 = vpop.f32.mrb[0].mxu0
      %v5757 = vadd.f32 0.0, %v5756
      %v5758 = vpop.f32.mrb[0].mxu0
      %5759 = vmatprep.mubr.bf16.mxu0 0
      %5760 = vmatmul.mubr.bf16.gmra.mrb[0].mxu0 %v5632
      %v5761 = vpop.f32.mrb[0].mxu0
      %v5762 = vadd.f32 0.0, %v5761
      %v5763 = vpop.f32.mrb[0].mxu0
      %v5764 = vpop.f32.mrb[0].mxu0
      %v5765 = vadd.f32 0.0, %v5764
      %v5766 = vpop.f32.mrb[0].mxu0
      %5767 = vdwg.mxu0
      %v5768 = vadd.f32 %v5588, %v5722
      %v5769 = vadd.f32 %v5589, %v5725
      %v5770 = vadd.f32 %v5590, %v5730
      %v5771 = vadd.f32 %v5591, %v5733
      %v5772 = vadd.f32 %v5592, %v5738
      %v5773 = vadd.f32 %v5593, %v5741
      %v5774 = vadd.f32 %v5594, %v5746
      %v5775 = vadd.f32 %v5595, %v5749
      %v5776 = vadd.f32 %v5596, %v5754
      %v5777 = vadd.f32 %v5597, %v5757
      %v5778 = vadd.f32 %v5598, %v5762
      %v5779 = vadd.f32 %v5599, %v5765
      %v5780 = vld [vmem:[%s246 + $0x70] sm:$0xc]
      %v5781 = vld [vmem:[%s246 + $0x74] sm:$0xf]
      %v5782 = vld [vmem:[%s246 + $0x78] sm:$0xf]
      %v5783 = vld [vmem:[%s246 + $0x7c] sm:$0xf]
      %v5784 = vld [vmem:[%s246 + $0x80] sm:$0xf]
      %v5785 = vld [vmem:[%s246 + $0x84] sm:$0xf]
      %v5786 = vld [vmem:[%s246 + $0x88] sm:$0xf]
      %v5787 = vld [vmem:[%s246 + $0x8c] sm:$0xf]
      %v5788 = vld [vmem:[%s246 + $0x90] sm:$0xf]
      %v5789 = vld [vmem:[%s246 + $0x94] sm:$0xf]
      %v5790 = vld [vmem:[%s246 + $0x98] sm:$0xf]
      %v5791 = vld [vmem:[%s246 + $0x9c] sm:$0xf]
      %v5792 = vld [vmem:[%s246 + $0xa0] sm:$0x3]
      %v5793 = vld [vmem:[%s1502] sm:$0xf]
      %v5794 = vld [vmem:[%s1502 + $0x4] sm:$0xf]
      %v5795 = vld [vmem:[%s1502 + $0x8] sm:$0xf]
      %v5796 = vld [vmem:[%s1502 + $0xc] sm:$0xf]
      %v5797 = vld [vmem:[%s1502 + $0x10] sm:$0xf]
      %v5798 = vld [vmem:[%s1502 + $0x14] sm:$0xf]
      %v5799 = vld [vmem:[%s1502 + $0x18] sm:$0xf]
      %v5800 = vld [vmem:[%s1502 + $0x1c] sm:$0xf]
      %v5801 = vld [vmem:[%s1502 + $0x20] sm:$0xf]
      %v5802 = vld [vmem:[%s1502 + $0x24] sm:$0xf]
      %v5803 = vld [vmem:[%s1502 + $0x28] sm:$0xf]
      %v5804 = vld [vmem:[%s1502 + $0x2c] sm:$0xf]
      %v5805 = vld [vmem:[%s1502 + $0x30] sm:$0xf]
      %v5806 = vld [vmem:[%s1502 + $0x34] sm:$0xf]
      %v5807 = vld [vmem:[%s1502 + $0x38] sm:$0xf]
      %v5808 = vld [vmem:[%s1502 + $0x3c] sm:$0xf]
      %v5822 = vunpack.c.l.b16 %v5780
      %v5823 = vunpack.c.l.b16 %v5781
      %v5824 = vunpack.c.l.b16 %v5782
      %v5825 = vunpack.c.l.b16 %v5783
      %v5826 = vunpack.c.l.b16 %v5784
      %v5827 = vunpack.c.l.b16 %v5785
      %v5828 = vunpack.c.l.b16 %v5786
      %v5829 = vunpack.c.l.b16 %v5787
      %v5830 = vunpack.c.l.b16 %v5788
      %v5831 = vunpack.c.l.b16 %v5789
      %v5832 = vunpack.c.l.b16 %v5790
      %v5833 = vunpack.c.l.b16 %v5791
      %v5834 = vunpack.c.l.b16 %v5792
      %v5835 = vpack.c.b16 %v5823, %v5822
      %v5836 = vpack.c.b16 %v5825, %v5824
      %v5837 = vpack.c.b16 %v5827, %v5826
      %v5838 = vpack.c.b16 %v5829, %v5828
      %v5839 = vpack.c.b16 %v5831, %v5830
      %v5840 = vpack.c.b16 %v5833, %v5832
      %v5841 = vpack.c.b16 %v5834, %v5834
      %v5842 = vrot.slane %v5835, 2
      %v5843 = vrot.slane %v5836, 2
      %v5844 = vsel %vm1328, %v5842, %v5843
      %v5845 = vrot.slane %v5837, 2
      %v5846 = vsel %vm1328, %v5843, %v5845
      %v5847 = vrot.slane %v5838, 2
      %v5848 = vsel %vm1328, %v5845, %v5847
      %v5849 = vrot.slane %v5839, 2
      %v5850 = vsel %vm1328, %v5847, %v5849
      %v5851 = vrot.slane %v5840, 2
      %v5852 = vsel %vm1328, %v5849, %v5851
      %v5853 = vrot.slane %v5841, 2
      %v5854 = vsel %vm1328, %v5851, %v5853
      %v5877 = vunpack.c.l.b16 %v5793
      %v5878 = vunpack.c.l.b16 %v5794
      %v5879 = vunpack.c.l.b16 %v5795
      %v5880 = vunpack.c.l.b16 %v5796
      %v5881 = vunpack.c.l.b16 %v5797
      %v5882 = vunpack.c.l.b16 %v5798
      %v5883 = vunpack.c.l.b16 %v5799
      %v5884 = vunpack.c.l.b16 %v5800
      %v5885 = vunpack.c.l.b16 %v5801
      %v5886 = vunpack.c.l.b16 %v5802
      %v5887 = vunpack.c.l.b16 %v5803
      %v5888 = vunpack.c.l.b16 %v5804
      %v5889 = vunpack.c.l.b16 %v5805
      %v5890 = vunpack.c.l.b16 %v5806
      %v5891 = vunpack.c.l.b16 %v5807
      %v5892 = vunpack.c.l.b16 %v5808
      %v5893 = vpack.c.b16 %v5878, %v5877
      %v5894 = vpack.c.b16 %v5880, %v5879
      %v5895 = vpack.c.b16 %v5882, %v5881
      %v5896 = vpack.c.b16 %v5884, %v5883
      %v5897 = vpack.c.b16 %v5886, %v5885
      %v5898 = vpack.c.b16 %v5888, %v5887
      %v5899 = vpack.c.b16 %v5890, %v5889
      %v5900 = vpack.c.b16 %v5892, %v5891
      %5909 = vmatprep.subr.bf16.mxu0 0
      %5910 = vmatpush1.bf16.msra.mxu0 %v5893
      %5911 = vmatprep.subr.bf16.mxu0 0
      %5912 = vmatpush1.bf16.msra.mxu0 %v5894
      %5913 = vmatprep.subr.bf16.mxu0 0
      %5914 = vmatpush1.bf16.msra.mxu0 %v5895
      %5915 = vmatprep.subr.bf16.mxu0 0
      %5916 = vmatpush1.bf16.msra.mxu0 %v5896
      %5917 = vmatprep.subr.bf16.mxu0 0
      %5918 = vmatpush1.bf16.msra.mxu0 %v5897
      %5919 = vmatprep.subr.bf16.mxu0 0
      %5920 = vmatpush1.bf16.msra.mxu0 %v5898
      %5921 = vmatprep.subr.bf16.mxu0 0
      %5922 = vmatpush1.bf16.msra.mxu0 %v5899
      %5923 = vmatprep.subr.bf16.mxu0 0
      %5924 = vmatpush1.bf16.msra.mxu0 %v5900
      %5925 = vmatprep.subr.bf16.mxu0 0
      %5926 = vmatpush1.bf16.msra.mxu0 0
      %5927 = vmatprep.subr.bf16.mxu0 0
      %5928 = vmatpush1.bf16.msra.mxu0 0
      %5929 = vmatprep.subr.bf16.mxu0 0
      %5930 = vmatpush1.bf16.msra.mxu0 0
      %5931 = vmatprep.subr.bf16.mxu0 0
      %5932 = vmatpush1.bf16.msra.mxu0 0
      %5933 = vmatprep.subr.bf16.mxu0 0
      %5934 = vmatpush1.bf16.msra.mxu0 0
      %5935 = vmatprep.subr.bf16.mxu0 0
      %5936 = vmatpush1.bf16.msra.mxu0 0
      %5937 = vmatprep.subr.bf16.mxu0 0
      %5938 = vmatpush1.bf16.msra.mxu0 0
      %5939 = vmatprep.subr.bf16.mxu0 0
      %5940 = vmatpush1.bf16.msra.mxu0 0
      %5941 = vmatprep.mubr.bf16.mxu0 0
      %5942 = vmatmul.mubr.bf16.gmra.mrb[0].mxu0 %v5844
      %v5943 = vpop.f32.mrb[0].mxu0
      %v5944 = vadd.f32 0.0, %v5943
      %v5945 = vpop.f32.mrb[0].mxu0
      %v5946 = vpop.f32.mrb[0].mxu0
      %v5947 = vadd.f32 0.0, %v5946
      %v5948 = vpop.f32.mrb[0].mxu0
      %5949 = vmatprep.mubr.bf16.mxu0 0
      %5950 = vmatmul.mubr.bf16.gmra.mrb[0].mxu0 %v5846
      %v5951 = vpop.f32.mrb[0].mxu0
      %v5952 = vadd.f32 0.0, %v5951
      %v5953 = vpop.f32.mrb[0].mxu0
      %v5954 = vpop.f32.mrb[0].mxu0
      %v5955 = vadd.f32 0.0, %v5954
      %v5956 = vpop.f32.mrb[0].mxu0
      %5957 = vmatprep.mubr.bf16.mxu0 0
      %5958 = vmatmul.mubr.bf16.gmra.mrb[0].mxu0 %v5848
      %v5959 = vpop.f32.mrb[0].mxu0
      %v5960 = vadd.f32 0.0, %v5959
      %v5961 = vpop.f32.mrb[0].mxu0
      %v5962 = vpop.f32.mrb[0].mxu0
      %v5963 = vadd.f32 0.0, %v5962
      %v5964 = vpop.f32.mrb[0].mxu0
      %5965 = vmatprep.mubr.bf16.mxu0 0
      %5966 = vmatmul.mubr.bf16.gmra.mrb[0].mxu0 %v5850
      %v5967 = vpop.f32.mrb[0].mxu0
      %v5968 = vadd.f32 0.0, %v5967
      %v5969 = vpop.f32.mrb[0].mxu0
      %v5970 = vpop.f32.mrb[0].mxu0
      %v5971 = vadd.f32 0.0, %v5970
      %v5972 = vpop.f32.mrb[0].mxu0
      %5973 = vmatprep.mubr.bf16.mxu0 0
      %5974 = vmatmul.mubr.bf16.gmra.mrb[0].mxu0 %v5852
      %v5975 = vpop.f32.mrb[0].mxu0
      %v5976 = vadd.f32 0.0, %v5975
      %v5977 = vpop.f32.mrb[0].mxu0
      %v5978 = vpop.f32.mrb[0].mxu0
      %v5979 = vadd.f32 0.0, %v5978
      %v5980 = vpop.f32.mrb[0].mxu0
      %5981 = vmatprep.mubr.bf16.mxu0 0
      %5982 = vmatmul.mubr.bf16.gmra.mrb[0].mxu0 %v5854
      %v5983 = vpop.f32.mrb[0].mxu0
      %v5984 = vadd.f32 0.0, %v5983
      %v5985 = vpop.f32.mrb[0].mxu0
      %v5986 = vpop.f32.mrb[0].mxu0
      %v5987 = vadd.f32 0.0, %v5986
      %v5988 = vpop.f32.mrb[0].mxu0
      %5989 = vdwg.mxu0
      %v5990 = vadd.f32 %v5768, %v5944
      %v5991 = vadd.f32 %v5769, %v5947
      %v5992 = vadd.f32 %v5770, %v5952
      %v5993 = vadd.f32 %v5771, %v5955
      %v5994 = vadd.f32 %v5772, %v5960
      %v5995 = vadd.f32 %v5773, %v5963
      %v5996 = vadd.f32 %v5774, %v5968
      %v5997 = vadd.f32 %v5775, %v5971
      %v5998 = vadd.f32 %v5776, %v5976
      %v5999 = vadd.f32 %v5777, %v5979
      %v6000 = vadd.f32 %v5778, %v5984
      %v6001 = vadd.f32 %v5779, %v5987
      %v6002 = vld [vmem:[%s246 + $0xa0] sm:$0x7]
      %v6003 = vld [vmem:[%s1713] sm:$0xf]
      %v6004 = vld [vmem:[%s1713 + $0x4] sm:$0xf]
      %v6005 = vld [vmem:[%s1713 + $0x8] sm:$0xf]
      %v6006 = vld [vmem:[%s1713 + $0xc] sm:$0xf]
      %v6007 = vld [vmem:[%s1713 + $0x10] sm:$0xf]
      %v6008 = vld [vmem:[%s1713 + $0x14] sm:$0xf]
      %v6009 = vld [vmem:[%s1713 + $0x18] sm:$0xf]
      %v6010 = vld [vmem:[%s1713 + $0x1c] sm:$0xf]
      %v6011 = vld [vmem:[%s1713 + $0x20] sm:$0xf]
      %v6012 = vld [vmem:[%s1713 + $0x24] sm:$0xf]
      %v6013 = vld [vmem:[%s1713 + $0x28] sm:$0xf]
      %v6014 = vld [vmem:[%s1713 + $0x2c] sm:$0xf]
      %v6015 = vld [vmem:[%s1713 + $0x30] sm:$0xf]
      %v6016 = vld [vmem:[%s1713 + $0x34] sm:$0xf]
      %v6017 = vld [vmem:[%s1713 + $0x38] sm:$0xf]
      %v6018 = vld [vmem:[%s1713 + $0x3c] sm:$0xf]
      %v6020 = vunpack.c.l.b16 %v6002
      %v6021 = vpack.c.b16 %v6020, %v6020
      %v6023 = vshrl.u32 %v5835, 16
      %v6025 = vrot.slane %v6023, 2
      %v6026 = vshll.u32 %v5835, 16
      %v6028 = vrot.slane %v6026, 3
      %v6029 = vor.u32 %v6025, %v6028
      %v6031 = vshrl.u32 %v5836, 16
      %v6033 = vrot.slane %v6031, 2
      %v6034 = vshll.u32 %v5836, 16
      %v6036 = vrot.slane %v6034, 3
      %v6037 = vor.u32 %v6033, %v6036
      %v6038 = vsel %vm1733, %v6029, %v6037
      %v6040 = vshrl.u32 %v5837, 16
      %v6042 = vrot.slane %v6040, 2
      %v6043 = vshll.u32 %v5837, 16
      %v6045 = vrot.slane %v6043, 3
      %v6046 = vor.u32 %v6042, %v6045
      %v6047 = vsel %vm1733, %v6037, %v6046
      %v6049 = vshrl.u32 %v5838, 16
      %v6051 = vrot.slane %v6049, 2
      %v6052 = vshll.u32 %v5838, 16
      %v6054 = vrot.slane %v6052, 3
      %v6055 = vor.u32 %v6051, %v6054
      %v6056 = vsel %vm1733, %v6046, %v6055
      %v6058 = vshrl.u32 %v5839, 16
      %v6060 = vrot.slane %v6058, 2
      %v6061 = vshll.u32 %v5839, 16
      %v6063 = vrot.slane %v6061, 3
      %v6064 = vor.u32 %v6060, %v6063
      %v6065 = vsel %vm1733, %v6055, %v6064
      %v6067 = vshrl.u32 %v5840, 16
      %v6069 = vrot.slane %v6067, 2
      %v6070 = vshll.u32 %v5840, 16
      %v6072 = vrot.slane %v6070, 3
      %v6073 = vor.u32 %v6069, %v6072
      %v6074 = vsel %vm1733, %v6064, %v6073
      %v6076 = vshrl.u32 %v6021, 16
      %v6078 = vrot.slane %v6076, 2
      %v6079 = vshll.u32 %v6021, 16
      %v6081 = vrot.slane %v6079, 3
      %v6082 = vor.u32 %v6078, %v6081
      %v6083 = vsel %vm1733, %v6073, %v6082
      %v6106 = vunpack.c.l.b16 %v6003
      %v6107 = vunpack.c.l.b16 %v6004
      %v6108 = vunpack.c.l.b16 %v6005
      %v6109 = vunpack.c.l.b16 %v6006
      %v6110 = vunpack.c.l.b16 %v6007
      %v6111 = vunpack.c.l.b16 %v6008
      %v6112 = vunpack.c.l.b16 %v6009
      %v6113 = vunpack.c.l.b16 %v6010
      %v6114 = vunpack.c.l.b16 %v6011
      %v6115 = vunpack.c.l.b16 %v6012
      %v6116 = vunpack.c.l.b16 %v6013
      %v6117 = vunpack.c.l.b16 %v6014
      %v6118 = vunpack.c.l.b16 %v6015
      %v6119 = vunpack.c.l.b16 %v6016
      %v6120 = vunpack.c.l.b16 %v6017
      %v6121 = vunpack.c.l.b16 %v6018
      %v6122 = vpack.c.b16 %v6107, %v6106
      %v6123 = vpack.c.b16 %v6109, %v6108
      %v6124 = vpack.c.b16 %v6111, %v6110
      %v6125 = vpack.c.b16 %v6113, %v6112
      %v6126 = vpack.c.b16 %v6115, %v6114
      %v6127 = vpack.c.b16 %v6117, %v6116
      %v6128 = vpack.c.b16 %v6119, %v6118
      %v6129 = vpack.c.b16 %v6121, %v6120
      %6138 = vmatprep.subr.bf16.mxu0 0
      %6139 = vmatpush1.bf16.msra.mxu0 %v6122
      %6140 = vmatprep.subr.bf16.mxu0 0
      %6141 = vmatpush1.bf16.msra.mxu0 %v6123
      %6142 = vmatprep.subr.bf16.mxu0 0
      %6143 = vmatpush1.bf16.msra.mxu0 %v6124
      %6144 = vmatprep.subr.bf16.mxu0 0
      %6145 = vmatpush1.bf16.msra.mxu0 %v6125
      %6146 = vmatprep.subr.bf16.mxu0 0
      %6147 = vmatpush1.bf16.msra.mxu0 %v6126
      %6148 = vmatprep.subr.bf16.mxu0 0
      %6149 = vmatpush1.bf16.msra.mxu0 %v6127
      %6150 = vmatprep.subr.bf16.mxu0 0
      %6151 = vmatpush1.bf16.msra.mxu0 %v6128
      %6152 = vmatprep.subr.bf16.mxu0 0
      %6153 = vmatpush1.bf16.msra.mxu0 %v6129
      %6154 = vmatprep.subr.bf16.mxu0 0
      %6155 = vmatpush1.bf16.msra.mxu0 0
      %6156 = vmatprep.subr.bf16.mxu0 0
      %6157 = vmatpush1.bf16.msra.mxu0 0
      %6158 = vmatprep.subr.bf16.mxu0 0
      %6159 = vmatpush1.bf16.msra.mxu0 0
      %6160 = vmatprep.subr.bf16.mxu0 0
      %6161 = vmatpush1.bf16.msra.mxu0 0
      %6162 = vmatprep.subr.bf16.mxu0 0
      %6163 = vmatpush1.bf16.msra.mxu0 0
      %6164 = vmatprep.subr.bf16.mxu0 0
      %6165 = vmatpush1.bf16.msra.mxu0 0
      %6166 = vmatprep.subr.bf16.mxu0 0
      %6167 = vmatpush1.bf16.msra.mxu0 0
      %6168 = vmatprep.subr.bf16.mxu0 0
      %6169 = vmatpush1.bf16.msra.mxu0 0
      %6170 = vmatprep.mubr.bf16.mxu0 0
      %6171 = vmatmul.mubr.bf16.gmra.mrb[0].mxu0 %v6038
      %v6172 = vpop.f32.mrb[0].mxu0
      %v6173 = vadd.f32 0.0, %v6172
      %v6174 = vpop.f32.mrb[0].mxu0
      %v6175 = vpop.f32.mrb[0].mxu0
      %v6176 = vadd.f32 0.0, %v6175
      %v6177 = vpop.f32.mrb[0].mxu0
      %6178 = vmatprep.mubr.bf16.mxu0 0
      %6179 = vmatmul.mubr.bf16.gmra.mrb[0].mxu0 %v6047
      %v6180 = vpop.f32.mrb[0].mxu0
      %v6181 = vadd.f32 0.0, %v6180
      %v6182 = vpop.f32.mrb[0].mxu0
      %v6183 = vpop.f32.mrb[0].mxu0
      %v6184 = vadd.f32 0.0, %v6183
      %v6185 = vpop.f32.mrb[0].mxu0
      %6186 = vmatprep.mubr.bf16.mxu0 0
      %6187 = vmatmul.mubr.bf16.gmra.mrb[0].mxu0 %v6056
      %v6188 = vpop.f32.mrb[0].mxu0
      %v6189 = vadd.f32 0.0, %v6188
      %v6190 = vpop.f32.mrb[0].mxu0
      %v6191 = vpop.f32.mrb[0].mxu0
      %v6192 = vadd.f32 0.0, %v6191
      %v6193 = vpop.f32.mrb[0].mxu0
      %6194 = vmatprep.mubr.bf16.mxu0 0
      %6195 = vmatmul.mubr.bf16.gmra.mrb[0].mxu0 %v6065
      %v6196 = vpop.f32.mrb[0].mxu0
      %v6197 = vadd.f32 0.0, %v6196
      %v6198 = vpop.f32.mrb[0].mxu0
      %v6199 = vpop.f32.mrb[0].mxu0
      %v6200 = vadd.f32 0.0, %v6199
      %v6201 = vpop.f32.mrb[0].mxu0
      %6202 = vmatprep.mubr.bf16.mxu0 0
      %6203 = vmatmul.mubr.bf16.gmra.mrb[0].mxu0 %v6074
      %v6204 = vpop.f32.mrb[0].mxu0
      %v6205 = vadd.f32 0.0, %v6204
      %v6206 = vpop.f32.mrb[0].mxu0
      %v6207 = vpop.f32.mrb[0].mxu0
      %v6208 = vadd.f32 0.0, %v6207
      %v6209 = vpop.f32.mrb[0].mxu0
      %6210 = vmatprep.mubr.bf16.mxu0 0
      %6211 = vmatmul.mubr.bf16.gmra.mrb[0].mxu0 %v6083
      %v6212 = vpop.f32.mrb[0].mxu0
      %v6213 = vadd.f32 0.0, %v6212
      %v6214 = vpop.f32.mrb[0].mxu0
      %v6215 = vpop.f32.mrb[0].mxu0
      %v6216 = vadd.f32 0.0, %v6215
      %v6217 = vpop.f32.mrb[0].mxu0
      %6218 = vdwg.mxu0
      %v6219 = vadd.f32 %v5990, %v6173
      %v6220 = vadd.f32 %v5991, %v6176
      %v6221 = vadd.f32 %v5992, %v6181
      %v6222 = vadd.f32 %v5993, %v6184
      %v6223 = vadd.f32 %v5994, %v6189
      %v6224 = vadd.f32 %v5995, %v6192
      %v6225 = vadd.f32 %v5996, %v6197
      %v6226 = vadd.f32 %v5997, %v6200
      %v6227 = vadd.f32 %v5998, %v6205
      %v6228 = vadd.f32 %v5999, %v6208
      %v6229 = vadd.f32 %v6000, %v6213
      %v6230 = vadd.f32 %v6001, %v6216
      %v6231 = vld [vmem:[%s246 + $0x70] sm:$0x8]
      %v6232 = vld [vmem:[%s1944] sm:$0xf]
      %v6233 = vld [vmem:[%s1944 + $0x4] sm:$0xf]
      %v6234 = vld [vmem:[%s1944 + $0x8] sm:$0xf]
      %v6235 = vld [vmem:[%s1944 + $0xc] sm:$0xf]
      %v6236 = vld [vmem:[%s1944 + $0x10] sm:$0xf]
      %v6237 = vld [vmem:[%s1944 + $0x14] sm:$0xf]
      %v6238 = vld [vmem:[%s1944 + $0x18] sm:$0xf]
      %v6239 = vld [vmem:[%s1944 + $0x1c] sm:$0xf]
      %v6240 = vld [vmem:[%s1944 + $0x20] sm:$0xf]
      %v6241 = vld [vmem:[%s1944 + $0x24] sm:$0xf]
      %v6242 = vld [vmem:[%s1944 + $0x28] sm:$0xf]
      %v6243 = vld [vmem:[%s1944 + $0x2c] sm:$0xf]
      %v6244 = vld [vmem:[%s1944 + $0x30] sm:$0xf]
      %v6245 = vld [vmem:[%s1944 + $0x34] sm:$0xf]
      %v6246 = vld [vmem:[%s1944 + $0x38] sm:$0xf]
      %v6247 = vld [vmem:[%s1944 + $0x3c] sm:$0xf]
      %v6249 = vunpack.c.l.b16 %v6231
      %v6250 = vpack.c.b16 %v5823, %v6249
      %v6251 = vrot.slane %v6250, 3
      %v6252 = vrot.slane %v5836, 3
      %v6253 = vsel %vm1964, %v6251, %v6252
      %v6254 = vrot.slane %v5837, 3
      %v6255 = vsel %vm1964, %v6252, %v6254
      %v6256 = vrot.slane %v5838, 3
      %v6257 = vsel %vm1964, %v6254, %v6256
      %v6258 = vrot.slane %v5839, 3
      %v6259 = vsel %vm1964, %v6256, %v6258
      %v6260 = vrot.slane %v5840, 3
      %v6261 = vsel %vm1964, %v6258, %v6260
      %v6262 = vrot.slane %v6021, 3
      %v6263 = vsel %vm1964, %v6260, %v6262
      %v6286 = vunpack.c.l.b16 %v6232
      %v6287 = vunpack.c.l.b16 %v6233
      %v6288 = vunpack.c.l.b16 %v6234
      %v6289 = vunpack.c.l.b16 %v6235
      %v6290 = vunpack.c.l.b16 %v6236
      %v6291 = vunpack.c.l.b16 %v6237
      %v6292 = vunpack.c.l.b16 %v6238
      %v6293 = vunpack.c.l.b16 %v6239
      %v6294 = vunpack.c.l.b16 %v6240
      %v6295 = vunpack.c.l.b16 %v6241
      %v6296 = vunpack.c.l.b16 %v6242
      %v6297 = vunpack.c.l.b16 %v6243
      %v6298 = vunpack.c.l.b16 %v6244
      %v6299 = vunpack.c.l.b16 %v6245
      %v6300 = vunpack.c.l.b16 %v6246
      %v6301 = vunpack.c.l.b16 %v6247
      %v6302 = vpack.c.b16 %v6287, %v6286
      %v6303 = vpack.c.b16 %v6289, %v6288
      %v6304 = vpack.c.b16 %v6291, %v6290
      %v6305 = vpack.c.b16 %v6293, %v6292
      %v6306 = vpack.c.b16 %v6295, %v6294
      %v6307 = vpack.c.b16 %v6297, %v6296
      %v6308 = vpack.c.b16 %v6299, %v6298
      %v6309 = vpack.c.b16 %v6301, %v6300
      %6318 = vmatprep.subr.bf16.mxu0 0
      %6319 = vmatpush1.bf16.msra.mxu0 %v6302
      %6320 = vmatprep.subr.bf16.mxu0 0
      %6321 = vmatpush1.bf16.msra.mxu0 %v6303
      %6322 = vmatprep.subr.bf16.mxu0 0
      %6323 = vmatpush1.bf16.msra.mxu0 %v6304
      %6324 = vmatprep.subr.bf16.mxu0 0
      %6325 = vmatpush1.bf16.msra.mxu0 %v6305
      %6326 = vmatprep.subr.bf16.mxu0 0
      %6327 = vmatpush1.bf16.msra.mxu0 %v6306
      %6328 = vmatprep.subr.bf16.mxu0 0
      %6329 = vmatpush1.bf16.msra.mxu0 %v6307
      %6330 = vmatprep.subr.bf16.mxu0 0
      %6331 = vmatpush1.bf16.msra.mxu0 %v6308
      %6332 = vmatprep.subr.bf16.mxu0 0
      %6333 = vmatpush1.bf16.msra.mxu0 %v6309
      %6334 = vmatprep.subr.bf16.mxu0 0
      %6335 = vmatpush1.bf16.msra.mxu0 0
      %6336 = vmatprep.subr.bf16.mxu0 0
      %6337 = vmatpush1.bf16.msra.mxu0 0
      %6338 = vmatprep.subr.bf16.mxu0 0
      %6339 = vmatpush1.bf16.msra.mxu0 0
      %6340 = vmatprep.subr.bf16.mxu0 0
      %6341 = vmatpush1.bf16.msra.mxu0 0
      %6342 = vmatprep.subr.bf16.mxu0 0
      %6343 = vmatpush1.bf16.msra.mxu0 0
      %6344 = vmatprep.subr.bf16.mxu0 0
      %6345 = vmatpush1.bf16.msra.mxu0 0
      %6346 = vmatprep.subr.bf16.mxu0 0
      %6347 = vmatpush1.bf16.msra.mxu0 0
      %6348 = vmatprep.subr.bf16.mxu0 0
      %6349 = vmatpush1.bf16.msra.mxu0 0
      %6350 = vmatprep.mubr.bf16.mxu0 0
      %6351 = vmatmul.mubr.bf16.gmra.mrb[0].mxu0 %v6253
      %v6352 = vpop.f32.mrb[0].mxu0
      %v6353 = vadd.f32 0.0, %v6352
      %v6354 = vpop.f32.mrb[0].mxu0
      %v6355 = vpop.f32.mrb[0].mxu0
      %v6356 = vadd.f32 0.0, %v6355
      %v6357 = vpop.f32.mrb[0].mxu0
      %6358 = vmatprep.mubr.bf16.mxu0 0
      %6359 = vmatmul.mubr.bf16.gmra.mrb[0].mxu0 %v6255
      %v6360 = vpop.f32.mrb[0].mxu0
      %v6361 = vadd.f32 0.0, %v6360
      %v6362 = vpop.f32.mrb[0].mxu0
      %v6363 = vpop.f32.mrb[0].mxu0
      %v6364 = vadd.f32 0.0, %v6363
      %v6365 = vpop.f32.mrb[0].mxu0
      %6366 = vmatprep.mubr.bf16.mxu0 0
      %6367 = vmatmul.mubr.bf16.gmra.mrb[0].mxu0 %v6257
      %v6368 = vpop.f32.mrb[0].mxu0
      %v6369 = vadd.f32 0.0, %v6368
      %v6370 = vpop.f32.mrb[0].mxu0
      %v6371 = vpop.f32.mrb[0].mxu0
      %v6372 = vadd.f32 0.0, %v6371
      %v6373 = vpop.f32.mrb[0].mxu0
      %6374 = vmatprep.mubr.bf16.mxu0 0
      %6375 = vmatmul.mubr.bf16.gmra.mrb[0].mxu0 %v6259
      %v6376 = vpop.f32.mrb[0].mxu0
      %v6377 = vadd.f32 0.0, %v6376
      %v6378 = vpop.f32.mrb[0].mxu0
      %v6379 = vpop.f32.mrb[0].mxu0
      %v6380 = vadd.f32 0.0, %v6379
      %v6381 = vpop.f32.mrb[0].mxu0
      %6382 = vmatprep.mubr.bf16.mxu0 0
      %6383 = vmatmul.mubr.bf16.gmra.mrb[0].mxu0 %v6261
      %v6384 = vpop.f32.mrb[0].mxu0
      %v6385 = vadd.f32 0.0, %v6384
      %v6386 = vpop.f32.mrb[0].mxu0
      %v6387 = vpop.f32.mrb[0].mxu0
      %v6388 = vadd.f32 0.0, %v6387
      %v6389 = vpop.f32.mrb[0].mxu0
      %6390 = vmatprep.mubr.bf16.mxu0 0
      %6391 = vmatmul.mubr.bf16.gmra.mrb[0].mxu0 %v6263
      %v6392 = vpop.f32.mrb[0].mxu0
      %v6393 = vadd.f32 0.0, %v6392
      %v6394 = vpop.f32.mrb[0].mxu0
      %v6395 = vpop.f32.mrb[0].mxu0
      %v6396 = vadd.f32 0.0, %v6395
      %v6397 = vpop.f32.mrb[0].mxu0
      %6398 = vdwg.mxu0
      %v6399 = vadd.f32 %v6219, %v6353
      %v6400 = vadd.f32 %v6220, %v6356
      %v6401 = vadd.f32 %v6221, %v6361
      %v6402 = vadd.f32 %v6222, %v6364
      %v6403 = vadd.f32 %v6223, %v6369
      %v6404 = vadd.f32 %v6224, %v6372
      %v6405 = vadd.f32 %v6225, %v6377
      %v6406 = vadd.f32 %v6226, %v6380
      %v6407 = vadd.f32 %v6227, %v6385
      %v6408 = vadd.f32 %v6228, %v6388
      %v6409 = vadd.f32 %v6229, %v6393
      %v6410 = vadd.f32 %v6230, %v6396
      %v6411 = vld [vmem:[%s4] sm:$0x1]
      %v6413 = vlaneseq
      %v6414 = vshrl.u32 %v6413, 7
      %v6415 = vsub.s32 0, %v6414
      %v6416 = vrot.slane %v6411, %v6415
      %v6418 = vadd.f32 %v6399, %v6416
      %v6419 = vadd.f32 %v6400, %v6416
      %v6420 = vadd.f32 %v6401, %v6416
      %v6421 = vadd.f32 %v6402, %v6416
      %v6422 = vadd.f32 %v6403, %v6416
      %v6423 = vadd.f32 %v6404, %v6416
      %v6424 = vadd.f32 %v6405, %v6416
      %v6425 = vadd.f32 %v6406, %v6416
      %v6426 = vadd.f32 %v6407, %v6416
      %v6427 = vadd.f32 %v6408, %v6416
      %v6428 = vadd.f32 %v6409, %v6416
      %v6429 = vadd.f32 %v6410, %v6416
      %v6430 = vmax.f32 %v6418, 0.0
      %v6431 = vmax.f32 %v6419, 0.0
      %v6432 = vmax.f32 %v6420, 0.0
      %v6433 = vmax.f32 %v6421, 0.0
      %v6434 = vmax.f32 %v6422, 0.0
      %v6435 = vmax.f32 %v6423, 0.0
      %v6436 = vmax.f32 %v6424, 0.0
      %v6437 = vmax.f32 %v6425, 0.0
      %v6438 = vmax.f32 %v6426, 0.0
      %v6439 = vmax.f32 %v6427, 0.0
      %v6440 = vmax.f32 %v6428, 0.0
      %v6441 = vmax.f32 %v6429, 0.0
      %v6442 = vld [vmem:[%s1 + $0xc0] sm:$0xff]
      %v6443 = vld [vmem:[%s1 + $0xc8] sm:$0xff]
      %v6444 = vld [vmem:[%s1 + $0xd0] sm:$0xff]
      %v6445 = vld [vmem:[%s1 + $0xd8] sm:$0xff]
      %v6446 = vld [vmem:[%s1 + $0xe0] sm:$0xff]
      %v6447 = vld [vmem:[%s1 + $0xe8] sm:$0xff]
      %v6448 = vld [vmem:[%s1 + $0xf0] sm:$0xff]
      %v6449 = vld [vmem:[%s1 + $0xf8] sm:$0xff]
      %v6450 = vld [vmem:[%s1 + $0x100] sm:$0xff]
      %v6451 = vld [vmem:[%s1 + $0x108] sm:$0xff]
      %v6452 = vld [vmem:[%s1 + $0x110] sm:$0xff]
      %v6453 = vld [vmem:[%s1 + $0x118] sm:$0xff]
      %6455 = vset.pattern.permute.xlu0 0
      %6456 = vperm.xlu0 %6455, %v6442
      %v6457 = vpop.permute.xlu0 %6456
      %6460 = vset.pattern.permute.xlu0 0
      %6461 = vperm.xlu0 %6460, %v6443
      %v6462 = vpop.permute.xlu0 %6461
      %6465 = vset.pattern.permute.xlu0 0
      %6466 = vperm.xlu0 %6465, %v6444
      %v6467 = vpop.permute.xlu0 %6466
      %6470 = vset.pattern.permute.xlu0 0
      %6471 = vperm.xlu0 %6470, %v6445
      %v6472 = vpop.permute.xlu0 %6471
      %6475 = vset.pattern.permute.xlu0 0
      %6476 = vperm.xlu0 %6475, %v6446
      %v6477 = vpop.permute.xlu0 %6476
      %6480 = vset.pattern.permute.xlu0 0
      %6481 = vperm.xlu0 %6480, %v6447
      %v6482 = vpop.permute.xlu0 %6481
      %6485 = vset.pattern.permute.xlu0 0
      %6486 = vperm.xlu0 %6485, %v6448
      %v6487 = vpop.permute.xlu0 %6486
      %6490 = vset.pattern.permute.xlu0 0
      %6491 = vperm.xlu0 %6490, %v6449
      %v6492 = vpop.permute.xlu0 %6491
      %6495 = vset.pattern.permute.xlu0 0
      %6496 = vperm.xlu0 %6495, %v6450
      %v6497 = vpop.permute.xlu0 %6496
      %6500 = vset.pattern.permute.xlu0 0
      %6501 = vperm.xlu0 %6500, %v6451
      %v6502 = vpop.permute.xlu0 %6501
      %6505 = vset.pattern.permute.xlu0 0
      %6506 = vperm.xlu0 %6505, %v6452
      %v6507 = vpop.permute.xlu0 %6506
      %6510 = vset.pattern.permute.xlu0 0
      %6511 = vperm.xlu0 %6510, %v6453
      %v6512 = vpop.permute.xlu0 %6511
      %v6514 = vmul.f32 %v6430, %v6457
      %v6515 = vmul.f32 %v6431, %v6462
      %v6516 = vmul.f32 %v6432, %v6467
      %v6517 = vmul.f32 %v6433, %v6472
      %v6518 = vmul.f32 %v6434, %v6477
      %v6519 = vmul.f32 %v6435, %v6482
      %v6520 = vmul.f32 %v6436, %v6487
      %v6521 = vmul.f32 %v6437, %v6492
      %v6522 = vmul.f32 %v6438, %v6497
      %v6523 = vmul.f32 %v6439, %v6502
      %v6524 = vmul.f32 %v6440, %v6507
      %v6525 = vmul.f32 %v6441, %v6512
      %v6526 = vpack.c.bf16 %v6515, %v6514
      %v6527 = vpack.c.bf16 %v6517, %v6516
      %v6528 = vpack.c.bf16 %v6519, %v6518
      %v6529 = vpack.c.bf16 %v6521, %v6520
      %v6530 = vpack.c.bf16 %v6523, %v6522
      %v6531 = vpack.c.bf16 %v6525, %v6524
      %v6538 = vunpack.c.l.b16 %v6526
      %v6539 = vunpack.c.h.b16 %v6526
      %v6540 = vunpack.c.l.b16 %v6527
      %v6541 = vunpack.c.h.b16 %v6527
      %v6542 = vunpack.c.l.b16 %v6528
      %v6543 = vunpack.c.h.b16 %v6528
      %v6544 = vunpack.c.l.b16 %v6529
      %v6545 = vunpack.c.h.b16 %v6529
      %v6546 = vunpack.c.l.b16 %v6530
      %v6547 = vunpack.c.h.b16 %v6530
      %v6548 = vunpack.c.l.b16 %v6531
      %v6549 = vunpack.c.h.b16 %v6531
      %v6550 = vpack.c.b16 %v6538, %v6538
      %v6551 = vpack.c.b16 %v6539, %v6539
      %v6552 = vpack.c.b16 %v6540, %v6540
      %v6553 = vpack.c.b16 %v6541, %v6541
      %v6554 = vpack.c.b16 %v6542, %v6542
      %v6555 = vpack.c.b16 %v6543, %v6543
      %v6556 = vpack.c.b16 %v6544, %v6544
      %v6557 = vpack.c.b16 %v6545, %v6545
      %v6558 = vpack.c.b16 %v6546, %v6546
      %v6559 = vpack.c.b16 %v6547, %v6547
      %v6560 = vpack.c.b16 %v6548, %v6548
      %v6561 = vpack.c.b16 %v6549, %v6549
      %v6563 = vshrl.u32 %v6550, 16
      %v6565 = vrot.slane %v6563, 6
      %v6566 = vshll.u32 %v6550, 16
      %v6568 = vrot.slane %v6566, 7
      %v6569 = vor.u32 %v6565, %v6568
      %v6570 = vrot.slane %v6569, 4
      %v6572 = vshrl.u32 %v6551, 16
      %v6574 = vrot.slane %v6572, 6
      %v6575 = vshll.u32 %v6551, 16
      %v6577 = vrot.slane %v6575, 7
      %v6578 = vor.u32 %v6574, %v6577
      %v6579 = vsel %vm2277, %v6570, %v6578
      %v6580 = vrot.slane %v6578, 4
      %v6582 = vshrl.u32 %v6552, 16
      %v6584 = vrot.slane %v6582, 6
      %v6585 = vshll.u32 %v6552, 16
      %v6587 = vrot.slane %v6585, 7
      %v6588 = vor.u32 %v6584, %v6587
      %v6589 = vsel %vm2277, %v6580, %v6588
      %v6590 = vrot.slane %v6588, 4
      %v6592 = vshrl.u32 %v6553, 16
      %v6594 = vrot.slane %v6592, 6
      %v6595 = vshll.u32 %v6553, 16
      %v6597 = vrot.slane %v6595, 7
      %v6598 = vor.u32 %v6594, %v6597
      %v6599 = vsel %vm2277, %v6590, %v6598
      %v6600 = vrot.slane %v6598, 4
      %v6602 = vshrl.u32 %v6554, 16
      %v6604 = vrot.slane %v6602, 6
      %v6605 = vshll.u32 %v6554, 16
      %v6607 = vrot.slane %v6605, 7
      %v6608 = vor.u32 %v6604, %v6607
      %v6609 = vsel %vm2277, %v6600, %v6608
      %v6610 = vrot.slane %v6608, 4
      %v6612 = vshrl.u32 %v6555, 16
      %v6614 = vrot.slane %v6612, 6
      %v6615 = vshll.u32 %v6555, 16
      %v6617 = vrot.slane %v6615, 7
      %v6618 = vor.u32 %v6614, %v6617
      %v6619 = vsel %vm2277, %v6610, %v6618
      %v6620 = vrot.slane %v6618, 4
      %v6622 = vshrl.u32 %v6556, 16
      %v6624 = vrot.slane %v6622, 6
      %v6625 = vshll.u32 %v6556, 16
      %v6627 = vrot.slane %v6625, 7
      %v6628 = vor.u32 %v6624, %v6627
      %v6629 = vsel %vm2277, %v6620, %v6628
      %v6630 = vrot.slane %v6628, 4
      %v6632 = vshrl.u32 %v6557, 16
      %v6634 = vrot.slane %v6632, 6
      %v6635 = vshll.u32 %v6557, 16
      %v6637 = vrot.slane %v6635, 7
      %v6638 = vor.u32 %v6634, %v6637
      %v6639 = vsel %vm2277, %v6630, %v6638
      %v6640 = vrot.slane %v6638, 4
      %v6642 = vshrl.u32 %v6558, 16
      %v6644 = vrot.slane %v6642, 6
      %v6645 = vshll.u32 %v6558, 16
      %v6647 = vrot.slane %v6645, 7
      %v6648 = vor.u32 %v6644, %v6647
      %v6649 = vsel %vm2277, %v6640, %v6648
      %v6650 = vrot.slane %v6648, 4
      %v6652 = vshrl.u32 %v6559, 16
      %v6654 = vrot.slane %v6652, 6
      %v6655 = vshll.u32 %v6559, 16
      %v6657 = vrot.slane %v6655, 7
      %v6658 = vor.u32 %v6654, %v6657
      %v6659 = vsel %vm2277, %v6650, %v6658
      %v6660 = vrot.slane %v6658, 4
      %v6662 = vshrl.u32 %v6560, 16
      %v6664 = vrot.slane %v6662, 6
      %v6665 = vshll.u32 %v6560, 16
      %v6667 = vrot.slane %v6665, 7
      %v6668 = vor.u32 %v6664, %v6667
      %v6669 = vsel %vm2277, %v6660, %v6668
      %v6670 = vrot.slane %v6668, 4
      %v6672 = vshrl.u32 %v6561, 16
      %v6674 = vrot.slane %v6672, 6
      %v6675 = vshll.u32 %v6561, 16
      %v6677 = vrot.slane %v6675, 7
      %v6678 = vor.u32 %v6674, %v6677
      %v6679 = vsel %vm2277, %v6670, %v6678
      %v6680 = vrot.slane %v6678, 4
      %v6694 = vld [vmem:[#allocation2 + $0x68] sm:$0xe]
      %v6695 = vsel %vm263, %v6569, %v6694
      %6696 = vst [vmem:[#allocation2 + $0x68] sm:$0xe] %v6695
      %6697 = vst [vmem:[#allocation2 + $0x6c] sm:$0xf] %v6579
      %6698 = vst [vmem:[#allocation2 + $0x70] sm:$0xf] %v6589
      %6699 = vst [vmem:[#allocation2 + $0x74] sm:$0xf] %v6599
      %6700 = vst [vmem:[#allocation2 + $0x78] sm:$0xf] %v6609
      %6701 = vst [vmem:[#allocation2 + $0x7c] sm:$0xf] %v6619
      %6702 = vst [vmem:[#allocation2 + $0x80] sm:$0xf] %v6629
      %6703 = vst [vmem:[#allocation2 + $0x84] sm:$0xf] %v6639
      %6704 = vst [vmem:[#allocation2 + $0x88] sm:$0xf] %v6649
      %6705 = vst [vmem:[#allocation2 + $0x8c] sm:$0xf] %v6659
      %6706 = vst [vmem:[#allocation2 + $0x90] sm:$0xf] %v6669
      %6707 = vst [vmem:[#allocation2 + $0x94] sm:$0xf] %v6679
      %v6708 = vld [vmem:[#allocation2 + $0x98] sm:$0x3]
      %v6709 = vsel %vm257, %v6680, %v6708
      %6710 = vst [vmem:[#allocation2 + $0x98] sm:$0x3] %v6709
      %v6711 = vld [vmem:[#allocation2] sm:$0xf]
      %v6712 = vld [vmem:[#allocation2 + $0x4] sm:$0xf]
      %v6713 = vld [vmem:[#allocation2 + $0x8] sm:$0xf]
      %v6714 = vld [vmem:[#allocation2 + $0xc] sm:$0xf]
      %v6715 = vld [vmem:[#allocation2 + $0x10] sm:$0xf]
      %v6716 = vld [vmem:[#allocation2 + $0x14] sm:$0xf]
      %v6717 = vld [vmem:[#allocation2 + $0x18] sm:$0xf]
      %v6718 = vld [vmem:[#allocation2 + $0x1c] sm:$0xf]
      %v6719 = vld [vmem:[#allocation2 + $0x20] sm:$0xf]
      %v6720 = vld [vmem:[#allocation2 + $0x24] sm:$0xf]
      %v6721 = vld [vmem:[#allocation2 + $0x28] sm:$0xf]
      %v6722 = vld [vmem:[#allocation2 + $0x2c] sm:$0xf]
      %v6723 = vld [vmem:[%s3] sm:$0xf]
      %v6724 = vld [vmem:[%s3 + $0x4] sm:$0xf]
      %v6725 = vld [vmem:[%s3 + $0x8] sm:$0xf]
      %v6726 = vld [vmem:[%s3 + $0xc] sm:$0xf]
      %v6727 = vld [vmem:[%s3 + $0x10] sm:$0xf]
      %v6728 = vld [vmem:[%s3 + $0x14] sm:$0xf]
      %v6729 = vld [vmem:[%s3 + $0x18] sm:$0xf]
      %v6730 = vld [vmem:[%s3 + $0x1c] sm:$0xf]
      %v6731 = vld [vmem:[%s3 + $0x20] sm:$0xf]
      %v6732 = vld [vmem:[%s3 + $0x24] sm:$0xf]
      %v6733 = vld [vmem:[%s3 + $0x28] sm:$0xf]
      %v6734 = vld [vmem:[%s3 + $0x2c] sm:$0xf]
      %v6735 = vld [vmem:[%s3 + $0x30] sm:$0xf]
      %v6736 = vld [vmem:[%s3 + $0x34] sm:$0xf]
      %v6737 = vld [vmem:[%s3 + $0x38] sm:$0xf]
      %v6738 = vld [vmem:[%s3 + $0x3c] sm:$0xf]
      %v6739 = vld [vmem:[#allocation2 + $0x30] sm:$0x1]
      %s6740 = scalar_lea.vmem %s3, 64
      %v6741 = vld [vmem:[%s6740] sm:$0xf]
      %v6742 = vld [vmem:[%s6740 + $0x4] sm:$0xf]
      %v6743 = vld [vmem:[%s6740 + $0x8] sm:$0xf]
      %v6744 = vld [vmem:[%s6740 + $0xc] sm:$0xf]
      %v6745 = vld [vmem:[%s6740 + $0x10] sm:$0xf]
      %v6746 = vld [vmem:[%s6740 + $0x14] sm:$0xf]
      %v6747 = vld [vmem:[%s6740 + $0x18] sm:$0xf]
      %v6748 = vld [vmem:[%s6740 + $0x1c] sm:$0xf]
      %v6749 = vld [vmem:[%s6740 + $0x20] sm:$0xf]
      %v6750 = vld [vmem:[%s6740 + $0x24] sm:$0xf]
      %v6751 = vld [vmem:[%s6740 + $0x28] sm:$0xf]
      %v6752 = vld [vmem:[%s6740 + $0x2c] sm:$0xf]
      %v6753 = vld [vmem:[%s6740 + $0x30] sm:$0xf]
      %v6754 = vld [vmem:[%s6740 + $0x34] sm:$0xf]
      %v6755 = vld [vmem:[%s6740 + $0x38] sm:$0xf]
      %v6756 = vld [vmem:[%s6740 + $0x3c] sm:$0xf]
      %v6770 = vunpack.c.l.b16 %v6711
      %v6771 = vunpack.c.l.b16 %v6712
      %v6772 = vunpack.c.l.b16 %v6713
      %v6773 = vunpack.c.l.b16 %v6714
      %v6774 = vunpack.c.l.b16 %v6715
      %v6775 = vunpack.c.l.b16 %v6716
      %v6776 = vunpack.c.l.b16 %v6717
      %v6777 = vunpack.c.l.b16 %v6718
      %v6778 = vunpack.c.l.b16 %v6719
      %v6779 = vunpack.c.l.b16 %v6720
      %v6780 = vunpack.c.l.b16 %v6721
      %v6781 = vunpack.c.l.b16 %v6722
      %v6782 = vunpack.c.l.b16 %v6739
      %v6783 = vpack.c.b16 %v6771, %v6770
      %v6784 = vpack.c.b16 %v6773, %v6772
      %v6785 = vpack.c.b16 %v6775, %v6774
      %v6786 = vpack.c.b16 %v6777, %v6776
      %v6787 = vpack.c.b16 %v6779, %v6778
      %v6788 = vpack.c.b16 %v6781, %v6780
      %v6789 = vpack.c.b16 %v6782, %v6782
      %v6791 = vshrl.u32 %v6783, 16
      %v6793 = vshll.u32 %v6783, 16
      %v6795 = vrot.slane %v6793, 1
      %v6796 = vor.u32 %v6791, %v6795
      %v6798 = vshll.u32 %v6784, 16
      %v6800 = vrot.slane %v6798, 1
      %v6801 = vsel %vm348, %v6796, %v6800
      %v6802 = vshrl.u32 %v6784, 16
      %v6804 = vor.u32 %v6802, %v6800
      %v6806 = vshll.u32 %v6785, 16
      %v6808 = vrot.slane %v6806, 1
      %v6809 = vsel %vm348, %v6804, %v6808
      %v6810 = vshrl.u32 %v6785, 16
      %v6812 = vor.u32 %v6810, %v6808
      %v6814 = vshll.u32 %v6786, 16
      %v6816 = vrot.slane %v6814, 1
      %v6817 = vsel %vm348, %v6812, %v6816
      %v6818 = vshrl.u32 %v6786, 16
      %v6820 = vor.u32 %v6818, %v6816
      %v6822 = vshll.u32 %v6787, 16
      %v6824 = vrot.slane %v6822, 1
      %v6825 = vsel %vm348, %v6820, %v6824
      %v6826 = vshrl.u32 %v6787, 16
      %v6828 = vor.u32 %v6826, %v6824
      %v6830 = vshll.u32 %v6788, 16
      %v6832 = vrot.slane %v6830, 1
      %v6833 = vsel %vm348, %v6828, %v6832
      %v6834 = vshrl.u32 %v6788, 16
      %v6836 = vor.u32 %v6834, %v6832
      %v6838 = vshll.u32 %v6789, 16
      %v6840 = vrot.slane %v6838, 1
      %v6841 = vsel %vm348, %v6836, %v6840
      %v6864 = vunpack.c.l.b16 %v6741
      %v6865 = vunpack.c.l.b16 %v6742
      %v6866 = vunpack.c.l.b16 %v6743
      %v6867 = vunpack.c.l.b16 %v6744
      %v6868 = vunpack.c.l.b16 %v6745
      %v6869 = vunpack.c.l.b16 %v6746
      %v6870 = vunpack.c.l.b16 %v6747
      %v6871 = vunpack.c.l.b16 %v6748
      %v6872 = vunpack.c.l.b16 %v6749
      %v6873 = vunpack.c.l.b16 %v6750
      %v6874 = vunpack.c.l.b16 %v6751
      %v6875 = vunpack.c.l.b16 %v6752
      %v6876 = vunpack.c.l.b16 %v6753
      %v6877 = vunpack.c.l.b16 %v6754
      %v6878 = vunpack.c.l.b16 %v6755
      %v6879 = vunpack.c.l.b16 %v6756
      %v6880 = vpack.c.b16 %v6865, %v6864
      %v6881 = vpack.c.b16 %v6867, %v6866
      %v6882 = vpack.c.b16 %v6869, %v6868
      %v6883 = vpack.c.b16 %v6871, %v6870
      %v6884 = vpack.c.b16 %v6873, %v6872
      %v6885 = vpack.c.b16 %v6875, %v6874
      %v6886 = vpack.c.b16 %v6877, %v6876
      %v6887 = vpack.c.b16 %v6879, %v6878
      %6896 = vmatprep.subr.bf16.mxu0 0
      %6897 = vmatpush1.bf16.msra.mxu0 %v6880
      %6898 = vmatprep.subr.bf16.mxu0 0
      %6899 = vmatpush1.bf16.msra.mxu0 %v6881
      %6900 = vmatprep.subr.bf16.mxu0 0
      %6901 = vmatpush1.bf16.msra.mxu0 %v6882
      %6902 = vmatprep.subr.bf16.mxu0 0
      %6903 = vmatpush1.bf16.msra.mxu0 %v6883
      %6904 = vmatprep.subr.bf16.mxu0 0
      %6905 = vmatpush1.bf16.msra.mxu0 %v6884
      %6906 = vmatprep.subr.bf16.mxu0 0
      %6907 = vmatpush1.bf16.msra.mxu0 %v6885
      %6908 = vmatprep.subr.bf16.mxu0 0
      %6909 = vmatpush1.bf16.msra.mxu0 %v6886
      %6910 = vmatprep.subr.bf16.mxu0 0
      %6911 = vmatpush1.bf16.msra.mxu0 %v6887
      %6912 = vmatprep.subr.bf16.mxu0 0
      %6913 = vmatpush1.bf16.msra.mxu0 0
      %6914 = vmatprep.subr.bf16.mxu0 0
      %6915 = vmatpush1.bf16.msra.mxu0 0
      %6916 = vmatprep.subr.bf16.mxu0 0
      %6917 = vmatpush1.bf16.msra.mxu0 0
      %6918 = vmatprep.subr.bf16.mxu0 0
      %6919 = vmatpush1.bf16.msra.mxu0 0
      %6920 = vmatprep.subr.bf16.mxu0 0
      %6921 = vmatpush1.bf16.msra.mxu0 0
      %6922 = vmatprep.subr.bf16.mxu0 0
      %6923 = vmatpush1.bf16.msra.mxu0 0
      %6924 = vmatprep.subr.bf16.mxu0 0
      %6925 = vmatpush1.bf16.msra.mxu0 0
      %6926 = vmatprep.subr.bf16.mxu0 0
      %6927 = vmatpush1.bf16.msra.mxu0 0
      %6928 = vmatprep.mubr.bf16.mxu0 0
      %6929 = vmatmul.mubr.bf16.gmra.mrb[0].mxu0 %v6801
      %v6930 = vpop.f32.mrb[0].mxu0
      %v6931 = vadd.f32 0.0, %v6930
      %v6932 = vpop.f32.mrb[0].mxu0
      %v6933 = vpop.f32.mrb[0].mxu0
      %v6934 = vadd.f32 0.0, %v6933
      %v6935 = vpop.f32.mrb[0].mxu0
      %6936 = vmatprep.mubr.bf16.mxu0 0
      %6937 = vmatmul.mubr.bf16.gmra.mrb[0].mxu0 %v6809
      %v6938 = vpop.f32.mrb[0].mxu0
      %v6939 = vadd.f32 0.0, %v6938
      %v6940 = vpop.f32.mrb[0].mxu0
      %v6941 = vpop.f32.mrb[0].mxu0
      %v6942 = vadd.f32 0.0, %v6941
      %v6943 = vpop.f32.mrb[0].mxu0
      %6944 = vmatprep.mubr.bf16.mxu0 0
      %6945 = vmatmul.mubr.bf16.gmra.mrb[0].mxu0 %v6817
      %v6946 = vpop.f32.mrb[0].mxu0
      %v6947 = vadd.f32 0.0, %v6946
      %v6948 = vpop.f32.mrb[0].mxu0
      %v6949 = vpop.f32.mrb[0].mxu0
      %v6950 = vadd.f32 0.0, %v6949
      %v6951 = vpop.f32.mrb[0].mxu0
      %6952 = vmatprep.mubr.bf16.mxu0 0
      %6953 = vmatmul.mubr.bf16.gmra.mrb[0].mxu0 %v6825
      %v6954 = vpop.f32.mrb[0].mxu0
      %v6955 = vadd.f32 0.0, %v6954
      %v6956 = vpop.f32.mrb[0].mxu0
      %v6957 = vpop.f32.mrb[0].mxu0
      %v6958 = vadd.f32 0.0, %v6957
      %v6959 = vpop.f32.mrb[0].mxu0
      %6960 = vmatprep.mubr.bf16.mxu0 0
      %6961 = vmatmul.mubr.bf16.gmra.mrb[0].mxu0 %v6833
      %v6962 = vpop.f32.mrb[0].mxu0
      %v6963 = vadd.f32 0.0, %v6962
      %v6964 = vpop.f32.mrb[0].mxu0
      %v6965 = vpop.f32.mrb[0].mxu0
      %v6966 = vadd.f32 0.0, %v6965
      %v6967 = vpop.f32.mrb[0].mxu0
      %6968 = vmatprep.mubr.bf16.mxu0 0
      %6969 = vmatmul.mubr.bf16.gmra.mrb[0].mxu0 %v6841
      %v6970 = vpop.f32.mrb[0].mxu0
      %v6971 = vadd.f32 0.0, %v6970
      %v6972 = vpop.f32.mrb[0].mxu0
      %v6973 = vpop.f32.mrb[0].mxu0
      %v6974 = vadd.f32 0.0, %v6973
      %v6975 = vpop.f32.mrb[0].mxu0
      %6976 = vdwg.mxu0
      %v6999 = vunpack.c.l.b16 %v6723
      %v7000 = vunpack.c.l.b16 %v6724
      %v7001 = vunpack.c.l.b16 %v6725
      %v7002 = vunpack.c.l.b16 %v6726
      %v7003 = vunpack.c.l.b16 %v6727
      %v7004 = vunpack.c.l.b16 %v6728
      %v7005 = vunpack.c.l.b16 %v6729
      %v7006 = vunpack.c.l.b16 %v6730
      %v7007 = vunpack.c.l.b16 %v6731
      %v7008 = vunpack.c.l.b16 %v6732
      %v7009 = vunpack.c.l.b16 %v6733
      %v7010 = vunpack.c.l.b16 %v6734
      %v7011 = vunpack.c.l.b16 %v6735
      %v7012 = vunpack.c.l.b16 %v6736
      %v7013 = vunpack.c.l.b16 %v6737
      %v7014 = vunpack.c.l.b16 %v6738
      %v7015 = vpack.c.b16 %v7000, %v6999
      %v7016 = vpack.c.b16 %v7002, %v7001
      %v7017 = vpack.c.b16 %v7004, %v7003
      %v7018 = vpack.c.b16 %v7006, %v7005
      %v7019 = vpack.c.b16 %v7008, %v7007
      %v7020 = vpack.c.b16 %v7010, %v7009
      %v7021 = vpack.c.b16 %v7012, %v7011
      %v7022 = vpack.c.b16 %v7014, %v7013
      %7031 = vmatprep.subr.bf16.mxu0 0
      %7032 = vmatpush1.bf16.msra.mxu0 %v7015
      %7033 = vmatprep.subr.bf16.mxu0 0
      %7034 = vmatpush1.bf16.msra.mxu0 %v7016
      %7035 = vmatprep.subr.bf16.mxu0 0
      %7036 = vmatpush1.bf16.msra.mxu0 %v7017
      %7037 = vmatprep.subr.bf16.mxu0 0
      %7038 = vmatpush1.bf16.msra.mxu0 %v7018
      %7039 = vmatprep.subr.bf16.mxu0 0
      %7040 = vmatpush1.bf16.msra.mxu0 %v7019
      %7041 = vmatprep.subr.bf16.mxu0 0
      %7042 = vmatpush1.bf16.msra.mxu0 %v7020
      %7043 = vmatprep.subr.bf16.mxu0 0
      %7044 = vmatpush1.bf16.msra.mxu0 %v7021
      %7045 = vmatprep.subr.bf16.mxu0 0
      %7046 = vmatpush1.bf16.msra.mxu0 %v7022
      %7047 = vmatprep.subr.bf16.mxu0 0
      %7048 = vmatpush1.bf16.msra.mxu0 0
      %7049 = vmatprep.subr.bf16.mxu0 0
      %7050 = vmatpush1.bf16.msra.mxu0 0
      %7051 = vmatprep.subr.bf16.mxu0 0
      %7052 = vmatpush1.bf16.msra.mxu0 0
      %7053 = vmatprep.subr.bf16.mxu0 0
      %7054 = vmatpush1.bf16.msra.mxu0 0
      %7055 = vmatprep.subr.bf16.mxu0 0
      %7056 = vmatpush1.bf16.msra.mxu0 0
      %7057 = vmatprep.subr.bf16.mxu0 0
      %7058 = vmatpush1.bf16.msra.mxu0 0
      %7059 = vmatprep.subr.bf16.mxu0 0
      %7060 = vmatpush1.bf16.msra.mxu0 0
      %7061 = vmatprep.subr.bf16.mxu0 0
      %7062 = vmatpush1.bf16.msra.mxu0 0
      %7063 = vmatprep.mubr.bf16.mxu0 0
      %7064 = vmatmul.mubr.bf16.gmra.mrb[0].mxu0 %v6783
      %v7065 = vpop.f32.mrb[0].mxu0
      %v7066 = vadd.f32 %v6931, %v7065
      %v7067 = vpop.f32.mrb[0].mxu0
      %v7068 = vpop.f32.mrb[0].mxu0
      %v7069 = vadd.f32 %v6934, %v7068
      %v7070 = vpop.f32.mrb[0].mxu0
      %7071 = vmatprep.mubr.bf16.mxu0 0
      %7072 = vmatmul.mubr.bf16.gmra.mrb[0].mxu0 %v6784
      %v7073 = vpop.f32.mrb[0].mxu0
      %v7074 = vadd.f32 %v6939, %v7073
      %v7075 = vpop.f32.mrb[0].mxu0
      %v7076 = vpop.f32.mrb[0].mxu0
      %v7077 = vadd.f32 %v6942, %v7076
      %v7078 = vpop.f32.mrb[0].mxu0
      %7079 = vmatprep.mubr.bf16.mxu0 0
      %7080 = vmatmul.mubr.bf16.gmra.mrb[0].mxu0 %v6785
      %v7081 = vpop.f32.mrb[0].mxu0
      %v7082 = vadd.f32 %v6947, %v7081
      %v7083 = vpop.f32.mrb[0].mxu0
      %v7084 = vpop.f32.mrb[0].mxu0
      %v7085 = vadd.f32 %v6950, %v7084
      %v7086 = vpop.f32.mrb[0].mxu0
      %7087 = vmatprep.mubr.bf16.mxu0 0
      %7088 = vmatmul.mubr.bf16.gmra.mrb[0].mxu0 %v6786
      %v7089 = vpop.f32.mrb[0].mxu0
      %v7090 = vadd.f32 %v6955, %v7089
      %v7091 = vpop.f32.mrb[0].mxu0
      %v7092 = vpop.f32.mrb[0].mxu0
      %v7093 = vadd.f32 %v6958, %v7092
      %v7094 = vpop.f32.mrb[0].mxu0
      %7095 = vmatprep.mubr.bf16.mxu0 0
      %7096 = vmatmul.mubr.bf16.gmra.mrb[0].mxu0 %v6787
      %v7097 = vpop.f32.mrb[0].mxu0
      %v7098 = vadd.f32 %v6963, %v7097
      %v7099 = vpop.f32.mrb[0].mxu0
      %v7100 = vpop.f32.mrb[0].mxu0
      %v7101 = vadd.f32 %v6966, %v7100
      %v7102 = vpop.f32.mrb[0].mxu0
      %7103 = vmatprep.mubr.bf16.mxu0 0
      %7104 = vmatmul.mubr.bf16.gmra.mrb[0].mxu0 %v6788
      %v7105 = vpop.f32.mrb[0].mxu0
      %v7106 = vadd.f32 %v6971, %v7105
      %v7107 = vpop.f32.mrb[0].mxu0
      %v7108 = vpop.f32.mrb[0].mxu0
      %v7109 = vadd.f32 %v6974, %v7108
      %v7110 = vpop.f32.mrb[0].mxu0
      %7111 = vdwg.mxu0
      %v7112 = vld [vmem:[#allocation2] sm:$0xe]
      %s7113 = scalar_lea.vmem %s3, 128
      %v7114 = vld [vmem:[%s7113] sm:$0xf]
      %v7115 = vld [vmem:[%s7113 + $0x4] sm:$0xf]
      %v7116 = vld [vmem:[%s7113 + $0x8] sm:$0xf]
      %v7117 = vld [vmem:[%s7113 + $0xc] sm:$0xf]
      %v7118 = vld [vmem:[%s7113 + $0x10] sm:$0xf]
      %v7119 = vld [vmem:[%s7113 + $0x14] sm:$0xf]
      %v7120 = vld [vmem:[%s7113 + $0x18] sm:$0xf]
      %v7121 = vld [vmem:[%s7113 + $0x1c] sm:$0xf]
      %v7122 = vld [vmem:[%s7113 + $0x20] sm:$0xf]
      %v7123 = vld [vmem:[%s7113 + $0x24] sm:$0xf]
      %v7124 = vld [vmem:[%s7113 + $0x28] sm:$0xf]
      %v7125 = vld [vmem:[%s7113 + $0x2c] sm:$0xf]
      %v7126 = vld [vmem:[%s7113 + $0x30] sm:$0xf]
      %v7127 = vld [vmem:[%s7113 + $0x34] sm:$0xf]
      %v7128 = vld [vmem:[%s7113 + $0x38] sm:$0xf]
      %v7129 = vld [vmem:[%s7113 + $0x3c] sm:$0xf]
      %v7131 = vunpack.c.l.b16 %v7112
      %v7132 = vpack.c.b16 %v6771, %v7131
      %v7133 = vrot.slane %v7132, 1
      %v7134 = vrot.slane %v6784, 1
      %v7135 = vsel %vm692, %v7133, %v7134
      %v7136 = vrot.slane %v6785, 1
      %v7137 = vsel %vm692, %v7134, %v7136
      %v7138 = vrot.slane %v6786, 1
      %v7139 = vsel %vm692, %v7136, %v7138
      %v7140 = vrot.slane %v6787, 1
      %v7141 = vsel %vm692, %v7138, %v7140
      %v7142 = vrot.slane %v6788, 1
      %v7143 = vsel %vm692, %v7140, %v7142
      %v7144 = vrot.slane %v6789, 1
      %v7145 = vsel %vm692, %v7142, %v7144
      %v7168 = vunpack.c.l.b16 %v7114
      %v7169 = vunpack.c.l.b16 %v7115
      %v7170 = vunpack.c.l.b16 %v7116
      %v7171 = vunpack.c.l.b16 %v7117
      %v7172 = vunpack.c.l.b16 %v7118
      %v7173 = vunpack.c.l.b16 %v7119
      %v7174 = vunpack.c.l.b16 %v7120
      %v7175 = vunpack.c.l.b16 %v7121
      %v7176 = vunpack.c.l.b16 %v7122
      %v7177 = vunpack.c.l.b16 %v7123
      %v7178 = vunpack.c.l.b16 %v7124
      %v7179 = vunpack.c.l.b16 %v7125
      %v7180 = vunpack.c.l.b16 %v7126
      %v7181 = vunpack.c.l.b16 %v7127
      %v7182 = vunpack.c.l.b16 %v7128
      %v7183 = vunpack.c.l.b16 %v7129
      %v7184 = vpack.c.b16 %v7169, %v7168
      %v7185 = vpack.c.b16 %v7171, %v7170
      %v7186 = vpack.c.b16 %v7173, %v7172
      %v7187 = vpack.c.b16 %v7175, %v7174
      %v7188 = vpack.c.b16 %v7177, %v7176
      %v7189 = vpack.c.b16 %v7179, %v7178
      %v7190 = vpack.c.b16 %v7181, %v7180
      %v7191 = vpack.c.b16 %v7183, %v7182
      %7200 = vmatprep.subr.bf16.mxu0 0
      %7201 = vmatpush1.bf16.msra.mxu0 %v7184
      %7202 = vmatprep.subr.bf16.mxu0 0
      %7203 = vmatpush1.bf16.msra.mxu0 %v7185
      %7204 = vmatprep.subr.bf16.mxu0 0
      %7205 = vmatpush1.bf16.msra.mxu0 %v7186
      %7206 = vmatprep.subr.bf16.mxu0 0
      %7207 = vmatpush1.bf16.msra.mxu0 %v7187
      %7208 = vmatprep.subr.bf16.mxu0 0
      %7209 = vmatpush1.bf16.msra.mxu0 %v7188
      %7210 = vmatprep.subr.bf16.mxu0 0
      %7211 = vmatpush1.bf16.msra.mxu0 %v7189
      %7212 = vmatprep.subr.bf16.mxu0 0
      %7213 = vmatpush1.bf16.msra.mxu0 %v7190
      %7214 = vmatprep.subr.bf16.mxu0 0
      %7215 = vmatpush1.bf16.msra.mxu0 %v7191
      %7216 = vmatprep.subr.bf16.mxu0 0
      %7217 = vmatpush1.bf16.msra.mxu0 0
      %7218 = vmatprep.subr.bf16.mxu0 0
      %7219 = vmatpush1.bf16.msra.mxu0 0
      %7220 = vmatprep.subr.bf16.mxu0 0
      %7221 = vmatpush1.bf16.msra.mxu0 0
      %7222 = vmatprep.subr.bf16.mxu0 0
      %7223 = vmatpush1.bf16.msra.mxu0 0
      %7224 = vmatprep.subr.bf16.mxu0 0
      %7225 = vmatpush1.bf16.msra.mxu0 0
      %7226 = vmatprep.subr.bf16.mxu0 0
      %7227 = vmatpush1.bf16.msra.mxu0 0
      %7228 = vmatprep.subr.bf16.mxu0 0
      %7229 = vmatpush1.bf16.msra.mxu0 0
      %7230 = vmatprep.subr.bf16.mxu0 0
      %7231 = vmatpush1.bf16.msra.mxu0 0
      %7232 = vmatprep.mubr.bf16.mxu0 0
      %7233 = vmatmul.mubr.bf16.gmra.mrb[0].mxu0 %v7135
      %v7234 = vpop.f32.mrb[0].mxu0
      %v7235 = vadd.f32 0.0, %v7234
      %v7236 = vpop.f32.mrb[0].mxu0
      %v7237 = vpop.f32.mrb[0].mxu0
      %v7238 = vadd.f32 0.0, %v7237
      %v7239 = vpop.f32.mrb[0].mxu0
      %7240 = vmatprep.mubr.bf16.mxu0 0
      %7241 = vmatmul.mubr.bf16.gmra.mrb[0].mxu0 %v7137
      %v7242 = vpop.f32.mrb[0].mxu0
      %v7243 = vadd.f32 0.0, %v7242
      %v7244 = vpop.f32.mrb[0].mxu0
      %v7245 = vpop.f32.mrb[0].mxu0
      %v7246 = vadd.f32 0.0, %v7245
      %v7247 = vpop.f32.mrb[0].mxu0
      %7248 = vmatprep.mubr.bf16.mxu0 0
      %7249 = vmatmul.mubr.bf16.gmra.mrb[0].mxu0 %v7139
      %v7250 = vpop.f32.mrb[0].mxu0
      %v7251 = vadd.f32 0.0, %v7250
      %v7252 = vpop.f32.mrb[0].mxu0
      %v7253 = vpop.f32.mrb[0].mxu0
      %v7254 = vadd.f32 0.0, %v7253
      %v7255 = vpop.f32.mrb[0].mxu0
      %7256 = vmatprep.mubr.bf16.mxu0 0
      %7257 = vmatmul.mubr.bf16.gmra.mrb[0].mxu0 %v7141
      %v7258 = vpop.f32.mrb[0].mxu0
      %v7259 = vadd.f32 0.0, %v7258
      %v7260 = vpop.f32.mrb[0].mxu0
      %v7261 = vpop.f32.mrb[0].mxu0
      %v7262 = vadd.f32 0.0, %v7261
      %v7263 = vpop.f32.mrb[0].mxu0
      %7264 = vmatprep.mubr.bf16.mxu0 0
      %7265 = vmatmul.mubr.bf16.gmra.mrb[0].mxu0 %v7143
      %v7266 = vpop.f32.mrb[0].mxu0
      %v7267 = vadd.f32 0.0, %v7266
      %v7268 = vpop.f32.mrb[0].mxu0
      %v7269 = vpop.f32.mrb[0].mxu0
      %v7270 = vadd.f32 0.0, %v7269
      %v7271 = vpop.f32.mrb[0].mxu0
      %7272 = vmatprep.mubr.bf16.mxu0 0
      %7273 = vmatmul.mubr.bf16.gmra.mrb[0].mxu0 %v7145
      %v7274 = vpop.f32.mrb[0].mxu0
      %v7275 = vadd.f32 0.0, %v7274
      %v7276 = vpop.f32.mrb[0].mxu0
      %v7277 = vpop.f32.mrb[0].mxu0
      %v7278 = vadd.f32 0.0, %v7277
      %v7279 = vpop.f32.mrb[0].mxu0
      %7280 = vdwg.mxu0
      %v7281 = vadd.f32 %v7066, %v7235
      %v7282 = vadd.f32 %v7069, %v7238
      %v7283 = vadd.f32 %v7074, %v7243
      %v7284 = vadd.f32 %v7077, %v7246
      %v7285 = vadd.f32 %v7082, %v7251
      %v7286 = vadd.f32 %v7085, %v7254
      %v7287 = vadd.f32 %v7090, %v7259
      %v7288 = vadd.f32 %v7093, %v7262
      %v7289 = vadd.f32 %v7098, %v7267
      %v7290 = vadd.f32 %v7101, %v7270
      %v7291 = vadd.f32 %v7106, %v7275
      %v7292 = vadd.f32 %v7109, %v7278
      %v7293 = vld [vmem:[#allocation2 + $0x8] sm:$0xe]
      %v7294 = vld [vmem:[#allocation2 + $0xc] sm:$0xf]
      %v7295 = vld [vmem:[#allocation2 + $0x10] sm:$0xf]
      %v7296 = vld [vmem:[#allocation2 + $0x14] sm:$0xf]
      %v7297 = vld [vmem:[#allocation2 + $0x18] sm:$0xf]
      %v7298 = vld [vmem:[#allocation2 + $0x1c] sm:$0xf]
      %v7299 = vld [vmem:[#allocation2 + $0x20] sm:$0xf]
      %v7300 = vld [vmem:[#allocation2 + $0x24] sm:$0xf]
      %v7301 = vld [vmem:[#allocation2 + $0x28] sm:$0xf]
      %v7302 = vld [vmem:[#allocation2 + $0x2c] sm:$0xf]
      %v7303 = vld [vmem:[#allocation2 + $0x30] sm:$0xf]
      %v7304 = vld [vmem:[#allocation2 + $0x34] sm:$0xf]
      %v7305 = vld [vmem:[#allocation2 + $0x38] sm:$0x1]
      %s7306 = scalar_lea.vmem %s3, 192
      %v7307 = vld [vmem:[%s7306] sm:$0xf]
      %v7308 = vld [vmem:[%s7306 + $0x4] sm:$0xf]
      %v7309 = vld [vmem:[%s7306 + $0x8] sm:$0xf]
      %v7310 = vld [vmem:[%s7306 + $0xc] sm:$0xf]
      %v7311 = vld [vmem:[%s7306 + $0x10] sm:$0xf]
      %v7312 = vld [vmem:[%s7306 + $0x14] sm:$0xf]
      %v7313 = vld [vmem:[%s7306 + $0x18] sm:$0xf]
      %v7314 = vld [vmem:[%s7306 + $0x1c] sm:$0xf]
      %v7315 = vld [vmem:[%s7306 + $0x20] sm:$0xf]
      %v7316 = vld [vmem:[%s7306 + $0x24] sm:$0xf]
      %v7317 = vld [vmem:[%s7306 + $0x28] sm:$0xf]
      %v7318 = vld [vmem:[%s7306 + $0x2c] sm:$0xf]
      %v7319 = vld [vmem:[%s7306 + $0x30] sm:$0xf]
      %v7320 = vld [vmem:[%s7306 + $0x34] sm:$0xf]
      %v7321 = vld [vmem:[%s7306 + $0x38] sm:$0xf]
      %v7322 = vld [vmem:[%s7306 + $0x3c] sm:$0xf]
      %v7336 = vunpack.c.l.b16 %v7293
      %v7337 = vunpack.c.l.b16 %v7294
      %v7338 = vunpack.c.l.b16 %v7295
      %v7339 = vunpack.c.l.b16 %v7296
      %v7340 = vunpack.c.l.b16 %v7297
      %v7341 = vunpack.c.l.b16 %v7298
      %v7342 = vunpack.c.l.b16 %v7299
      %v7343 = vunpack.c.l.b16 %v7300
      %v7344 = vunpack.c.l.b16 %v7301
      %v7345 = vunpack.c.l.b16 %v7302
      %v7346 = vunpack.c.l.b16 %v7303
      %v7347 = vunpack.c.l.b16 %v7304
      %v7348 = vunpack.c.l.b16 %v7305
      %v7349 = vpack.c.b16 %v7337, %v7336
      %v7350 = vpack.c.b16 %v7339, %v7338
      %v7351 = vpack.c.b16 %v7341, %v7340
      %v7352 = vpack.c.b16 %v7343, %v7342
      %v7353 = vpack.c.b16 %v7345, %v7344
      %v7354 = vpack.c.b16 %v7347, %v7346
      %v7355 = vpack.c.b16 %v7348, %v7348
      %v7356 = vrot.slane %v7349, 1
      %v7357 = vrot.slane %v7350, 1
      %v7358 = vsel %vm692, %v7356, %v7357
      %v7359 = vrot.slane %v7351, 1
      %v7360 = vsel %vm692, %v7357, %v7359
      %v7361 = vrot.slane %v7352, 1
      %v7362 = vsel %vm692, %v7359, %v7361
      %v7363 = vrot.slane %v7353, 1
      %v7364 = vsel %vm692, %v7361, %v7363
      %v7365 = vrot.slane %v7354, 1
      %v7366 = vsel %vm692, %v7363, %v7365
      %v7367 = vrot.slane %v7355, 1
      %v7368 = vsel %vm692, %v7365, %v7367
      %v7391 = vunpack.c.l.b16 %v7307
      %v7392 = vunpack.c.l.b16 %v7308
      %v7393 = vunpack.c.l.b16 %v7309
      %v7394 = vunpack.c.l.b16 %v7310
      %v7395 = vunpack.c.l.b16 %v7311
      %v7396 = vunpack.c.l.b16 %v7312
      %v7397 = vunpack.c.l.b16 %v7313
      %v7398 = vunpack.c.l.b16 %v7314
      %v7399 = vunpack.c.l.b16 %v7315
      %v7400 = vunpack.c.l.b16 %v7316
      %v7401 = vunpack.c.l.b16 %v7317
      %v7402 = vunpack.c.l.b16 %v7318
      %v7403 = vunpack.c.l.b16 %v7319
      %v7404 = vunpack.c.l.b16 %v7320
      %v7405 = vunpack.c.l.b16 %v7321
      %v7406 = vunpack.c.l.b16 %v7322
      %v7407 = vpack.c.b16 %v7392, %v7391
      %v7408 = vpack.c.b16 %v7394, %v7393
      %v7409 = vpack.c.b16 %v7396, %v7395
      %v7410 = vpack.c.b16 %v7398, %v7397
      %v7411 = vpack.c.b16 %v7400, %v7399
      %v7412 = vpack.c.b16 %v7402, %v7401
      %v7413 = vpack.c.b16 %v7404, %v7403
      %v7414 = vpack.c.b16 %v7406, %v7405
      %7423 = vmatprep.subr.bf16.mxu0 0
      %7424 = vmatpush1.bf16.msra.mxu0 %v7407
      %7425 = vmatprep.subr.bf16.mxu0 0
      %7426 = vmatpush1.bf16.msra.mxu0 %v7408
      %7427 = vmatprep.subr.bf16.mxu0 0
      %7428 = vmatpush1.bf16.msra.mxu0 %v7409
      %7429 = vmatprep.subr.bf16.mxu0 0
      %7430 = vmatpush1.bf16.msra.mxu0 %v7410
      %7431 = vmatprep.subr.bf16.mxu0 0
      %7432 = vmatpush1.bf16.msra.mxu0 %v7411
      %7433 = vmatprep.subr.bf16.mxu0 0
      %7434 = vmatpush1.bf16.msra.mxu0 %v7412
      %7435 = vmatprep.subr.bf16.mxu0 0
      %7436 = vmatpush1.bf16.msra.mxu0 %v7413
      %7437 = vmatprep.subr.bf16.mxu0 0
      %7438 = vmatpush1.bf16.msra.mxu0 %v7414
      %7439 = vmatprep.subr.bf16.mxu0 0
      %7440 = vmatpush1.bf16.msra.mxu0 0
      %7441 = vmatprep.subr.bf16.mxu0 0
      %7442 = vmatpush1.bf16.msra.mxu0 0
      %7443 = vmatprep.subr.bf16.mxu0 0
      %7444 = vmatpush1.bf16.msra.mxu0 0
      %7445 = vmatprep.subr.bf16.mxu0 0
      %7446 = vmatpush1.bf16.msra.mxu0 0
      %7447 = vmatprep.subr.bf16.mxu0 0
      %7448 = vmatpush1.bf16.msra.mxu0 0
      %7449 = vmatprep.subr.bf16.mxu0 0
      %7450 = vmatpush1.bf16.msra.mxu0 0
      %7451 = vmatprep.subr.bf16.mxu0 0
      %7452 = vmatpush1.bf16.msra.mxu0 0
      %7453 = vmatprep.subr.bf16.mxu0 0
      %7454 = vmatpush1.bf16.msra.mxu0 0
      %7455 = vmatprep.mubr.bf16.mxu0 0
      %7456 = vmatmul.mubr.bf16.gmra.mrb[0].mxu0 %v7358
      %v7457 = vpop.f32.mrb[0].mxu0
      %v7458 = vadd.f32 0.0, %v7457
      %v7459 = vpop.f32.mrb[0].mxu0
      %v7460 = vpop.f32.mrb[0].mxu0
      %v7461 = vadd.f32 0.0, %v7460
      %v7462 = vpop.f32.mrb[0].mxu0
      %7463 = vmatprep.mubr.bf16.mxu0 0
      %7464 = vmatmul.mubr.bf16.gmra.mrb[0].mxu0 %v7360
      %v7465 = vpop.f32.mrb[0].mxu0
      %v7466 = vadd.f32 0.0, %v7465
      %v7467 = vpop.f32.mrb[0].mxu0
      %v7468 = vpop.f32.mrb[0].mxu0
      %v7469 = vadd.f32 0.0, %v7468
      %v7470 = vpop.f32.mrb[0].mxu0
      %7471 = vmatprep.mubr.bf16.mxu0 0
      %7472 = vmatmul.mubr.bf16.gmra.mrb[0].mxu0 %v7362
      %v7473 = vpop.f32.mrb[0].mxu0
      %v7474 = vadd.f32 0.0, %v7473
      %v7475 = vpop.f32.mrb[0].mxu0
      %v7476 = vpop.f32.mrb[0].mxu0
      %v7477 = vadd.f32 0.0, %v7476
      %v7478 = vpop.f32.mrb[0].mxu0
      %7479 = vmatprep.mubr.bf16.mxu0 0
      %7480 = vmatmul.mubr.bf16.gmra.mrb[0].mxu0 %v7364
      %v7481 = vpop.f32.mrb[0].mxu0
      %v7482 = vadd.f32 0.0, %v7481
      %v7483 = vpop.f32.mrb[0].mxu0
      %v7484 = vpop.f32.mrb[0].mxu0
      %v7485 = vadd.f32 0.0, %v7484
      %v7486 = vpop.f32.mrb[0].mxu0
      %7487 = vmatprep.mubr.bf16.mxu0 0
      %7488 = vmatmul.mubr.bf16.gmra.mrb[0].mxu0 %v7366
      %v7489 = vpop.f32.mrb[0].mxu0
      %v7490 = vadd.f32 0.0, %v7489
      %v7491 = vpop.f32.mrb[0].mxu0
      %v7492 = vpop.f32.mrb[0].mxu0
      %v7493 = vadd.f32 0.0, %v7492
      %v7494 = vpop.f32.mrb[0].mxu0
      %7495 = vmatprep.mubr.bf16.mxu0 0
      %7496 = vmatmul.mubr.bf16.gmra.mrb[0].mxu0 %v7368
      %v7497 = vpop.f32.mrb[0].mxu0
      %v7498 = vadd.f32 0.0, %v7497
      %v7499 = vpop.f32.mrb[0].mxu0
      %v7500 = vpop.f32.mrb[0].mxu0
      %v7501 = vadd.f32 0.0, %v7500
      %v7502 = vpop.f32.mrb[0].mxu0
      %7503 = vdwg.mxu0
      %v7504 = vadd.f32 %v7281, %v7458
      %v7505 = vadd.f32 %v7282, %v7461
      %v7506 = vadd.f32 %v7283, %v7466
      %v7507 = vadd.f32 %v7284, %v7469
      %v7508 = vadd.f32 %v7285, %v7474
      %v7509 = vadd.f32 %v7286, %v7477
      %v7510 = vadd.f32 %v7287, %v7482
      %v7511 = vadd.f32 %v7288, %v7485
      %v7512 = vadd.f32 %v7289, %v7490
      %v7513 = vadd.f32 %v7290, %v7493
      %v7514 = vadd.f32 %v7291, %v7498
      %v7515 = vadd.f32 %v7292, %v7501
      %v7516 = vld [vmem:[#allocation2 + $0x38] sm:$0x3]
      %s7517 = scalar_lea.vmem %s3, 256
      %v7518 = vld [vmem:[%s7517] sm:$0xf]
      %v7519 = vld [vmem:[%s7517 + $0x4] sm:$0xf]
      %v7520 = vld [vmem:[%s7517 + $0x8] sm:$0xf]
      %v7521 = vld [vmem:[%s7517 + $0xc] sm:$0xf]
      %v7522 = vld [vmem:[%s7517 + $0x10] sm:$0xf]
      %v7523 = vld [vmem:[%s7517 + $0x14] sm:$0xf]
      %v7524 = vld [vmem:[%s7517 + $0x18] sm:$0xf]
      %v7525 = vld [vmem:[%s7517 + $0x1c] sm:$0xf]
      %v7526 = vld [vmem:[%s7517 + $0x20] sm:$0xf]
      %v7527 = vld [vmem:[%s7517 + $0x24] sm:$0xf]
      %v7528 = vld [vmem:[%s7517 + $0x28] sm:$0xf]
      %v7529 = vld [vmem:[%s7517 + $0x2c] sm:$0xf]
      %v7530 = vld [vmem:[%s7517 + $0x30] sm:$0xf]
      %v7531 = vld [vmem:[%s7517 + $0x34] sm:$0xf]
      %v7532 = vld [vmem:[%s7517 + $0x38] sm:$0xf]
      %v7533 = vld [vmem:[%s7517 + $0x3c] sm:$0xf]
      %v7535 = vunpack.c.l.b16 %v7516
      %v7536 = vpack.c.b16 %v7535, %v7535
      %v7538 = vshrl.u32 %v7349, 16
      %v7540 = vrot.slane %v7538, 1
      %v7541 = vshll.u32 %v7349, 16
      %v7543 = vrot.slane %v7541, 2
      %v7544 = vor.u32 %v7540, %v7543
      %v7546 = vshrl.u32 %v7350, 16
      %v7548 = vrot.slane %v7546, 1
      %v7549 = vshll.u32 %v7350, 16
      %v7551 = vrot.slane %v7549, 2
      %v7552 = vor.u32 %v7548, %v7551
      %v7553 = vsel %vm1097, %v7544, %v7552
      %v7555 = vshrl.u32 %v7351, 16
      %v7557 = vrot.slane %v7555, 1
      %v7558 = vshll.u32 %v7351, 16
      %v7560 = vrot.slane %v7558, 2
      %v7561 = vor.u32 %v7557, %v7560
      %v7562 = vsel %vm1097, %v7552, %v7561
      %v7564 = vshrl.u32 %v7352, 16
      %v7566 = vrot.slane %v7564, 1
      %v7567 = vshll.u32 %v7352, 16
      %v7569 = vrot.slane %v7567, 2
      %v7570 = vor.u32 %v7566, %v7569
      %v7571 = vsel %vm1097, %v7561, %v7570
      %v7573 = vshrl.u32 %v7353, 16
      %v7575 = vrot.slane %v7573, 1
      %v7576 = vshll.u32 %v7353, 16
      %v7578 = vrot.slane %v7576, 2
      %v7579 = vor.u32 %v7575, %v7578
      %v7580 = vsel %vm1097, %v7570, %v7579
      %v7582 = vshrl.u32 %v7354, 16
      %v7584 = vrot.slane %v7582, 1
      %v7585 = vshll.u32 %v7354, 16
      %v7587 = vrot.slane %v7585, 2
      %v7588 = vor.u32 %v7584, %v7587
      %v7589 = vsel %vm1097, %v7579, %v7588
      %v7591 = vshrl.u32 %v7536, 16
      %v7593 = vrot.slane %v7591, 1
      %v7594 = vshll.u32 %v7536, 16
      %v7596 = vrot.slane %v7594, 2
      %v7597 = vor.u32 %v7593, %v7596
      %v7598 = vsel %vm1097, %v7588, %v7597
      %v7621 = vunpack.c.l.b16 %v7518
      %v7622 = vunpack.c.l.b16 %v7519
      %v7623 = vunpack.c.l.b16 %v7520
      %v7624 = vunpack.c.l.b16 %v7521
      %v7625 = vunpack.c.l.b16 %v7522
      %v7626 = vunpack.c.l.b16 %v7523
      %v7627 = vunpack.c.l.b16 %v7524
      %v7628 = vunpack.c.l.b16 %v7525
      %v7629 = vunpack.c.l.b16 %v7526
      %v7630 = vunpack.c.l.b16 %v7527
      %v7631 = vunpack.c.l.b16 %v7528
      %v7632 = vunpack.c.l.b16 %v7529
      %v7633 = vunpack.c.l.b16 %v7530
      %v7634 = vunpack.c.l.b16 %v7531
      %v7635 = vunpack.c.l.b16 %v7532
      %v7636 = vunpack.c.l.b16 %v7533
      %v7637 = vpack.c.b16 %v7622, %v7621
      %v7638 = vpack.c.b16 %v7624, %v7623
      %v7639 = vpack.c.b16 %v7626, %v7625
      %v7640 = vpack.c.b16 %v7628, %v7627
      %v7641 = vpack.c.b16 %v7630, %v7629
      %v7642 = vpack.c.b16 %v7632, %v7631
      %v7643 = vpack.c.b16 %v7634, %v7633
      %v7644 = vpack.c.b16 %v7636, %v7635
      %7653 = vmatprep.subr.bf16.mxu0 0
      %7654 = vmatpush1.bf16.msra.mxu0 %v7637
      %7655 = vmatprep.subr.bf16.mxu0 0
      %7656 = vmatpush1.bf16.msra.mxu0 %v7638
      %7657 = vmatprep.subr.bf16.mxu0 0
      %7658 = vmatpush1.bf16.msra.mxu0 %v7639
      %7659 = vmatprep.subr.bf16.mxu0 0
      %7660 = vmatpush1.bf16.msra.mxu0 %v7640
      %7661 = vmatprep.subr.bf16.mxu0 0
      %7662 = vmatpush1.bf16.msra.mxu0 %v7641
      %7663 = vmatprep.subr.bf16.mxu0 0
      %7664 = vmatpush1.bf16.msra.mxu0 %v7642
      %7665 = vmatprep.subr.bf16.mxu0 0
      %7666 = vmatpush1.bf16.msra.mxu0 %v7643
      %7667 = vmatprep.subr.bf16.mxu0 0
      %7668 = vmatpush1.bf16.msra.mxu0 %v7644
      %7669 = vmatprep.subr.bf16.mxu0 0
      %7670 = vmatpush1.bf16.msra.mxu0 0
      %7671 = vmatprep.subr.bf16.mxu0 0
      %7672 = vmatpush1.bf16.msra.mxu0 0
      %7673 = vmatprep.subr.bf16.mxu0 0
      %7674 = vmatpush1.bf16.msra.mxu0 0
      %7675 = vmatprep.subr.bf16.mxu0 0
      %7676 = vmatpush1.bf16.msra.mxu0 0
      %7677 = vmatprep.subr.bf16.mxu0 0
      %7678 = vmatpush1.bf16.msra.mxu0 0
      %7679 = vmatprep.subr.bf16.mxu0 0
      %7680 = vmatpush1.bf16.msra.mxu0 0
      %7681 = vmatprep.subr.bf16.mxu0 0
      %7682 = vmatpush1.bf16.msra.mxu0 0
      %7683 = vmatprep.subr.bf16.mxu0 0
      %7684 = vmatpush1.bf16.msra.mxu0 0
      %7685 = vmatprep.mubr.bf16.mxu0 0
      %7686 = vmatmul.mubr.bf16.gmra.mrb[0].mxu0 %v7553
      %v7687 = vpop.f32.mrb[0].mxu0
      %v7688 = vadd.f32 0.0, %v7687
      %v7689 = vpop.f32.mrb[0].mxu0
      %v7690 = vpop.f32.mrb[0].mxu0
      %v7691 = vadd.f32 0.0, %v7690
      %v7692 = vpop.f32.mrb[0].mxu0
      %7693 = vmatprep.mubr.bf16.mxu0 0
      %7694 = vmatmul.mubr.bf16.gmra.mrb[0].mxu0 %v7562
      %v7695 = vpop.f32.mrb[0].mxu0
      %v7696 = vadd.f32 0.0, %v7695
      %v7697 = vpop.f32.mrb[0].mxu0
      %v7698 = vpop.f32.mrb[0].mxu0
      %v7699 = vadd.f32 0.0, %v7698
      %v7700 = vpop.f32.mrb[0].mxu0
      %7701 = vmatprep.mubr.bf16.mxu0 0
      %7702 = vmatmul.mubr.bf16.gmra.mrb[0].mxu0 %v7571
      %v7703 = vpop.f32.mrb[0].mxu0
      %v7704 = vadd.f32 0.0, %v7703
      %v7705 = vpop.f32.mrb[0].mxu0
      %v7706 = vpop.f32.mrb[0].mxu0
      %v7707 = vadd.f32 0.0, %v7706
      %v7708 = vpop.f32.mrb[0].mxu0
      %7709 = vmatprep.mubr.bf16.mxu0 0
      %7710 = vmatmul.mubr.bf16.gmra.mrb[0].mxu0 %v7580
      %v7711 = vpop.f32.mrb[0].mxu0
      %v7712 = vadd.f32 0.0, %v7711
      %v7713 = vpop.f32.mrb[0].mxu0
      %v7714 = vpop.f32.mrb[0].mxu0
      %v7715 = vadd.f32 0.0, %v7714
      %v7716 = vpop.f32.mrb[0].mxu0
      %7717 = vmatprep.mubr.bf16.mxu0 0
      %7718 = vmatmul.mubr.bf16.gmra.mrb[0].mxu0 %v7589
      %v7719 = vpop.f32.mrb[0].mxu0
      %v7720 = vadd.f32 0.0, %v7719
      %v7721 = vpop.f32.mrb[0].mxu0
      %v7722 = vpop.f32.mrb[0].mxu0
      %v7723 = vadd.f32 0.0, %v7722
      %v7724 = vpop.f32.mrb[0].mxu0
      %7725 = vmatprep.mubr.bf16.mxu0 0
      %7726 = vmatmul.mubr.bf16.gmra.mrb[0].mxu0 %v7598
      %v7727 = vpop.f32.mrb[0].mxu0
      %v7728 = vadd.f32 0.0, %v7727
      %v7729 = vpop.f32.mrb[0].mxu0
      %v7730 = vpop.f32.mrb[0].mxu0
      %v7731 = vadd.f32 0.0, %v7730
      %v7732 = vpop.f32.mrb[0].mxu0
      %7733 = vdwg.mxu0
      %v7734 = vadd.f32 %v7504, %v7688
      %v7735 = vadd.f32 %v7505, %v7691
      %v7736 = vadd.f32 %v7506, %v7696
      %v7737 = vadd.f32 %v7507, %v7699
      %v7738 = vadd.f32 %v7508, %v7704
      %v7739 = vadd.f32 %v7509, %v7707
      %v7740 = vadd.f32 %v7510, %v7712
      %v7741 = vadd.f32 %v7511, %v7715
      %v7742 = vadd.f32 %v7512, %v7720
      %v7743 = vadd.f32 %v7513, %v7723
      %v7744 = vadd.f32 %v7514, %v7728
      %v7745 = vadd.f32 %v7515, %v7731
      %v7746 = vld [vmem:[#allocation2 + $0x8] sm:$0xc]
      %s7747 = scalar_lea.vmem %s3, 320
      %v7748 = vld [vmem:[%s7747] sm:$0xf]
      %v7749 = vld [vmem:[%s7747 + $0x4] sm:$0xf]
      %v7750 = vld [vmem:[%s7747 + $0x8] sm:$0xf]
      %v7751 = vld [vmem:[%s7747 + $0xc] sm:$0xf]
      %v7752 = vld [vmem:[%s7747 + $0x10] sm:$0xf]
      %v7753 = vld [vmem:[%s7747 + $0x14] sm:$0xf]
      %v7754 = vld [vmem:[%s7747 + $0x18] sm:$0xf]
      %v7755 = vld [vmem:[%s7747 + $0x1c] sm:$0xf]
      %v7756 = vld [vmem:[%s7747 + $0x20] sm:$0xf]
      %v7757 = vld [vmem:[%s7747 + $0x24] sm:$0xf]
      %v7758 = vld [vmem:[%s7747 + $0x28] sm:$0xf]
      %v7759 = vld [vmem:[%s7747 + $0x2c] sm:$0xf]
      %v7760 = vld [vmem:[%s7747 + $0x30] sm:$0xf]
      %v7761 = vld [vmem:[%s7747 + $0x34] sm:$0xf]
      %v7762 = vld [vmem:[%s7747 + $0x38] sm:$0xf]
      %v7763 = vld [vmem:[%s7747 + $0x3c] sm:$0xf]
      %v7765 = vunpack.c.l.b16 %v7746
      %v7766 = vpack.c.b16 %v7337, %v7765
      %v7767 = vrot.slane %v7766, 2
      %v7768 = vrot.slane %v7350, 2
      %v7769 = vsel %vm1328, %v7767, %v7768
      %v7770 = vrot.slane %v7351, 2
      %v7771 = vsel %vm1328, %v7768, %v7770
      %v7772 = vrot.slane %v7352, 2
      %v7773 = vsel %vm1328, %v7770, %v7772
      %v7774 = vrot.slane %v7353, 2
      %v7775 = vsel %vm1328, %v7772, %v7774
      %v7776 = vrot.slane %v7354, 2
      %v7777 = vsel %vm1328, %v7774, %v7776
      %v7778 = vrot.slane %v7536, 2
      %v7779 = vsel %vm1328, %v7776, %v7778
      %v7802 = vunpack.c.l.b16 %v7748
      %v7803 = vunpack.c.l.b16 %v7749
      %v7804 = vunpack.c.l.b16 %v7750
      %v7805 = vunpack.c.l.b16 %v7751
      %v7806 = vunpack.c.l.b16 %v7752
      %v7807 = vunpack.c.l.b16 %v7753
      %v7808 = vunpack.c.l.b16 %v7754
      %v7809 = vunpack.c.l.b16 %v7755
      %v7810 = vunpack.c.l.b16 %v7756
      %v7811 = vunpack.c.l.b16 %v7757
      %v7812 = vunpack.c.l.b16 %v7758
      %v7813 = vunpack.c.l.b16 %v7759
      %v7814 = vunpack.c.l.b16 %v7760
      %v7815 = vunpack.c.l.b16 %v7761
      %v7816 = vunpack.c.l.b16 %v7762
      %v7817 = vunpack.c.l.b16 %v7763
      %v7818 = vpack.c.b16 %v7803, %v7802
      %v7819 = vpack.c.b16 %v7805, %v7804
      %v7820 = vpack.c.b16 %v7807, %v7806
      %v7821 = vpack.c.b16 %v7809, %v7808
      %v7822 = vpack.c.b16 %v7811, %v7810
      %v7823 = vpack.c.b16 %v7813, %v7812
      %v7824 = vpack.c.b16 %v7815, %v7814
      %v7825 = vpack.c.b16 %v7817, %v7816
      %7834 = vmatprep.subr.bf16.mxu0 0
      %7835 = vmatpush1.bf16.msra.mxu0 %v7818
      %7836 = vmatprep.subr.bf16.mxu0 0
      %7837 = vmatpush1.bf16.msra.mxu0 %v7819
      %7838 = vmatprep.subr.bf16.mxu0 0
      %7839 = vmatpush1.bf16.msra.mxu0 %v7820
      %7840 = vmatprep.subr.bf16.mxu0 0
      %7841 = vmatpush1.bf16.msra.mxu0 %v7821
      %7842 = vmatprep.subr.bf16.mxu0 0
      %7843 = vmatpush1.bf16.msra.mxu0 %v7822
      %7844 = vmatprep.subr.bf16.mxu0 0
      %7845 = vmatpush1.bf16.msra.mxu0 %v7823
      %7846 = vmatprep.subr.bf16.mxu0 0
      %7847 = vmatpush1.bf16.msra.mxu0 %v7824
      %7848 = vmatprep.subr.bf16.mxu0 0
      %7849 = vmatpush1.bf16.msra.mxu0 %v7825
      %7850 = vmatprep.subr.bf16.mxu0 0
      %7851 = vmatpush1.bf16.msra.mxu0 0
      %7852 = vmatprep.subr.bf16.mxu0 0
      %7853 = vmatpush1.bf16.msra.mxu0 0
      %7854 = vmatprep.subr.bf16.mxu0 0
      %7855 = vmatpush1.bf16.msra.mxu0 0
      %7856 = vmatprep.subr.bf16.mxu0 0
      %7857 = vmatpush1.bf16.msra.mxu0 0
      %7858 = vmatprep.subr.bf16.mxu0 0
      %7859 = vmatpush1.bf16.msra.mxu0 0
      %7860 = vmatprep.subr.bf16.mxu0 0
      %7861 = vmatpush1.bf16.msra.mxu0 0
      %7862 = vmatprep.subr.bf16.mxu0 0
      %7863 = vmatpush1.bf16.msra.mxu0 0
      %7864 = vmatprep.subr.bf16.mxu0 0
      %7865 = vmatpush1.bf16.msra.mxu0 0
      %7866 = vmatprep.mubr.bf16.mxu0 0
      %7867 = vmatmul.mubr.bf16.gmra.mrb[0].mxu0 %v7769
      %v7868 = vpop.f32.mrb[0].mxu0
      %v7869 = vadd.f32 0.0, %v7868
      %v7870 = vpop.f32.mrb[0].mxu0
      %v7871 = vpop.f32.mrb[0].mxu0
      %v7872 = vadd.f32 0.0, %v7871
      %v7873 = vpop.f32.mrb[0].mxu0
      %7874 = vmatprep.mubr.bf16.mxu0 0
      %7875 = vmatmul.mubr.bf16.gmra.mrb[0].mxu0 %v7771
      %v7876 = vpop.f32.mrb[0].mxu0
      %v7877 = vadd.f32 0.0, %v7876
      %v7878 = vpop.f32.mrb[0].mxu0
      %v7879 = vpop.f32.mrb[0].mxu0
      %v7880 = vadd.f32 0.0, %v7879
      %v7881 = vpop.f32.mrb[0].mxu0
      %7882 = vmatprep.mubr.bf16.mxu0 0
      %7883 = vmatmul.mubr.bf16.gmra.mrb[0].mxu0 %v7773
      %v7884 = vpop.f32.mrb[0].mxu0
      %v7885 = vadd.f32 0.0, %v7884
      %v7886 = vpop.f32.mrb[0].mxu0
      %v7887 = vpop.f32.mrb[0].mxu0
      %v7888 = vadd.f32 0.0, %v7887
      %v7889 = vpop.f32.mrb[0].mxu0
      %7890 = vmatprep.mubr.bf16.mxu0 0
      %7891 = vmatmul.mubr.bf16.gmra.mrb[0].mxu0 %v7775
      %v7892 = vpop.f32.mrb[0].mxu0
      %v7893 = vadd.f32 0.0, %v7892
      %v7894 = vpop.f32.mrb[0].mxu0
      %v7895 = vpop.f32.mrb[0].mxu0
      %v7896 = vadd.f32 0.0, %v7895
      %v7897 = vpop.f32.mrb[0].mxu0
      %7898 = vmatprep.mubr.bf16.mxu0 0
      %7899 = vmatmul.mubr.bf16.gmra.mrb[0].mxu0 %v7777
      %v7900 = vpop.f32.mrb[0].mxu0
      %v7901 = vadd.f32 0.0, %v7900
      %v7902 = vpop.f32.mrb[0].mxu0
      %v7903 = vpop.f32.mrb[0].mxu0
      %v7904 = vadd.f32 0.0, %v7903
      %v7905 = vpop.f32.mrb[0].mxu0
      %7906 = vmatprep.mubr.bf16.mxu0 0
      %7907 = vmatmul.mubr.bf16.gmra.mrb[0].mxu0 %v7779
      %v7908 = vpop.f32.mrb[0].mxu0
      %v7909 = vadd.f32 0.0, %v7908
      %v7910 = vpop.f32.mrb[0].mxu0
      %v7911 = vpop.f32.mrb[0].mxu0
      %v7912 = vadd.f32 0.0, %v7911
      %v7913 = vpop.f32.mrb[0].mxu0
      %7914 = vdwg.mxu0
      %v7915 = vadd.f32 %v7734, %v7869
      %v7916 = vadd.f32 %v7735, %v7872
      %v7917 = vadd.f32 %v7736, %v7877
      %v7918 = vadd.f32 %v7737, %v7880
      %v7919 = vadd.f32 %v7738, %v7885
      %v7920 = vadd.f32 %v7739, %v7888
      %v7921 = vadd.f32 %v7740, %v7893
      %v7922 = vadd.f32 %v7741, %v7896
      %v7923 = vadd.f32 %v7742, %v7901
      %v7924 = vadd.f32 %v7743, %v7904
      %v7925 = vadd.f32 %v7744, %v7909
      %v7926 = vadd.f32 %v7745, %v7912
      %v7927 = vld [vmem:[#allocation2 + $0x10] sm:$0xc]
      %v7928 = vld [vmem:[#allocation2 + $0x14] sm:$0xf]
      %v7929 = vld [vmem:[#allocation2 + $0x18] sm:$0xf]
      %v7930 = vld [vmem:[#allocation2 + $0x1c] sm:$0xf]
      %v7931 = vld [vmem:[#allocation2 + $0x20] sm:$0xf]
      %v7932 = vld [vmem:[#allocation2 + $0x24] sm:$0xf]
      %v7933 = vld [vmem:[#allocation2 + $0x28] sm:$0xf]
      %v7934 = vld [vmem:[#allocation2 + $0x2c] sm:$0xf]
      %v7935 = vld [vmem:[#allocation2 + $0x30] sm:$0xf]
      %v7936 = vld [vmem:[#allocation2 + $0x34] sm:$0xf]
      %v7937 = vld [vmem:[#allocation2 + $0x38] sm:$0xf]
      %v7938 = vld [vmem:[#allocation2 + $0x3c] sm:$0xf]
      %v7939 = vld [vmem:[#allocation2 + $0x40] sm:$0x3]
      %s7940 = scalar_lea.vmem %s3, 384
      %v7941 = vld [vmem:[%s7940] sm:$0xf]
      %v7942 = vld [vmem:[%s7940 + $0x4] sm:$0xf]
      %v7943 = vld [vmem:[%s7940 + $0x8] sm:$0xf]
      %v7944 = vld [vmem:[%s7940 + $0xc] sm:$0xf]
      %v7945 = vld [vmem:[%s7940 + $0x10] sm:$0xf]
      %v7946 = vld [vmem:[%s7940 + $0x14] sm:$0xf]
      %v7947 = vld [vmem:[%s7940 + $0x18] sm:$0xf]
      %v7948 = vld [vmem:[%s7940 + $0x1c] sm:$0xf]
      %v7949 = vld [vmem:[%s7940 + $0x20] sm:$0xf]
      %v7950 = vld [vmem:[%s7940 + $0x24] sm:$0xf]
      %v7951 = vld [vmem:[%s7940 + $0x28] sm:$0xf]
      %v7952 = vld [vmem:[%s7940 + $0x2c] sm:$0xf]
      %v7953 = vld [vmem:[%s7940 + $0x30] sm:$0xf]
      %v7954 = vld [vmem:[%s7940 + $0x34] sm:$0xf]
      %v7955 = vld [vmem:[%s7940 + $0x38] sm:$0xf]
      %v7956 = vld [vmem:[%s7940 + $0x3c] sm:$0xf]
      %v7970 = vunpack.c.l.b16 %v7927
      %v7971 = vunpack.c.l.b16 %v7928
      %v7972 = vunpack.c.l.b16 %v7929
      %v7973 = vunpack.c.l.b16 %v7930
      %v7974 = vunpack.c.l.b16 %v7931
      %v7975 = vunpack.c.l.b16 %v7932
      %v7976 = vunpack.c.l.b16 %v7933
      %v7977 = vunpack.c.l.b16 %v7934
      %v7978 = vunpack.c.l.b16 %v7935
      %v7979 = vunpack.c.l.b16 %v7936
      %v7980 = vunpack.c.l.b16 %v7937
      %v7981 = vunpack.c.l.b16 %v7938
      %v7982 = vunpack.c.l.b16 %v7939
      %v7983 = vpack.c.b16 %v7971, %v7970
      %v7984 = vpack.c.b16 %v7973, %v7972
      %v7985 = vpack.c.b16 %v7975, %v7974
      %v7986 = vpack.c.b16 %v7977, %v7976
      %v7987 = vpack.c.b16 %v7979, %v7978
      %v7988 = vpack.c.b16 %v7981, %v7980
      %v7989 = vpack.c.b16 %v7982, %v7982
      %v7990 = vrot.slane %v7983, 2
      %v7991 = vrot.slane %v7984, 2
      %v7992 = vsel %vm1328, %v7990, %v7991
      %v7993 = vrot.slane %v7985, 2
      %v7994 = vsel %vm1328, %v7991, %v7993
      %v7995 = vrot.slane %v7986, 2
      %v7996 = vsel %vm1328, %v7993, %v7995
      %v7997 = vrot.slane %v7987, 2
      %v7998 = vsel %vm1328, %v7995, %v7997
      %v7999 = vrot.slane %v7988, 2
      %v8000 = vsel %vm1328, %v7997, %v7999
      %v8001 = vrot.slane %v7989, 2
      %v8002 = vsel %vm1328, %v7999, %v8001
      %v8025 = vunpack.c.l.b16 %v7941
      %v8026 = vunpack.c.l.b16 %v7942
      %v8027 = vunpack.c.l.b16 %v7943
      %v8028 = vunpack.c.l.b16 %v7944
      %v8029 = vunpack.c.l.b16 %v7945
      %v8030 = vunpack.c.l.b16 %v7946
      %v8031 = vunpack.c.l.b16 %v7947
      %v8032 = vunpack.c.l.b16 %v7948
      %v8033 = vunpack.c.l.b16 %v7949
      %v8034 = vunpack.c.l.b16 %v7950
      %v8035 = vunpack.c.l.b16 %v7951
      %v8036 = vunpack.c.l.b16 %v7952
      %v8037 = vunpack.c.l.b16 %v7953
      %v8038 = vunpack.c.l.b16 %v7954
      %v8039 = vunpack.c.l.b16 %v7955
      %v8040 = vunpack.c.l.b16 %v7956
      %v8041 = vpack.c.b16 %v8026, %v8025
      %v8042 = vpack.c.b16 %v8028, %v8027
      %v8043 = vpack.c.b16 %v8030, %v8029
      %v8044 = vpack.c.b16 %v8032, %v8031
      %v8045 = vpack.c.b16 %v8034, %v8033
      %v8046 = vpack.c.b16 %v8036, %v8035
      %v8047 = vpack.c.b16 %v8038, %v8037
      %v8048 = vpack.c.b16 %v8040, %v8039
      %8057 = vmatprep.subr.bf16.mxu0 0
      %8058 = vmatpush1.bf16.msra.mxu0 %v8041
      %8059 = vmatprep.subr.bf16.mxu0 0
      %8060 = vmatpush1.bf16.msra.mxu0 %v8042
      %8061 = vmatprep.subr.bf16.mxu0 0
      %8062 = vmatpush1.bf16.msra.mxu0 %v8043
      %8063 = vmatprep.subr.bf16.mxu0 0
      %8064 = vmatpush1.bf16.msra.mxu0 %v8044
      %8065 = vmatprep.subr.bf16.mxu0 0
      %8066 = vmatpush1.bf16.msra.mxu0 %v8045
      %8067 = vmatprep.subr.bf16.mxu0 0
      %8068 = vmatpush1.bf16.msra.mxu0 %v8046
      %8069 = vmatprep.subr.bf16.mxu0 0
      %8070 = vmatpush1.bf16.msra.mxu0 %v8047
      %8071 = vmatprep.subr.bf16.mxu0 0
      %8072 = vmatpush1.bf16.msra.mxu0 %v8048
      %8073 = vmatprep.subr.bf16.mxu0 0
      %8074 = vmatpush1.bf16.msra.mxu0 0
      %8075 = vmatprep.subr.bf16.mxu0 0
      %8076 = vmatpush1.bf16.msra.mxu0 0
      %8077 = vmatprep.subr.bf16.mxu0 0
      %8078 = vmatpush1.bf16.msra.mxu0 0
      %8079 = vmatprep.subr.bf16.mxu0 0
      %8080 = vmatpush1.bf16.msra.mxu0 0
      %8081 = vmatprep.subr.bf16.mxu0 0
      %8082 = vmatpush1.bf16.msra.mxu0 0
      %8083 = vmatprep.subr.bf16.mxu0 0
      %8084 = vmatpush1.bf16.msra.mxu0 0
      %8085 = vmatprep.subr.bf16.mxu0 0
      %8086 = vmatpush1.bf16.msra.mxu0 0
      %8087 = vmatprep.subr.bf16.mxu0 0
      %8088 = vmatpush1.bf16.msra.mxu0 0
      %8089 = vmatprep.mubr.bf16.mxu0 0
      %8090 = vmatmul.mubr.bf16.gmra.mrb[0].mxu0 %v7992
      %v8091 = vpop.f32.mrb[0].mxu0
      %v8092 = vadd.f32 0.0, %v8091
      %v8093 = vpop.f32.mrb[0].mxu0
      %v8094 = vpop.f32.mrb[0].mxu0
      %v8095 = vadd.f32 0.0, %v8094
      %v8096 = vpop.f32.mrb[0].mxu0
      %8097 = vmatprep.mubr.bf16.mxu0 0
      %8098 = vmatmul.mubr.bf16.gmra.mrb[0].mxu0 %v7994
      %v8099 = vpop.f32.mrb[0].mxu0
      %v8100 = vadd.f32 0.0, %v8099
      %v8101 = vpop.f32.mrb[0].mxu0
      %v8102 = vpop.f32.mrb[0].mxu0
      %v8103 = vadd.f32 0.0, %v8102
      %v8104 = vpop.f32.mrb[0].mxu0
      %8105 = vmatprep.mubr.bf16.mxu0 0
      %8106 = vmatmul.mubr.bf16.gmra.mrb[0].mxu0 %v7996
      %v8107 = vpop.f32.mrb[0].mxu0
      %v8108 = vadd.f32 0.0, %v8107
      %v8109 = vpop.f32.mrb[0].mxu0
      %v8110 = vpop.f32.mrb[0].mxu0
      %v8111 = vadd.f32 0.0, %v8110
      %v8112 = vpop.f32.mrb[0].mxu0
      %8113 = vmatprep.mubr.bf16.mxu0 0
      %8114 = vmatmul.mubr.bf16.gmra.mrb[0].mxu0 %v7998
      %v8115 = vpop.f32.mrb[0].mxu0
      %v8116 = vadd.f32 0.0, %v8115
      %v8117 = vpop.f32.mrb[0].mxu0
      %v8118 = vpop.f32.mrb[0].mxu0
      %v8119 = vadd.f32 0.0, %v8118
      %v8120 = vpop.f32.mrb[0].mxu0
      %8121 = vmatprep.mubr.bf16.mxu0 0
      %8122 = vmatmul.mubr.bf16.gmra.mrb[0].mxu0 %v8000
      %v8123 = vpop.f32.mrb[0].mxu0
      %v8124 = vadd.f32 0.0, %v8123
      %v8125 = vpop.f32.mrb[0].mxu0
      %v8126 = vpop.f32.mrb[0].mxu0
      %v8127 = vadd.f32 0.0, %v8126
      %v8128 = vpop.f32.mrb[0].mxu0
      %8129 = vmatprep.mubr.bf16.mxu0 0
      %8130 = vmatmul.mubr.bf16.gmra.mrb[0].mxu0 %v8002
      %v8131 = vpop.f32.mrb[0].mxu0
      %v8132 = vadd.f32 0.0, %v8131
      %v8133 = vpop.f32.mrb[0].mxu0
      %v8134 = vpop.f32.mrb[0].mxu0
      %v8135 = vadd.f32 0.0, %v8134
      %v8136 = vpop.f32.mrb[0].mxu0
      %8137 = vdwg.mxu0
      %v8138 = vadd.f32 %v7915, %v8092
      %v8139 = vadd.f32 %v7916, %v8095
      %v8140 = vadd.f32 %v7917, %v8100
      %v8141 = vadd.f32 %v7918, %v8103
      %v8142 = vadd.f32 %v7919, %v8108
      %v8143 = vadd.f32 %v7920, %v8111
      %v8144 = vadd.f32 %v7921, %v8116
      %v8145 = vadd.f32 %v7922, %v8119
      %v8146 = vadd.f32 %v7923, %v8124
      %v8147 = vadd.f32 %v7924, %v8127
      %v8148 = vadd.f32 %v7925, %v8132
      %v8149 = vadd.f32 %v7926, %v8135
      %v8150 = vld [vmem:[#allocation2 + $0x40] sm:$0x7]
      %s8151 = scalar_lea.vmem %s3, 448
      %v8152 = vld [vmem:[%s8151] sm:$0xf]
      %v8153 = vld [vmem:[%s8151 + $0x4] sm:$0xf]
      %v8154 = vld [vmem:[%s8151 + $0x8] sm:$0xf]
      %v8155 = vld [vmem:[%s8151 + $0xc] sm:$0xf]
      %v8156 = vld [vmem:[%s8151 + $0x10] sm:$0xf]
      %v8157 = vld [vmem:[%s8151 + $0x14] sm:$0xf]
      %v8158 = vld [vmem:[%s8151 + $0x18] sm:$0xf]
      %v8159 = vld [vmem:[%s8151 + $0x1c] sm:$0xf]
      %v8160 = vld [vmem:[%s8151 + $0x20] sm:$0xf]
      %v8161 = vld [vmem:[%s8151 + $0x24] sm:$0xf]
      %v8162 = vld [vmem:[%s8151 + $0x28] sm:$0xf]
      %v8163 = vld [vmem:[%s8151 + $0x2c] sm:$0xf]
      %v8164 = vld [vmem:[%s8151 + $0x30] sm:$0xf]
      %v8165 = vld [vmem:[%s8151 + $0x34] sm:$0xf]
      %v8166 = vld [vmem:[%s8151 + $0x38] sm:$0xf]
      %v8167 = vld [vmem:[%s8151 + $0x3c] sm:$0xf]
      %v8169 = vunpack.c.l.b16 %v8150
      %v8170 = vpack.c.b16 %v8169, %v8169
      %v8172 = vshrl.u32 %v7983, 16
      %v8174 = vrot.slane %v8172, 2
      %v8175 = vshll.u32 %v7983, 16
      %v8177 = vrot.slane %v8175, 3
      %v8178 = vor.u32 %v8174, %v8177
      %v8180 = vshrl.u32 %v7984, 16
      %v8182 = vrot.slane %v8180, 2
      %v8183 = vshll.u32 %v7984, 16
      %v8185 = vrot.slane %v8183, 3
      %v8186 = vor.u32 %v8182, %v8185
      %v8187 = vsel %vm1733, %v8178, %v8186
      %v8189 = vshrl.u32 %v7985, 16
      %v8191 = vrot.slane %v8189, 2
      %v8192 = vshll.u32 %v7985, 16
      %v8194 = vrot.slane %v8192, 3
      %v8195 = vor.u32 %v8191, %v8194
      %v8196 = vsel %vm1733, %v8186, %v8195
      %v8198 = vshrl.u32 %v7986, 16
      %v8200 = vrot.slane %v8198, 2
      %v8201 = vshll.u32 %v7986, 16
      %v8203 = vrot.slane %v8201, 3
      %v8204 = vor.u32 %v8200, %v8203
      %v8205 = vsel %vm1733, %v8195, %v8204
      %v8207 = vshrl.u32 %v7987, 16
      %v8209 = vrot.slane %v8207, 2
      %v8210 = vshll.u32 %v7987, 16
      %v8212 = vrot.slane %v8210, 3
      %v8213 = vor.u32 %v8209, %v8212
      %v8214 = vsel %vm1733, %v8204, %v8213
      %v8216 = vshrl.u32 %v7988, 16
      %v8218 = vrot.slane %v8216, 2
      %v8219 = vshll.u32 %v7988, 16
      %v8221 = vrot.slane %v8219, 3
      %v8222 = vor.u32 %v8218, %v8221
      %v8223 = vsel %vm1733, %v8213, %v8222
      %v8225 = vshrl.u32 %v8170, 16
      %v8227 = vrot.slane %v8225, 2
      %v8228 = vshll.u32 %v8170, 16
      %v8230 = vrot.slane %v8228, 3
      %v8231 = vor.u32 %v8227, %v8230
      %v8232 = vsel %vm1733, %v8222, %v8231
      %v8255 = vunpack.c.l.b16 %v8152
      %v8256 = vunpack.c.l.b16 %v8153
      %v8257 = vunpack.c.l.b16 %v8154
      %v8258 = vunpack.c.l.b16 %v8155
      %v8259 = vunpack.c.l.b16 %v8156
      %v8260 = vunpack.c.l.b16 %v8157
      %v8261 = vunpack.c.l.b16 %v8158
      %v8262 = vunpack.c.l.b16 %v8159
      %v8263 = vunpack.c.l.b16 %v8160
      %v8264 = vunpack.c.l.b16 %v8161
      %v8265 = vunpack.c.l.b16 %v8162
      %v8266 = vunpack.c.l.b16 %v8163
      %v8267 = vunpack.c.l.b16 %v8164
      %v8268 = vunpack.c.l.b16 %v8165
      %v8269 = vunpack.c.l.b16 %v8166
      %v8270 = vunpack.c.l.b16 %v8167
      %v8271 = vpack.c.b16 %v8256, %v8255
      %v8272 = vpack.c.b16 %v8258, %v8257
      %v8273 = vpack.c.b16 %v8260, %v8259
      %v8274 = vpack.c.b16 %v8262, %v8261
      %v8275 = vpack.c.b16 %v8264, %v8263
      %v8276 = vpack.c.b16 %v8266, %v8265
      %v8277 = vpack.c.b16 %v8268, %v8267
      %v8278 = vpack.c.b16 %v8270, %v8269
      %8287 = vmatprep.subr.bf16.mxu0 0
      %8288 = vmatpush1.bf16.msra.mxu0 %v8271
      %8289 = vmatprep.subr.bf16.mxu0 0
      %8290 = vmatpush1.bf16.msra.mxu0 %v8272
      %8291 = vmatprep.subr.bf16.mxu0 0
      %8292 = vmatpush1.bf16.msra.mxu0 %v8273
      %8293 = vmatprep.subr.bf16.mxu0 0
      %8294 = vmatpush1.bf16.msra.mxu0 %v8274
      %8295 = vmatprep.subr.bf16.mxu0 0
      %8296 = vmatpush1.bf16.msra.mxu0 %v8275
      %8297 = vmatprep.subr.bf16.mxu0 0
      %8298 = vmatpush1.bf16.msra.mxu0 %v8276
      %8299 = vmatprep.subr.bf16.mxu0 0
      %8300 = vmatpush1.bf16.msra.mxu0 %v8277
      %8301 = vmatprep.subr.bf16.mxu0 0
      %8302 = vmatpush1.bf16.msra.mxu0 %v8278
      %8303 = vmatprep.subr.bf16.mxu0 0
      %8304 = vmatpush1.bf16.msra.mxu0 0
      %8305 = vmatprep.subr.bf16.mxu0 0
      %8306 = vmatpush1.bf16.msra.mxu0 0
      %8307 = vmatprep.subr.bf16.mxu0 0
      %8308 = vmatpush1.bf16.msra.mxu0 0
      %8309 = vmatprep.subr.bf16.mxu0 0
      %8310 = vmatpush1.bf16.msra.mxu0 0
      %8311 = vmatprep.subr.bf16.mxu0 0
      %8312 = vmatpush1.bf16.msra.mxu0 0
      %8313 = vmatprep.subr.bf16.mxu0 0
      %8314 = vmatpush1.bf16.msra.mxu0 0
      %8315 = vmatprep.subr.bf16.mxu0 0
      %8316 = vmatpush1.bf16.msra.mxu0 0
      %8317 = vmatprep.subr.bf16.mxu0 0
      %8318 = vmatpush1.bf16.msra.mxu0 0
      %8319 = vmatprep.mubr.bf16.mxu0 0
      %8320 = vmatmul.mubr.bf16.gmra.mrb[0].mxu0 %v8187
      %v8321 = vpop.f32.mrb[0].mxu0
      %v8322 = vadd.f32 0.0, %v8321
      %v8323 = vpop.f32.mrb[0].mxu0
      %v8324 = vpop.f32.mrb[0].mxu0
      %v8325 = vadd.f32 0.0, %v8324
      %v8326 = vpop.f32.mrb[0].mxu0
      %8327 = vmatprep.mubr.bf16.mxu0 0
      %8328 = vmatmul.mubr.bf16.gmra.mrb[0].mxu0 %v8196
      %v8329 = vpop.f32.mrb[0].mxu0
      %v8330 = vadd.f32 0.0, %v8329
      %v8331 = vpop.f32.mrb[0].mxu0
      %v8332 = vpop.f32.mrb[0].mxu0
      %v8333 = vadd.f32 0.0, %v8332
      %v8334 = vpop.f32.mrb[0].mxu0
      %8335 = vmatprep.mubr.bf16.mxu0 0
      %8336 = vmatmul.mubr.bf16.gmra.mrb[0].mxu0 %v8205
      %v8337 = vpop.f32.mrb[0].mxu0
      %v8338 = vadd.f32 0.0, %v8337
      %v8339 = vpop.f32.mrb[0].mxu0
      %v8340 = vpop.f32.mrb[0].mxu0
      %v8341 = vadd.f32 0.0, %v8340
      %v8342 = vpop.f32.mrb[0].mxu0
      %8343 = vmatprep.mubr.bf16.mxu0 0
      %8344 = vmatmul.mubr.bf16.gmra.mrb[0].mxu0 %v8214
      %v8345 = vpop.f32.mrb[0].mxu0
      %v8346 = vadd.f32 0.0, %v8345
      %v8347 = vpop.f32.mrb[0].mxu0
      %v8348 = vpop.f32.mrb[0].mxu0
      %v8349 = vadd.f32 0.0, %v8348
      %v8350 = vpop.f32.mrb[0].mxu0
      %8351 = vmatprep.mubr.bf16.mxu0 0
      %8352 = vmatmul.mubr.bf16.gmra.mrb[0].mxu0 %v8223
      %v8353 = vpop.f32.mrb[0].mxu0
      %v8354 = vadd.f32 0.0, %v8353
      %v8355 = vpop.f32.mrb[0].mxu0
      %v8356 = vpop.f32.mrb[0].mxu0
      %v8357 = vadd.f32 0.0, %v8356
      %v8358 = vpop.f32.mrb[0].mxu0
      %8359 = vmatprep.mubr.bf16.mxu0 0
      %8360 = vmatmul.mubr.bf16.gmra.mrb[0].mxu0 %v8232
      %v8361 = vpop.f32.mrb[0].mxu0
      %v8362 = vadd.f32 0.0, %v8361
      %v8363 = vpop.f32.mrb[0].mxu0
      %v8364 = vpop.f32.mrb[0].mxu0
      %v8365 = vadd.f32 0.0, %v8364
      %v8366 = vpop.f32.mrb[0].mxu0
      %8367 = vdwg.mxu0
      %v8368 = vadd.f32 %v8138, %v8322
      %v8369 = vadd.f32 %v8139, %v8325
      %v8370 = vadd.f32 %v8140, %v8330
      %v8371 = vadd.f32 %v8141, %v8333
      %v8372 = vadd.f32 %v8142, %v8338
      %v8373 = vadd.f32 %v8143, %v8341
      %v8374 = vadd.f32 %v8144, %v8346
      %v8375 = vadd.f32 %v8145, %v8349
      %v8376 = vadd.f32 %v8146, %v8354
      %v8377 = vadd.f32 %v8147, %v8357
      %v8378 = vadd.f32 %v8148, %v8362
      %v8379 = vadd.f32 %v8149, %v8365
      %v8380 = vld [vmem:[#allocation2 + $0x10] sm:$0x8]
      %s8381 = scalar_lea.vmem %s3, 512
      %v8382 = vld [vmem:[%s8381] sm:$0xf]
      %v8383 = vld [vmem:[%s8381 + $0x4] sm:$0xf]
      %v8384 = vld [vmem:[%s8381 + $0x8] sm:$0xf]
      %v8385 = vld [vmem:[%s8381 + $0xc] sm:$0xf]
      %v8386 = vld [vmem:[%s8381 + $0x10] sm:$0xf]
      %v8387 = vld [vmem:[%s8381 + $0x14] sm:$0xf]
      %v8388 = vld [vmem:[%s8381 + $0x18] sm:$0xf]
      %v8389 = vld [vmem:[%s8381 + $0x1c] sm:$0xf]
      %v8390 = vld [vmem:[%s8381 + $0x20] sm:$0xf]
      %v8391 = vld [vmem:[%s8381 + $0x24] sm:$0xf]
      %v8392 = vld [vmem:[%s8381 + $0x28] sm:$0xf]
      %v8393 = vld [vmem:[%s8381 + $0x2c] sm:$0xf]
      %v8394 = vld [vmem:[%s8381 + $0x30] sm:$0xf]
      %v8395 = vld [vmem:[%s8381 + $0x34] sm:$0xf]
      %v8396 = vld [vmem:[%s8381 + $0x38] sm:$0xf]
      %v8397 = vld [vmem:[%s8381 + $0x3c] sm:$0xf]
      %v8399 = vunpack.c.l.b16 %v8380
      %v8400 = vpack.c.b16 %v7971, %v8399
      %v8401 = vrot.slane %v8400, 3
      %v8402 = vrot.slane %v7984, 3
      %v8403 = vsel %vm1964, %v8401, %v8402
      %v8404 = vrot.slane %v7985, 3
      %v8405 = vsel %vm1964, %v8402, %v8404
      %v8406 = vrot.slane %v7986, 3
      %v8407 = vsel %vm1964, %v8404, %v8406
      %v8408 = vrot.slane %v7987, 3
      %v8409 = vsel %vm1964, %v8406, %v8408
      %v8410 = vrot.slane %v7988, 3
      %v8411 = vsel %vm1964, %v8408, %v8410
      %v8412 = vrot.slane %v8170, 3
      %v8413 = vsel %vm1964, %v8410, %v8412
      %v8436 = vunpack.c.l.b16 %v8382
      %v8437 = vunpack.c.l.b16 %v8383
      %v8438 = vunpack.c.l.b16 %v8384
      %v8439 = vunpack.c.l.b16 %v8385
      %v8440 = vunpack.c.l.b16 %v8386
      %v8441 = vunpack.c.l.b16 %v8387
      %v8442 = vunpack.c.l.b16 %v8388
      %v8443 = vunpack.c.l.b16 %v8389
      %v8444 = vunpack.c.l.b16 %v8390
      %v8445 = vunpack.c.l.b16 %v8391
      %v8446 = vunpack.c.l.b16 %v8392
      %v8447 = vunpack.c.l.b16 %v8393
      %v8448 = vunpack.c.l.b16 %v8394
      %v8449 = vunpack.c.l.b16 %v8395
      %v8450 = vunpack.c.l.b16 %v8396
      %v8451 = vunpack.c.l.b16 %v8397
      %v8452 = vpack.c.b16 %v8437, %v8436
      %v8453 = vpack.c.b16 %v8439, %v8438
      %v8454 = vpack.c.b16 %v8441, %v8440
      %v8455 = vpack.c.b16 %v8443, %v8442
      %v8456 = vpack.c.b16 %v8445, %v8444
      %v8457 = vpack.c.b16 %v8447, %v8446
      %v8458 = vpack.c.b16 %v8449, %v8448
      %v8459 = vpack.c.b16 %v8451, %v8450
      %8468 = vmatprep.subr.bf16.mxu0 0
      %8469 = vmatpush1.bf16.msra.mxu0 %v8452
      %8470 = vmatprep.subr.bf16.mxu0 0
      %8471 = vmatpush1.bf16.msra.mxu0 %v8453
      %8472 = vmatprep.subr.bf16.mxu0 0
      %8473 = vmatpush1.bf16.msra.mxu0 %v8454
      %8474 = vmatprep.subr.bf16.mxu0 0
      %8475 = vmatpush1.bf16.msra.mxu0 %v8455
      %8476 = vmatprep.subr.bf16.mxu0 0
      %8477 = vmatpush1.bf16.msra.mxu0 %v8456
      %8478 = vmatprep.subr.bf16.mxu0 0
      %8479 = vmatpush1.bf16.msra.mxu0 %v8457
      %8480 = vmatprep.subr.bf16.mxu0 0
      %8481 = vmatpush1.bf16.msra.mxu0 %v8458
      %8482 = vmatprep.subr.bf16.mxu0 0
      %8483 = vmatpush1.bf16.msra.mxu0 %v8459
      %8484 = vmatprep.subr.bf16.mxu0 0
      %8485 = vmatpush1.bf16.msra.mxu0 0
      %8486 = vmatprep.subr.bf16.mxu0 0
      %8487 = vmatpush1.bf16.msra.mxu0 0
      %8488 = vmatprep.subr.bf16.mxu0 0
      %8489 = vmatpush1.bf16.msra.mxu0 0
      %8490 = vmatprep.subr.bf16.mxu0 0
      %8491 = vmatpush1.bf16.msra.mxu0 0
      %8492 = vmatprep.subr.bf16.mxu0 0
      %8493 = vmatpush1.bf16.msra.mxu0 0
      %8494 = vmatprep.subr.bf16.mxu0 0
      %8495 = vmatpush1.bf16.msra.mxu0 0
      %8496 = vmatprep.subr.bf16.mxu0 0
      %8497 = vmatpush1.bf16.msra.mxu0 0
      %8498 = vmatprep.subr.bf16.mxu0 0
      %8499 = vmatpush1.bf16.msra.mxu0 0
      %8500 = vmatprep.mubr.bf16.mxu0 0
      %8501 = vmatmul.mubr.bf16.gmra.mrb[0].mxu0 %v8403
      %v8502 = vpop.f32.mrb[0].mxu0
      %v8503 = vadd.f32 0.0, %v8502
      %v8504 = vpop.f32.mrb[0].mxu0
      %v8505 = vpop.f32.mrb[0].mxu0
      %v8506 = vadd.f32 0.0, %v8505
      %v8507 = vpop.f32.mrb[0].mxu0
      %8508 = vmatprep.mubr.bf16.mxu0 0
      %8509 = vmatmul.mubr.bf16.gmra.mrb[0].mxu0 %v8405
      %v8510 = vpop.f32.mrb[0].mxu0
      %v8511 = vadd.f32 0.0, %v8510
      %v8512 = vpop.f32.mrb[0].mxu0
      %v8513 = vpop.f32.mrb[0].mxu0
      %v8514 = vadd.f32 0.0, %v8513
      %v8515 = vpop.f32.mrb[0].mxu0
      %8516 = vmatprep.mubr.bf16.mxu0 0
      %8517 = vmatmul.mubr.bf16.gmra.mrb[0].mxu0 %v8407
      %v8518 = vpop.f32.mrb[0].mxu0
      %v8519 = vadd.f32 0.0, %v8518
      %v8520 = vpop.f32.mrb[0].mxu0
      %v8521 = vpop.f32.mrb[0].mxu0
      %v8522 = vadd.f32 0.0, %v8521
      %v8523 = vpop.f32.mrb[0].mxu0
      %8524 = vmatprep.mubr.bf16.mxu0 0
      %8525 = vmatmul.mubr.bf16.gmra.mrb[0].mxu0 %v8409
      %v8526 = vpop.f32.mrb[0].mxu0
      %v8527 = vadd.f32 0.0, %v8526
      %v8528 = vpop.f32.mrb[0].mxu0
      %v8529 = vpop.f32.mrb[0].mxu0
      %v8530 = vadd.f32 0.0, %v8529
      %v8531 = vpop.f32.mrb[0].mxu0
      %8532 = vmatprep.mubr.bf16.mxu0 0
      %8533 = vmatmul.mubr.bf16.gmra.mrb[0].mxu0 %v8411
      %v8534 = vpop.f32.mrb[0].mxu0
      %v8535 = vadd.f32 0.0, %v8534
      %v8536 = vpop.f32.mrb[0].mxu0
      %v8537 = vpop.f32.mrb[0].mxu0
      %v8538 = vadd.f32 0.0, %v8537
      %v8539 = vpop.f32.mrb[0].mxu0
      %8540 = vmatprep.mubr.bf16.mxu0 0
      %8541 = vmatmul.mubr.bf16.gmra.mrb[0].mxu0 %v8413
      %v8542 = vpop.f32.mrb[0].mxu0
      %v8543 = vadd.f32 0.0, %v8542
      %v8544 = vpop.f32.mrb[0].mxu0
      %v8545 = vpop.f32.mrb[0].mxu0
      %v8546 = vadd.f32 0.0, %v8545
      %v8547 = vpop.f32.mrb[0].mxu0
      %8548 = vdwg.mxu0
      %v8549 = vadd.f32 %v8368, %v8503
      %v8550 = vadd.f32 %v8369, %v8506
      %v8551 = vadd.f32 %v8370, %v8511
      %v8552 = vadd.f32 %v8371, %v8514
      %v8553 = vadd.f32 %v8372, %v8519
      %v8554 = vadd.f32 %v8373, %v8522
      %v8555 = vadd.f32 %v8374, %v8527
      %v8556 = vadd.f32 %v8375, %v8530
      %v8557 = vadd.f32 %v8376, %v8535
      %v8558 = vadd.f32 %v8377, %v8538
      %v8559 = vadd.f32 %v8378, %v8543
      %v8560 = vadd.f32 %v8379, %v8546
      %v8561 = vld [vmem:[%s246 + $0x8] sm:$0xe]
      %v8562 = vld [vmem:[%s246 + $0xc] sm:$0xf]
      %v8563 = vld [vmem:[%s246 + $0x10] sm:$0xf]
      %v8564 = vld [vmem:[%s246 + $0x14] sm:$0xf]
      %v8565 = vld [vmem:[%s246 + $0x18] sm:$0xf]
      %v8566 = vld [vmem:[%s246 + $0x1c] sm:$0xf]
      %v8567 = vld [vmem:[%s246 + $0x20] sm:$0xf]
      %v8568 = vld [vmem:[%s246 + $0x24] sm:$0xf]
      %v8569 = vld [vmem:[%s246 + $0x28] sm:$0xf]
      %v8570 = vld [vmem:[%s246 + $0x2c] sm:$0xf]
      %v8571 = vld [vmem:[%s246 + $0x30] sm:$0xf]
      %v8572 = vld [vmem:[%s246 + $0x34] sm:$0xf]
      %v8573 = vld [vmem:[%s246 + $0x38] sm:$0x3]
      %v8574 = vunpack.c.l.bf16 %v8561
      %v8575 = vunpack.c.l.bf16 %v8562
      %v8576 = vunpack.c.l.bf16 %v8563
      %v8577 = vunpack.c.l.bf16 %v8564
      %v8578 = vunpack.c.l.bf16 %v8565
      %v8579 = vunpack.c.l.bf16 %v8566
      %v8580 = vunpack.c.l.bf16 %v8567
      %v8581 = vunpack.c.l.bf16 %v8568
      %v8582 = vunpack.c.l.bf16 %v8569
      %v8583 = vunpack.c.l.bf16 %v8570
      %v8584 = vunpack.c.l.bf16 %v8571
      %v8585 = vunpack.c.l.bf16 %v8572
      %v8586 = vunpack.c.l.bf16 %v8573
      %v8587 = vld [vmem:[%s5] sm:$0x1]
      %v8589 = vlaneseq
      %v8590 = vshrl.u32 %v8589, 7
      %v8591 = vsub.s32 0, %v8590
      %v8592 = vrot.slane %v8587, %v8591
      %v8594 = vadd.f32 %v8549, %v8592
      %v8595 = vadd.f32 %v8550, %v8592
      %v8596 = vadd.f32 %v8551, %v8592
      %v8597 = vadd.f32 %v8552, %v8592
      %v8598 = vadd.f32 %v8553, %v8592
      %v8599 = vadd.f32 %v8554, %v8592
      %v8600 = vadd.f32 %v8555, %v8592
      %v8601 = vadd.f32 %v8556, %v8592
      %v8602 = vadd.f32 %v8557, %v8592
      %v8603 = vadd.f32 %v8558, %v8592
      %v8604 = vadd.f32 %v8559, %v8592
      %v8605 = vadd.f32 %v8560, %v8592
      %vm8619 = vcmask 1044480
      %v8620 = vrot.slane %v8574, 3
      %v8621 = vrot.slane %v8575, 3
      %v8622 = vsel %vm8619, %v8620, %v8621
      %v8623 = vrot.slane %v8576, 3
      %v8624 = vsel %vm8619, %v8621, %v8623
      %v8625 = vrot.slane %v8577, 3
      %v8626 = vsel %vm8619, %v8623, %v8625
      %v8627 = vrot.slane %v8578, 3
      %v8628 = vsel %vm8619, %v8625, %v8627
      %v8629 = vrot.slane %v8579, 3
      %v8630 = vsel %vm8619, %v8627, %v8629
      %v8631 = vrot.slane %v8580, 3
      %v8632 = vsel %vm8619, %v8629, %v8631
      %v8633 = vrot.slane %v8581, 3
      %v8634 = vsel %vm8619, %v8631, %v8633
      %v8635 = vrot.slane %v8582, 3
      %v8636 = vsel %vm8619, %v8633, %v8635
      %v8637 = vrot.slane %v8583, 3
      %v8638 = vsel %vm8619, %v8635, %v8637
      %v8639 = vrot.slane %v8584, 3
      %v8640 = vsel %vm8619, %v8637, %v8639
      %v8641 = vrot.slane %v8585, 3
      %v8642 = vsel %vm8619, %v8639, %v8641
      %v8643 = vrot.slane %v8586, 3
      %v8644 = vsel %vm8619, %v8641, %v8643
      %v8657 = vadd.f32 %v8594, %v8622
      %v8658 = vadd.f32 %v8595, %v8624
      %v8659 = vadd.f32 %v8596, %v8626
      %v8660 = vadd.f32 %v8597, %v8628
      %v8661 = vadd.f32 %v8598, %v8630
      %v8662 = vadd.f32 %v8599, %v8632
      %v8663 = vadd.f32 %v8600, %v8634
      %v8664 = vadd.f32 %v8601, %v8636
      %v8665 = vadd.f32 %v8602, %v8638
      %v8666 = vadd.f32 %v8603, %v8640
      %v8667 = vadd.f32 %v8604, %v8642
      %v8668 = vadd.f32 %v8605, %v8644
      %v8669 = vmax.f32 %v8657, 0.0
      %v8670 = vmax.f32 %v8658, 0.0
      %v8671 = vmax.f32 %v8659, 0.0
      %v8672 = vmax.f32 %v8660, 0.0
      %v8673 = vmax.f32 %v8661, 0.0
      %v8674 = vmax.f32 %v8662, 0.0
      %v8675 = vmax.f32 %v8663, 0.0
      %v8676 = vmax.f32 %v8664, 0.0
      %v8677 = vmax.f32 %v8665, 0.0
      %v8678 = vmax.f32 %v8666, 0.0
      %v8679 = vmax.f32 %v8667, 0.0
      %v8680 = vmax.f32 %v8668, 0.0
      %8681 = vst [vmem:[%s251] sm:$0xff] %v8669
      %8682 = vst [vmem:[%s251 + $0x8] sm:$0xff] %v8670
      %8683 = vst [vmem:[%s251 + $0x10] sm:$0xff] %v8671
      %8684 = vst [vmem:[%s251 + $0x18] sm:$0xff] %v8672
      %8685 = vst [vmem:[%s251 + $0x20] sm:$0xff] %v8673
      %8686 = vst [vmem:[%s251 + $0x28] sm:$0xff] %v8674
      %8687 = vst [vmem:[%s251 + $0x30] sm:$0xff] %v8675
      %8688 = vst [vmem:[%s251 + $0x38] sm:$0xff] %v8676
      %8689 = vst [vmem:[%s251 + $0x40] sm:$0xff] %v8677
      %8690 = vst [vmem:[%s251 + $0x48] sm:$0xff] %v8678
      %8691 = vst [vmem:[%s251 + $0x50] sm:$0xff] %v8679
      %8692 = vst [vmem:[%s251 + $0x58] sm:$0xff] %v8680
      %v8693 = vld [vmem:[#allocation2 + $0x30] sm:$0xf]
      %v8694 = vld [vmem:[#allocation2 + $0x34] sm:$0xf]
      %v8695 = vld [vmem:[#allocation2 + $0x38] sm:$0xf]
      %v8696 = vld [vmem:[#allocation2 + $0x3c] sm:$0xf]
      %v8697 = vld [vmem:[#allocation2 + $0x40] sm:$0xf]
      %v8698 = vld [vmem:[#allocation2 + $0x44] sm:$0xf]
      %v8699 = vld [vmem:[#allocation2 + $0x48] sm:$0xf]
      %v8700 = vld [vmem:[#allocation2 + $0x4c] sm:$0xf]
      %v8701 = vld [vmem:[#allocation2 + $0x50] sm:$0xf]
      %v8702 = vld [vmem:[#allocation2 + $0x54] sm:$0xf]
      %v8703 = vld [vmem:[#allocation2 + $0x58] sm:$0xf]
      %v8704 = vld [vmem:[#allocation2 + $0x5c] sm:$0xf]
      %v8705 = vld [vmem:[%s3] sm:$0xf]
      %v8706 = vld [vmem:[%s3 + $0x4] sm:$0xf]
      %v8707 = vld [vmem:[%s3 + $0x8] sm:$0xf]
      %v8708 = vld [vmem:[%s3 + $0xc] sm:$0xf]
      %v8709 = vld [vmem:[%s3 + $0x10] sm:$0xf]
      %v8710 = vld [vmem:[%s3 + $0x14] sm:$0xf]
      %v8711 = vld [vmem:[%s3 + $0x18] sm:$0xf]
      %v8712 = vld [vmem:[%s3 + $0x1c] sm:$0xf]
      %v8713 = vld [vmem:[%s3 + $0x20] sm:$0xf]
      %v8714 = vld [vmem:[%s3 + $0x24] sm:$0xf]
      %v8715 = vld [vmem:[%s3 + $0x28] sm:$0xf]
      %v8716 = vld [vmem:[%s3 + $0x2c] sm:$0xf]
      %v8717 = vld [vmem:[%s3 + $0x30] sm:$0xf]
      %v8718 = vld [vmem:[%s3 + $0x34] sm:$0xf]
      %v8719 = vld [vmem:[%s3 + $0x38] sm:$0xf]
      %v8720 = vld [vmem:[%s3 + $0x3c] sm:$0xf]
      %v8721 = vld [vmem:[#allocation2 + $0x60] sm:$0x1]
      %v8722 = vld [vmem:[%s6740] sm:$0xf]
      %v8723 = vld [vmem:[%s6740 + $0x4] sm:$0xf]
      %v8724 = vld [vmem:[%s6740 + $0x8] sm:$0xf]
      %v8725 = vld [vmem:[%s6740 + $0xc] sm:$0xf]
      %v8726 = vld [vmem:[%s6740 + $0x10] sm:$0xf]
      %v8727 = vld [vmem:[%s6740 + $0x14] sm:$0xf]
      %v8728 = vld [vmem:[%s6740 + $0x18] sm:$0xf]
      %v8729 = vld [vmem:[%s6740 + $0x1c] sm:$0xf]
      %v8730 = vld [vmem:[%s6740 + $0x20] sm:$0xf]
      %v8731 = vld [vmem:[%s6740 + $0x24] sm:$0xf]
      %v8732 = vld [vmem:[%s6740 + $0x28] sm:$0xf]
      %v8733 = vld [vmem:[%s6740 + $0x2c] sm:$0xf]
      %v8734 = vld [vmem:[%s6740 + $0x30] sm:$0xf]
      %v8735 = vld [vmem:[%s6740 + $0x34] sm:$0xf]
      %v8736 = vld [vmem:[%s6740 + $0x38] sm:$0xf]
      %v8737 = vld [vmem:[%s6740 + $0x3c] sm:$0xf]
      %v8751 = vunpack.c.l.b16 %v8693
      %v8752 = vunpack.c.l.b16 %v8694
      %v8753 = vunpack.c.l.b16 %v8695
      %v8754 = vunpack.c.l.b16 %v8696
      %v8755 = vunpack.c.l.b16 %v8697
      %v8756 = vunpack.c.l.b16 %v8698
      %v8757 = vunpack.c.l.b16 %v8699
      %v8758 = vunpack.c.l.b16 %v8700
      %v8759 = vunpack.c.l.b16 %v8701
      %v8760 = vunpack.c.l.b16 %v8702
      %v8761 = vunpack.c.l.b16 %v8703
      %v8762 = vunpack.c.l.b16 %v8704
      %v8763 = vunpack.c.l.b16 %v8721
      %v8764 = vpack.c.b16 %v8752, %v8751
      %v8765 = vpack.c.b16 %v8754, %v8753
      %v8766 = vpack.c.b16 %v8756, %v8755
      %v8767 = vpack.c.b16 %v8758, %v8757
      %v8768 = vpack.c.b16 %v8760, %v8759
      %v8769 = vpack.c.b16 %v8762, %v8761
      %v8770 = vpack.c.b16 %v8763, %v8763
      %v8772 = vshrl.u32 %v8764, 16
      %v8774 = vshll.u32 %v8764, 16
      %v8776 = vrot.slane %v8774, 1
      %v8777 = vor.u32 %v8772, %v8776
      %v8779 = vshll.u32 %v8765, 16
      %v8781 = vrot.slane %v8779, 1
      %v8782 = vsel %vm348, %v8777, %v8781
      %v8783 = vshrl.u32 %v8765, 16
      %v8785 = vor.u32 %v8783, %v8781
      %v8787 = vshll.u32 %v8766, 16
      %v8789 = vrot.slane %v8787, 1
      %v8790 = vsel %vm348, %v8785, %v8789
      %v8791 = vshrl.u32 %v8766, 16
      %v8793 = vor.u32 %v8791, %v8789
      %v8795 = vshll.u32 %v8767, 16
      %v8797 = vrot.slane %v8795, 1
      %v8798 = vsel %vm348, %v8793, %v8797
      %v8799 = vshrl.u32 %v8767, 16
      %v8801 = vor.u32 %v8799, %v8797
      %v8803 = vshll.u32 %v8768, 16
      %v8805 = vrot.slane %v8803, 1
      %v8806 = vsel %vm348, %v8801, %v8805
      %v8807 = vshrl.u32 %v8768, 16
      %v8809 = vor.u32 %v8807, %v8805
      %v8811 = vshll.u32 %v8769, 16
      %v8813 = vrot.slane %v8811, 1
      %v8814 = vsel %vm348, %v8809, %v8813
      %v8815 = vshrl.u32 %v8769, 16
      %v8817 = vor.u32 %v8815, %v8813
      %v8819 = vshll.u32 %v8770, 16
      %v8821 = vrot.slane %v8819, 1
      %v8822 = vsel %vm348, %v8817, %v8821
      %v8845 = vunpack.c.l.b16 %v8722
      %v8846 = vunpack.c.l.b16 %v8723
      %v8847 = vunpack.c.l.b16 %v8724
      %v8848 = vunpack.c.l.b16 %v8725
      %v8849 = vunpack.c.l.b16 %v8726
      %v8850 = vunpack.c.l.b16 %v8727
      %v8851 = vunpack.c.l.b16 %v8728
      %v8852 = vunpack.c.l.b16 %v8729
      %v8853 = vunpack.c.l.b16 %v8730
      %v8854 = vunpack.c.l.b16 %v8731
      %v8855 = vunpack.c.l.b16 %v8732
      %v8856 = vunpack.c.l.b16 %v8733
      %v8857 = vunpack.c.l.b16 %v8734
      %v8858 = vunpack.c.l.b16 %v8735
      %v8859 = vunpack.c.l.b16 %v8736
      %v8860 = vunpack.c.l.b16 %v8737
      %v8861 = vpack.c.b16 %v8846, %v8845
      %v8862 = vpack.c.b16 %v8848, %v8847
      %v8863 = vpack.c.b16 %v8850, %v8849
      %v8864 = vpack.c.b16 %v8852, %v8851
      %v8865 = vpack.c.b16 %v8854, %v8853
      %v8866 = vpack.c.b16 %v8856, %v8855
      %v8867 = vpack.c.b16 %v8858, %v8857
      %v8868 = vpack.c.b16 %v8860, %v8859
      %8877 = vmatprep.subr.bf16.mxu0 0
      %8878 = vmatpush1.bf16.msra.mxu0 %v8861
      %8879 = vmatprep.subr.bf16.mxu0 0
      %8880 = vmatpush1.bf16.msra.mxu0 %v8862
      %8881 = vmatprep.subr.bf16.mxu0 0
      %8882 = vmatpush1.bf16.msra.mxu0 %v8863
      %8883 = vmatprep.subr.bf16.mxu0 0
      %8884 = vmatpush1.bf16.msra.mxu0 %v8864
      %8885 = vmatprep.subr.bf16.mxu0 0
      %8886 = vmatpush1.bf16.msra.mxu0 %v8865
      %8887 = vmatprep.subr.bf16.mxu0 0
      %8888 = vmatpush1.bf16.msra.mxu0 %v8866
      %8889 = vmatprep.subr.bf16.mxu0 0
      %8890 = vmatpush1.bf16.msra.mxu0 %v8867
      %8891 = vmatprep.subr.bf16.mxu0 0
      %8892 = vmatpush1.bf16.msra.mxu0 %v8868
      %8893 = vmatprep.subr.bf16.mxu0 0
      %8894 = vmatpush1.bf16.msra.mxu0 0
      %8895 = vmatprep.subr.bf16.mxu0 0
      %8896 = vmatpush1.bf16.msra.mxu0 0
      %8897 = vmatprep.subr.bf16.mxu0 0
      %8898 = vmatpush1.bf16.msra.mxu0 0
      %8899 = vmatprep.subr.bf16.mxu0 0
      %8900 = vmatpush1.bf16.msra.mxu0 0
      %8901 = vmatprep.subr.bf16.mxu0 0
      %8902 = vmatpush1.bf16.msra.mxu0 0
      %8903 = vmatprep.subr.bf16.mxu0 0
      %8904 = vmatpush1.bf16.msra.mxu0 0
      %8905 = vmatprep.subr.bf16.mxu0 0
      %8906 = vmatpush1.bf16.msra.mxu0 0
      %8907 = vmatprep.subr.bf16.mxu0 0
      %8908 = vmatpush1.bf16.msra.mxu0 0
      %8909 = vmatprep.mubr.bf16.mxu0 0
      %8910 = vmatmul.mubr.bf16.gmra.mrb[0].mxu0 %v8782
      %v8911 = vpop.f32.mrb[0].mxu0
      %v8912 = vadd.f32 0.0, %v8911
      %v8913 = vpop.f32.mrb[0].mxu0
      %v8914 = vpop.f32.mrb[0].mxu0
      %v8915 = vadd.f32 0.0, %v8914
      %v8916 = vpop.f32.mrb[0].mxu0
      %8917 = vmatprep.mubr.bf16.mxu0 0
      %8918 = vmatmul.mubr.bf16.gmra.mrb[0].mxu0 %v8790
      %v8919 = vpop.f32.mrb[0].mxu0
      %v8920 = vadd.f32 0.0, %v8919
      %v8921 = vpop.f32.mrb[0].mxu0
      %v8922 = vpop.f32.mrb[0].mxu0
      %v8923 = vadd.f32 0.0, %v8922
      %v8924 = vpop.f32.mrb[0].mxu0
      %8925 = vmatprep.mubr.bf16.mxu0 0
      %8926 = vmatmul.mubr.bf16.gmra.mrb[0].mxu0 %v8798
      %v8927 = vpop.f32.mrb[0].mxu0
      %v8928 = vadd.f32 0.0, %v8927
      %v8929 = vpop.f32.mrb[0].mxu0
      %v8930 = vpop.f32.mrb[0].mxu0
      %v8931 = vadd.f32 0.0, %v8930
      %v8932 = vpop.f32.mrb[0].mxu0
      %8933 = vmatprep.mubr.bf16.mxu0 0
      %8934 = vmatmul.mubr.bf16.gmra.mrb[0].mxu0 %v8806
      %v8935 = vpop.f32.mrb[0].mxu0
      %v8936 = vadd.f32 0.0, %v8935
      %v8937 = vpop.f32.mrb[0].mxu0
      %v8938 = vpop.f32.mrb[0].mxu0
      %v8939 = vadd.f32 0.0, %v8938
      %v8940 = vpop.f32.mrb[0].mxu0
      %8941 = vmatprep.mubr.bf16.mxu0 0
      %8942 = vmatmul.mubr.bf16.gmra.mrb[0].mxu0 %v8814
      %v8943 = vpop.f32.mrb[0].mxu0
      %v8944 = vadd.f32 0.0, %v8943
      %v8945 = vpop.f32.mrb[0].mxu0
      %v8946 = vpop.f32.mrb[0].mxu0
      %v8947 = vadd.f32 0.0, %v8946
      %v8948 = vpop.f32.mrb[0].mxu0
      %8949 = vmatprep.mubr.bf16.mxu0 0
      %8950 = vmatmul.mubr.bf16.gmra.mrb[0].mxu0 %v8822
      %v8951 = vpop.f32.mrb[0].mxu0
      %v8952 = vadd.f32 0.0, %v8951
      %v8953 = vpop.f32.mrb[0].mxu0
      %v8954 = vpop.f32.mrb[0].mxu0
      %v8955 = vadd.f32 0.0, %v8954
      %v8956 = vpop.f32.mrb[0].mxu0
      %8957 = vdwg.mxu0
      %v8980 = vunpack.c.l.b16 %v8705
      %v8981 = vunpack.c.l.b16 %v8706
      %v8982 = vunpack.c.l.b16 %v8707
      %v8983 = vunpack.c.l.b16 %v8708
      %v8984 = vunpack.c.l.b16 %v8709
      %v8985 = vunpack.c.l.b16 %v8710
      %v8986 = vunpack.c.l.b16 %v8711
      %v8987 = vunpack.c.l.b16 %v8712
      %v8988 = vunpack.c.l.b16 %v8713
      %v8989 = vunpack.c.l.b16 %v8714
      %v8990 = vunpack.c.l.b16 %v8715
      %v8991 = vunpack.c.l.b16 %v8716
      %v8992 = vunpack.c.l.b16 %v8717
      %v8993 = vunpack.c.l.b16 %v8718
      %v8994 = vunpack.c.l.b16 %v8719
      %v8995 = vunpack.c.l.b16 %v8720
      %v8996 = vpack.c.b16 %v8981, %v8980
      %v8997 = vpack.c.b16 %v8983, %v8982
      %v8998 = vpack.c.b16 %v8985, %v8984
      %v8999 = vpack.c.b16 %v8987, %v8986
      %v9000 = vpack.c.b16 %v8989, %v8988
      %v9001 = vpack.c.b16 %v8991, %v8990
      %v9002 = vpack.c.b16 %v8993, %v8992
      %v9003 = vpack.c.b16 %v8995, %v8994
      %9012 = vmatprep.subr.bf16.mxu0 0
      %9013 = vmatpush1.bf16.msra.mxu0 %v8996
      %9014 = vmatprep.subr.bf16.mxu0 0
      %9015 = vmatpush1.bf16.msra.mxu0 %v8997
      %9016 = vmatprep.subr.bf16.mxu0 0
      %9017 = vmatpush1.bf16.msra.mxu0 %v8998
      %9018 = vmatprep.subr.bf16.mxu0 0
      %9019 = vmatpush1.bf16.msra.mxu0 %v8999
      %9020 = vmatprep.subr.bf16.mxu0 0
      %9021 = vmatpush1.bf16.msra.mxu0 %v9000
      %9022 = vmatprep.subr.bf16.mxu0 0
      %9023 = vmatpush1.bf16.msra.mxu0 %v9001
      %9024 = vmatprep.subr.bf16.mxu0 0
      %9025 = vmatpush1.bf16.msra.mxu0 %v9002
      %9026 = vmatprep.subr.bf16.mxu0 0
      %9027 = vmatpush1.bf16.msra.mxu0 %v9003
      %9028 = vmatprep.subr.bf16.mxu0 0
      %9029 = vmatpush1.bf16.msra.mxu0 0
      %9030 = vmatprep.subr.bf16.mxu0 0
      %9031 = vmatpush1.bf16.msra.mxu0 0
      %9032 = vmatprep.subr.bf16.mxu0 0
      %9033 = vmatpush1.bf16.msra.mxu0 0
      %9034 = vmatprep.subr.bf16.mxu0 0
      %9035 = vmatpush1.bf16.msra.mxu0 0
      %9036 = vmatprep.subr.bf16.mxu0 0
      %9037 = vmatpush1.bf16.msra.mxu0 0
      %9038 = vmatprep.subr.bf16.mxu0 0
      %9039 = vmatpush1.bf16.msra.mxu0 0
      %9040 = vmatprep.subr.bf16.mxu0 0
      %9041 = vmatpush1.bf16.msra.mxu0 0
      %9042 = vmatprep.subr.bf16.mxu0 0
      %9043 = vmatpush1.bf16.msra.mxu0 0
      %9044 = vmatprep.mubr.bf16.mxu0 0
      %9045 = vmatmul.mubr.bf16.gmra.mrb[0].mxu0 %v8764
      %v9046 = vpop.f32.mrb[0].mxu0
      %v9047 = vadd.f32 %v8912, %v9046
      %v9048 = vpop.f32.mrb[0].mxu0
      %v9049 = vpop.f32.mrb[0].mxu0
      %v9050 = vadd.f32 %v8915, %v9049
      %v9051 = vpop.f32.mrb[0].mxu0
      %9052 = vmatprep.mubr.bf16.mxu0 0
      %9053 = vmatmul.mubr.bf16.gmra.mrb[0].mxu0 %v8765
      %v9054 = vpop.f32.mrb[0].mxu0
      %v9055 = vadd.f32 %v8920, %v9054
      %v9056 = vpop.f32.mrb[0].mxu0
      %v9057 = vpop.f32.mrb[0].mxu0
      %v9058 = vadd.f32 %v8923, %v9057
      %v9059 = vpop.f32.mrb[0].mxu0
      %9060 = vmatprep.mubr.bf16.mxu0 0
      %9061 = vmatmul.mubr.bf16.gmra.mrb[0].mxu0 %v8766
      %v9062 = vpop.f32.mrb[0].mxu0
      %v9063 = vadd.f32 %v8928, %v9062
      %v9064 = vpop.f32.mrb[0].mxu0
      %v9065 = vpop.f32.mrb[0].mxu0
      %v9066 = vadd.f32 %v8931, %v9065
      %v9067 = vpop.f32.mrb[0].mxu0
      %9068 = vmatprep.mubr.bf16.mxu0 0
      %9069 = vmatmul.mubr.bf16.gmra.mrb[0].mxu0 %v8767
      %v9070 = vpop.f32.mrb[0].mxu0
      %v9071 = vadd.f32 %v8936, %v9070
      %v9072 = vpop.f32.mrb[0].mxu0
      %v9073 = vpop.f32.mrb[0].mxu0
      %v9074 = vadd.f32 %v8939, %v9073
      %v9075 = vpop.f32.mrb[0].mxu0
      %9076 = vmatprep.mubr.bf16.mxu0 0
      %9077 = vmatmul.mubr.bf16.gmra.mrb[0].mxu0 %v8768
      %v9078 = vpop.f32.mrb[0].mxu0
      %v9079 = vadd.f32 %v8944, %v9078
      %v9080 = vpop.f32.mrb[0].mxu0
      %v9081 = vpop.f32.mrb[0].mxu0
      %v9082 = vadd.f32 %v8947, %v9081
      %v9083 = vpop.f32.mrb[0].mxu0
      %9084 = vmatprep.mubr.bf16.mxu0 0
      %9085 = vmatmul.mubr.bf16.gmra.mrb[0].mxu0 %v8769
      %v9086 = vpop.f32.mrb[0].mxu0
      %v9087 = vadd.f32 %v8952, %v9086
      %v9088 = vpop.f32.mrb[0].mxu0
      %v9089 = vpop.f32.mrb[0].mxu0
      %v9090 = vadd.f32 %v8955, %v9089
      %v9091 = vpop.f32.mrb[0].mxu0
      %9092 = vdwg.mxu0
      %v9093 = vld [vmem:[#allocation2 + $0x30] sm:$0xe]
      %v9094 = vld [vmem:[%s7113] sm:$0xf]
      %v9095 = vld [vmem:[%s7113 + $0x4] sm:$0xf]
      %v9096 = vld [vmem:[%s7113 + $0x8] sm:$0xf]
      %v9097 = vld [vmem:[%s7113 + $0xc] sm:$0xf]
      %v9098 = vld [vmem:[%s7113 + $0x10] sm:$0xf]
      %v9099 = vld [vmem:[%s7113 + $0x14] sm:$0xf]
      %v9100 = vld [vmem:[%s7113 + $0x18] sm:$0xf]
      %v9101 = vld [vmem:[%s7113 + $0x1c] sm:$0xf]
      %v9102 = vld [vmem:[%s7113 + $0x20] sm:$0xf]
      %v9103 = vld [vmem:[%s7113 + $0x24] sm:$0xf]
      %v9104 = vld [vmem:[%s7113 + $0x28] sm:$0xf]
      %v9105 = vld [vmem:[%s7113 + $0x2c] sm:$0xf]
      %v9106 = vld [vmem:[%s7113 + $0x30] sm:$0xf]
      %v9107 = vld [vmem:[%s7113 + $0x34] sm:$0xf]
      %v9108 = vld [vmem:[%s7113 + $0x38] sm:$0xf]
      %v9109 = vld [vmem:[%s7113 + $0x3c] sm:$0xf]
      %v9111 = vunpack.c.l.b16 %v9093
      %v9112 = vpack.c.b16 %v8752, %v9111
      %v9113 = vrot.slane %v9112, 1
      %v9114 = vrot.slane %v8765, 1
      %v9115 = vsel %vm692, %v9113, %v9114
      %v9116 = vrot.slane %v8766, 1
      %v9117 = vsel %vm692, %v9114, %v9116
      %v9118 = vrot.slane %v8767, 1
      %v9119 = vsel %vm692, %v9116, %v9118
      %v9120 = vrot.slane %v8768, 1
      %v9121 = vsel %vm692, %v9118, %v9120
      %v9122 = vrot.slane %v8769, 1
      %v9123 = vsel %vm692, %v9120, %v9122
      %v9124 = vrot.slane %v8770, 1
      %v9125 = vsel %vm692, %v9122, %v9124
      %v9148 = vunpack.c.l.b16 %v9094
      %v9149 = vunpack.c.l.b16 %v9095
      %v9150 = vunpack.c.l.b16 %v9096
      %v9151 = vunpack.c.l.b16 %v9097
      %v9152 = vunpack.c.l.b16 %v9098
      %v9153 = vunpack.c.l.b16 %v9099
      %v9154 = vunpack.c.l.b16 %v9100
      %v9155 = vunpack.c.l.b16 %v9101
      %v9156 = vunpack.c.l.b16 %v9102
      %v9157 = vunpack.c.l.b16 %v9103
      %v9158 = vunpack.c.l.b16 %v9104
      %v9159 = vunpack.c.l.b16 %v9105
      %v9160 = vunpack.c.l.b16 %v9106
      %v9161 = vunpack.c.l.b16 %v9107
      %v9162 = vunpack.c.l.b16 %v9108
      %v9163 = vunpack.c.l.b16 %v9109
      %v9164 = vpack.c.b16 %v9149, %v9148
      %v9165 = vpack.c.b16 %v9151, %v9150
      %v9166 = vpack.c.b16 %v9153, %v9152
      %v9167 = vpack.c.b16 %v9155, %v9154
      %v9168 = vpack.c.b16 %v9157, %v9156
      %v9169 = vpack.c.b16 %v9159, %v9158
      %v9170 = vpack.c.b16 %v9161, %v9160
      %v9171 = vpack.c.b16 %v9163, %v9162
      %9180 = vmatprep.subr.bf16.mxu0 0
      %9181 = vmatpush1.bf16.msra.mxu0 %v9164
      %9182 = vmatprep.subr.bf16.mxu0 0
      %9183 = vmatpush1.bf16.msra.mxu0 %v9165
      %9184 = vmatprep.subr.bf16.mxu0 0
      %9185 = vmatpush1.bf16.msra.mxu0 %v9166
      %9186 = vmatprep.subr.bf16.mxu0 0
      %9187 = vmatpush1.bf16.msra.mxu0 %v9167
      %9188 = vmatprep.subr.bf16.mxu0 0
      %9189 = vmatpush1.bf16.msra.mxu0 %v9168
      %9190 = vmatprep.subr.bf16.mxu0 0
      %9191 = vmatpush1.bf16.msra.mxu0 %v9169
      %9192 = vmatprep.subr.bf16.mxu0 0
      %9193 = vmatpush1.bf16.msra.mxu0 %v9170
      %9194 = vmatprep.subr.bf16.mxu0 0
      %9195 = vmatpush1.bf16.msra.mxu0 %v9171
      %9196 = vmatprep.subr.bf16.mxu0 0
      %9197 = vmatpush1.bf16.msra.mxu0 0
      %9198 = vmatprep.subr.bf16.mxu0 0
      %9199 = vmatpush1.bf16.msra.mxu0 0
      %9200 = vmatprep.subr.bf16.mxu0 0
      %9201 = vmatpush1.bf16.msra.mxu0 0
      %9202 = vmatprep.subr.bf16.mxu0 0
      %9203 = vmatpush1.bf16.msra.mxu0 0
      %9204 = vmatprep.subr.bf16.mxu0 0
      %9205 = vmatpush1.bf16.msra.mxu0 0
      %9206 = vmatprep.subr.bf16.mxu0 0
      %9207 = vmatpush1.bf16.msra.mxu0 0
      %9208 = vmatprep.subr.bf16.mxu0 0
      %9209 = vmatpush1.bf16.msra.mxu0 0
      %9210 = vmatprep.subr.bf16.mxu0 0
      %9211 = vmatpush1.bf16.msra.mxu0 0
      %9212 = vmatprep.mubr.bf16.mxu0 0
      %9213 = vmatmul.mubr.bf16.gmra.mrb[0].mxu0 %v9115
      %v9214 = vpop.f32.mrb[0].mxu0
      %v9215 = vadd.f32 0.0, %v9214
      %v9216 = vpop.f32.mrb[0].mxu0
      %v9217 = vpop.f32.mrb[0].mxu0
      %v9218 = vadd.f32 0.0, %v9217
      %v9219 = vpop.f32.mrb[0].mxu0
      %9220 = vmatprep.mubr.bf16.mxu0 0
      %9221 = vmatmul.mubr.bf16.gmra.mrb[0].mxu0 %v9117
      %v9222 = vpop.f32.mrb[0].mxu0
      %v9223 = vadd.f32 0.0, %v9222
      %v9224 = vpop.f32.mrb[0].mxu0
      %v9225 = vpop.f32.mrb[0].mxu0
      %v9226 = vadd.f32 0.0, %v9225
      %v9227 = vpop.f32.mrb[0].mxu0
      %9228 = vmatprep.mubr.bf16.mxu0 0
      %9229 = vmatmul.mubr.bf16.gmra.mrb[0].mxu0 %v9119
      %v9230 = vpop.f32.mrb[0].mxu0
      %v9231 = vadd.f32 0.0, %v9230
      %v9232 = vpop.f32.mrb[0].mxu0
      %v9233 = vpop.f32.mrb[0].mxu0
      %v9234 = vadd.f32 0.0, %v9233
      %v9235 = vpop.f32.mrb[0].mxu0
      %9236 = vmatprep.mubr.bf16.mxu0 0
      %9237 = vmatmul.mubr.bf16.gmra.mrb[0].mxu0 %v9121
      %v9238 = vpop.f32.mrb[0].mxu0
      %v9239 = vadd.f32 0.0, %v9238
      %v9240 = vpop.f32.mrb[0].mxu0
      %v9241 = vpop.f32.mrb[0].mxu0
      %v9242 = vadd.f32 0.0, %v9241
      %v9243 = vpop.f32.mrb[0].mxu0
      %9244 = vmatprep.mubr.bf16.mxu0 0
      %9245 = vmatmul.mubr.bf16.gmra.mrb[0].mxu0 %v9123
      %v9246 = vpop.f32.mrb[0].mxu0
      %v9247 = vadd.f32 0.0, %v9246
      %v9248 = vpop.f32.mrb[0].mxu0
      %v9249 = vpop.f32.mrb[0].mxu0
      %v9250 = vadd.f32 0.0, %v9249
      %v9251 = vpop.f32.mrb[0].mxu0
      %9252 = vmatprep.mubr.bf16.mxu0 0
      %9253 = vmatmul.mubr.bf16.gmra.mrb[0].mxu0 %v9125
      %v9254 = vpop.f32.mrb[0].mxu0
      %v9255 = vadd.f32 0.0, %v9254
      %v9256 = vpop.f32.mrb[0].mxu0
      %v9257 = vpop.f32.mrb[0].mxu0
      %v9258 = vadd.f32 0.0, %v9257
      %v9259 = vpop.f32.mrb[0].mxu0
      %9260 = vdwg.mxu0
      %v9261 = vadd.f32 %v9047, %v9215
      %v9262 = vadd.f32 %v9050, %v9218
      %v9263 = vadd.f32 %v9055, %v9223
      %v9264 = vadd.f32 %v9058, %v9226
      %v9265 = vadd.f32 %v9063, %v9231
      %v9266 = vadd.f32 %v9066, %v9234
      %v9267 = vadd.f32 %v9071, %v9239
      %v9268 = vadd.f32 %v9074, %v9242
      %v9269 = vadd.f32 %v9079, %v9247
      %v9270 = vadd.f32 %v9082, %v9250
      %v9271 = vadd.f32 %v9087, %v9255
      %v9272 = vadd.f32 %v9090, %v9258
      %v9273 = vld [vmem:[#allocation2 + $0x38] sm:$0xe]
      %v9274 = vld [vmem:[#allocation2 + $0x3c] sm:$0xf]
      %v9275 = vld [vmem:[#allocation2 + $0x40] sm:$0xf]
      %v9276 = vld [vmem:[#allocation2 + $0x44] sm:$0xf]
      %v9277 = vld [vmem:[#allocation2 + $0x48] sm:$0xf]
      %v9278 = vld [vmem:[#allocation2 + $0x4c] sm:$0xf]
      %v9279 = vld [vmem:[#allocation2 + $0x50] sm:$0xf]
      %v9280 = vld [vmem:[#allocation2 + $0x54] sm:$0xf]
      %v9281 = vld [vmem:[#allocation2 + $0x58] sm:$0xf]
      %v9282 = vld [vmem:[#allocation2 + $0x5c] sm:$0xf]
      %v9283 = vld [vmem:[#allocation2 + $0x60] sm:$0xf]
      %v9284 = vld [vmem:[#allocation2 + $0x64] sm:$0xf]
      %v9285 = vld [vmem:[#allocation2 + $0x68] sm:$0x1]
      %v9286 = vld [vmem:[%s7306] sm:$0xf]
      %v9287 = vld [vmem:[%s7306 + $0x4] sm:$0xf]
      %v9288 = vld [vmem:[%s7306 + $0x8] sm:$0xf]
      %v9289 = vld [vmem:[%s7306 + $0xc] sm:$0xf]
      %v9290 = vld [vmem:[%s7306 + $0x10] sm:$0xf]
      %v9291 = vld [vmem:[%s7306 + $0x14] sm:$0xf]
      %v9292 = vld [vmem:[%s7306 + $0x18] sm:$0xf]
      %v9293 = vld [vmem:[%s7306 + $0x1c] sm:$0xf]
      %v9294 = vld [vmem:[%s7306 + $0x20] sm:$0xf]
      %v9295 = vld [vmem:[%s7306 + $0x24] sm:$0xf]
      %v9296 = vld [vmem:[%s7306 + $0x28] sm:$0xf]
      %v9297 = vld [vmem:[%s7306 + $0x2c] sm:$0xf]
      %v9298 = vld [vmem:[%s7306 + $0x30] sm:$0xf]
      %v9299 = vld [vmem:[%s7306 + $0x34] sm:$0xf]
      %v9300 = vld [vmem:[%s7306 + $0x38] sm:$0xf]
      %v9301 = vld [vmem:[%s7306 + $0x3c] sm:$0xf]
      %v9315 = vunpack.c.l.b16 %v9273
      %v9316 = vunpack.c.l.b16 %v9274
      %v9317 = vunpack.c.l.b16 %v9275
      %v9318 = vunpack.c.l.b16 %v9276
      %v9319 = vunpack.c.l.b16 %v9277
      %v9320 = vunpack.c.l.b16 %v9278
      %v9321 = vunpack.c.l.b16 %v9279
      %v9322 = vunpack.c.l.b16 %v9280
      %v9323 = vunpack.c.l.b16 %v9281
      %v9324 = vunpack.c.l.b16 %v9282
      %v9325 = vunpack.c.l.b16 %v9283
      %v9326 = vunpack.c.l.b16 %v9284
      %v9327 = vunpack.c.l.b16 %v9285
      %v9328 = vpack.c.b16 %v9316, %v9315
      %v9329 = vpack.c.b16 %v9318, %v9317
      %v9330 = vpack.c.b16 %v9320, %v9319
      %v9331 = vpack.c.b16 %v9322, %v9321
      %v9332 = vpack.c.b16 %v9324, %v9323
      %v9333 = vpack.c.b16 %v9326, %v9325
      %v9334 = vpack.c.b16 %v9327, %v9327
      %v9335 = vrot.slane %v9328, 1
      %v9336 = vrot.slane %v9329, 1
      %v9337 = vsel %vm692, %v9335, %v9336
      %v9338 = vrot.slane %v9330, 1
      %v9339 = vsel %vm692, %v9336, %v9338
      %v9340 = vrot.slane %v9331, 1
      %v9341 = vsel %vm692, %v9338, %v9340
      %v9342 = vrot.slane %v9332, 1
      %v9343 = vsel %vm692, %v9340, %v9342
      %v9344 = vrot.slane %v9333, 1
      %v9345 = vsel %vm692, %v9342, %v9344
      %v9346 = vrot.slane %v9334, 1
      %v9347 = vsel %vm692, %v9344, %v9346
      %v9370 = vunpack.c.l.b16 %v9286
      %v9371 = vunpack.c.l.b16 %v9287
      %v9372 = vunpack.c.l.b16 %v9288
      %v9373 = vunpack.c.l.b16 %v9289
      %v9374 = vunpack.c.l.b16 %v9290
      %v9375 = vunpack.c.l.b16 %v9291
      %v9376 = vunpack.c.l.b16 %v9292
      %v9377 = vunpack.c.l.b16 %v9293
      %v9378 = vunpack.c.l.b16 %v9294
      %v9379 = vunpack.c.l.b16 %v9295
      %v9380 = vunpack.c.l.b16 %v9296
      %v9381 = vunpack.c.l.b16 %v9297
      %v9382 = vunpack.c.l.b16 %v9298
      %v9383 = vunpack.c.l.b16 %v9299
      %v9384 = vunpack.c.l.b16 %v9300
      %v9385 = vunpack.c.l.b16 %v9301
      %v9386 = vpack.c.b16 %v9371, %v9370
      %v9387 = vpack.c.b16 %v9373, %v9372
      %v9388 = vpack.c.b16 %v9375, %v9374
      %v9389 = vpack.c.b16 %v9377, %v9376
      %v9390 = vpack.c.b16 %v9379, %v9378
      %v9391 = vpack.c.b16 %v9381, %v9380
      %v9392 = vpack.c.b16 %v9383, %v9382
      %v9393 = vpack.c.b16 %v9385, %v9384
      %9402 = vmatprep.subr.bf16.mxu0 0
      %9403 = vmatpush1.bf16.msra.mxu0 %v9386
      %9404 = vmatprep.subr.bf16.mxu0 0
      %9405 = vmatpush1.bf16.msra.mxu0 %v9387
      %9406 = vmatprep.subr.bf16.mxu0 0
      %9407 = vmatpush1.bf16.msra.mxu0 %v9388
      %9408 = vmatprep.subr.bf16.mxu0 0
      %9409 = vmatpush1.bf16.msra.mxu0 %v9389
      %9410 = vmatprep.subr.bf16.mxu0 0
      %9411 = vmatpush1.bf16.msra.mxu0 %v9390
      %9412 = vmatprep.subr.bf16.mxu0 0
      %9413 = vmatpush1.bf16.msra.mxu0 %v9391
      %9414 = vmatprep.subr.bf16.mxu0 0
      %9415 = vmatpush1.bf16.msra.mxu0 %v9392
      %9416 = vmatprep.subr.bf16.mxu0 0
      %9417 = vmatpush1.bf16.msra.mxu0 %v9393
      %9418 = vmatprep.subr.bf16.mxu0 0
      %9419 = vmatpush1.bf16.msra.mxu0 0
      %9420 = vmatprep.subr.bf16.mxu0 0
      %9421 = vmatpush1.bf16.msra.mxu0 0
      %9422 = vmatprep.subr.bf16.mxu0 0
      %9423 = vmatpush1.bf16.msra.mxu0 0
      %9424 = vmatprep.subr.bf16.mxu0 0
      %9425 = vmatpush1.bf16.msra.mxu0 0
      %9426 = vmatprep.subr.bf16.mxu0 0
      %9427 = vmatpush1.bf16.msra.mxu0 0
      %9428 = vmatprep.subr.bf16.mxu0 0
      %9429 = vmatpush1.bf16.msra.mxu0 0
      %9430 = vmatprep.subr.bf16.mxu0 0
      %9431 = vmatpush1.bf16.msra.mxu0 0
      %9432 = vmatprep.subr.bf16.mxu0 0
      %9433 = vmatpush1.bf16.msra.mxu0 0
      %9434 = vmatprep.mubr.bf16.mxu0 0
      %9435 = vmatmul.mubr.bf16.gmra.mrb[0].mxu0 %v9337
      %v9436 = vpop.f32.mrb[0].mxu0
      %v9437 = vadd.f32 0.0, %v9436
      %v9438 = vpop.f32.mrb[0].mxu0
      %v9439 = vpop.f32.mrb[0].mxu0
      %v9440 = vadd.f32 0.0, %v9439
      %v9441 = vpop.f32.mrb[0].mxu0
      %9442 = vmatprep.mubr.bf16.mxu0 0
      %9443 = vmatmul.mubr.bf16.gmra.mrb[0].mxu0 %v9339
      %v9444 = vpop.f32.mrb[0].mxu0
      %v9445 = vadd.f32 0.0, %v9444
      %v9446 = vpop.f32.mrb[0].mxu0
      %v9447 = vpop.f32.mrb[0].mxu0
      %v9448 = vadd.f32 0.0, %v9447
      %v9449 = vpop.f32.mrb[0].mxu0
      %9450 = vmatprep.mubr.bf16.mxu0 0
      %9451 = vmatmul.mubr.bf16.gmra.mrb[0].mxu0 %v9341
      %v9452 = vpop.f32.mrb[0].mxu0
      %v9453 = vadd.f32 0.0, %v9452
      %v9454 = vpop.f32.mrb[0].mxu0
      %v9455 = vpop.f32.mrb[0].mxu0
      %v9456 = vadd.f32 0.0, %v9455
      %v9457 = vpop.f32.mrb[0].mxu0
      %9458 = vmatprep.mubr.bf16.mxu0 0
      %9459 = vmatmul.mubr.bf16.gmra.mrb[0].mxu0 %v9343
      %v9460 = vpop.f32.mrb[0].mxu0
      %v9461 = vadd.f32 0.0, %v9460
      %v9462 = vpop.f32.mrb[0].mxu0
      %v9463 = vpop.f32.mrb[0].mxu0
      %v9464 = vadd.f32 0.0, %v9463
      %v9465 = vpop.f32.mrb[0].mxu0
      %9466 = vmatprep.mubr.bf16.mxu0 0
      %9467 = vmatmul.mubr.bf16.gmra.mrb[0].mxu0 %v9345
      %v9468 = vpop.f32.mrb[0].mxu0
      %v9469 = vadd.f32 0.0, %v9468
      %v9470 = vpop.f32.mrb[0].mxu0
      %v9471 = vpop.f32.mrb[0].mxu0
      %v9472 = vadd.f32 0.0, %v9471
      %v9473 = vpop.f32.mrb[0].mxu0
      %9474 = vmatprep.mubr.bf16.mxu0 0
      %9475 = vmatmul.mubr.bf16.gmra.mrb[0].mxu0 %v9347
      %v9476 = vpop.f32.mrb[0].mxu0
      %v9477 = vadd.f32 0.0, %v9476
      %v9478 = vpop.f32.mrb[0].mxu0
      %v9479 = vpop.f32.mrb[0].mxu0
      %v9480 = vadd.f32 0.0, %v9479
      %v9481 = vpop.f32.mrb[0].mxu0
      %9482 = vdwg.mxu0
      %v9483 = vadd.f32 %v9261, %v9437
      %v9484 = vadd.f32 %v9262, %v9440
      %v9485 = vadd.f32 %v9263, %v9445
      %v9486 = vadd.f32 %v9264, %v9448
      %v9487 = vadd.f32 %v9265, %v9453
      %v9488 = vadd.f32 %v9266, %v9456
      %v9489 = vadd.f32 %v9267, %v9461
      %v9490 = vadd.f32 %v9268, %v9464
      %v9491 = vadd.f32 %v9269, %v9469
      %v9492 = vadd.f32 %v9270, %v9472
      %v9493 = vadd.f32 %v9271, %v9477
      %v9494 = vadd.f32 %v9272, %v9480
      %v9495 = vld [vmem:[#allocation2 + $0x68] sm:$0x3]
      %v9496 = vld [vmem:[%s7517] sm:$0xf]
      %v9497 = vld [vmem:[%s7517 + $0x4] sm:$0xf]
      %v9498 = vld [vmem:[%s7517 + $0x8] sm:$0xf]
      %v9499 = vld [vmem:[%s7517 + $0xc] sm:$0xf]
      %v9500 = vld [vmem:[%s7517 + $0x10] sm:$0xf]
      %v9501 = vld [vmem:[%s7517 + $0x14] sm:$0xf]
      %v9502 = vld [vmem:[%s7517 + $0x18] sm:$0xf]
      %v9503 = vld [vmem:[%s7517 + $0x1c] sm:$0xf]
      %v9504 = vld [vmem:[%s7517 + $0x20] sm:$0xf]
      %v9505 = vld [vmem:[%s7517 + $0x24] sm:$0xf]
      %v9506 = vld [vmem:[%s7517 + $0x28] sm:$0xf]
      %v9507 = vld [vmem:[%s7517 + $0x2c] sm:$0xf]
      %v9508 = vld [vmem:[%s7517 + $0x30] sm:$0xf]
      %v9509 = vld [vmem:[%s7517 + $0x34] sm:$0xf]
      %v9510 = vld [vmem:[%s7517 + $0x38] sm:$0xf]
      %v9511 = vld [vmem:[%s7517 + $0x3c] sm:$0xf]
      %v9513 = vunpack.c.l.b16 %v9495
      %v9514 = vpack.c.b16 %v9513, %v9513
      %v9516 = vshrl.u32 %v9328, 16
      %v9518 = vrot.slane %v9516, 1
      %v9519 = vshll.u32 %v9328, 16
      %v9521 = vrot.slane %v9519, 2
      %v9522 = vor.u32 %v9518, %v9521
      %v9524 = vshrl.u32 %v9329, 16
      %v9526 = vrot.slane %v9524, 1
      %v9527 = vshll.u32 %v9329, 16
      %v9529 = vrot.slane %v9527, 2
      %v9530 = vor.u32 %v9526, %v9529
      %v9531 = vsel %vm1097, %v9522, %v9530
      %v9533 = vshrl.u32 %v9330, 16
      %v9535 = vrot.slane %v9533, 1
      %v9536 = vshll.u32 %v9330, 16
      %v9538 = vrot.slane %v9536, 2
      %v9539 = vor.u32 %v9535, %v9538
      %v9540 = vsel %vm1097, %v9530, %v9539
      %v9542 = vshrl.u32 %v9331, 16
      %v9544 = vrot.slane %v9542, 1
      %v9545 = vshll.u32 %v9331, 16
      %v9547 = vrot.slane %v9545, 2
      %v9548 = vor.u32 %v9544, %v9547
      %v9549 = vsel %vm1097, %v9539, %v9548
      %v9551 = vshrl.u32 %v9332, 16
      %v9553 = vrot.slane %v9551, 1
      %v9554 = vshll.u32 %v9332, 16
      %v9556 = vrot.slane %v9554, 2
      %v9557 = vor.u32 %v9553, %v9556
      %v9558 = vsel %vm1097, %v9548, %v9557
      %v9560 = vshrl.u32 %v9333, 16
      %v9562 = vrot.slane %v9560, 1
      %v9563 = vshll.u32 %v9333, 16
      %v9565 = vrot.slane %v9563, 2
      %v9566 = vor.u32 %v9562, %v9565
      %v9567 = vsel %vm1097, %v9557, %v9566
      %v9569 = vshrl.u32 %v9514, 16
      %v9571 = vrot.slane %v9569, 1
      %v9572 = vshll.u32 %v9514, 16
      %v9574 = vrot.slane %v9572, 2
      %v9575 = vor.u32 %v9571, %v9574
      %v9576 = vsel %vm1097, %v9566, %v9575
      %v9599 = vunpack.c.l.b16 %v9496
      %v9600 = vunpack.c.l.b16 %v9497
      %v9601 = vunpack.c.l.b16 %v9498
      %v9602 = vunpack.c.l.b16 %v9499
      %v9603 = vunpack.c.l.b16 %v9500
      %v9604 = vunpack.c.l.b16 %v9501
      %v9605 = vunpack.c.l.b16 %v9502
      %v9606 = vunpack.c.l.b16 %v9503
      %v9607 = vunpack.c.l.b16 %v9504
      %v9608 = vunpack.c.l.b16 %v9505
      %v9609 = vunpack.c.l.b16 %v9506
      %v9610 = vunpack.c.l.b16 %v9507
      %v9611 = vunpack.c.l.b16 %v9508
      %v9612 = vunpack.c.l.b16 %v9509
      %v9613 = vunpack.c.l.b16 %v9510
      %v9614 = vunpack.c.l.b16 %v9511
      %v9615 = vpack.c.b16 %v9600, %v9599
      %v9616 = vpack.c.b16 %v9602, %v9601
      %v9617 = vpack.c.b16 %v9604, %v9603
      %v9618 = vpack.c.b16 %v9606, %v9605
      %v9619 = vpack.c.b16 %v9608, %v9607
      %v9620 = vpack.c.b16 %v9610, %v9609
      %v9621 = vpack.c.b16 %v9612, %v9611
      %v9622 = vpack.c.b16 %v9614, %v9613
      %9631 = vmatprep.subr.bf16.mxu0 0
      %9632 = vmatpush1.bf16.msra.mxu0 %v9615
      %9633 = vmatprep.subr.bf16.mxu0 0
      %9634 = vmatpush1.bf16.msra.mxu0 %v9616
      %9635 = vmatprep.subr.bf16.mxu0 0
      %9636 = vmatpush1.bf16.msra.mxu0 %v9617
      %9637 = vmatprep.subr.bf16.mxu0 0
      %9638 = vmatpush1.bf16.msra.mxu0 %v9618
      %9639 = vmatprep.subr.bf16.mxu0 0
      %9640 = vmatpush1.bf16.msra.mxu0 %v9619
      %9641 = vmatprep.subr.bf16.mxu0 0
      %9642 = vmatpush1.bf16.msra.mxu0 %v9620
      %9643 = vmatprep.subr.bf16.mxu0 0
      %9644 = vmatpush1.bf16.msra.mxu0 %v9621
      %9645 = vmatprep.subr.bf16.mxu0 0
      %9646 = vmatpush1.bf16.msra.mxu0 %v9622
      %9647 = vmatprep.subr.bf16.mxu0 0
      %9648 = vmatpush1.bf16.msra.mxu0 0
      %9649 = vmatprep.subr.bf16.mxu0 0
      %9650 = vmatpush1.bf16.msra.mxu0 0
      %9651 = vmatprep.subr.bf16.mxu0 0
      %9652 = vmatpush1.bf16.msra.mxu0 0
      %9653 = vmatprep.subr.bf16.mxu0 0
      %9654 = vmatpush1.bf16.msra.mxu0 0
      %9655 = vmatprep.subr.bf16.mxu0 0
      %9656 = vmatpush1.bf16.msra.mxu0 0
      %9657 = vmatprep.subr.bf16.mxu0 0
      %9658 = vmatpush1.bf16.msra.mxu0 0
      %9659 = vmatprep.subr.bf16.mxu0 0
      %9660 = vmatpush1.bf16.msra.mxu0 0
      %9661 = vmatprep.subr.bf16.mxu0 0
      %9662 = vmatpush1.bf16.msra.mxu0 0
      %9663 = vmatprep.mubr.bf16.mxu0 0
      %9664 = vmatmul.mubr.bf16.gmra.mrb[0].mxu0 %v9531
      %v9665 = vpop.f32.mrb[0].mxu0
      %v9666 = vadd.f32 0.0, %v9665
      %v9667 = vpop.f32.mrb[0].mxu0
      %v9668 = vpop.f32.mrb[0].mxu0
      %v9669 = vadd.f32 0.0, %v9668
      %v9670 = vpop.f32.mrb[0].mxu0
      %9671 = vmatprep.mubr.bf16.mxu0 0
      %9672 = vmatmul.mubr.bf16.gmra.mrb[0].mxu0 %v9540
      %v9673 = vpop.f32.mrb[0].mxu0
      %v9674 = vadd.f32 0.0, %v9673
      %v9675 = vpop.f32.mrb[0].mxu0
      %v9676 = vpop.f32.mrb[0].mxu0
      %v9677 = vadd.f32 0.0, %v9676
      %v9678 = vpop.f32.mrb[0].mxu0
      %9679 = vmatprep.mubr.bf16.mxu0 0
      %9680 = vmatmul.mubr.bf16.gmra.mrb[0].mxu0 %v9549
      %v9681 = vpop.f32.mrb[0].mxu0
      %v9682 = vadd.f32 0.0, %v9681
      %v9683 = vpop.f32.mrb[0].mxu0
      %v9684 = vpop.f32.mrb[0].mxu0
      %v9685 = vadd.f32 0.0, %v9684
      %v9686 = vpop.f32.mrb[0].mxu0
      %9687 = vmatprep.mubr.bf16.mxu0 0
      %9688 = vmatmul.mubr.bf16.gmra.mrb[0].mxu0 %v9558
      %v9689 = vpop.f32.mrb[0].mxu0
      %v9690 = vadd.f32 0.0, %v9689
      %v9691 = vpop.f32.mrb[0].mxu0
      %v9692 = vpop.f32.mrb[0].mxu0
      %v9693 = vadd.f32 0.0, %v9692
      %v9694 = vpop.f32.mrb[0].mxu0
      %9695 = vmatprep.mubr.bf16.mxu0 0
      %9696 = vmatmul.mubr.bf16.gmra.mrb[0].mxu0 %v9567
      %v9697 = vpop.f32.mrb[0].mxu0
      %v9698 = vadd.f32 0.0, %v9697
      %v9699 = vpop.f32.mrb[0].mxu0
      %v9700 = vpop.f32.mrb[0].mxu0
      %v9701 = vadd.f32 0.0, %v9700
      %v9702 = vpop.f32.mrb[0].mxu0
      %9703 = vmatprep.mubr.bf16.mxu0 0
      %9704 = vmatmul.mubr.bf16.gmra.mrb[0].mxu0 %v9576
      %v9705 = vpop.f32.mrb[0].mxu0
      %v9706 = vadd.f32 0.0, %v9705
      %v9707 = vpop.f32.mrb[0].mxu0
      %v9708 = vpop.f32.mrb[0].mxu0
      %v9709 = vadd.f32 0.0, %v9708
      %v9710 = vpop.f32.mrb[0].mxu0
      %9711 = vdwg.mxu0
      %v9712 = vadd.f32 %v9483, %v9666
      %v9713 = vadd.f32 %v9484, %v9669
      %v9714 = vadd.f32 %v9485, %v9674
      %v9715 = vadd.f32 %v9486, %v9677
      %v9716 = vadd.f32 %v9487, %v9682
      %v9717 = vadd.f32 %v9488, %v9685
      %v9718 = vadd.f32 %v9489, %v9690
      %v9719 = vadd.f32 %v9490, %v9693
      %v9720 = vadd.f32 %v9491, %v9698
      %v9721 = vadd.f32 %v9492, %v9701
      %v9722 = vadd.f32 %v9493, %v9706
      %v9723 = vadd.f32 %v9494, %v9709
      %v9724 = vld [vmem:[#allocation2 + $0x38] sm:$0xc]
      %v9725 = vld [vmem:[%s7747] sm:$0xf]
      %v9726 = vld [vmem:[%s7747 + $0x4] sm:$0xf]
      %v9727 = vld [vmem:[%s7747 + $0x8] sm:$0xf]
      %v9728 = vld [vmem:[%s7747 + $0xc] sm:$0xf]
      %v9729 = vld [vmem:[%s7747 + $0x10] sm:$0xf]
      %v9730 = vld [vmem:[%s7747 + $0x14] sm:$0xf]
      %v9731 = vld [vmem:[%s7747 + $0x18] sm:$0xf]
      %v9732 = vld [vmem:[%s7747 + $0x1c] sm:$0xf]
      %v9733 = vld [vmem:[%s7747 + $0x20] sm:$0xf]
      %v9734 = vld [vmem:[%s7747 + $0x24] sm:$0xf]
      %v9735 = vld [vmem:[%s7747 + $0x28] sm:$0xf]
      %v9736 = vld [vmem:[%s7747 + $0x2c] sm:$0xf]
      %v9737 = vld [vmem:[%s7747 + $0x30] sm:$0xf]
      %v9738 = vld [vmem:[%s7747 + $0x34] sm:$0xf]
      %v9739 = vld [vmem:[%s7747 + $0x38] sm:$0xf]
      %v9740 = vld [vmem:[%s7747 + $0x3c] sm:$0xf]
      %v9742 = vunpack.c.l.b16 %v9724
      %v9743 = vpack.c.b16 %v9316, %v9742
      %v9744 = vrot.slane %v9743, 2
      %v9745 = vrot.slane %v9329, 2
      %v9746 = vsel %vm1328, %v9744, %v9745
      %v9747 = vrot.slane %v9330, 2
      %v9748 = vsel %vm1328, %v9745, %v9747
      %v9749 = vrot.slane %v9331, 2
      %v9750 = vsel %vm1328, %v9747, %v9749
      %v9751 = vrot.slane %v9332, 2
      %v9752 = vsel %vm1328, %v9749, %v9751
      %v9753 = vrot.slane %v9333, 2
      %v9754 = vsel %vm1328, %v9751, %v9753
      %v9755 = vrot.slane %v9514, 2
      %v9756 = vsel %vm1328, %v9753, %v9755
      %v9779 = vunpack.c.l.b16 %v9725
      %v9780 = vunpack.c.l.b16 %v9726
      %v9781 = vunpack.c.l.b16 %v9727
      %v9782 = vunpack.c.l.b16 %v9728
      %v9783 = vunpack.c.l.b16 %v9729
      %v9784 = vunpack.c.l.b16 %v9730
      %v9785 = vunpack.c.l.b16 %v9731
      %v9786 = vunpack.c.l.b16 %v9732
      %v9787 = vunpack.c.l.b16 %v9733
      %v9788 = vunpack.c.l.b16 %v9734
      %v9789 = vunpack.c.l.b16 %v9735
      %v9790 = vunpack.c.l.b16 %v9736
      %v9791 = vunpack.c.l.b16 %v9737
      %v9792 = vunpack.c.l.b16 %v9738
      %v9793 = vunpack.c.l.b16 %v9739
      %v9794 = vunpack.c.l.b16 %v9740
      %v9795 = vpack.c.b16 %v9780, %v9779
      %v9796 = vpack.c.b16 %v9782, %v9781
      %v9797 = vpack.c.b16 %v9784, %v9783
      %v9798 = vpack.c.b16 %v9786, %v9785
      %v9799 = vpack.c.b16 %v9788, %v9787
      %v9800 = vpack.c.b16 %v9790, %v9789
      %v9801 = vpack.c.b16 %v9792, %v9791
      %v9802 = vpack.c.b16 %v9794, %v9793
      %9811 = vmatprep.subr.bf16.mxu0 0
      %9812 = vmatpush1.bf16.msra.mxu0 %v9795
      %9813 = vmatprep.subr.bf16.mxu0 0
      %9814 = vmatpush1.bf16.msra.mxu0 %v9796
      %9815 = vmatprep.subr.bf16.mxu0 0
      %9816 = vmatpush1.bf16.msra.mxu0 %v9797
      %9817 = vmatprep.subr.bf16.mxu0 0
      %9818 = vmatpush1.bf16.msra.mxu0 %v9798
      %9819 = vmatprep.subr.bf16.mxu0 0
      %9820 = vmatpush1.bf16.msra.mxu0 %v9799
      %9821 = vmatprep.subr.bf16.mxu0 0
      %9822 = vmatpush1.bf16.msra.mxu0 %v9800
      %9823 = vmatprep.subr.bf16.mxu0 0
      %9824 = vmatpush1.bf16.msra.mxu0 %v9801
      %9825 = vmatprep.subr.bf16.mxu0 0
      %9826 = vmatpush1.bf16.msra.mxu0 %v9802
      %9827 = vmatprep.subr.bf16.mxu0 0
      %9828 = vmatpush1.bf16.msra.mxu0 0
      %9829 = vmatprep.subr.bf16.mxu0 0
      %9830 = vmatpush1.bf16.msra.mxu0 0
      %9831 = vmatprep.subr.bf16.mxu0 0
      %9832 = vmatpush1.bf16.msra.mxu0 0
      %9833 = vmatprep.subr.bf16.mxu0 0
      %9834 = vmatpush1.bf16.msra.mxu0 0
      %9835 = vmatprep.subr.bf16.mxu0 0
      %9836 = vmatpush1.bf16.msra.mxu0 0
      %9837 = vmatprep.subr.bf16.mxu0 0
      %9838 = vmatpush1.bf16.msra.mxu0 0
      %9839 = vmatprep.subr.bf16.mxu0 0
      %9840 = vmatpush1.bf16.msra.mxu0 0
      %9841 = vmatprep.subr.bf16.mxu0 0
      %9842 = vmatpush1.bf16.msra.mxu0 0
      %9843 = vmatprep.mubr.bf16.mxu0 0
      %9844 = vmatmul.mubr.bf16.gmra.mrb[0].mxu0 %v9746
      %v9845 = vpop.f32.mrb[0].mxu0
      %v9846 = vadd.f32 0.0, %v9845
      %v9847 = vpop.f32.mrb[0].mxu0
      %v9848 = vpop.f32.mrb[0].mxu0
      %v9849 = vadd.f32 0.0, %v9848
      %v9850 = vpop.f32.mrb[0].mxu0
      %9851 = vmatprep.mubr.bf16.mxu0 0
      %9852 = vmatmul.mubr.bf16.gmra.mrb[0].mxu0 %v9748
      %v9853 = vpop.f32.mrb[0].mxu0
      %v9854 = vadd.f32 0.0, %v9853
      %v9855 = vpop.f32.mrb[0].mxu0
      %v9856 = vpop.f32.mrb[0].mxu0
      %v9857 = vadd.f32 0.0, %v9856
      %v9858 = vpop.f32.mrb[0].mxu0
      %9859 = vmatprep.mubr.bf16.mxu0 0
      %9860 = vmatmul.mubr.bf16.gmra.mrb[0].mxu0 %v9750
      %v9861 = vpop.f32.mrb[0].mxu0
      %v9862 = vadd.f32 0.0, %v9861
      %v9863 = vpop.f32.mrb[0].mxu0
      %v9864 = vpop.f32.mrb[0].mxu0
      %v9865 = vadd.f32 0.0, %v9864
      %v9866 = vpop.f32.mrb[0].mxu0
      %9867 = vmatprep.mubr.bf16.mxu0 0
      %9868 = vmatmul.mubr.bf16.gmra.mrb[0].mxu0 %v9752
      %v9869 = vpop.f32.mrb[0].mxu0
      %v9870 = vadd.f32 0.0, %v9869
      %v9871 = vpop.f32.mrb[0].mxu0
      %v9872 = vpop.f32.mrb[0].mxu0
      %v9873 = vadd.f32 0.0, %v9872
      %v9874 = vpop.f32.mrb[0].mxu0
      %9875 = vmatprep.mubr.bf16.mxu0 0
      %9876 = vmatmul.mubr.bf16.gmra.mrb[0].mxu0 %v9754
      %v9877 = vpop.f32.mrb[0].mxu0
      %v9878 = vadd.f32 0.0, %v9877
      %v9879 = vpop.f32.mrb[0].mxu0
      %v9880 = vpop.f32.mrb[0].mxu0
      %v9881 = vadd.f32 0.0, %v9880
      %v9882 = vpop.f32.mrb[0].mxu0
      %9883 = vmatprep.mubr.bf16.mxu0 0
      %9884 = vmatmul.mubr.bf16.gmra.mrb[0].mxu0 %v9756
      %v9885 = vpop.f32.mrb[0].mxu0
      %v9886 = vadd.f32 0.0, %v9885
      %v9887 = vpop.f32.mrb[0].mxu0
      %v9888 = vpop.f32.mrb[0].mxu0
      %v9889 = vadd.f32 0.0, %v9888
      %v9890 = vpop.f32.mrb[0].mxu0
      %9891 = vdwg.mxu0
      %v9892 = vadd.f32 %v9712, %v9846
      %v9893 = vadd.f32 %v9713, %v9849
      %v9894 = vadd.f32 %v9714, %v9854
      %v9895 = vadd.f32 %v9715, %v9857
      %v9896 = vadd.f32 %v9716, %v9862
      %v9897 = vadd.f32 %v9717, %v9865
      %v9898 = vadd.f32 %v9718, %v9870
      %v9899 = vadd.f32 %v9719, %v9873
      %v9900 = vadd.f32 %v9720, %v9878
      %v9901 = vadd.f32 %v9721, %v9881
      %v9902 = vadd.f32 %v9722, %v9886
      %v9903 = vadd.f32 %v9723, %v9889
      %v9904 = vld [vmem:[#allocation2 + $0x40] sm:$0xc]
      %v9905 = vld [vmem:[#allocation2 + $0x44] sm:$0xf]
      %v9906 = vld [vmem:[#allocation2 + $0x48] sm:$0xf]
      %v9907 = vld [vmem:[#allocation2 + $0x4c] sm:$0xf]
      %v9908 = vld [vmem:[#allocation2 + $0x50] sm:$0xf]
      %v9909 = vld [vmem:[#allocation2 + $0x54] sm:$0xf]
      %v9910 = vld [vmem:[#allocation2 + $0x58] sm:$0xf]
      %v9911 = vld [vmem:[#allocation2 + $0x5c] sm:$0xf]
      %v9912 = vld [vmem:[#allocation2 + $0x60] sm:$0xf]
      %v9913 = vld [vmem:[#allocation2 + $0x64] sm:$0xf]
      %v9914 = vld [vmem:[#allocation2 + $0x68] sm:$0xf]
      %v9915 = vld [vmem:[#allocation2 + $0x6c] sm:$0xf]
      %v9916 = vld [vmem:[#allocation2 + $0x70] sm:$0x3]
      %v9917 = vld [vmem:[%s7940] sm:$0xf]
      %v9918 = vld [vmem:[%s7940 + $0x4] sm:$0xf]
      %v9919 = vld [vmem:[%s7940 + $0x8] sm:$0xf]
      %v9920 = vld [vmem:[%s7940 + $0xc] sm:$0xf]
      %v9921 = vld [vmem:[%s7940 + $0x10] sm:$0xf]
      %v9922 = vld [vmem:[%s7940 + $0x14] sm:$0xf]
      %v9923 = vld [vmem:[%s7940 + $0x18] sm:$0xf]
      %v9924 = vld [vmem:[%s7940 + $0x1c] sm:$0xf]
      %v9925 = vld [vmem:[%s7940 + $0x20] sm:$0xf]
      %v9926 = vld [vmem:[%s7940 + $0x24] sm:$0xf]
      %v9927 = vld [vmem:[%s7940 + $0x28] sm:$0xf]
      %v9928 = vld [vmem:[%s7940 + $0x2c] sm:$0xf]
      %v9929 = vld [vmem:[%s7940 + $0x30] sm:$0xf]
      %v9930 = vld [vmem:[%s7940 + $0x34] sm:$0xf]
      %v9931 = vld [vmem:[%s7940 + $0x38] sm:$0xf]
      %v9932 = vld [vmem:[%s7940 + $0x3c] sm:$0xf]
      %v9946 = vunpack.c.l.b16 %v9904
      %v9947 = vunpack.c.l.b16 %v9905
      %v9948 = vunpack.c.l.b16 %v9906
      %v9949 = vunpack.c.l.b16 %v9907
      %v9950 = vunpack.c.l.b16 %v9908
      %v9951 = vunpack.c.l.b16 %v9909
      %v9952 = vunpack.c.l.b16 %v9910
      %v9953 = vunpack.c.l.b16 %v9911
      %v9954 = vunpack.c.l.b16 %v9912
      %v9955 = vunpack.c.l.b16 %v9913
      %v9956 = vunpack.c.l.b16 %v9914
      %v9957 = vunpack.c.l.b16 %v9915
      %v9958 = vunpack.c.l.b16 %v9916
      %v9959 = vpack.c.b16 %v9947, %v9946
      %v9960 = vpack.c.b16 %v9949, %v9948
      %v9961 = vpack.c.b16 %v9951, %v9950
      %v9962 = vpack.c.b16 %v9953, %v9952
      %v9963 = vpack.c.b16 %v9955, %v9954
      %v9964 = vpack.c.b16 %v9957, %v9956
      %v9965 = vpack.c.b16 %v9958, %v9958
      %v9966 = vrot.slane %v9959, 2
      %v9967 = vrot.slane %v9960, 2
      %v9968 = vsel %vm1328, %v9966, %v9967
      %v9969 = vrot.slane %v9961, 2
      %v9970 = vsel %vm1328, %v9967, %v9969
      %v9971 = vrot.slane %v9962, 2
      %v9972 = vsel %vm1328, %v9969, %v9971
      %v9973 = vrot.slane %v9963, 2
      %v9974 = vsel %vm1328, %v9971, %v9973
      %v9975 = vrot.slane %v9964, 2
      %v9976 = vsel %vm1328, %v9973, %v9975
      %v9977 = vrot.slane %v9965, 2
      %v9978 = vsel %vm1328, %v9975, %v9977
      %v10001 = vunpack.c.l.b16 %v9917
      %v10002 = vunpack.c.l.b16 %v9918
      %v10003 = vunpack.c.l.b16 %v9919
      %v10004 = vunpack.c.l.b16 %v9920
      %v10005 = vunpack.c.l.b16 %v9921
      %v10006 = vunpack.c.l.b16 %v9922
      %v10007 = vunpack.c.l.b16 %v9923
      %v10008 = vunpack.c.l.b16 %v9924
      %v10009 = vunpack.c.l.b16 %v9925
      %v10010 = vunpack.c.l.b16 %v9926
      %v10011 = vunpack.c.l.b16 %v9927
      %v10012 = vunpack.c.l.b16 %v9928
      %v10013 = vunpack.c.l.b16 %v9929
      %v10014 = vunpack.c.l.b16 %v9930
      %v10015 = vunpack.c.l.b16 %v9931
      %v10016 = vunpack.c.l.b16 %v9932
      %v10017 = vpack.c.b16 %v10002, %v10001
      %v10018 = vpack.c.b16 %v10004, %v10003
      %v10019 = vpack.c.b16 %v10006, %v10005
      %v10020 = vpack.c.b16 %v10008, %v10007
      %v10021 = vpack.c.b16 %v10010, %v10009
      %v10022 = vpack.c.b16 %v10012, %v10011
      %v10023 = vpack.c.b16 %v10014, %v10013
      %v10024 = vpack.c.b16 %v10016, %v10015
      %10033 = vmatprep.subr.bf16.mxu0 0
      %10034 = vmatpush1.bf16.msra.mxu0 %v10017
      %10035 = vmatprep.subr.bf16.mxu0 0
      %10036 = vmatpush1.bf16.msra.mxu0 %v10018
      %10037 = vmatprep.subr.bf16.mxu0 0
      %10038 = vmatpush1.bf16.msra.mxu0 %v10019
      %10039 = vmatprep.subr.bf16.mxu0 0
      %10040 = vmatpush1.bf16.msra.mxu0 %v10020
      %10041 = vmatprep.subr.bf16.mxu0 0
      %10042 = vmatpush1.bf16.msra.mxu0 %v10021
      %10043 = vmatprep.subr.bf16.mxu0 0
      %10044 = vmatpush1.bf16.msra.mxu0 %v10022
      %10045 = vmatprep.subr.bf16.mxu0 0
      %10046 = vmatpush1.bf16.msra.mxu0 %v10023
      %10047 = vmatprep.subr.bf16.mxu0 0
      %10048 = vmatpush1.bf16.msra.mxu0 %v10024
      %10049 = vmatprep.subr.bf16.mxu0 0
      %10050 = vmatpush1.bf16.msra.mxu0 0
      %10051 = vmatprep.subr.bf16.mxu0 0
      %10052 = vmatpush1.bf16.msra.mxu0 0
      %10053 = vmatprep.subr.bf16.mxu0 0
      %10054 = vmatpush1.bf16.msra.mxu0 0
      %10055 = vmatprep.subr.bf16.mxu0 0
      %10056 = vmatpush1.bf16.msra.mxu0 0
      %10057 = vmatprep.subr.bf16.mxu0 0
      %10058 = vmatpush1.bf16.msra.mxu0 0
      %10059 = vmatprep.subr.bf16.mxu0 0
      %10060 = vmatpush1.bf16.msra.mxu0 0
      %10061 = vmatprep.subr.bf16.mxu0 0
      %10062 = vmatpush1.bf16.msra.mxu0 0
      %10063 = vmatprep.subr.bf16.mxu0 0
      %10064 = vmatpush1.bf16.msra.mxu0 0
      %10065 = vmatprep.mubr.bf16.mxu0 0
      %10066 = vmatmul.mubr.bf16.gmra.mrb[0].mxu0 %v9968
      %v10067 = vpop.f32.mrb[0].mxu0
      %v10068 = vadd.f32 0.0, %v10067
      %v10069 = vpop.f32.mrb[0].mxu0
      %v10070 = vpop.f32.mrb[0].mxu0
      %v10071 = vadd.f32 0.0, %v10070
      %v10072 = vpop.f32.mrb[0].mxu0
      %10073 = vmatprep.mubr.bf16.mxu0 0
      %10074 = vmatmul.mubr.bf16.gmra.mrb[0].mxu0 %v9970
      %v10075 = vpop.f32.mrb[0].mxu0
      %v10076 = vadd.f32 0.0, %v10075
      %v10077 = vpop.f32.mrb[0].mxu0
      %v10078 = vpop.f32.mrb[0].mxu0
      %v10079 = vadd.f32 0.0, %v10078
      %v10080 = vpop.f32.mrb[0].mxu0
      %10081 = vmatprep.mubr.bf16.mxu0 0
      %10082 = vmatmul.mubr.bf16.gmra.mrb[0].mxu0 %v9972
      %v10083 = vpop.f32.mrb[0].mxu0
      %v10084 = vadd.f32 0.0, %v10083
      %v10085 = vpop.f32.mrb[0].mxu0
      %v10086 = vpop.f32.mrb[0].mxu0
      %v10087 = vadd.f32 0.0, %v10086
      %v10088 = vpop.f32.mrb[0].mxu0
      %10089 = vmatprep.mubr.bf16.mxu0 0
      %10090 = vmatmul.mubr.bf16.gmra.mrb[0].mxu0 %v9974
      %v10091 = vpop.f32.mrb[0].mxu0
      %v10092 = vadd.f32 0.0, %v10091
      %v10093 = vpop.f32.mrb[0].mxu0
      %v10094 = vpop.f32.mrb[0].mxu0
      %v10095 = vadd.f32 0.0, %v10094
      %v10096 = vpop.f32.mrb[0].mxu0
      %10097 = vmatprep.mubr.bf16.mxu0 0
      %10098 = vmatmul.mubr.bf16.gmra.mrb[0].mxu0 %v9976
      %v10099 = vpop.f32.mrb[0].mxu0
      %v10100 = vadd.f32 0.0, %v10099
      %v10101 = vpop.f32.mrb[0].mxu0
      %v10102 = vpop.f32.mrb[0].mxu0
      %v10103 = vadd.f32 0.0, %v10102
      %v10104 = vpop.f32.mrb[0].mxu0
      %10105 = vmatprep.mubr.bf16.mxu0 0
      %10106 = vmatmul.mubr.bf16.gmra.mrb[0].mxu0 %v9978
      %v10107 = vpop.f32.mrb[0].mxu0
      %v10108 = vadd.f32 0.0, %v10107
      %v10109 = vpop.f32.mrb[0].mxu0
      %v10110 = vpop.f32.mrb[0].mxu0
      %v10111 = vadd.f32 0.0, %v10110
      %v10112 = vpop.f32.mrb[0].mxu0
      %10113 = vdwg.mxu0
      %v10114 = vadd.f32 %v9892, %v10068
      %v10115 = vadd.f32 %v9893, %v10071
      %v10116 = vadd.f32 %v9894, %v10076
      %v10117 = vadd.f32 %v9895, %v10079
      %v10118 = vadd.f32 %v9896, %v10084
      %v10119 = vadd.f32 %v9897, %v10087
      %v10120 = vadd.f32 %v9898, %v10092
      %v10121 = vadd.f32 %v9899, %v10095
      %v10122 = vadd.f32 %v9900, %v10100
      %v10123 = vadd.f32 %v9901, %v10103
      %v10124 = vadd.f32 %v9902, %v10108
      %v10125 = vadd.f32 %v9903, %v10111
      %v10126 = vld [vmem:[#allocation2 + $0x70] sm:$0x7]
      %v10127 = vld [vmem:[%s8151] sm:$0xf]
      %v10128 = vld [vmem:[%s8151 + $0x4] sm:$0xf]
      %v10129 = vld [vmem:[%s8151 + $0x8] sm:$0xf]
      %v10130 = vld [vmem:[%s8151 + $0xc] sm:$0xf]
      %v10131 = vld [vmem:[%s8151 + $0x10] sm:$0xf]
      %v10132 = vld [vmem:[%s8151 + $0x14] sm:$0xf]
      %v10133 = vld [vmem:[%s8151 + $0x18] sm:$0xf]
      %v10134 = vld [vmem:[%s8151 + $0x1c] sm:$0xf]
      %v10135 = vld [vmem:[%s8151 + $0x20] sm:$0xf]
      %v10136 = vld [vmem:[%s8151 + $0x24] sm:$0xf]
      %v10137 = vld [vmem:[%s8151 + $0x28] sm:$0xf]
      %v10138 = vld [vmem:[%s8151 + $0x2c] sm:$0xf]
      %v10139 = vld [vmem:[%s8151 + $0x30] sm:$0xf]
      %v10140 = vld [vmem:[%s8151 + $0x34] sm:$0xf]
      %v10141 = vld [vmem:[%s8151 + $0x38] sm:$0xf]
      %v10142 = vld [vmem:[%s8151 + $0x3c] sm:$0xf]
      %v10144 = vunpack.c.l.b16 %v10126
      %v10145 = vpack.c.b16 %v10144, %v10144
      %v10147 = vshrl.u32 %v9959, 16
      %v10149 = vrot.slane %v10147, 2
      %v10150 = vshll.u32 %v9959, 16
      %v10152 = vrot.slane %v10150, 3
      %v10153 = vor.u32 %v10149, %v10152
      %v10155 = vshrl.u32 %v9960, 16
      %v10157 = vrot.slane %v10155, 2
      %v10158 = vshll.u32 %v9960, 16
      %v10160 = vrot.slane %v10158, 3
      %v10161 = vor.u32 %v10157, %v10160
      %v10162 = vsel %vm1733, %v10153, %v10161
      %v10164 = vshrl.u32 %v9961, 16
      %v10166 = vrot.slane %v10164, 2
      %v10167 = vshll.u32 %v9961, 16
      %v10169 = vrot.slane %v10167, 3
      %v10170 = vor.u32 %v10166, %v10169
      %v10171 = vsel %vm1733, %v10161, %v10170
      %v10173 = vshrl.u32 %v9962, 16
      %v10175 = vrot.slane %v10173, 2
      %v10176 = vshll.u32 %v9962, 16
      %v10178 = vrot.slane %v10176, 3
      %v10179 = vor.u32 %v10175, %v10178
      %v10180 = vsel %vm1733, %v10170, %v10179
      %v10182 = vshrl.u32 %v9963, 16
      %v10184 = vrot.slane %v10182, 2
      %v10185 = vshll.u32 %v9963, 16
      %v10187 = vrot.slane %v10185, 3
      %v10188 = vor.u32 %v10184, %v10187
      %v10189 = vsel %vm1733, %v10179, %v10188
      %v10191 = vshrl.u32 %v9964, 16
      %v10193 = vrot.slane %v10191, 2
      %v10194 = vshll.u32 %v9964, 16
      %v10196 = vrot.slane %v10194, 3
      %v10197 = vor.u32 %v10193, %v10196
      %v10198 = vsel %vm1733, %v10188, %v10197
      %v10200 = vshrl.u32 %v10145, 16
      %v10202 = vrot.slane %v10200, 2
      %v10203 = vshll.u32 %v10145, 16
      %v10205 = vrot.slane %v10203, 3
      %v10206 = vor.u32 %v10202, %v10205
      %v10207 = vsel %vm1733, %v10197, %v10206
      %v10230 = vunpack.c.l.b16 %v10127
      %v10231 = vunpack.c.l.b16 %v10128
      %v10232 = vunpack.c.l.b16 %v10129
      %v10233 = vunpack.c.l.b16 %v10130
      %v10234 = vunpack.c.l.b16 %v10131
      %v10235 = vunpack.c.l.b16 %v10132
      %v10236 = vunpack.c.l.b16 %v10133
      %v10237 = vunpack.c.l.b16 %v10134
      %v10238 = vunpack.c.l.b16 %v10135
      %v10239 = vunpack.c.l.b16 %v10136
      %v10240 = vunpack.c.l.b16 %v10137
      %v10241 = vunpack.c.l.b16 %v10138
      %v10242 = vunpack.c.l.b16 %v10139
      %v10243 = vunpack.c.l.b16 %v10140
      %v10244 = vunpack.c.l.b16 %v10141
      %v10245 = vunpack.c.l.b16 %v10142
      %v10246 = vpack.c.b16 %v10231, %v10230
      %v10247 = vpack.c.b16 %v10233, %v10232
      %v10248 = vpack.c.b16 %v10235, %v10234
      %v10249 = vpack.c.b16 %v10237, %v10236
      %v10250 = vpack.c.b16 %v10239, %v10238
      %v10251 = vpack.c.b16 %v10241, %v10240
      %v10252 = vpack.c.b16 %v10243, %v10242
      %v10253 = vpack.c.b16 %v10245, %v10244
      %10262 = vmatprep.subr.bf16.mxu0 0
      %10263 = vmatpush1.bf16.msra.mxu0 %v10246
      %10264 = vmatprep.subr.bf16.mxu0 0
      %10265 = vmatpush1.bf16.msra.mxu0 %v10247
      %10266 = vmatprep.subr.bf16.mxu0 0
      %10267 = vmatpush1.bf16.msra.mxu0 %v10248
      %10268 = vmatprep.subr.bf16.mxu0 0
      %10269 = vmatpush1.bf16.msra.mxu0 %v10249
      %10270 = vmatprep.subr.bf16.mxu0 0
      %10271 = vmatpush1.bf16.msra.mxu0 %v10250
      %10272 = vmatprep.subr.bf16.mxu0 0
      %10273 = vmatpush1.bf16.msra.mxu0 %v10251
      %10274 = vmatprep.subr.bf16.mxu0 0
      %10275 = vmatpush1.bf16.msra.mxu0 %v10252
      %10276 = vmatprep.subr.bf16.mxu0 0
      %10277 = vmatpush1.bf16.msra.mxu0 %v10253
      %10278 = vmatprep.subr.bf16.mxu0 0
      %10279 = vmatpush1.bf16.msra.mxu0 0
      %10280 = vmatprep.subr.bf16.mxu0 0
      %10281 = vmatpush1.bf16.msra.mxu0 0
      %10282 = vmatprep.subr.bf16.mxu0 0
      %10283 = vmatpush1.bf16.msra.mxu0 0
      %10284 = vmatprep.subr.bf16.mxu0 0
      %10285 = vmatpush1.bf16.msra.mxu0 0
      %10286 = vmatprep.subr.bf16.mxu0 0
      %10287 = vmatpush1.bf16.msra.mxu0 0
      %10288 = vmatprep.subr.bf16.mxu0 0
      %10289 = vmatpush1.bf16.msra.mxu0 0
      %10290 = vmatprep.subr.bf16.mxu0 0
      %10291 = vmatpush1.bf16.msra.mxu0 0
      %10292 = vmatprep.subr.bf16.mxu0 0
      %10293 = vmatpush1.bf16.msra.mxu0 0
      %10294 = vmatprep.mubr.bf16.mxu0 0
      %10295 = vmatmul.mubr.bf16.gmra.mrb[0].mxu0 %v10162
      %v10296 = vpop.f32.mrb[0].mxu0
      %v10297 = vadd.f32 0.0, %v10296
      %v10298 = vpop.f32.mrb[0].mxu0
      %v10299 = vpop.f32.mrb[0].mxu0
      %v10300 = vadd.f32 0.0, %v10299
      %v10301 = vpop.f32.mrb[0].mxu0
      %10302 = vmatprep.mubr.bf16.mxu0 0
      %10303 = vmatmul.mubr.bf16.gmra.mrb[0].mxu0 %v10171
      %v10304 = vpop.f32.mrb[0].mxu0
      %v10305 = vadd.f32 0.0, %v10304
      %v10306 = vpop.f32.mrb[0].mxu0
      %v10307 = vpop.f32.mrb[0].mxu0
      %v10308 = vadd.f32 0.0, %v10307
      %v10309 = vpop.f32.mrb[0].mxu0
      %10310 = vmatprep.mubr.bf16.mxu0 0
      %10311 = vmatmul.mubr.bf16.gmra.mrb[0].mxu0 %v10180
      %v10312 = vpop.f32.mrb[0].mxu0
      %v10313 = vadd.f32 0.0, %v10312
      %v10314 = vpop.f32.mrb[0].mxu0
      %v10315 = vpop.f32.mrb[0].mxu0
      %v10316 = vadd.f32 0.0, %v10315
      %v10317 = vpop.f32.mrb[0].mxu0
      %10318 = vmatprep.mubr.bf16.mxu0 0
      %10319 = vmatmul.mubr.bf16.gmra.mrb[0].mxu0 %v10189
      %v10320 = vpop.f32.mrb[0].mxu0
      %v10321 = vadd.f32 0.0, %v10320
      %v10322 = vpop.f32.mrb[0].mxu0
      %v10323 = vpop.f32.mrb[0].mxu0
      %v10324 = vadd.f32 0.0, %v10323
      %v10325 = vpop.f32.mrb[0].mxu0
      %10326 = vmatprep.mubr.bf16.mxu0 0
      %10327 = vmatmul.mubr.bf16.gmra.mrb[0].mxu0 %v10198
      %v10328 = vpop.f32.mrb[0].mxu0
      %v10329 = vadd.f32 0.0, %v10328
      %v10330 = vpop.f32.mrb[0].mxu0
      %v10331 = vpop.f32.mrb[0].mxu0
      %v10332 = vadd.f32 0.0, %v10331
      %v10333 = vpop.f32.mrb[0].mxu0
      %10334 = vmatprep.mubr.bf16.mxu0 0
      %10335 = vmatmul.mubr.bf16.gmra.mrb[0].mxu0 %v10207
      %v10336 = vpop.f32.mrb[0].mxu0
      %v10337 = vadd.f32 0.0, %v10336
      %v10338 = vpop.f32.mrb[0].mxu0
      %v10339 = vpop.f32.mrb[0].mxu0
      %v10340 = vadd.f32 0.0, %v10339
      %v10341 = vpop.f32.mrb[0].mxu0
      %10342 = vdwg.mxu0
      %v10343 = vadd.f32 %v10114, %v10297
      %v10344 = vadd.f32 %v10115, %v10300
      %v10345 = vadd.f32 %v10116, %v10305
      %v10346 = vadd.f32 %v10117, %v10308
      %v10347 = vadd.f32 %v10118, %v10313
      %v10348 = vadd.f32 %v10119, %v10316
      %v10349 = vadd.f32 %v10120, %v10321
      %v10350 = vadd.f32 %v10121, %v10324
      %v10351 = vadd.f32 %v10122, %v10329
      %v10352 = vadd.f32 %v10123, %v10332
      %v10353 = vadd.f32 %v10124, %v10337
      %v10354 = vadd.f32 %v10125, %v10340
      %v10355 = vld [vmem:[#allocation2 + $0x40] sm:$0x8]
      %v10356 = vld [vmem:[%s8381] sm:$0xf]
      %v10357 = vld [vmem:[%s8381 + $0x4] sm:$0xf]
      %v10358 = vld [vmem:[%s8381 + $0x8] sm:$0xf]
      %v10359 = vld [vmem:[%s8381 + $0xc] sm:$0xf]
      %v10360 = vld [vmem:[%s8381 + $0x10] sm:$0xf]
      %v10361 = vld [vmem:[%s8381 + $0x14] sm:$0xf]
      %v10362 = vld [vmem:[%s8381 + $0x18] sm:$0xf]
      %v10363 = vld [vmem:[%s8381 + $0x1c] sm:$0xf]
      %v10364 = vld [vmem:[%s8381 + $0x20] sm:$0xf]
      %v10365 = vld [vmem:[%s8381 + $0x24] sm:$0xf]
      %v10366 = vld [vmem:[%s8381 + $0x28] sm:$0xf]
      %v10367 = vld [vmem:[%s8381 + $0x2c] sm:$0xf]
      %v10368 = vld [vmem:[%s8381 + $0x30] sm:$0xf]
      %v10369 = vld [vmem:[%s8381 + $0x34] sm:$0xf]
      %v10370 = vld [vmem:[%s8381 + $0x38] sm:$0xf]
      %v10371 = vld [vmem:[%s8381 + $0x3c] sm:$0xf]
      %v10373 = vunpack.c.l.b16 %v10355
      %v10374 = vpack.c.b16 %v9947, %v10373
      %v10375 = vrot.slane %v10374, 3
      %v10376 = vrot.slane %v9960, 3
      %v10377 = vsel %vm1964, %v10375, %v10376
      %v10378 = vrot.slane %v9961, 3
      %v10379 = vsel %vm1964, %v10376, %v10378
      %v10380 = vrot.slane %v9962, 3
      %v10381 = vsel %vm1964, %v10378, %v10380
      %v10382 = vrot.slane %v9963, 3
      %v10383 = vsel %vm1964, %v10380, %v10382
      %v10384 = vrot.slane %v9964, 3
      %v10385 = vsel %vm1964, %v10382, %v10384
      %v10386 = vrot.slane %v10145, 3
      %v10387 = vsel %vm1964, %v10384, %v10386
      %v10410 = vunpack.c.l.b16 %v10356
      %v10411 = vunpack.c.l.b16 %v10357
      %v10412 = vunpack.c.l.b16 %v10358
      %v10413 = vunpack.c.l.b16 %v10359
      %v10414 = vunpack.c.l.b16 %v10360
      %v10415 = vunpack.c.l.b16 %v10361
      %v10416 = vunpack.c.l.b16 %v10362
      %v10417 = vunpack.c.l.b16 %v10363
      %v10418 = vunpack.c.l.b16 %v10364
      %v10419 = vunpack.c.l.b16 %v10365
      %v10420 = vunpack.c.l.b16 %v10366
      %v10421 = vunpack.c.l.b16 %v10367
      %v10422 = vunpack.c.l.b16 %v10368
      %v10423 = vunpack.c.l.b16 %v10369
      %v10424 = vunpack.c.l.b16 %v10370
      %v10425 = vunpack.c.l.b16 %v10371
      %v10426 = vpack.c.b16 %v10411, %v10410
      %v10427 = vpack.c.b16 %v10413, %v10412
      %v10428 = vpack.c.b16 %v10415, %v10414
      %v10429 = vpack.c.b16 %v10417, %v10416
      %v10430 = vpack.c.b16 %v10419, %v10418
      %v10431 = vpack.c.b16 %v10421, %v10420
      %v10432 = vpack.c.b16 %v10423, %v10422
      %v10433 = vpack.c.b16 %v10425, %v10424
      %10442 = vmatprep.subr.bf16.mxu0 0
      %10443 = vmatpush1.bf16.msra.mxu0 %v10426
      %10444 = vmatprep.subr.bf16.mxu0 0
      %10445 = vmatpush1.bf16.msra.mxu0 %v10427
      %10446 = vmatprep.subr.bf16.mxu0 0
      %10447 = vmatpush1.bf16.msra.mxu0 %v10428
      %10448 = vmatprep.subr.bf16.mxu0 0
      %10449 = vmatpush1.bf16.msra.mxu0 %v10429
      %10450 = vmatprep.subr.bf16.mxu0 0
      %10451 = vmatpush1.bf16.msra.mxu0 %v10430
      %10452 = vmatprep.subr.bf16.mxu0 0
      %10453 = vmatpush1.bf16.msra.mxu0 %v10431
      %10454 = vmatprep.subr.bf16.mxu0 0
      %10455 = vmatpush1.bf16.msra.mxu0 %v10432
      %10456 = vmatprep.subr.bf16.mxu0 0
      %10457 = vmatpush1.bf16.msra.mxu0 %v10433
      %10458 = vmatprep.subr.bf16.mxu0 0
      %10459 = vmatpush1.bf16.msra.mxu0 0
      %10460 = vmatprep.subr.bf16.mxu0 0
      %10461 = vmatpush1.bf16.msra.mxu0 0
      %10462 = vmatprep.subr.bf16.mxu0 0
      %10463 = vmatpush1.bf16.msra.mxu0 0
      %10464 = vmatprep.subr.bf16.mxu0 0
      %10465 = vmatpush1.bf16.msra.mxu0 0
      %10466 = vmatprep.subr.bf16.mxu0 0
      %10467 = vmatpush1.bf16.msra.mxu0 0
      %10468 = vmatprep.subr.bf16.mxu0 0
      %10469 = vmatpush1.bf16.msra.mxu0 0
      %10470 = vmatprep.subr.bf16.mxu0 0
      %10471 = vmatpush1.bf16.msra.mxu0 0
      %10472 = vmatprep.subr.bf16.mxu0 0
      %10473 = vmatpush1.bf16.msra.mxu0 0
      %10474 = vmatprep.mubr.bf16.mxu0 0
      %10475 = vmatmul.mubr.bf16.gmra.mrb[0].mxu0 %v10377
      %v10476 = vpop.f32.mrb[0].mxu0
      %v10477 = vadd.f32 0.0, %v10476
      %v10478 = vpop.f32.mrb[0].mxu0
      %v10479 = vpop.f32.mrb[0].mxu0
      %v10480 = vadd.f32 0.0, %v10479
      %v10481 = vpop.f32.mrb[0].mxu0
      %10482 = vmatprep.mubr.bf16.mxu0 0
      %10483 = vmatmul.mubr.bf16.gmra.mrb[0].mxu0 %v10379
      %v10484 = vpop.f32.mrb[0].mxu0
      %v10485 = vadd.f32 0.0, %v10484
      %v10486 = vpop.f32.mrb[0].mxu0
      %v10487 = vpop.f32.mrb[0].mxu0
      %v10488 = vadd.f32 0.0, %v10487
      %v10489 = vpop.f32.mrb[0].mxu0
      %10490 = vmatprep.mubr.bf16.mxu0 0
      %10491 = vmatmul.mubr.bf16.gmra.mrb[0].mxu0 %v10381
      %v10492 = vpop.f32.mrb[0].mxu0
      %v10493 = vadd.f32 0.0, %v10492
      %v10494 = vpop.f32.mrb[0].mxu0
      %v10495 = vpop.f32.mrb[0].mxu0
      %v10496 = vadd.f32 0.0, %v10495
      %v10497 = vpop.f32.mrb[0].mxu0
      %10498 = vmatprep.mubr.bf16.mxu0 0
      %10499 = vmatmul.mubr.bf16.gmra.mrb[0].mxu0 %v10383
      %v10500 = vpop.f32.mrb[0].mxu0
      %v10501 = vadd.f32 0.0, %v10500
      %v10502 = vpop.f32.mrb[0].mxu0
      %v10503 = vpop.f32.mrb[0].mxu0
      %v10504 = vadd.f32 0.0, %v10503
      %v10505 = vpop.f32.mrb[0].mxu0
      %10506 = vmatprep.mubr.bf16.mxu0 0
      %10507 = vmatmul.mubr.bf16.gmra.mrb[0].mxu0 %v10385
      %v10508 = vpop.f32.mrb[0].mxu0
      %v10509 = vadd.f32 0.0, %v10508
      %v10510 = vpop.f32.mrb[0].mxu0
      %v10511 = vpop.f32.mrb[0].mxu0
      %v10512 = vadd.f32 0.0, %v10511
      %v10513 = vpop.f32.mrb[0].mxu0
      %10514 = vmatprep.mubr.bf16.mxu0 0
      %10515 = vmatmul.mubr.bf16.gmra.mrb[0].mxu0 %v10387
      %v10516 = vpop.f32.mrb[0].mxu0
      %v10517 = vadd.f32 0.0, %v10516
      %v10518 = vpop.f32.mrb[0].mxu0
      %v10519 = vpop.f32.mrb[0].mxu0
      %v10520 = vadd.f32 0.0, %v10519
      %v10521 = vpop.f32.mrb[0].mxu0
      %10522 = vdwg.mxu0
      %v10523 = vadd.f32 %v10343, %v10477
      %v10524 = vadd.f32 %v10344, %v10480
      %v10525 = vadd.f32 %v10345, %v10485
      %v10526 = vadd.f32 %v10346, %v10488
      %v10527 = vadd.f32 %v10347, %v10493
      %v10528 = vadd.f32 %v10348, %v10496
      %v10529 = vadd.f32 %v10349, %v10501
      %v10530 = vadd.f32 %v10350, %v10504
      %v10531 = vadd.f32 %v10351, %v10509
      %v10532 = vadd.f32 %v10352, %v10512
      %v10533 = vadd.f32 %v10353, %v10517
      %v10534 = vadd.f32 %v10354, %v10520
      %v10535 = vld [vmem:[%s246 + $0x38] sm:$0xe]
      %v10536 = vld [vmem:[%s246 + $0x3c] sm:$0xf]
      %v10537 = vld [vmem:[%s246 + $0x40] sm:$0xf]
      %v10538 = vld [vmem:[%s246 + $0x44] sm:$0xf]
      %v10539 = vld [vmem:[%s246 + $0x48] sm:$0xf]
      %v10540 = vld [vmem:[%s246 + $0x4c] sm:$0xf]
      %v10541 = vld [vmem:[%s246 + $0x50] sm:$0xf]
      %v10542 = vld [vmem:[%s246 + $0x54] sm:$0xf]
      %v10543 = vld [vmem:[%s246 + $0x58] sm:$0xf]
      %v10544 = vld [vmem:[%s246 + $0x5c] sm:$0xf]
      %v10545 = vld [vmem:[%s246 + $0x60] sm:$0xf]
      %v10546 = vld [vmem:[%s246 + $0x64] sm:$0xf]
      %v10547 = vld [vmem:[%s246 + $0x68] sm:$0x3]
      %v10548 = vunpack.c.l.bf16 %v10535
      %v10549 = vunpack.c.l.bf16 %v10536
      %v10550 = vunpack.c.l.bf16 %v10537
      %v10551 = vunpack.c.l.bf16 %v10538
      %v10552 = vunpack.c.l.bf16 %v10539
      %v10553 = vunpack.c.l.bf16 %v10540
      %v10554 = vunpack.c.l.bf16 %v10541
      %v10555 = vunpack.c.l.bf16 %v10542
      %v10556 = vunpack.c.l.bf16 %v10543
      %v10557 = vunpack.c.l.bf16 %v10544
      %v10558 = vunpack.c.l.bf16 %v10545
      %v10559 = vunpack.c.l.bf16 %v10546
      %v10560 = vunpack.c.l.bf16 %v10547
      %v10561 = vld [vmem:[%s5] sm:$0x1]
      %v10563 = vlaneseq
      %v10564 = vshrl.u32 %v10563, 7
      %v10565 = vsub.s32 0, %v10564
      %v10566 = vrot.slane %v10561, %v10565
      %v10568 = vadd.f32 %v10523, %v10566
      %v10569 = vadd.f32 %v10524, %v10566
      %v10570 = vadd.f32 %v10525, %v10566
      %v10571 = vadd.f32 %v10526, %v10566
      %v10572 = vadd.f32 %v10527, %v10566
      %v10573 = vadd.f32 %v10528, %v10566
      %v10574 = vadd.f32 %v10529, %v10566
      %v10575 = vadd.f32 %v10530, %v10566
      %v10576 = vadd.f32 %v10531, %v10566
      %v10577 = vadd.f32 %v10532, %v10566
      %v10578 = vadd.f32 %v10533, %v10566
      %v10579 = vadd.f32 %v10534, %v10566
      %v10593 = vrot.slane %v10548, 3
      %v10594 = vrot.slane %v10549, 3
      %v10595 = vsel %vm8619, %v10593, %v10594
      %v10596 = vrot.slane %v10550, 3
      %v10597 = vsel %vm8619, %v10594, %v10596
      %v10598 = vrot.slane %v10551, 3
      %v10599 = vsel %vm8619, %v10596, %v10598
      %v10600 = vrot.slane %v10552, 3
      %v10601 = vsel %vm8619, %v10598, %v10600
      %v10602 = vrot.slane %v10553, 3
      %v10603 = vsel %vm8619, %v10600, %v10602
      %v10604 = vrot.slane %v10554, 3
      %v10605 = vsel %vm8619, %v10602, %v10604
      %v10606 = vrot.slane %v10555, 3
      %v10607 = vsel %vm8619, %v10604, %v10606
      %v10608 = vrot.slane %v10556, 3
      %v10609 = vsel %vm8619, %v10606, %v10608
      %v10610 = vrot.slane %v10557, 3
      %v10611 = vsel %vm8619, %v10608, %v10610
      %v10612 = vrot.slane %v10558, 3
      %v10613 = vsel %vm8619, %v10610, %v10612
      %v10614 = vrot.slane %v10559, 3
      %v10615 = vsel %vm8619, %v10612, %v10614
      %v10616 = vrot.slane %v10560, 3
      %v10617 = vsel %vm8619, %v10614, %v10616
      %v10630 = vadd.f32 %v10568, %v10595
      %v10631 = vadd.f32 %v10569, %v10597
      %v10632 = vadd.f32 %v10570, %v10599
      %v10633 = vadd.f32 %v10571, %v10601
      %v10634 = vadd.f32 %v10572, %v10603
      %v10635 = vadd.f32 %v10573, %v10605
      %v10636 = vadd.f32 %v10574, %v10607
      %v10637 = vadd.f32 %v10575, %v10609
      %v10638 = vadd.f32 %v10576, %v10611
      %v10639 = vadd.f32 %v10577, %v10613
      %v10640 = vadd.f32 %v10578, %v10615
      %v10641 = vadd.f32 %v10579, %v10617
      %v10642 = vmax.f32 %v10630, 0.0
      %v10643 = vmax.f32 %v10631, 0.0
      %v10644 = vmax.f32 %v10632, 0.0
      %v10645 = vmax.f32 %v10633, 0.0
      %v10646 = vmax.f32 %v10634, 0.0
      %v10647 = vmax.f32 %v10635, 0.0
      %v10648 = vmax.f32 %v10636, 0.0
      %v10649 = vmax.f32 %v10637, 0.0
      %v10650 = vmax.f32 %v10638, 0.0
      %v10651 = vmax.f32 %v10639, 0.0
      %v10652 = vmax.f32 %v10640, 0.0
      %v10653 = vmax.f32 %v10641, 0.0
      %10654 = vst [vmem:[%s251 + $0x60] sm:$0xff] %v10642
      %10655 = vst [vmem:[%s251 + $0x68] sm:$0xff] %v10643
      %10656 = vst [vmem:[%s251 + $0x70] sm:$0xff] %v10644
      %10657 = vst [vmem:[%s251 + $0x78] sm:$0xff] %v10645
      %10658 = vst [vmem:[%s251 + $0x80] sm:$0xff] %v10646
      %10659 = vst [vmem:[%s251 + $0x88] sm:$0xff] %v10647
      %10660 = vst [vmem:[%s251 + $0x90] sm:$0xff] %v10648
      %10661 = vst [vmem:[%s251 + $0x98] sm:$0xff] %v10649
      %10662 = vst [vmem:[%s251 + $0xa0] sm:$0xff] %v10650
      %10663 = vst [vmem:[%s251 + $0xa8] sm:$0xff] %v10651
      %10664 = vst [vmem:[%s251 + $0xb0] sm:$0xff] %v10652
      %10665 = vst [vmem:[%s251 + $0xb8] sm:$0xff] %v10653
      %v10666 = vld [vmem:[#allocation2 + $0x60] sm:$0xf]
      %v10667 = vld [vmem:[#allocation2 + $0x64] sm:$0xf]
      %v10668 = vld [vmem:[#allocation2 + $0x68] sm:$0xf]
      %v10669 = vld [vmem:[#allocation2 + $0x6c] sm:$0xf]
      %v10670 = vld [vmem:[#allocation2 + $0x70] sm:$0xf]
      %v10671 = vld [vmem:[#allocation2 + $0x74] sm:$0xf]
      %v10672 = vld [vmem:[#allocation2 + $0x78] sm:$0xf]
      %v10673 = vld [vmem:[#allocation2 + $0x7c] sm:$0xf]
      %v10674 = vld [vmem:[#allocation2 + $0x80] sm:$0xf]
      %v10675 = vld [vmem:[#allocation2 + $0x84] sm:$0xf]
      %v10676 = vld [vmem:[#allocation2 + $0x88] sm:$0xf]
      %v10677 = vld [vmem:[#allocation2 + $0x8c] sm:$0xf]
      %v10678 = vld [vmem:[%s3] sm:$0xf]
      %v10679 = vld [vmem:[%s3 + $0x4] sm:$0xf]
      %v10680 = vld [vmem:[%s3 + $0x8] sm:$0xf]
      %v10681 = vld [vmem:[%s3 + $0xc] sm:$0xf]
      %v10682 = vld [vmem:[%s3 + $0x10] sm:$0xf]
      %v10683 = vld [vmem:[%s3 + $0x14] sm:$0xf]
      %v10684 = vld [vmem:[%s3 + $0x18] sm:$0xf]
      %v10685 = vld [vmem:[%s3 + $0x1c] sm:$0xf]
      %v10686 = vld [vmem:[%s3 + $0x20] sm:$0xf]
      %v10687 = vld [vmem:[%s3 + $0x24] sm:$0xf]
      %v10688 = vld [vmem:[%s3 + $0x28] sm:$0xf]
      %v10689 = vld [vmem:[%s3 + $0x2c] sm:$0xf]
      %v10690 = vld [vmem:[%s3 + $0x30] sm:$0xf]
      %v10691 = vld [vmem:[%s3 + $0x34] sm:$0xf]
      %v10692 = vld [vmem:[%s3 + $0x38] sm:$0xf]
      %v10693 = vld [vmem:[%s3 + $0x3c] sm:$0xf]
      %v10694 = vld [vmem:[#allocation2 + $0x90] sm:$0x1]
      %v10695 = vld [vmem:[%s6740] sm:$0xf]
      %v10696 = vld [vmem:[%s6740 + $0x4] sm:$0xf]
      %v10697 = vld [vmem:[%s6740 + $0x8] sm:$0xf]
      %v10698 = vld [vmem:[%s6740 + $0xc] sm:$0xf]
      %v10699 = vld [vmem:[%s6740 + $0x10] sm:$0xf]
      %v10700 = vld [vmem:[%s6740 + $0x14] sm:$0xf]
      %v10701 = vld [vmem:[%s6740 + $0x18] sm:$0xf]
      %v10702 = vld [vmem:[%s6740 + $0x1c] sm:$0xf]
      %v10703 = vld [vmem:[%s6740 + $0x20] sm:$0xf]
      %v10704 = vld [vmem:[%s6740 + $0x24] sm:$0xf]
      %v10705 = vld [vmem:[%s6740 + $0x28] sm:$0xf]
      %v10706 = vld [vmem:[%s6740 + $0x2c] sm:$0xf]
      %v10707 = vld [vmem:[%s6740 + $0x30] sm:$0xf]
      %v10708 = vld [vmem:[%s6740 + $0x34] sm:$0xf]
      %v10709 = vld [vmem:[%s6740 + $0x38] sm:$0xf]
      %v10710 = vld [vmem:[%s6740 + $0x3c] sm:$0xf]
      %v10724 = vunpack.c.l.b16 %v10666
      %v10725 = vunpack.c.l.b16 %v10667
      %v10726 = vunpack.c.l.b16 %v10668
      %v10727 = vunpack.c.l.b16 %v10669
      %v10728 = vunpack.c.l.b16 %v10670
      %v10729 = vunpack.c.l.b16 %v10671
      %v10730 = vunpack.c.l.b16 %v10672
      %v10731 = vunpack.c.l.b16 %v10673
      %v10732 = vunpack.c.l.b16 %v10674
      %v10733 = vunpack.c.l.b16 %v10675
      %v10734 = vunpack.c.l.b16 %v10676
      %v10735 = vunpack.c.l.b16 %v10677
      %v10736 = vunpack.c.l.b16 %v10694
      %v10737 = vpack.c.b16 %v10725, %v10724
      %v10738 = vpack.c.b16 %v10727, %v10726
      %v10739 = vpack.c.b16 %v10729, %v10728
      %v10740 = vpack.c.b16 %v10731, %v10730
      %v10741 = vpack.c.b16 %v10733, %v10732
      %v10742 = vpack.c.b16 %v10735, %v10734
      %v10743 = vpack.c.b16 %v10736, %v10736
      %v10745 = vshrl.u32 %v10737, 16
      %v10747 = vshll.u32 %v10737, 16
      %v10749 = vrot.slane %v10747, 1
      %v10750 = vor.u32 %v10745, %v10749
      %v10752 = vshll.u32 %v10738, 16
      %v10754 = vrot.slane %v10752, 1
      %v10755 = vsel %vm348, %v10750, %v10754
      %v10756 = vshrl.u32 %v10738, 16
      %v10758 = vor.u32 %v10756, %v10754
      %v10760 = vshll.u32 %v10739, 16
      %v10762 = vrot.slane %v10760, 1
      %v10763 = vsel %vm348, %v10758, %v10762
      %v10764 = vshrl.u32 %v10739, 16
      %v10766 = vor.u32 %v10764, %v10762
      %v10768 = vshll.u32 %v10740, 16
      %v10770 = vrot.slane %v10768, 1
      %v10771 = vsel %vm348, %v10766, %v10770
      %v10772 = vshrl.u32 %v10740, 16
      %v10774 = vor.u32 %v10772, %v10770
      %v10776 = vshll.u32 %v10741, 16
      %v10778 = vrot.slane %v10776, 1
      %v10779 = vsel %vm348, %v10774, %v10778
      %v10780 = vshrl.u32 %v10741, 16
      %v10782 = vor.u32 %v10780, %v10778
      %v10784 = vshll.u32 %v10742, 16
      %v10786 = vrot.slane %v10784, 1
      %v10787 = vsel %vm348, %v10782, %v10786
      %v10788 = vshrl.u32 %v10742, 16
      %v10790 = vor.u32 %v10788, %v10786
      %v10792 = vshll.u32 %v10743, 16
      %v10794 = vrot.slane %v10792, 1
      %v10795 = vsel %vm348, %v10790, %v10794
      %v10818 = vunpack.c.l.b16 %v10695
      %v10819 = vunpack.c.l.b16 %v10696
      %v10820 = vunpack.c.l.b16 %v10697
      %v10821 = vunpack.c.l.b16 %v10698
      %v10822 = vunpack.c.l.b16 %v10699
      %v10823 = vunpack.c.l.b16 %v10700
      %v10824 = vunpack.c.l.b16 %v10701
      %v10825 = vunpack.c.l.b16 %v10702
      %v10826 = vunpack.c.l.b16 %v10703
      %v10827 = vunpack.c.l.b16 %v10704
      %v10828 = vunpack.c.l.b16 %v10705
      %v10829 = vunpack.c.l.b16 %v10706
      %v10830 = vunpack.c.l.b16 %v10707
      %v10831 = vunpack.c.l.b16 %v10708
      %v10832 = vunpack.c.l.b16 %v10709
      %v10833 = vunpack.c.l.b16 %v10710
      %v10834 = vpack.c.b16 %v10819, %v10818
      %v10835 = vpack.c.b16 %v10821, %v10820
      %v10836 = vpack.c.b16 %v10823, %v10822
      %v10837 = vpack.c.b16 %v10825, %v10824
      %v10838 = vpack.c.b16 %v10827, %v10826
      %v10839 = vpack.c.b16 %v10829, %v10828
      %v10840 = vpack.c.b16 %v10831, %v10830
      %v10841 = vpack.c.b16 %v10833, %v10832
      %10850 = vmatprep.subr.bf16.mxu0 0
      %10851 = vmatpush1.bf16.msra.mxu0 %v10834
      %10852 = vmatprep.subr.bf16.mxu0 0
      %10853 = vmatpush1.bf16.msra.mxu0 %v10835
      %10854 = vmatprep.subr.bf16.mxu0 0
      %10855 = vmatpush1.bf16.msra.mxu0 %v10836
      %10856 = vmatprep.subr.bf16.mxu0 0
      %10857 = vmatpush1.bf16.msra.mxu0 %v10837
      %10858 = vmatprep.subr.bf16.mxu0 0
      %10859 = vmatpush1.bf16.msra.mxu0 %v10838
      %10860 = vmatprep.subr.bf16.mxu0 0
      %10861 = vmatpush1.bf16.msra.mxu0 %v10839
      %10862 = vmatprep.subr.bf16.mxu0 0
      %10863 = vmatpush1.bf16.msra.mxu0 %v10840
      %10864 = vmatprep.subr.bf16.mxu0 0
      %10865 = vmatpush1.bf16.msra.mxu0 %v10841
      %10866 = vmatprep.subr.bf16.mxu0 0
      %10867 = vmatpush1.bf16.msra.mxu0 0
      %10868 = vmatprep.subr.bf16.mxu0 0
      %10869 = vmatpush1.bf16.msra.mxu0 0
      %10870 = vmatprep.subr.bf16.mxu0 0
      %10871 = vmatpush1.bf16.msra.mxu0 0
      %10872 = vmatprep.subr.bf16.mxu0 0
      %10873 = vmatpush1.bf16.msra.mxu0 0
      %10874 = vmatprep.subr.bf16.mxu0 0
      %10875 = vmatpush1.bf16.msra.mxu0 0
      %10876 = vmatprep.subr.bf16.mxu0 0
      %10877 = vmatpush1.bf16.msra.mxu0 0
      %10878 = vmatprep.subr.bf16.mxu0 0
      %10879 = vmatpush1.bf16.msra.mxu0 0
      %10880 = vmatprep.subr.bf16.mxu0 0
      %10881 = vmatpush1.bf16.msra.mxu0 0
      %10882 = vmatprep.mubr.bf16.mxu0 0
      %10883 = vmatmul.mubr.bf16.gmra.mrb[0].mxu0 %v10755
      %v10884 = vpop.f32.mrb[0].mxu0
      %v10885 = vadd.f32 0.0, %v10884
      %v10886 = vpop.f32.mrb[0].mxu0
      %v10887 = vpop.f32.mrb[0].mxu0
      %v10888 = vadd.f32 0.0, %v10887
      %v10889 = vpop.f32.mrb[0].mxu0
      %10890 = vmatprep.mubr.bf16.mxu0 0
      %10891 = vmatmul.mubr.bf16.gmra.mrb[0].mxu0 %v10763
      %v10892 = vpop.f32.mrb[0].mxu0
      %v10893 = vadd.f32 0.0, %v10892
      %v10894 = vpop.f32.mrb[0].mxu0
      %v10895 = vpop.f32.mrb[0].mxu0
      %v10896 = vadd.f32 0.0, %v10895
      %v10897 = vpop.f32.mrb[0].mxu0
      %10898 = vmatprep.mubr.bf16.mxu0 0
      %10899 = vmatmul.mubr.bf16.gmra.mrb[0].mxu0 %v10771
      %v10900 = vpop.f32.mrb[0].mxu0
      %v10901 = vadd.f32 0.0, %v10900
      %v10902 = vpop.f32.mrb[0].mxu0
      %v10903 = vpop.f32.mrb[0].mxu0
      %v10904 = vadd.f32 0.0, %v10903
      %v10905 = vpop.f32.mrb[0].mxu0
      %10906 = vmatprep.mubr.bf16.mxu0 0
      %10907 = vmatmul.mubr.bf16.gmra.mrb[0].mxu0 %v10779
      %v10908 = vpop.f32.mrb[0].mxu0
      %v10909 = vadd.f32 0.0, %v10908
      %v10910 = vpop.f32.mrb[0].mxu0
      %v10911 = vpop.f32.mrb[0].mxu0
      %v10912 = vadd.f32 0.0, %v10911
      %v10913 = vpop.f32.mrb[0].mxu0
      %10914 = vmatprep.mubr.bf16.mxu0 0
      %10915 = vmatmul.mubr.bf16.gmra.mrb[0].mxu0 %v10787
      %v10916 = vpop.f32.mrb[0].mxu0
      %v10917 = vadd.f32 0.0, %v10916
      %v10918 = vpop.f32.mrb[0].mxu0
      %v10919 = vpop.f32.mrb[0].mxu0
      %v10920 = vadd.f32 0.0, %v10919
      %v10921 = vpop.f32.mrb[0].mxu0
      %10922 = vmatprep.mubr.bf16.mxu0 0
      %10923 = vmatmul.mubr.bf16.gmra.mrb[0].mxu0 %v10795
      %v10924 = vpop.f32.mrb[0].mxu0
      %v10925 = vadd.f32 0.0, %v10924
      %v10926 = vpop.f32.mrb[0].mxu0
      %v10927 = vpop.f32.mrb[0].mxu0
      %v10928 = vadd.f32 0.0, %v10927
      %v10929 = vpop.f32.mrb[0].mxu0
      %10930 = vdwg.mxu0
      %v10953 = vunpack.c.l.b16 %v10678
      %v10954 = vunpack.c.l.b16 %v10679
      %v10955 = vunpack.c.l.b16 %v10680
      %v10956 = vunpack.c.l.b16 %v10681
      %v10957 = vunpack.c.l.b16 %v10682
      %v10958 = vunpack.c.l.b16 %v10683
      %v10959 = vunpack.c.l.b16 %v10684
      %v10960 = vunpack.c.l.b16 %v10685
      %v10961 = vunpack.c.l.b16 %v10686
      %v10962 = vunpack.c.l.b16 %v10687
      %v10963 = vunpack.c.l.b16 %v10688
      %v10964 = vunpack.c.l.b16 %v10689
      %v10965 = vunpack.c.l.b16 %v10690
      %v10966 = vunpack.c.l.b16 %v10691
      %v10967 = vunpack.c.l.b16 %v10692
      %v10968 = vunpack.c.l.b16 %v10693
      %v10969 = vpack.c.b16 %v10954, %v10953
      %v10970 = vpack.c.b16 %v10956, %v10955
      %v10971 = vpack.c.b16 %v10958, %v10957
      %v10972 = vpack.c.b16 %v10960, %v10959
      %v10973 = vpack.c.b16 %v10962, %v10961
      %v10974 = vpack.c.b16 %v10964, %v10963
      %v10975 = vpack.c.b16 %v10966, %v10965
      %v10976 = vpack.c.b16 %v10968, %v10967
      %10985 = vmatprep.subr.bf16.mxu0 0
      %10986 = vmatpush1.bf16.msra.mxu0 %v10969
      %10987 = vmatprep.subr.bf16.mxu0 0
      %10988 = vmatpush1.bf16.msra.mxu0 %v10970
      %10989 = vmatprep.subr.bf16.mxu0 0
      %10990 = vmatpush1.bf16.msra.mxu0 %v10971
      %10991 = vmatprep.subr.bf16.mxu0 0
      %10992 = vmatpush1.bf16.msra.mxu0 %v10972
      %10993 = vmatprep.subr.bf16.mxu0 0
      %10994 = vmatpush1.bf16.msra.mxu0 %v10973
      %10995 = vmatprep.subr.bf16.mxu0 0
      %10996 = vmatpush1.bf16.msra.mxu0 %v10974
      %10997 = vmatprep.subr.bf16.mxu0 0
      %10998 = vmatpush1.bf16.msra.mxu0 %v10975
      %10999 = vmatprep.subr.bf16.mxu0 0
      %11000 = vmatpush1.bf16.msra.mxu0 %v10976
      %11001 = vmatprep.subr.bf16.mxu0 0
      %11002 = vmatpush1.bf16.msra.mxu0 0
      %11003 = vmatprep.subr.bf16.mxu0 0
      %11004 = vmatpush1.bf16.msra.mxu0 0
      %11005 = vmatprep.subr.bf16.mxu0 0
      %11006 = vmatpush1.bf16.msra.mxu0 0
      %11007 = vmatprep.subr.bf16.mxu0 0
      %11008 = vmatpush1.bf16.msra.mxu0 0
      %11009 = vmatprep.subr.bf16.mxu0 0
      %11010 = vmatpush1.bf16.msra.mxu0 0
      %11011 = vmatprep.subr.bf16.mxu0 0
      %11012 = vmatpush1.bf16.msra.mxu0 0
      %11013 = vmatprep.subr.bf16.mxu0 0
      %11014 = vmatpush1.bf16.msra.mxu0 0
      %11015 = vmatprep.subr.bf16.mxu0 0
      %11016 = vmatpush1.bf16.msra.mxu0 0
      %11017 = vmatprep.mubr.bf16.mxu0 0
      %11018 = vmatmul.mubr.bf16.gmra.mrb[0].mxu0 %v10737
      %v11019 = vpop.f32.mrb[0].mxu0
      %v11020 = vadd.f32 %v10885, %v11019
      %v11021 = vpop.f32.mrb[0].mxu0
      %v11022 = vpop.f32.mrb[0].mxu0
      %v11023 = vadd.f32 %v10888, %v11022
      %v11024 = vpop.f32.mrb[0].mxu0
      %11025 = vmatprep.mubr.bf16.mxu0 0
      %11026 = vmatmul.mubr.bf16.gmra.mrb[0].mxu0 %v10738
      %v11027 = vpop.f32.mrb[0].mxu0
      %v11028 = vadd.f32 %v10893, %v11027
      %v11029 = vpop.f32.mrb[0].mxu0
      %v11030 = vpop.f32.mrb[0].mxu0
      %v11031 = vadd.f32 %v10896, %v11030
      %v11032 = vpop.f32.mrb[0].mxu0
      %11033 = vmatprep.mubr.bf16.mxu0 0
      %11034 = vmatmul.mubr.bf16.gmra.mrb[0].mxu0 %v10739
      %v11035 = vpop.f32.mrb[0].mxu0
      %v11036 = vadd.f32 %v10901, %v11035
      %v11037 = vpop.f32.mrb[0].mxu0
      %v11038 = vpop.f32.mrb[0].mxu0
      %v11039 = vadd.f32 %v10904, %v11038
      %v11040 = vpop.f32.mrb[0].mxu0
      %11041 = vmatprep.mubr.bf16.mxu0 0
      %11042 = vmatmul.mubr.bf16.gmra.mrb[0].mxu0 %v10740
      %v11043 = vpop.f32.mrb[0].mxu0
      %v11044 = vadd.f32 %v10909, %v11043
      %v11045 = vpop.f32.mrb[0].mxu0
      %v11046 = vpop.f32.mrb[0].mxu0
      %v11047 = vadd.f32 %v10912, %v11046
      %v11048 = vpop.f32.mrb[0].mxu0
      %11049 = vmatprep.mubr.bf16.mxu0 0
      %11050 = vmatmul.mubr.bf16.gmra.mrb[0].mxu0 %v10741
      %v11051 = vpop.f32.mrb[0].mxu0
      %v11052 = vadd.f32 %v10917, %v11051
      %v11053 = vpop.f32.mrb[0].mxu0
      %v11054 = vpop.f32.mrb[0].mxu0
      %v11055 = vadd.f32 %v10920, %v11054
      %v11056 = vpop.f32.mrb[0].mxu0
      %11057 = vmatprep.mubr.bf16.mxu0 0
      %11058 = vmatmul.mubr.bf16.gmra.mrb[0].mxu0 %v10742
      %v11059 = vpop.f32.mrb[0].mxu0
      %v11060 = vadd.f32 %v10925, %v11059
      %v11061 = vpop.f32.mrb[0].mxu0
      %v11062 = vpop.f32.mrb[0].mxu0
      %v11063 = vadd.f32 %v10928, %v11062
      %v11064 = vpop.f32.mrb[0].mxu0
      %11065 = vdwg.mxu0
      %v11066 = vld [vmem:[#allocation2 + $0x60] sm:$0xe]
      %v11067 = vld [vmem:[%s7113] sm:$0xf]
      %v11068 = vld [vmem:[%s7113 + $0x4] sm:$0xf]
      %v11069 = vld [vmem:[%s7113 + $0x8] sm:$0xf]
      %v11070 = vld [vmem:[%s7113 + $0xc] sm:$0xf]
      %v11071 = vld [vmem:[%s7113 + $0x10] sm:$0xf]
      %v11072 = vld [vmem:[%s7113 + $0x14] sm:$0xf]
      %v11073 = vld [vmem:[%s7113 + $0x18] sm:$0xf]
      %v11074 = vld [vmem:[%s7113 + $0x1c] sm:$0xf]
      %v11075 = vld [vmem:[%s7113 + $0x20] sm:$0xf]
      %v11076 = vld [vmem:[%s7113 + $0x24] sm:$0xf]
      %v11077 = vld [vmem:[%s7113 + $0x28] sm:$0xf]
      %v11078 = vld [vmem:[%s7113 + $0x2c] sm:$0xf]
      %v11079 = vld [vmem:[%s7113 + $0x30] sm:$0xf]
      %v11080 = vld [vmem:[%s7113 + $0x34] sm:$0xf]
      %v11081 = vld [vmem:[%s7113 + $0x38] sm:$0xf]
      %v11082 = vld [vmem:[%s7113 + $0x3c] sm:$0xf]
      %v11084 = vunpack.c.l.b16 %v11066
      %v11085 = vpack.c.b16 %v10725, %v11084
      %v11086 = vrot.slane %v11085, 1
      %v11087 = vrot.slane %v10738, 1
      %v11088 = vsel %vm692, %v11086, %v11087
      %v11089 = vrot.slane %v10739, 1
      %v11090 = vsel %vm692, %v11087, %v11089
      %v11091 = vrot.slane %v10740, 1
      %v11092 = vsel %vm692, %v11089, %v11091
      %v11093 = vrot.slane %v10741, 1
      %v11094 = vsel %vm692, %v11091, %v11093
      %v11095 = vrot.slane %v10742, 1
      %v11096 = vsel %vm692, %v11093, %v11095
      %v11097 = vrot.slane %v10743, 1
      %v11098 = vsel %vm692, %v11095, %v11097
      %v11121 = vunpack.c.l.b16 %v11067
      %v11122 = vunpack.c.l.b16 %v11068
      %v11123 = vunpack.c.l.b16 %v11069
      %v11124 = vunpack.c.l.b16 %v11070
      %v11125 = vunpack.c.l.b16 %v11071
      %v11126 = vunpack.c.l.b16 %v11072
      %v11127 = vunpack.c.l.b16 %v11073
      %v11128 = vunpack.c.l.b16 %v11074
      %v11129 = vunpack.c.l.b16 %v11075
      %v11130 = vunpack.c.l.b16 %v11076
      %v11131 = vunpack.c.l.b16 %v11077
      %v11132 = vunpack.c.l.b16 %v11078
      %v11133 = vunpack.c.l.b16 %v11079
      %v11134 = vunpack.c.l.b16 %v11080
      %v11135 = vunpack.c.l.b16 %v11081
      %v11136 = vunpack.c.l.b16 %v11082
      %v11137 = vpack.c.b16 %v11122, %v11121
      %v11138 = vpack.c.b16 %v11124, %v11123
      %v11139 = vpack.c.b16 %v11126, %v11125
      %v11140 = vpack.c.b16 %v11128, %v11127
      %v11141 = vpack.c.b16 %v11130, %v11129
      %v11142 = vpack.c.b16 %v11132, %v11131
      %v11143 = vpack.c.b16 %v11134, %v11133
      %v11144 = vpack.c.b16 %v11136, %v11135
      %11153 = vmatprep.subr.bf16.mxu0 0
      %11154 = vmatpush1.bf16.msra.mxu0 %v11137
      %11155 = vmatprep.subr.bf16.mxu0 0
      %11156 = vmatpush1.bf16.msra.mxu0 %v11138
      %11157 = vmatprep.subr.bf16.mxu0 0
      %11158 = vmatpush1.bf16.msra.mxu0 %v11139
      %11159 = vmatprep.subr.bf16.mxu0 0
      %11160 = vmatpush1.bf16.msra.mxu0 %v11140
      %11161 = vmatprep.subr.bf16.mxu0 0
      %11162 = vmatpush1.bf16.msra.mxu0 %v11141
      %11163 = vmatprep.subr.bf16.mxu0 0
      %11164 = vmatpush1.bf16.msra.mxu0 %v11142
      %11165 = vmatprep.subr.bf16.mxu0 0
      %11166 = vmatpush1.bf16.msra.mxu0 %v11143
      %11167 = vmatprep.subr.bf16.mxu0 0
      %11168 = vmatpush1.bf16.msra.mxu0 %v11144
      %11169 = vmatprep.subr.bf16.mxu0 0
      %11170 = vmatpush1.bf16.msra.mxu0 0
      %11171 = vmatprep.subr.bf16.mxu0 0
      %11172 = vmatpush1.bf16.msra.mxu0 0
      %11173 = vmatprep.subr.bf16.mxu0 0
      %11174 = vmatpush1.bf16.msra.mxu0 0
      %11175 = vmatprep.subr.bf16.mxu0 0
      %11176 = vmatpush1.bf16.msra.mxu0 0
      %11177 = vmatprep.subr.bf16.mxu0 0
      %11178 = vmatpush1.bf16.msra.mxu0 0
      %11179 = vmatprep.subr.bf16.mxu0 0
      %11180 = vmatpush1.bf16.msra.mxu0 0
      %11181 = vmatprep.subr.bf16.mxu0 0
      %11182 = vmatpush1.bf16.msra.mxu0 0
      %11183 = vmatprep.subr.bf16.mxu0 0
      %11184 = vmatpush1.bf16.msra.mxu0 0
      %11185 = vmatprep.mubr.bf16.mxu0 0
      %11186 = vmatmul.mubr.bf16.gmra.mrb[0].mxu0 %v11088
      %v11187 = vpop.f32.mrb[0].mxu0
      %v11188 = vadd.f32 0.0, %v11187
      %v11189 = vpop.f32.mrb[0].mxu0
      %v11190 = vpop.f32.mrb[0].mxu0
      %v11191 = vadd.f32 0.0, %v11190
      %v11192 = vpop.f32.mrb[0].mxu0
      %11193 = vmatprep.mubr.bf16.mxu0 0
      %11194 = vmatmul.mubr.bf16.gmra.mrb[0].mxu0 %v11090
      %v11195 = vpop.f32.mrb[0].mxu0
      %v11196 = vadd.f32 0.0, %v11195
      %v11197 = vpop.f32.mrb[0].mxu0
      %v11198 = vpop.f32.mrb[0].mxu0
      %v11199 = vadd.f32 0.0, %v11198
      %v11200 = vpop.f32.mrb[0].mxu0
      %11201 = vmatprep.mubr.bf16.mxu0 0
      %11202 = vmatmul.mubr.bf16.gmra.mrb[0].mxu0 %v11092
      %v11203 = vpop.f32.mrb[0].mxu0
      %v11204 = vadd.f32 0.0, %v11203
      %v11205 = vpop.f32.mrb[0].mxu0
      %v11206 = vpop.f32.mrb[0].mxu0
      %v11207 = vadd.f32 0.0, %v11206
      %v11208 = vpop.f32.mrb[0].mxu0
      %11209 = vmatprep.mubr.bf16.mxu0 0
      %11210 = vmatmul.mubr.bf16.gmra.mrb[0].mxu0 %v11094
      %v11211 = vpop.f32.mrb[0].mxu0
      %v11212 = vadd.f32 0.0, %v11211
      %v11213 = vpop.f32.mrb[0].mxu0
      %v11214 = vpop.f32.mrb[0].mxu0
      %v11215 = vadd.f32 0.0, %v11214
      %v11216 = vpop.f32.mrb[0].mxu0
      %11217 = vmatprep.mubr.bf16.mxu0 0
      %11218 = vmatmul.mubr.bf16.gmra.mrb[0].mxu0 %v11096
      %v11219 = vpop.f32.mrb[0].mxu0
      %v11220 = vadd.f32 0.0, %v11219
      %v11221 = vpop.f32.mrb[0].mxu0
      %v11222 = vpop.f32.mrb[0].mxu0
      %v11223 = vadd.f32 0.0, %v11222
      %v11224 = vpop.f32.mrb[0].mxu0
      %11225 = vmatprep.mubr.bf16.mxu0 0
      %11226 = vmatmul.mubr.bf16.gmra.mrb[0].mxu0 %v11098
      %v11227 = vpop.f32.mrb[0].mxu0
      %v11228 = vadd.f32 0.0, %v11227
      %v11229 = vpop.f32.mrb[0].mxu0
      %v11230 = vpop.f32.mrb[0].mxu0
      %v11231 = vadd.f32 0.0, %v11230
      %v11232 = vpop.f32.mrb[0].mxu0
      %11233 = vdwg.mxu0
      %v11234 = vadd.f32 %v11020, %v11188
      %v11235 = vadd.f32 %v11023, %v11191
      %v11236 = vadd.f32 %v11028, %v11196
      %v11237 = vadd.f32 %v11031, %v11199
      %v11238 = vadd.f32 %v11036, %v11204
      %v11239 = vadd.f32 %v11039, %v11207
      %v11240 = vadd.f32 %v11044, %v11212
      %v11241 = vadd.f32 %v11047, %v11215
      %v11242 = vadd.f32 %v11052, %v11220
      %v11243 = vadd.f32 %v11055, %v11223
      %v11244 = vadd.f32 %v11060, %v11228
      %v11245 = vadd.f32 %v11063, %v11231
      %v11246 = vld [vmem:[#allocation2 + $0x68] sm:$0xe]
      %v11247 = vld [vmem:[#allocation2 + $0x6c] sm:$0xf]
      %v11248 = vld [vmem:[#allocation2 + $0x70] sm:$0xf]
      %v11249 = vld [vmem:[#allocation2 + $0x74] sm:$0xf]
      %v11250 = vld [vmem:[#allocation2 + $0x78] sm:$0xf]
      %v11251 = vld [vmem:[#allocation2 + $0x7c] sm:$0xf]
      %v11252 = vld [vmem:[#allocation2 + $0x80] sm:$0xf]
      %v11253 = vld [vmem:[#allocation2 + $0x84] sm:$0xf]
      %v11254 = vld [vmem:[#allocation2 + $0x88] sm:$0xf]
      %v11255 = vld [vmem:[#allocation2 + $0x8c] sm:$0xf]
      %v11256 = vld [vmem:[#allocation2 + $0x90] sm:$0xf]
      %v11257 = vld [vmem:[#allocation2 + $0x94] sm:$0xf]
      %v11258 = vld [vmem:[#allocation2 + $0x98] sm:$0x1]
      %v11259 = vld [vmem:[%s7306] sm:$0xf]
      %v11260 = vld [vmem:[%s7306 + $0x4] sm:$0xf]
      %v11261 = vld [vmem:[%s7306 + $0x8] sm:$0xf]
      %v11262 = vld [vmem:[%s7306 + $0xc] sm:$0xf]
      %v11263 = vld [vmem:[%s7306 + $0x10] sm:$0xf]
      %v11264 = vld [vmem:[%s7306 + $0x14] sm:$0xf]
      %v11265 = vld [vmem:[%s7306 + $0x18] sm:$0xf]
      %v11266 = vld [vmem:[%s7306 + $0x1c] sm:$0xf]
      %v11267 = vld [vmem:[%s7306 + $0x20] sm:$0xf]
      %v11268 = vld [vmem:[%s7306 + $0x24] sm:$0xf]
      %v11269 = vld [vmem:[%s7306 + $0x28] sm:$0xf]
      %v11270 = vld [vmem:[%s7306 + $0x2c] sm:$0xf]
      %v11271 = vld [vmem:[%s7306 + $0x30] sm:$0xf]
      %v11272 = vld [vmem:[%s7306 + $0x34] sm:$0xf]
      %v11273 = vld [vmem:[%s7306 + $0x38] sm:$0xf]
      %v11274 = vld [vmem:[%s7306 + $0x3c] sm:$0xf]
      %v11288 = vunpack.c.l.b16 %v11246
      %v11289 = vunpack.c.l.b16 %v11247
      %v11290 = vunpack.c.l.b16 %v11248
      %v11291 = vunpack.c.l.b16 %v11249
      %v11292 = vunpack.c.l.b16 %v11250
      %v11293 = vunpack.c.l.b16 %v11251
      %v11294 = vunpack.c.l.b16 %v11252
      %v11295 = vunpack.c.l.b16 %v11253
      %v11296 = vunpack.c.l.b16 %v11254
      %v11297 = vunpack.c.l.b16 %v11255
      %v11298 = vunpack.c.l.b16 %v11256
      %v11299 = vunpack.c.l.b16 %v11257
      %v11300 = vunpack.c.l.b16 %v11258
      %v11301 = vpack.c.b16 %v11289, %v11288
      %v11302 = vpack.c.b16 %v11291, %v11290
      %v11303 = vpack.c.b16 %v11293, %v11292
      %v11304 = vpack.c.b16 %v11295, %v11294
      %v11305 = vpack.c.b16 %v11297, %v11296
      %v11306 = vpack.c.b16 %v11299, %v11298
      %v11307 = vpack.c.b16 %v11300, %v11300
      %v11308 = vrot.slane %v11301, 1
      %v11309 = vrot.slane %v11302, 1
      %v11310 = vsel %vm692, %v11308, %v11309
      %v11311 = vrot.slane %v11303, 1
      %v11312 = vsel %vm692, %v11309, %v11311
      %v11313 = vrot.slane %v11304, 1
      %v11314 = vsel %vm692, %v11311, %v11313
      %v11315 = vrot.slane %v11305, 1
      %v11316 = vsel %vm692, %v11313, %v11315
      %v11317 = vrot.slane %v11306, 1
      %v11318 = vsel %vm692, %v11315, %v11317
      %v11319 = vrot.slane %v11307, 1
      %v11320 = vsel %vm692, %v11317, %v11319
      %v11343 = vunpack.c.l.b16 %v11259
      %v11344 = vunpack.c.l.b16 %v11260
      %v11345 = vunpack.c.l.b16 %v11261
      %v11346 = vunpack.c.l.b16 %v11262
      %v11347 = vunpack.c.l.b16 %v11263
      %v11348 = vunpack.c.l.b16 %v11264
      %v11349 = vunpack.c.l.b16 %v11265
      %v11350 = vunpack.c.l.b16 %v11266
      %v11351 = vunpack.c.l.b16 %v11267
      %v11352 = vunpack.c.l.b16 %v11268
      %v11353 = vunpack.c.l.b16 %v11269
      %v11354 = vunpack.c.l.b16 %v11270
      %v11355 = vunpack.c.l.b16 %v11271
      %v11356 = vunpack.c.l.b16 %v11272
      %v11357 = vunpack.c.l.b16 %v11273
      %v11358 = vunpack.c.l.b16 %v11274
      %v11359 = vpack.c.b16 %v11344, %v11343
      %v11360 = vpack.c.b16 %v11346, %v11345
      %v11361 = vpack.c.b16 %v11348, %v11347
      %v11362 = vpack.c.b16 %v11350, %v11349
      %v11363 = vpack.c.b16 %v11352, %v11351
      %v11364 = vpack.c.b16 %v11354, %v11353
      %v11365 = vpack.c.b16 %v11356, %v11355
      %v11366 = vpack.c.b16 %v11358, %v11357
      %11375 = vmatprep.subr.bf16.mxu0 0
      %11376 = vmatpush1.bf16.msra.mxu0 %v11359
      %11377 = vmatprep.subr.bf16.mxu0 0
      %11378 = vmatpush1.bf16.msra.mxu0 %v11360
      %11379 = vmatprep.subr.bf16.mxu0 0
      %11380 = vmatpush1.bf16.msra.mxu0 %v11361
      %11381 = vmatprep.subr.bf16.mxu0 0
      %11382 = vmatpush1.bf16.msra.mxu0 %v11362
      %11383 = vmatprep.subr.bf16.mxu0 0
      %11384 = vmatpush1.bf16.msra.mxu0 %v11363
      %11385 = vmatprep.subr.bf16.mxu0 0
      %11386 = vmatpush1.bf16.msra.mxu0 %v11364
      %11387 = vmatprep.subr.bf16.mxu0 0
      %11388 = vmatpush1.bf16.msra.mxu0 %v11365
      %11389 = vmatprep.subr.bf16.mxu0 0
      %11390 = vmatpush1.bf16.msra.mxu0 %v11366
      %11391 = vmatprep.subr.bf16.mxu0 0
      %11392 = vmatpush1.bf16.msra.mxu0 0
      %11393 = vmatprep.subr.bf16.mxu0 0
      %11394 = vmatpush1.bf16.msra.mxu0 0
      %11395 = vmatprep.subr.bf16.mxu0 0
      %11396 = vmatpush1.bf16.msra.mxu0 0
      %11397 = vmatprep.subr.bf16.mxu0 0
      %11398 = vmatpush1.bf16.msra.mxu0 0
      %11399 = vmatprep.subr.bf16.mxu0 0
      %11400 = vmatpush1.bf16.msra.mxu0 0
      %11401 = vmatprep.subr.bf16.mxu0 0
      %11402 = vmatpush1.bf16.msra.mxu0 0
      %11403 = vmatprep.subr.bf16.mxu0 0
      %11404 = vmatpush1.bf16.msra.mxu0 0
      %11405 = vmatprep.subr.bf16.mxu0 0
      %11406 = vmatpush1.bf16.msra.mxu0 0
      %11407 = vmatprep.mubr.bf16.mxu0 0
      %11408 = vmatmul.mubr.bf16.gmra.mrb[0].mxu0 %v11310
      %v11409 = vpop.f32.mrb[0].mxu0
      %v11410 = vadd.f32 0.0, %v11409
      %v11411 = vpop.f32.mrb[0].mxu0
      %v11412 = vpop.f32.mrb[0].mxu0
      %v11413 = vadd.f32 0.0, %v11412
      %v11414 = vpop.f32.mrb[0].mxu0
      %11415 = vmatprep.mubr.bf16.mxu0 0
      %11416 = vmatmul.mubr.bf16.gmra.mrb[0].mxu0 %v11312
      %v11417 = vpop.f32.mrb[0].mxu0
      %v11418 = vadd.f32 0.0, %v11417
      %v11419 = vpop.f32.mrb[0].mxu0
      %v11420 = vpop.f32.mrb[0].mxu0
      %v11421 = vadd.f32 0.0, %v11420
      %v11422 = vpop.f32.mrb[0].mxu0
      %11423 = vmatprep.mubr.bf16.mxu0 0
      %11424 = vmatmul.mubr.bf16.gmra.mrb[0].mxu0 %v11314
      %v11425 = vpop.f32.mrb[0].mxu0
      %v11426 = vadd.f32 0.0, %v11425
      %v11427 = vpop.f32.mrb[0].mxu0
      %v11428 = vpop.f32.mrb[0].mxu0
      %v11429 = vadd.f32 0.0, %v11428
      %v11430 = vpop.f32.mrb[0].mxu0
      %11431 = vmatprep.mubr.bf16.mxu0 0
      %11432 = vmatmul.mubr.bf16.gmra.mrb[0].mxu0 %v11316
      %v11433 = vpop.f32.mrb[0].mxu0
      %v11434 = vadd.f32 0.0, %v11433
      %v11435 = vpop.f32.mrb[0].mxu0
      %v11436 = vpop.f32.mrb[0].mxu0
      %v11437 = vadd.f32 0.0, %v11436
      %v11438 = vpop.f32.mrb[0].mxu0
      %11439 = vmatprep.mubr.bf16.mxu0 0
      %11440 = vmatmul.mubr.bf16.gmra.mrb[0].mxu0 %v11318
      %v11441 = vpop.f32.mrb[0].mxu0
      %v11442 = vadd.f32 0.0, %v11441
      %v11443 = vpop.f32.mrb[0].mxu0
      %v11444 = vpop.f32.mrb[0].mxu0
      %v11445 = vadd.f32 0.0, %v11444
      %v11446 = vpop.f32.mrb[0].mxu0
      %11447 = vmatprep.mubr.bf16.mxu0 0
      %11448 = vmatmul.mubr.bf16.gmra.mrb[0].mxu0 %v11320
      %v11449 = vpop.f32.mrb[0].mxu0
      %v11450 = vadd.f32 0.0, %v11449
      %v11451 = vpop.f32.mrb[0].mxu0
      %v11452 = vpop.f32.mrb[0].mxu0
      %v11453 = vadd.f32 0.0, %v11452
      %v11454 = vpop.f32.mrb[0].mxu0
      %11455 = vdwg.mxu0
      %v11456 = vadd.f32 %v11234, %v11410
      %v11457 = vadd.f32 %v11235, %v11413
      %v11458 = vadd.f32 %v11236, %v11418
      %v11459 = vadd.f32 %v11237, %v11421
      %v11460 = vadd.f32 %v11238, %v11426
      %v11461 = vadd.f32 %v11239, %v11429
      %v11462 = vadd.f32 %v11240, %v11434
      %v11463 = vadd.f32 %v11241, %v11437
      %v11464 = vadd.f32 %v11242, %v11442
      %v11465 = vadd.f32 %v11243, %v11445
      %v11466 = vadd.f32 %v11244, %v11450
      %v11467 = vadd.f32 %v11245, %v11453
      %v11468 = vld [vmem:[#allocation2 + $0x98] sm:$0x3]
      %v11469 = vld [vmem:[%s7517] sm:$0xf]
      %v11470 = vld [vmem:[%s7517 + $0x4] sm:$0xf]
      %v11471 = vld [vmem:[%s7517 + $0x8] sm:$0xf]
      %v11472 = vld [vmem:[%s7517 + $0xc] sm:$0xf]
      %v11473 = vld [vmem:[%s7517 + $0x10] sm:$0xf]
      %v11474 = vld [vmem:[%s7517 + $0x14] sm:$0xf]
      %v11475 = vld [vmem:[%s7517 + $0x18] sm:$0xf]
      %v11476 = vld [vmem:[%s7517 + $0x1c] sm:$0xf]
      %v11477 = vld [vmem:[%s7517 + $0x20] sm:$0xf]
      %v11478 = vld [vmem:[%s7517 + $0x24] sm:$0xf]
      %v11479 = vld [vmem:[%s7517 + $0x28] sm:$0xf]
      %v11480 = vld [vmem:[%s7517 + $0x2c] sm:$0xf]
      %v11481 = vld [vmem:[%s7517 + $0x30] sm:$0xf]
      %v11482 = vld [vmem:[%s7517 + $0x34] sm:$0xf]
      %v11483 = vld [vmem:[%s7517 + $0x38] sm:$0xf]
      %v11484 = vld [vmem:[%s7517 + $0x3c] sm:$0xf]
      %v11486 = vunpack.c.l.b16 %v11468
      %v11487 = vpack.c.b16 %v11486, %v11486
      %v11489 = vshrl.u32 %v11301, 16
      %v11491 = vrot.slane %v11489, 1
      %v11492 = vshll.u32 %v11301, 16
      %v11494 = vrot.slane %v11492, 2
      %v11495 = vor.u32 %v11491, %v11494
      %v11497 = vshrl.u32 %v11302, 16
      %v11499 = vrot.slane %v11497, 1
      %v11500 = vshll.u32 %v11302, 16
      %v11502 = vrot.slane %v11500, 2
      %v11503 = vor.u32 %v11499, %v11502
      %v11504 = vsel %vm1097, %v11495, %v11503
      %v11506 = vshrl.u32 %v11303, 16
      %v11508 = vrot.slane %v11506, 1
      %v11509 = vshll.u32 %v11303, 16
      %v11511 = vrot.slane %v11509, 2
      %v11512 = vor.u32 %v11508, %v11511
      %v11513 = vsel %vm1097, %v11503, %v11512
      %v11515 = vshrl.u32 %v11304, 16
      %v11517 = vrot.slane %v11515, 1
      %v11518 = vshll.u32 %v11304, 16
      %v11520 = vrot.slane %v11518, 2
      %v11521 = vor.u32 %v11517, %v11520
      %v11522 = vsel %vm1097, %v11512, %v11521
      %v11524 = vshrl.u32 %v11305, 16
      %v11526 = vrot.slane %v11524, 1
      %v11527 = vshll.u32 %v11305, 16
      %v11529 = vrot.slane %v11527, 2
      %v11530 = vor.u32 %v11526, %v11529
      %v11531 = vsel %vm1097, %v11521, %v11530
      %v11533 = vshrl.u32 %v11306, 16
      %v11535 = vrot.slane %v11533, 1
      %v11536 = vshll.u32 %v11306, 16
      %v11538 = vrot.slane %v11536, 2
      %v11539 = vor.u32 %v11535, %v11538
      %v11540 = vsel %vm1097, %v11530, %v11539
      %v11542 = vshrl.u32 %v11487, 16
      %v11544 = vrot.slane %v11542, 1
      %v11545 = vshll.u32 %v11487, 16
      %v11547 = vrot.slane %v11545, 2
      %v11548 = vor.u32 %v11544, %v11547
      %v11549 = vsel %vm1097, %v11539, %v11548
      %v11572 = vunpack.c.l.b16 %v11469
      %v11573 = vunpack.c.l.b16 %v11470
      %v11574 = vunpack.c.l.b16 %v11471
      %v11575 = vunpack.c.l.b16 %v11472
      %v11576 = vunpack.c.l.b16 %v11473
      %v11577 = vunpack.c.l.b16 %v11474
      %v11578 = vunpack.c.l.b16 %v11475
      %v11579 = vunpack.c.l.b16 %v11476
      %v11580 = vunpack.c.l.b16 %v11477
      %v11581 = vunpack.c.l.b16 %v11478
      %v11582 = vunpack.c.l.b16 %v11479
      %v11583 = vunpack.c.l.b16 %v11480
      %v11584 = vunpack.c.l.b16 %v11481
      %v11585 = vunpack.c.l.b16 %v11482
      %v11586 = vunpack.c.l.b16 %v11483
      %v11587 = vunpack.c.l.b16 %v11484
      %v11588 = vpack.c.b16 %v11573, %v11572
      %v11589 = vpack.c.b16 %v11575, %v11574
      %v11590 = vpack.c.b16 %v11577, %v11576
      %v11591 = vpack.c.b16 %v11579, %v11578
      %v11592 = vpack.c.b16 %v11581, %v11580
      %v11593 = vpack.c.b16 %v11583, %v11582
      %v11594 = vpack.c.b16 %v11585, %v11584
      %v11595 = vpack.c.b16 %v11587, %v11586
      %11604 = vmatprep.subr.bf16.mxu0 0
      %11605 = vmatpush1.bf16.msra.mxu0 %v11588
      %11606 = vmatprep.subr.bf16.mxu0 0
      %11607 = vmatpush1.bf16.msra.mxu0 %v11589
      %11608 = vmatprep.subr.bf16.mxu0 0
      %11609 = vmatpush1.bf16.msra.mxu0 %v11590
      %11610 = vmatprep.subr.bf16.mxu0 0
      %11611 = vmatpush1.bf16.msra.mxu0 %v11591
      %11612 = vmatprep.subr.bf16.mxu0 0
      %11613 = vmatpush1.bf16.msra.mxu0 %v11592
      %11614 = vmatprep.subr.bf16.mxu0 0
      %11615 = vmatpush1.bf16.msra.mxu0 %v11593
      %11616 = vmatprep.subr.bf16.mxu0 0
      %11617 = vmatpush1.bf16.msra.mxu0 %v11594
      %11618 = vmatprep.subr.bf16.mxu0 0
      %11619 = vmatpush1.bf16.msra.mxu0 %v11595
      %11620 = vmatprep.subr.bf16.mxu0 0
      %11621 = vmatpush1.bf16.msra.mxu0 0
      %11622 = vmatprep.subr.bf16.mxu0 0
      %11623 = vmatpush1.bf16.msra.mxu0 0
      %11624 = vmatprep.subr.bf16.mxu0 0
      %11625 = vmatpush1.bf16.msra.mxu0 0
      %11626 = vmatprep.subr.bf16.mxu0 0
      %11627 = vmatpush1.bf16.msra.mxu0 0
      %11628 = vmatprep.subr.bf16.mxu0 0
      %11629 = vmatpush1.bf16.msra.mxu0 0
      %11630 = vmatprep.subr.bf16.mxu0 0
      %11631 = vmatpush1.bf16.msra.mxu0 0
      %11632 = vmatprep.subr.bf16.mxu0 0
      %11633 = vmatpush1.bf16.msra.mxu0 0
      %11634 = vmatprep.subr.bf16.mxu0 0
      %11635 = vmatpush1.bf16.msra.mxu0 0
      %11636 = vmatprep.mubr.bf16.mxu0 0
      %11637 = vmatmul.mubr.bf16.gmra.mrb[0].mxu0 %v11504
      %v11638 = vpop.f32.mrb[0].mxu0
      %v11639 = vadd.f32 0.0, %v11638
      %v11640 = vpop.f32.mrb[0].mxu0
      %v11641 = vpop.f32.mrb[0].mxu0
      %v11642 = vadd.f32 0.0, %v11641
      %v11643 = vpop.f32.mrb[0].mxu0
      %11644 = vmatprep.mubr.bf16.mxu0 0
      %11645 = vmatmul.mubr.bf16.gmra.mrb[0].mxu0 %v11513
      %v11646 = vpop.f32.mrb[0].mxu0
      %v11647 = vadd.f32 0.0, %v11646
      %v11648 = vpop.f32.mrb[0].mxu0
      %v11649 = vpop.f32.mrb[0].mxu0
      %v11650 = vadd.f32 0.0, %v11649
      %v11651 = vpop.f32.mrb[0].mxu0
      %11652 = vmatprep.mubr.bf16.mxu0 0
      %11653 = vmatmul.mubr.bf16.gmra.mrb[0].mxu0 %v11522
      %v11654 = vpop.f32.mrb[0].mxu0
      %v11655 = vadd.f32 0.0, %v11654
      %v11656 = vpop.f32.mrb[0].mxu0
      %v11657 = vpop.f32.mrb[0].mxu0
      %v11658 = vadd.f32 0.0, %v11657
      %v11659 = vpop.f32.mrb[0].mxu0
      %11660 = vmatprep.mubr.bf16.mxu0 0
      %11661 = vmatmul.mubr.bf16.gmra.mrb[0].mxu0 %v11531
      %v11662 = vpop.f32.mrb[0].mxu0
      %v11663 = vadd.f32 0.0, %v11662
      %v11664 = vpop.f32.mrb[0].mxu0
      %v11665 = vpop.f32.mrb[0].mxu0
      %v11666 = vadd.f32 0.0, %v11665
      %v11667 = vpop.f32.mrb[0].mxu0
      %11668 = vmatprep.mubr.bf16.mxu0 0
      %11669 = vmatmul.mubr.bf16.gmra.mrb[0].mxu0 %v11540
      %v11670 = vpop.f32.mrb[0].mxu0
      %v11671 = vadd.f32 0.0, %v11670
      %v11672 = vpop.f32.mrb[0].mxu0
      %v11673 = vpop.f32.mrb[0].mxu0
      %v11674 = vadd.f32 0.0, %v11673
      %v11675 = vpop.f32.mrb[0].mxu0
      %11676 = vmatprep.mubr.bf16.mxu0 0
      %11677 = vmatmul.mubr.bf16.gmra.mrb[0].mxu0 %v11549
      %v11678 = vpop.f32.mrb[0].mxu0
      %v11679 = vadd.f32 0.0, %v11678
      %v11680 = vpop.f32.mrb[0].mxu0
      %v11681 = vpop.f32.mrb[0].mxu0
      %v11682 = vadd.f32 0.0, %v11681
      %v11683 = vpop.f32.mrb[0].mxu0
      %11684 = vdwg.mxu0
      %v11685 = vadd.f32 %v11456, %v11639
      %v11686 = vadd.f32 %v11457, %v11642
      %v11687 = vadd.f32 %v11458, %v11647
      %v11688 = vadd.f32 %v11459, %v11650
      %v11689 = vadd.f32 %v11460, %v11655
      %v11690 = vadd.f32 %v11461, %v11658
      %v11691 = vadd.f32 %v11462, %v11663
      %v11692 = vadd.f32 %v11463, %v11666
      %v11693 = vadd.f32 %v11464, %v11671
      %v11694 = vadd.f32 %v11465, %v11674
      %v11695 = vadd.f32 %v11466, %v11679
      %v11696 = vadd.f32 %v11467, %v11682
      %v11697 = vld [vmem:[#allocation2 + $0x68] sm:$0xc]
      %v11698 = vld [vmem:[%s7747] sm:$0xf]
      %v11699 = vld [vmem:[%s7747 + $0x4] sm:$0xf]
      %v11700 = vld [vmem:[%s7747 + $0x8] sm:$0xf]
      %v11701 = vld [vmem:[%s7747 + $0xc] sm:$0xf]
      %v11702 = vld [vmem:[%s7747 + $0x10] sm:$0xf]
      %v11703 = vld [vmem:[%s7747 + $0x14] sm:$0xf]
      %v11704 = vld [vmem:[%s7747 + $0x18] sm:$0xf]
      %v11705 = vld [vmem:[%s7747 + $0x1c] sm:$0xf]
      %v11706 = vld [vmem:[%s7747 + $0x20] sm:$0xf]
      %v11707 = vld [vmem:[%s7747 + $0x24] sm:$0xf]
      %v11708 = vld [vmem:[%s7747 + $0x28] sm:$0xf]
      %v11709 = vld [vmem:[%s7747 + $0x2c] sm:$0xf]
      %v11710 = vld [vmem:[%s7747 + $0x30] sm:$0xf]
      %v11711 = vld [vmem:[%s7747 + $0x34] sm:$0xf]
      %v11712 = vld [vmem:[%s7747 + $0x38] sm:$0xf]
      %v11713 = vld [vmem:[%s7747 + $0x3c] sm:$0xf]
      %v11715 = vunpack.c.l.b16 %v11697
      %v11716 = vpack.c.b16 %v11289, %v11715
      %v11717 = vrot.slane %v11716, 2
      %v11718 = vrot.slane %v11302, 2
      %v11719 = vsel %vm1328, %v11717, %v11718
      %v11720 = vrot.slane %v11303, 2
      %v11721 = vsel %vm1328, %v11718, %v11720
      %v11722 = vrot.slane %v11304, 2
      %v11723 = vsel %vm1328, %v11720, %v11722
      %v11724 = vrot.slane %v11305, 2
      %v11725 = vsel %vm1328, %v11722, %v11724
      %v11726 = vrot.slane %v11306, 2
      %v11727 = vsel %vm1328, %v11724, %v11726
      %v11728 = vrot.slane %v11487, 2
      %v11729 = vsel %vm1328, %v11726, %v11728
      %v11752 = vunpack.c.l.b16 %v11698
      %v11753 = vunpack.c.l.b16 %v11699
      %v11754 = vunpack.c.l.b16 %v11700
      %v11755 = vunpack.c.l.b16 %v11701
      %v11756 = vunpack.c.l.b16 %v11702
      %v11757 = vunpack.c.l.b16 %v11703
      %v11758 = vunpack.c.l.b16 %v11704
      %v11759 = vunpack.c.l.b16 %v11705
      %v11760 = vunpack.c.l.b16 %v11706
      %v11761 = vunpack.c.l.b16 %v11707
      %v11762 = vunpack.c.l.b16 %v11708
      %v11763 = vunpack.c.l.b16 %v11709
      %v11764 = vunpack.c.l.b16 %v11710
      %v11765 = vunpack.c.l.b16 %v11711
      %v11766 = vunpack.c.l.b16 %v11712
      %v11767 = vunpack.c.l.b16 %v11713
      %v11768 = vpack.c.b16 %v11753, %v11752
      %v11769 = vpack.c.b16 %v11755, %v11754
      %v11770 = vpack.c.b16 %v11757, %v11756
      %v11771 = vpack.c.b16 %v11759, %v11758
      %v11772 = vpack.c.b16 %v11761, %v11760
      %v11773 = vpack.c.b16 %v11763, %v11762
      %v11774 = vpack.c.b16 %v11765, %v11764
      %v11775 = vpack.c.b16 %v11767, %v11766
      %11784 = vmatprep.subr.bf16.mxu0 0
      %11785 = vmatpush1.bf16.msra.mxu0 %v11768
      %11786 = vmatprep.subr.bf16.mxu0 0
      %11787 = vmatpush1.bf16.msra.mxu0 %v11769
      %11788 = vmatprep.subr.bf16.mxu0 0
      %11789 = vmatpush1.bf16.msra.mxu0 %v11770
      %11790 = vmatprep.subr.bf16.mxu0 0
      %11791 = vmatpush1.bf16.msra.mxu0 %v11771
      %11792 = vmatprep.subr.bf16.mxu0 0
      %11793 = vmatpush1.bf16.msra.mxu0 %v11772
      %11794 = vmatprep.subr.bf16.mxu0 0
      %11795 = vmatpush1.bf16.msra.mxu0 %v11773
      %11796 = vmatprep.subr.bf16.mxu0 0
      %11797 = vmatpush1.bf16.msra.mxu0 %v11774
      %11798 = vmatprep.subr.bf16.mxu0 0
      %11799 = vmatpush1.bf16.msra.mxu0 %v11775
      %11800 = vmatprep.subr.bf16.mxu0 0
      %11801 = vmatpush1.bf16.msra.mxu0 0
      %11802 = vmatprep.subr.bf16.mxu0 0
      %11803 = vmatpush1.bf16.msra.mxu0 0
      %11804 = vmatprep.subr.bf16.mxu0 0
      %11805 = vmatpush1.bf16.msra.mxu0 0
      %11806 = vmatprep.subr.bf16.mxu0 0
      %11807 = vmatpush1.bf16.msra.mxu0 0
      %11808 = vmatprep.subr.bf16.mxu0 0
      %11809 = vmatpush1.bf16.msra.mxu0 0
      %11810 = vmatprep.subr.bf16.mxu0 0
      %11811 = vmatpush1.bf16.msra.mxu0 0
      %11812 = vmatprep.subr.bf16.mxu0 0
      %11813 = vmatpush1.bf16.msra.mxu0 0
      %11814 = vmatprep.subr.bf16.mxu0 0
      %11815 = vmatpush1.bf16.msra.mxu0 0
      %11816 = vmatprep.mubr.bf16.mxu0 0
      %11817 = vmatmul.mubr.bf16.gmra.mrb[0].mxu0 %v11719
      %v11818 = vpop.f32.mrb[0].mxu0
      %v11819 = vadd.f32 0.0, %v11818
      %v11820 = vpop.f32.mrb[0].mxu0
      %v11821 = vpop.f32.mrb[0].mxu0
      %v11822 = vadd.f32 0.0, %v11821
      %v11823 = vpop.f32.mrb[0].mxu0
      %11824 = vmatprep.mubr.bf16.mxu0 0
      %11825 = vmatmul.mubr.bf16.gmra.mrb[0].mxu0 %v11721
      %v11826 = vpop.f32.mrb[0].mxu0
      %v11827 = vadd.f32 0.0, %v11826
      %v11828 = vpop.f32.mrb[0].mxu0
      %v11829 = vpop.f32.mrb[0].mxu0
      %v11830 = vadd.f32 0.0, %v11829
      %v11831 = vpop.f32.mrb[0].mxu0
      %11832 = vmatprep.mubr.bf16.mxu0 0
      %11833 = vmatmul.mubr.bf16.gmra.mrb[0].mxu0 %v11723
      %v11834 = vpop.f32.mrb[0].mxu0
      %v11835 = vadd.f32 0.0, %v11834
      %v11836 = vpop.f32.mrb[0].mxu0
      %v11837 = vpop.f32.mrb[0].mxu0
      %v11838 = vadd.f32 0.0, %v11837
      %v11839 = vpop.f32.mrb[0].mxu0
      %11840 = vmatprep.mubr.bf16.mxu0 0
      %11841 = vmatmul.mubr.bf16.gmra.mrb[0].mxu0 %v11725
      %v11842 = vpop.f32.mrb[0].mxu0
      %v11843 = vadd.f32 0.0, %v11842
      %v11844 = vpop.f32.mrb[0].mxu0
      %v11845 = vpop.f32.mrb[0].mxu0
      %v11846 = vadd.f32 0.0, %v11845
      %v11847 = vpop.f32.mrb[0].mxu0
      %11848 = vmatprep.mubr.bf16.mxu0 0
      %11849 = vmatmul.mubr.bf16.gmra.mrb[0].mxu0 %v11727
      %v11850 = vpop.f32.mrb[0].mxu0
      %v11851 = vadd.f32 0.0, %v11850
      %v11852 = vpop.f32.mrb[0].mxu0
      %v11853 = vpop.f32.mrb[0].mxu0
      %v11854 = vadd.f32 0.0, %v11853
      %v11855 = vpop.f32.mrb[0].mxu0
      %11856 = vmatprep.mubr.bf16.mxu0 0
      %11857 = vmatmul.mubr.bf16.gmra.mrb[0].mxu0 %v11729
      %v11858 = vpop.f32.mrb[0].mxu0
      %v11859 = vadd.f32 0.0, %v11858
      %v11860 = vpop.f32.mrb[0].mxu0
      %v11861 = vpop.f32.mrb[0].mxu0
      %v11862 = vadd.f32 0.0, %v11861
      %v11863 = vpop.f32.mrb[0].mxu0
      %11864 = vdwg.mxu0
      %v11865 = vadd.f32 %v11685, %v11819
      %v11866 = vadd.f32 %v11686, %v11822
      %v11867 = vadd.f32 %v11687, %v11827
      %v11868 = vadd.f32 %v11688, %v11830
      %v11869 = vadd.f32 %v11689, %v11835
      %v11870 = vadd.f32 %v11690, %v11838
      %v11871 = vadd.f32 %v11691, %v11843
      %v11872 = vadd.f32 %v11692, %v11846
      %v11873 = vadd.f32 %v11693, %v11851
      %v11874 = vadd.f32 %v11694, %v11854
      %v11875 = vadd.f32 %v11695, %v11859
      %v11876 = vadd.f32 %v11696, %v11862
      %v11877 = vld [vmem:[#allocation2 + $0x70] sm:$0xc]
      %v11878 = vld [vmem:[#allocation2 + $0x74] sm:$0xf]
      %v11879 = vld [vmem:[#allocation2 + $0x78] sm:$0xf]
      %v11880 = vld [vmem:[#allocation2 + $0x7c] sm:$0xf]
      %v11881 = vld [vmem:[#allocation2 + $0x80] sm:$0xf]
      %v11882 = vld [vmem:[#allocation2 + $0x84] sm:$0xf]
      %v11883 = vld [vmem:[#allocation2 + $0x88] sm:$0xf]
      %v11884 = vld [vmem:[#allocation2 + $0x8c] sm:$0xf]
      %v11885 = vld [vmem:[#allocation2 + $0x90] sm:$0xf]
      %v11886 = vld [vmem:[#allocation2 + $0x94] sm:$0xf]
      %v11887 = vld [vmem:[#allocation2 + $0x98] sm:$0xf]
      %v11888 = vld [vmem:[#allocation2 + $0x9c] sm:$0xf]
      %v11889 = vld [vmem:[#allocation2 + $0xa0] sm:$0x3]
      %v11890 = vld [vmem:[%s7940] sm:$0xf]
      %v11891 = vld [vmem:[%s7940 + $0x4] sm:$0xf]
      %v11892 = vld [vmem:[%s7940 + $0x8] sm:$0xf]
      %v11893 = vld [vmem:[%s7940 + $0xc] sm:$0xf]
      %v11894 = vld [vmem:[%s7940 + $0x10] sm:$0xf]
      %v11895 = vld [vmem:[%s7940 + $0x14] sm:$0xf]
      %v11896 = vld [vmem:[%s7940 + $0x18] sm:$0xf]
      %v11897 = vld [vmem:[%s7940 + $0x1c] sm:$0xf]
      %v11898 = vld [vmem:[%s7940 + $0x20] sm:$0xf]
      %v11899 = vld [vmem:[%s7940 + $0x24] sm:$0xf]
      %v11900 = vld [vmem:[%s7940 + $0x28] sm:$0xf]
      %v11901 = vld [vmem:[%s7940 + $0x2c] sm:$0xf]
      %v11902 = vld [vmem:[%s7940 + $0x30] sm:$0xf]
      %v11903 = vld [vmem:[%s7940 + $0x34] sm:$0xf]
      %v11904 = vld [vmem:[%s7940 + $0x38] sm:$0xf]
      %v11905 = vld [vmem:[%s7940 + $0x3c] sm:$0xf]
      %v11919 = vunpack.c.l.b16 %v11877
      %v11920 = vunpack.c.l.b16 %v11878
      %v11921 = vunpack.c.l.b16 %v11879
      %v11922 = vunpack.c.l.b16 %v11880
      %v11923 = vunpack.c.l.b16 %v11881
      %v11924 = vunpack.c.l.b16 %v11882
      %v11925 = vunpack.c.l.b16 %v11883
      %v11926 = vunpack.c.l.b16 %v11884
      %v11927 = vunpack.c.l.b16 %v11885
      %v11928 = vunpack.c.l.b16 %v11886
      %v11929 = vunpack.c.l.b16 %v11887
      %v11930 = vunpack.c.l.b16 %v11888
      %v11931 = vunpack.c.l.b16 %v11889
      %v11932 = vpack.c.b16 %v11920, %v11919
      %v11933 = vpack.c.b16 %v11922, %v11921
      %v11934 = vpack.c.b16 %v11924, %v11923
      %v11935 = vpack.c.b16 %v11926, %v11925
      %v11936 = vpack.c.b16 %v11928, %v11927
      %v11937 = vpack.c.b16 %v11930, %v11929
      %v11938 = vpack.c.b16 %v11931, %v11931
      %v11939 = vrot.slane %v11932, 2
      %v11940 = vrot.slane %v11933, 2
      %v11941 = vsel %vm1328, %v11939, %v11940
      %v11942 = vrot.slane %v11934, 2
      %v11943 = vsel %vm1328, %v11940, %v11942
      %v11944 = vrot.slane %v11935, 2
      %v11945 = vsel %vm1328, %v11942, %v11944
      %v11946 = vrot.slane %v11936, 2
      %v11947 = vsel %vm1328, %v11944, %v11946
      %v11948 = vrot.slane %v11937, 2
      %v11949 = vsel %vm1328, %v11946, %v11948
      %v11950 = vrot.slane %v11938, 2
      %v11951 = vsel %vm1328, %v11948, %v11950
      %v11974 = vunpack.c.l.b16 %v11890
      %v11975 = vunpack.c.l.b16 %v11891
      %v11976 = vunpack.c.l.b16 %v11892
      %v11977 = vunpack.c.l.b16 %v11893
      %v11978 = vunpack.c.l.b16 %v11894
      %v11979 = vunpack.c.l.b16 %v11895
      %v11980 = vunpack.c.l.b16 %v11896
      %v11981 = vunpack.c.l.b16 %v11897
      %v11982 = vunpack.c.l.b16 %v11898
      %v11983 = vunpack.c.l.b16 %v11899
      %v11984 = vunpack.c.l.b16 %v11900
      %v11985 = vunpack.c.l.b16 %v11901
      %v11986 = vunpack.c.l.b16 %v11902
      %v11987 = vunpack.c.l.b16 %v11903
      %v11988 = vunpack.c.l.b16 %v11904
      %v11989 = vunpack.c.l.b16 %v11905
      %v11990 = vpack.c.b16 %v11975, %v11974
      %v11991 = vpack.c.b16 %v11977, %v11976
      %v11992 = vpack.c.b16 %v11979, %v11978
      %v11993 = vpack.c.b16 %v11981, %v11980
      %v11994 = vpack.c.b16 %v11983, %v11982
      %v11995 = vpack.c.b16 %v11985, %v11984
      %v11996 = vpack.c.b16 %v11987, %v11986
      %v11997 = vpack.c.b16 %v11989, %v11988
      %12006 = vmatprep.subr.bf16.mxu0 0
      %12007 = vmatpush1.bf16.msra.mxu0 %v11990
      %12008 = vmatprep.subr.bf16.mxu0 0
      %12009 = vmatpush1.bf16.msra.mxu0 %v11991
      %12010 = vmatprep.subr.bf16.mxu0 0
      %12011 = vmatpush1.bf16.msra.mxu0 %v11992
      %12012 = vmatprep.subr.bf16.mxu0 0
      %12013 = vmatpush1.bf16.msra.mxu0 %v11993
      %12014 = vmatprep.subr.bf16.mxu0 0
      %12015 = vmatpush1.bf16.msra.mxu0 %v11994
      %12016 = vmatprep.subr.bf16.mxu0 0
      %12017 = vmatpush1.bf16.msra.mxu0 %v11995
      %12018 = vmatprep.subr.bf16.mxu0 0
      %12019 = vmatpush1.bf16.msra.mxu0 %v11996
      %12020 = vmatprep.subr.bf16.mxu0 0
      %12021 = vmatpush1.bf16.msra.mxu0 %v11997
      %12022 = vmatprep.subr.bf16.mxu0 0
      %12023 = vmatpush1.bf16.msra.mxu0 0
      %12024 = vmatprep.subr.bf16.mxu0 0
      %12025 = vmatpush1.bf16.msra.mxu0 0
      %12026 = vmatprep.subr.bf16.mxu0 0
      %12027 = vmatpush1.bf16.msra.mxu0 0
      %12028 = vmatprep.subr.bf16.mxu0 0
      %12029 = vmatpush1.bf16.msra.mxu0 0
      %12030 = vmatprep.subr.bf16.mxu0 0
      %12031 = vmatpush1.bf16.msra.mxu0 0
      %12032 = vmatprep.subr.bf16.mxu0 0
      %12033 = vmatpush1.bf16.msra.mxu0 0
      %12034 = vmatprep.subr.bf16.mxu0 0
      %12035 = vmatpush1.bf16.msra.mxu0 0
      %12036 = vmatprep.subr.bf16.mxu0 0
      %12037 = vmatpush1.bf16.msra.mxu0 0
      %12038 = vmatprep.mubr.bf16.mxu0 0
      %12039 = vmatmul.mubr.bf16.gmra.mrb[0].mxu0 %v11941
      %v12040 = vpop.f32.mrb[0].mxu0
      %v12041 = vadd.f32 0.0, %v12040
      %v12042 = vpop.f32.mrb[0].mxu0
      %v12043 = vpop.f32.mrb[0].mxu0
      %v12044 = vadd.f32 0.0, %v12043
      %v12045 = vpop.f32.mrb[0].mxu0
      %12046 = vmatprep.mubr.bf16.mxu0 0
      %12047 = vmatmul.mubr.bf16.gmra.mrb[0].mxu0 %v11943
      %v12048 = vpop.f32.mrb[0].mxu0
      %v12049 = vadd.f32 0.0, %v12048
      %v12050 = vpop.f32.mrb[0].mxu0
      %v12051 = vpop.f32.mrb[0].mxu0
      %v12052 = vadd.f32 0.0, %v12051
      %v12053 = vpop.f32.mrb[0].mxu0
      %12054 = vmatprep.mubr.bf16.mxu0 0
      %12055 = vmatmul.mubr.bf16.gmra.mrb[0].mxu0 %v11945
      %v12056 = vpop.f32.mrb[0].mxu0
      %v12057 = vadd.f32 0.0, %v12056
      %v12058 = vpop.f32.mrb[0].mxu0
      %v12059 = vpop.f32.mrb[0].mxu0
      %v12060 = vadd.f32 0.0, %v12059
      %v12061 = vpop.f32.mrb[0].mxu0
      %12062 = vmatprep.mubr.bf16.mxu0 0
      %12063 = vmatmul.mubr.bf16.gmra.mrb[0].mxu0 %v11947
      %v12064 = vpop.f32.mrb[0].mxu0
      %v12065 = vadd.f32 0.0, %v12064
      %v12066 = vpop.f32.mrb[0].mxu0
      %v12067 = vpop.f32.mrb[0].mxu0
      %v12068 = vadd.f32 0.0, %v12067
      %v12069 = vpop.f32.mrb[0].mxu0
      %12070 = vmatprep.mubr.bf16.mxu0 0
      %12071 = vmatmul.mubr.bf16.gmra.mrb[0].mxu0 %v11949
      %v12072 = vpop.f32.mrb[0].mxu0
      %v12073 = vadd.f32 0.0, %v12072
      %v12074 = vpop.f32.mrb[0].mxu0
      %v12075 = vpop.f32.mrb[0].mxu0
      %v12076 = vadd.f32 0.0, %v12075
      %v12077 = vpop.f32.mrb[0].mxu0
      %12078 = vmatprep.mubr.bf16.mxu0 0
      %12079 = vmatmul.mubr.bf16.gmra.mrb[0].mxu0 %v11951
      %v12080 = vpop.f32.mrb[0].mxu0
      %v12081 = vadd.f32 0.0, %v12080
      %v12082 = vpop.f32.mrb[0].mxu0
      %v12083 = vpop.f32.mrb[0].mxu0
      %v12084 = vadd.f32 0.0, %v12083
      %v12085 = vpop.f32.mrb[0].mxu0
      %12086 = vdwg.mxu0
      %v12087 = vadd.f32 %v11865, %v12041
      %v12088 = vadd.f32 %v11866, %v12044
      %v12089 = vadd.f32 %v11867, %v12049
      %v12090 = vadd.f32 %v11868, %v12052
      %v12091 = vadd.f32 %v11869, %v12057
      %v12092 = vadd.f32 %v11870, %v12060
      %v12093 = vadd.f32 %v11871, %v12065
      %v12094 = vadd.f32 %v11872, %v12068
      %v12095 = vadd.f32 %v11873, %v12073
      %v12096 = vadd.f32 %v11874, %v12076
      %v12097 = vadd.f32 %v11875, %v12081
      %v12098 = vadd.f32 %v11876, %v12084
      %v12099 = vld [vmem:[#allocation2 + $0xa0] sm:$0x7]
      %v12100 = vld [vmem:[%s8151] sm:$0xf]
      %v12101 = vld [vmem:[%s8151 + $0x4] sm:$0xf]
      %v12102 = vld [vmem:[%s8151 + $0x8] sm:$0xf]
      %v12103 = vld [vmem:[%s8151 + $0xc] sm:$0xf]
      %v12104 = vld [vmem:[%s8151 + $0x10] sm:$0xf]
      %v12105 = vld [vmem:[%s8151 + $0x14] sm:$0xf]
      %v12106 = vld [vmem:[%s8151 + $0x18] sm:$0xf]
      %v12107 = vld [vmem:[%s8151 + $0x1c] sm:$0xf]
      %v12108 = vld [vmem:[%s8151 + $0x20] sm:$0xf]
      %v12109 = vld [vmem:[%s8151 + $0x24] sm:$0xf]
      %v12110 = vld [vmem:[%s8151 + $0x28] sm:$0xf]
      %v12111 = vld [vmem:[%s8151 + $0x2c] sm:$0xf]
      %v12112 = vld [vmem:[%s8151 + $0x30] sm:$0xf]
      %v12113 = vld [vmem:[%s8151 + $0x34] sm:$0xf]
      %v12114 = vld [vmem:[%s8151 + $0x38] sm:$0xf]
      %v12115 = vld [vmem:[%s8151 + $0x3c] sm:$0xf]
      %v12117 = vunpack.c.l.b16 %v12099
      %v12118 = vpack.c.b16 %v12117, %v12117
      %v12120 = vshrl.u32 %v11932, 16
      %v12122 = vrot.slane %v12120, 2
      %v12123 = vshll.u32 %v11932, 16
      %v12125 = vrot.slane %v12123, 3
      %v12126 = vor.u32 %v12122, %v12125
      %v12128 = vshrl.u32 %v11933, 16
      %v12130 = vrot.slane %v12128, 2
      %v12131 = vshll.u32 %v11933, 16
      %v12133 = vrot.slane %v12131, 3
      %v12134 = vor.u32 %v12130, %v12133
      %v12135 = vsel %vm1733, %v12126, %v12134
      %v12137 = vshrl.u32 %v11934, 16
      %v12139 = vrot.slane %v12137, 2
      %v12140 = vshll.u32 %v11934, 16
      %v12142 = vrot.slane %v12140, 3
      %v12143 = vor.u32 %v12139, %v12142
      %v12144 = vsel %vm1733, %v12134, %v12143
      %v12146 = vshrl.u32 %v11935, 16
      %v12148 = vrot.slane %v12146, 2
      %v12149 = vshll.u32 %v11935, 16
      %v12151 = vrot.slane %v12149, 3
      %v12152 = vor.u32 %v12148, %v12151
      %v12153 = vsel %vm1733, %v12143, %v12152
      %v12155 = vshrl.u32 %v11936, 16
      %v12157 = vrot.slane %v12155, 2
      %v12158 = vshll.u32 %v11936, 16
      %v12160 = vrot.slane %v12158, 3
      %v12161 = vor.u32 %v12157, %v12160
      %v12162 = vsel %vm1733, %v12152, %v12161
      %v12164 = vshrl.u32 %v11937, 16
      %v12166 = vrot.slane %v12164, 2
      %v12167 = vshll.u32 %v11937, 16
      %v12169 = vrot.slane %v12167, 3
      %v12170 = vor.u32 %v12166, %v12169
      %v12171 = vsel %vm1733, %v12161, %v12170
      %v12173 = vshrl.u32 %v12118, 16
      %v12175 = vrot.slane %v12173, 2
      %v12176 = vshll.u32 %v12118, 16
      %v12178 = vrot.slane %v12176, 3
      %v12179 = vor.u32 %v12175, %v12178
      %v12180 = vsel %vm1733, %v12170, %v12179
      %v12203 = vunpack.c.l.b16 %v12100
      %v12204 = vunpack.c.l.b16 %v12101
      %v12205 = vunpack.c.l.b16 %v12102
      %v12206 = vunpack.c.l.b16 %v12103
      %v12207 = vunpack.c.l.b16 %v12104
      %v12208 = vunpack.c.l.b16 %v12105
      %v12209 = vunpack.c.l.b16 %v12106
      %v12210 = vunpack.c.l.b16 %v12107
      %v12211 = vunpack.c.l.b16 %v12108
      %v12212 = vunpack.c.l.b16 %v12109
      %v12213 = vunpack.c.l.b16 %v12110
      %v12214 = vunpack.c.l.b16 %v12111
      %v12215 = vunpack.c.l.b16 %v12112
      %v12216 = vunpack.c.l.b16 %v12113
      %v12217 = vunpack.c.l.b16 %v12114
      %v12218 = vunpack.c.l.b16 %v12115
      %v12219 = vpack.c.b16 %v12204, %v12203
      %v12220 = vpack.c.b16 %v12206, %v12205
      %v12221 = vpack.c.b16 %v12208, %v12207
      %v12222 = vpack.c.b16 %v12210, %v12209
      %v12223 = vpack.c.b16 %v12212, %v12211
      %v12224 = vpack.c.b16 %v12214, %v12213
      %v12225 = vpack.c.b16 %v12216, %v12215
      %v12226 = vpack.c.b16 %v12218, %v12217
      %12235 = vmatprep.subr.bf16.mxu0 0
      %12236 = vmatpush1.bf16.msra.mxu0 %v12219
      %12237 = vmatprep.subr.bf16.mxu0 0
      %12238 = vmatpush1.bf16.msra.mxu0 %v12220
      %12239 = vmatprep.subr.bf16.mxu0 0
      %12240 = vmatpush1.bf16.msra.mxu0 %v12221
      %12241 = vmatprep.subr.bf16.mxu0 0
      %12242 = vmatpush1.bf16.msra.mxu0 %v12222
      %12243 = vmatprep.subr.bf16.mxu0 0
      %12244 = vmatpush1.bf16.msra.mxu0 %v12223
      %12245 = vmatprep.subr.bf16.mxu0 0
      %12246 = vmatpush1.bf16.msra.mxu0 %v12224
      %12247 = vmatprep.subr.bf16.mxu0 0
      %12248 = vmatpush1.bf16.msra.mxu0 %v12225
      %12249 = vmatprep.subr.bf16.mxu0 0
      %12250 = vmatpush1.bf16.msra.mxu0 %v12226
      %12251 = vmatprep.subr.bf16.mxu0 0
      %12252 = vmatpush1.bf16.msra.mxu0 0
      %12253 = vmatprep.subr.bf16.mxu0 0
      %12254 = vmatpush1.bf16.msra.mxu0 0
      %12255 = vmatprep.subr.bf16.mxu0 0
      %12256 = vmatpush1.bf16.msra.mxu0 0
      %12257 = vmatprep.subr.bf16.mxu0 0
      %12258 = vmatpush1.bf16.msra.mxu0 0
      %12259 = vmatprep.subr.bf16.mxu0 0
      %12260 = vmatpush1.bf16.msra.mxu0 0
      %12261 = vmatprep.subr.bf16.mxu0 0
      %12262 = vmatpush1.bf16.msra.mxu0 0
      %12263 = vmatprep.subr.bf16.mxu0 0
      %12264 = vmatpush1.bf16.msra.mxu0 0
      %12265 = vmatprep.subr.bf16.mxu0 0
      %12266 = vmatpush1.bf16.msra.mxu0 0
      %12267 = vmatprep.mubr.bf16.mxu0 0
      %12268 = vmatmul.mubr.bf16.gmra.mrb[0].mxu0 %v12135
      %v12269 = vpop.f32.mrb[0].mxu0
      %v12270 = vadd.f32 0.0, %v12269
      %v12271 = vpop.f32.mrb[0].mxu0
      %v12272 = vpop.f32.mrb[0].mxu0
      %v12273 = vadd.f32 0.0, %v12272
      %v12274 = vpop.f32.mrb[0].mxu0
      %12275 = vmatprep.mubr.bf16.mxu0 0
      %12276 = vmatmul.mubr.bf16.gmra.mrb[0].mxu0 %v12144
      %v12277 = vpop.f32.mrb[0].mxu0
      %v12278 = vadd.f32 0.0, %v12277
      %v12279 = vpop.f32.mrb[0].mxu0
      %v12280 = vpop.f32.mrb[0].mxu0
      %v12281 = vadd.f32 0.0, %v12280
      %v12282 = vpop.f32.mrb[0].mxu0
      %12283 = vmatprep.mubr.bf16.mxu0 0
      %12284 = vmatmul.mubr.bf16.gmra.mrb[0].mxu0 %v12153
      %v12285 = vpop.f32.mrb[0].mxu0
      %v12286 = vadd.f32 0.0, %v12285
      %v12287 = vpop.f32.mrb[0].mxu0
      %v12288 = vpop.f32.mrb[0].mxu0
      %v12289 = vadd.f32 0.0, %v12288
      %v12290 = vpop.f32.mrb[0].mxu0
      %12291 = vmatprep.mubr.bf16.mxu0 0
      %12292 = vmatmul.mubr.bf16.gmra.mrb[0].mxu0 %v12162
      %v12293 = vpop.f32.mrb[0].mxu0
      %v12294 = vadd.f32 0.0, %v12293
      %v12295 = vpop.f32.mrb[0].mxu0
      %v12296 = vpop.f32.mrb[0].mxu0
      %v12297 = vadd.f32 0.0, %v12296
      %v12298 = vpop.f32.mrb[0].mxu0
      %12299 = vmatprep.mubr.bf16.mxu0 0
      %12300 = vmatmul.mubr.bf16.gmra.mrb[0].mxu0 %v12171
      %v12301 = vpop.f32.mrb[0].mxu0
      %v12302 = vadd.f32 0.0, %v12301
      %v12303 = vpop.f32.mrb[0].mxu0
      %v12304 = vpop.f32.mrb[0].mxu0
      %v12305 = vadd.f32 0.0, %v12304
      %v12306 = vpop.f32.mrb[0].mxu0
      %12307 = vmatprep.mubr.bf16.mxu0 0
      %12308 = vmatmul.mubr.bf16.gmra.mrb[0].mxu0 %v12180
      %v12309 = vpop.f32.mrb[0].mxu0
      %v12310 = vadd.f32 0.0, %v12309
      %v12311 = vpop.f32.mrb[0].mxu0
      %v12312 = vpop.f32.mrb[0].mxu0
      %v12313 = vadd.f32 0.0, %v12312
      %v12314 = vpop.f32.mrb[0].mxu0
      %12315 = vdwg.mxu0
      %v12316 = vadd.f32 %v12087, %v12270
      %v12317 = vadd.f32 %v12088, %v12273
      %v12318 = vadd.f32 %v12089, %v12278
      %v12319 = vadd.f32 %v12090, %v12281
      %v12320 = vadd.f32 %v12091, %v12286
      %v12321 = vadd.f32 %v12092, %v12289
      %v12322 = vadd.f32 %v12093, %v12294
      %v12323 = vadd.f32 %v12094, %v12297
      %v12324 = vadd.f32 %v12095, %v12302
      %v12325 = vadd.f32 %v12096, %v12305
      %v12326 = vadd.f32 %v12097, %v12310
      %v12327 = vadd.f32 %v12098, %v12313
      %v12328 = vld [vmem:[#allocation2 + $0x70] sm:$0x8]
      %v12329 = vld [vmem:[%s8381] sm:$0xf]
      %v12330 = vld [vmem:[%s8381 + $0x4] sm:$0xf]
      %v12331 = vld [vmem:[%s8381 + $0x8] sm:$0xf]
      %v12332 = vld [vmem:[%s8381 + $0xc] sm:$0xf]
      %v12333 = vld [vmem:[%s8381 + $0x10] sm:$0xf]
      %v12334 = vld [vmem:[%s8381 + $0x14] sm:$0xf]
      %v12335 = vld [vmem:[%s8381 + $0x18] sm:$0xf]
      %v12336 = vld [vmem:[%s8381 + $0x1c] sm:$0xf]
      %v12337 = vld [vmem:[%s8381 + $0x20] sm:$0xf]
      %v12338 = vld [vmem:[%s8381 + $0x24] sm:$0xf]
      %v12339 = vld [vmem:[%s8381 + $0x28] sm:$0xf]
      %v12340 = vld [vmem:[%s8381 + $0x2c] sm:$0xf]
      %v12341 = vld [vmem:[%s8381 + $0x30] sm:$0xf]
      %v12342 = vld [vmem:[%s8381 + $0x34] sm:$0xf]
      %v12343 = vld [vmem:[%s8381 + $0x38] sm:$0xf]
      %v12344 = vld [vmem:[%s8381 + $0x3c] sm:$0xf]
      %v12346 = vunpack.c.l.b16 %v12328
      %v12347 = vpack.c.b16 %v11920, %v12346
      %v12348 = vrot.slane %v12347, 3
      %v12349 = vrot.slane %v11933, 3
      %v12350 = vsel %vm1964, %v12348, %v12349
      %v12351 = vrot.slane %v11934, 3
      %v12352 = vsel %vm1964, %v12349, %v12351
      %v12353 = vrot.slane %v11935, 3
      %v12354 = vsel %vm1964, %v12351, %v12353
      %v12355 = vrot.slane %v11936, 3
      %v12356 = vsel %vm1964, %v12353, %v12355
      %v12357 = vrot.slane %v11937, 3
      %v12358 = vsel %vm1964, %v12355, %v12357
      %v12359 = vrot.slane %v12118, 3
      %v12360 = vsel %vm1964, %v12357, %v12359
      %v12383 = vunpack.c.l.b16 %v12329
      %v12384 = vunpack.c.l.b16 %v12330
      %v12385 = vunpack.c.l.b16 %v12331
      %v12386 = vunpack.c.l.b16 %v12332
      %v12387 = vunpack.c.l.b16 %v12333
      %v12388 = vunpack.c.l.b16 %v12334
      %v12389 = vunpack.c.l.b16 %v12335
      %v12390 = vunpack.c.l.b16 %v12336
      %v12391 = vunpack.c.l.b16 %v12337
      %v12392 = vunpack.c.l.b16 %v12338
      %v12393 = vunpack.c.l.b16 %v12339
      %v12394 = vunpack.c.l.b16 %v12340
      %v12395 = vunpack.c.l.b16 %v12341
      %v12396 = vunpack.c.l.b16 %v12342
      %v12397 = vunpack.c.l.b16 %v12343
      %v12398 = vunpack.c.l.b16 %v12344
      %v12399 = vpack.c.b16 %v12384, %v12383
      %v12400 = vpack.c.b16 %v12386, %v12385
      %v12401 = vpack.c.b16 %v12388, %v12387
      %v12402 = vpack.c.b16 %v12390, %v12389
      %v12403 = vpack.c.b16 %v12392, %v12391
      %v12404 = vpack.c.b16 %v12394, %v12393
      %v12405 = vpack.c.b16 %v12396, %v12395
      %v12406 = vpack.c.b16 %v12398, %v12397
      %12415 = vmatprep.subr.bf16.mxu0 0
      %12416 = vmatpush1.bf16.msra.mxu0 %v12399
      %12417 = vmatprep.subr.bf16.mxu0 0
      %12418 = vmatpush1.bf16.msra.mxu0 %v12400
      %12419 = vmatprep.subr.bf16.mxu0 0
      %12420 = vmatpush1.bf16.msra.mxu0 %v12401
      %12421 = vmatprep.subr.bf16.mxu0 0
      %12422 = vmatpush1.bf16.msra.mxu0 %v12402
      %12423 = vmatprep.subr.bf16.mxu0 0
      %12424 = vmatpush1.bf16.msra.mxu0 %v12403
      %12425 = vmatprep.subr.bf16.mxu0 0
      %12426 = vmatpush1.bf16.msra.mxu0 %v12404
      %12427 = vmatprep.subr.bf16.mxu0 0
      %12428 = vmatpush1.bf16.msra.mxu0 %v12405
      %12429 = vmatprep.subr.bf16.mxu0 0
      %12430 = vmatpush1.bf16.msra.mxu0 %v12406
      %12431 = vmatprep.subr.bf16.mxu0 0
      %12432 = vmatpush1.bf16.msra.mxu0 0
      %12433 = vmatprep.subr.bf16.mxu0 0
      %12434 = vmatpush1.bf16.msra.mxu0 0
      %12435 = vmatprep.subr.bf16.mxu0 0
      %12436 = vmatpush1.bf16.msra.mxu0 0
      %12437 = vmatprep.subr.bf16.mxu0 0
      %12438 = vmatpush1.bf16.msra.mxu0 0
      %12439 = vmatprep.subr.bf16.mxu0 0
      %12440 = vmatpush1.bf16.msra.mxu0 0
      %12441 = vmatprep.subr.bf16.mxu0 0
      %12442 = vmatpush1.bf16.msra.mxu0 0
      %12443 = vmatprep.subr.bf16.mxu0 0
      %12444 = vmatpush1.bf16.msra.mxu0 0
      %12445 = vmatprep.subr.bf16.mxu0 0
      %12446 = vmatpush1.bf16.msra.mxu0 0
      %12447 = vmatprep.mubr.bf16.mxu0 0
      %12448 = vmatmul.mubr.bf16.gmra.mrb[0].mxu0 %v12350
      %v12449 = vpop.f32.mrb[0].mxu0
      %v12450 = vadd.f32 0.0, %v12449
      %v12451 = vpop.f32.mrb[0].mxu0
      %v12452 = vpop.f32.mrb[0].mxu0
      %v12453 = vadd.f32 0.0, %v12452
      %v12454 = vpop.f32.mrb[0].mxu0
      %12455 = vmatprep.mubr.bf16.mxu0 0
      %12456 = vmatmul.mubr.bf16.gmra.mrb[0].mxu0 %v12352
      %v12457 = vpop.f32.mrb[0].mxu0
      %v12458 = vadd.f32 0.0, %v12457
      %v12459 = vpop.f32.mrb[0].mxu0
      %v12460 = vpop.f32.mrb[0].mxu0
      %v12461 = vadd.f32 0.0, %v12460
      %v12462 = vpop.f32.mrb[0].mxu0
      %12463 = vmatprep.mubr.bf16.mxu0 0
      %12464 = vmatmul.mubr.bf16.gmra.mrb[0].mxu0 %v12354
      %v12465 = vpop.f32.mrb[0].mxu0
      %v12466 = vadd.f32 0.0, %v12465
      %v12467 = vpop.f32.mrb[0].mxu0
      %v12468 = vpop.f32.mrb[0].mxu0
      %v12469 = vadd.f32 0.0, %v12468
      %v12470 = vpop.f32.mrb[0].mxu0
      %12471 = vmatprep.mubr.bf16.mxu0 0
      %12472 = vmatmul.mubr.bf16.gmra.mrb[0].mxu0 %v12356
      %v12473 = vpop.f32.mrb[0].mxu0
      %v12474 = vadd.f32 0.0, %v12473
      %v12475 = vpop.f32.mrb[0].mxu0
      %v12476 = vpop.f32.mrb[0].mxu0
      %v12477 = vadd.f32 0.0, %v12476
      %v12478 = vpop.f32.mrb[0].mxu0
      %12479 = vmatprep.mubr.bf16.mxu0 0
      %12480 = vmatmul.mubr.bf16.gmra.mrb[0].mxu0 %v12358
      %v12481 = vpop.f32.mrb[0].mxu0
      %v12482 = vadd.f32 0.0, %v12481
      %v12483 = vpop.f32.mrb[0].mxu0
      %v12484 = vpop.f32.mrb[0].mxu0
      %v12485 = vadd.f32 0.0, %v12484
      %v12486 = vpop.f32.mrb[0].mxu0
      %12487 = vmatprep.mubr.bf16.mxu0 0
      %12488 = vmatmul.mubr.bf16.gmra.mrb[0].mxu0 %v12360
      %v12489 = vpop.f32.mrb[0].mxu0
      %v12490 = vadd.f32 0.0, %v12489
      %v12491 = vpop.f32.mrb[0].mxu0
      %v12492 = vpop.f32.mrb[0].mxu0
      %v12493 = vadd.f32 0.0, %v12492
      %v12494 = vpop.f32.mrb[0].mxu0
      %12495 = vdwg.mxu0
      %v12496 = vadd.f32 %v12316, %v12450
      %v12497 = vadd.f32 %v12317, %v12453
      %v12498 = vadd.f32 %v12318, %v12458
      %v12499 = vadd.f32 %v12319, %v12461
      %v12500 = vadd.f32 %v12320, %v12466
      %v12501 = vadd.f32 %v12321, %v12469
      %v12502 = vadd.f32 %v12322, %v12474
      %v12503 = vadd.f32 %v12323, %v12477
      %v12504 = vadd.f32 %v12324, %v12482
      %v12505 = vadd.f32 %v12325, %v12485
      %v12506 = vadd.f32 %v12326, %v12490
      %v12507 = vadd.f32 %v12327, %v12493
      %v12508 = vld [vmem:[%s246 + $0x68] sm:$0xe]
      %v12509 = vld [vmem:[%s246 + $0x6c] sm:$0xf]
      %v12510 = vld [vmem:[%s246 + $0x70] sm:$0xf]
      %v12511 = vld [vmem:[%s246 + $0x74] sm:$0xf]
      %v12512 = vld [vmem:[%s246 + $0x78] sm:$0xf]
      %v12513 = vld [vmem:[%s246 + $0x7c] sm:$0xf]
      %v12514 = vld [vmem:[%s246 + $0x80] sm:$0xf]
      %v12515 = vld [vmem:[%s246 + $0x84] sm:$0xf]
      %v12516 = vld [vmem:[%s246 + $0x88] sm:$0xf]
      %v12517 = vld [vmem:[%s246 + $0x8c] sm:$0xf]
      %v12518 = vld [vmem:[%s246 + $0x90] sm:$0xf]
      %v12519 = vld [vmem:[%s246 + $0x94] sm:$0xf]
      %v12520 = vld [vmem:[%s246 + $0x98] sm:$0x3]
      %v12521 = vunpack.c.l.bf16 %v12508
      %v12522 = vunpack.c.l.bf16 %v12509
      %v12523 = vunpack.c.l.bf16 %v12510
      %v12524 = vunpack.c.l.bf16 %v12511
      %v12525 = vunpack.c.l.bf16 %v12512
      %v12526 = vunpack.c.l.bf16 %v12513
      %v12527 = vunpack.c.l.bf16 %v12514
      %v12528 = vunpack.c.l.bf16 %v12515
      %v12529 = vunpack.c.l.bf16 %v12516
      %v12530 = vunpack.c.l.bf16 %v12517
      %v12531 = vunpack.c.l.bf16 %v12518
      %v12532 = vunpack.c.l.bf16 %v12519
      %v12533 = vunpack.c.l.bf16 %v12520
      %v12534 = vld [vmem:[%s5] sm:$0x1]
      %v12536 = vlaneseq
      %v12537 = vshrl.u32 %v12536, 7
      %v12538 = vsub.s32 0, %v12537
      %v12539 = vrot.slane %v12534, %v12538
      %v12541 = vadd.f32 %v12496, %v12539
      %v12542 = vadd.f32 %v12497, %v12539
      %v12543 = vadd.f32 %v12498, %v12539
      %v12544 = vadd.f32 %v12499, %v12539
      %v12545 = vadd.f32 %v12500, %v12539
      %v12546 = vadd.f32 %v12501, %v12539
      %v12547 = vadd.f32 %v12502, %v12539
      %v12548 = vadd.f32 %v12503, %v12539
      %v12549 = vadd.f32 %v12504, %v12539
      %v12550 = vadd.f32 %v12505, %v12539
      %v12551 = vadd.f32 %v12506, %v12539
      %v12552 = vadd.f32 %v12507, %v12539
      %v12566 = vrot.slane %v12521, 3
      %v12567 = vrot.slane %v12522, 3
      %v12568 = vsel %vm8619, %v12566, %v12567
      %v12569 = vrot.slane %v12523, 3
      %v12570 = vsel %vm8619, %v12567, %v12569
      %v12571 = vrot.slane %v12524, 3
      %v12572 = vsel %vm8619, %v12569, %v12571
      %v12573 = vrot.slane %v12525, 3
      %v12574 = vsel %vm8619, %v12571, %v12573
      %v12575 = vrot.slane %v12526, 3
      %v12576 = vsel %vm8619, %v12573, %v12575
      %v12577 = vrot.slane %v12527, 3
      %v12578 = vsel %vm8619, %v12575, %v12577
      %v12579 = vrot.slane %v12528, 3
      %v12580 = vsel %vm8619, %v12577, %v12579
      %v12581 = vrot.slane %v12529, 3
      %v12582 = vsel %vm8619, %v12579, %v12581
      %v12583 = vrot.slane %v12530, 3
      %v12584 = vsel %vm8619, %v12581, %v12583
      %v12585 = vrot.slane %v12531, 3
      %v12586 = vsel %vm8619, %v12583, %v12585
      %v12587 = vrot.slane %v12532, 3
      %v12588 = vsel %vm8619, %v12585, %v12587
      %v12589 = vrot.slane %v12533, 3
      %v12590 = vsel %vm8619, %v12587, %v12589
      %v12603 = vadd.f32 %v12541, %v12568
      %v12604 = vadd.f32 %v12542, %v12570
      %v12605 = vadd.f32 %v12543, %v12572
      %v12606 = vadd.f32 %v12544, %v12574
      %v12607 = vadd.f32 %v12545, %v12576
      %v12608 = vadd.f32 %v12546, %v12578
      %v12609 = vadd.f32 %v12547, %v12580
      %v12610 = vadd.f32 %v12548, %v12582
      %v12611 = vadd.f32 %v12549, %v12584
      %v12612 = vadd.f32 %v12550, %v12586
      %v12613 = vadd.f32 %v12551, %v12588
      %v12614 = vadd.f32 %v12552, %v12590
      %v12615 = vmax.f32 %v12603, 0.0
      %v12616 = vmax.f32 %v12604, 0.0
      %v12617 = vmax.f32 %v12605, 0.0
      %v12618 = vmax.f32 %v12606, 0.0
      %v12619 = vmax.f32 %v12607, 0.0
      %v12620 = vmax.f32 %v12608, 0.0
      %v12621 = vmax.f32 %v12609, 0.0
      %v12622 = vmax.f32 %v12610, 0.0
      %v12623 = vmax.f32 %v12611, 0.0
      %v12624 = vmax.f32 %v12612, 0.0
      %v12625 = vmax.f32 %v12613, 0.0
      %v12626 = vmax.f32 %v12614, 0.0
      %12627 = vst [vmem:[%s251 + $0xc0] sm:$0xff] %v12615
      %12628 = vst [vmem:[%s251 + $0xc8] sm:$0xff] %v12616
      %12629 = vst [vmem:[%s251 + $0xd0] sm:$0xff] %v12617
      %12630 = vst [vmem:[%s251 + $0xd8] sm:$0xff] %v12618
      %12631 = vst [vmem:[%s251 + $0xe0] sm:$0xff] %v12619
      %12632 = vst [vmem:[%s251 + $0xe8] sm:$0xff] %v12620
      %12633 = vst [vmem:[%s251 + $0xf0] sm:$0xff] %v12621
      %12634 = vst [vmem:[%s251 + $0xf8] sm:$0xff] %v12622
      %12635 = vst [vmem:[%s251 + $0x100] sm:$0xff] %v12623
      %12636 = vst [vmem:[%s251 + $0x108] sm:$0xff] %v12624
      %12637 = vst [vmem:[%s251 + $0x110] sm:$0xff] %v12625
      %12638 = vst [vmem:[%s251 + $0x118] sm:$0xff] %v12626
      %p12639 = scmp.lt.s32.totalorder %s17, 1
      %s12640 = scalar_select %p12639, %s17, 1
      %s12641 = smul.addr %s12640, 36
      %s12642 = smul.addr %s12641, 8
      %s12643 = scalar_lea.vmem %s6, %s12642
      // Predicated region
      $region45: #{basic_block_forward.1} parent=43 // pred_check
        %p12644 = pneg %p166
      $region46: #{basic_block_forward.1} parent=43 // pred_check_branch
        %12646 = sbr.rel (%p12644) target = $region48
      $region47: #{basic_block_forward.1} parent=43 // pred_region
        _
      $region48: #{basic_block_forward.1} parent=43 // pred_fallthru
        _
    $region44: #{basic_block_forward.1} parent=5 // pred_fallthru
      _
    %p12647 = scmp.le.s32.totalorder 2, %s12
    // Predicated region
    $region49: #{basic_block_forward.1} parent=5 // pred_check
      %p12648 = pneg %p12647
    $region50: #{basic_block_forward.1} parent=5 // pred_check_branch
      %12650 = sbr.rel (%p12648) target = $region52
    $region51: #{basic_block_forward.1} parent=5 // pred_region
      %s12651 = ssub.s32 %s12, 2
      // Predicated region
      $region53: #{basic_block_forward.1} parent=51 // pred_check
        %p12652 = pneg %p172
      $region54: #{basic_block_forward.1} parent=51 // pred_check_branch
        %12654 = sbr.rel (%p12652) target = $region56
      $region55: #{basic_block_forward.1} parent=51 // pred_region
        %p12655 = scmp.lt.s32.totalorder %s18, 1
        %s12656 = scalar_select %p12655, %s18, 1
        %s12657 = smul.addr %s12656, 36
        %s12658 = smul.addr %s12657, 8
        %s12659 = scalar_lea.vmem %s6, %s12658
      $region56: #{basic_block_forward.1} parent=51 // pred_fallthru
        _
    $region52: #{basic_block_forward.1} parent=5 // pred_fallthru
      _
  $region6: #{basic_block_forward.1} parent=0 // loop_footer
    %s16 = sadd.s32 1, %s12
  $region7: #{basic_block_forward.1} parent=0 // loop_footer_branch
    %11 = sbr.rel target = $region3
  $region8: #{basic_block_forward.1} parent=0 // loop_exit
    _

</llo_original>
